<compile_context>
chip_gen: v6e
topology: v6e:2x2x1
jax: 0.10.0
libtpu: 0.0.40
codegen_flags: <defaults>
</compile_context>

<pallas_src>
import math

import jax
import jax.numpy as jnp
from jax.experimental import pallas as pl
from jax.experimental.pallas import tpu as pltpu

NEG_SLOPE = 0.2      # leaky_relu_negative_slope
NEG_BIG = -1e30      # finite "-inf" for the running max init (never reaches exp args)


def _round_up(x, m):
    return ((x + m - 1) // m) * m


def _pick_tile(n_pad, preferred):
    """Largest multiple of 128 that divides n_pad and is <= preferred (>= 128)."""
    best = 128
    t = 256
    limit = min(preferred, n_pad)
    while t <= limit:
        if n_pad % t == 0:
            best = t
        t += 128
    return best


def _make_gatv2_kernel(n_heads, n_hidden, adj_heads, use_bf16_exp):
    H, Fh = n_heads, n_hidden
    exp_dtype = jnp.bfloat16 if use_bf16_exp else jnp.float32

    def kernel(glT_ref, gri_ref, grj_ref, bl_ref, br_ref, d_ref, adj_ref,
               out_ref, m_sc, l_sc, acc_sc):
        j = pl.program_id(1)

        @pl.when(j == 0)
        def _init():
            m_sc[...] = jnp.full_like(m_sc, NEG_BIG)
            l_sc[...] = jnp.zeros_like(l_sc)
            acc_sc[...] = jnp.zeros_like(acc_sc)

        d = d_ref[...]                                        # [Fh, 1], = c_abs * aw

        # Heads loop inside the kernel (H is small); per-head live state is just
        # the 2-D e tile, so VMEM temporaries stay small even unrolled.
        for h in range(H):
            glT_h = glT_ref[h]                                # [Fh, tj] (j on lanes)
            gri_h = gri_ref[:, h * Fh:(h + 1) * Fh]           # [ti, Fh]
            adj_h = adj_ref[h if adj_heads > 1 else 0]        # [ti, tj] int8

            # e = c_lin*(aw.g_l[j] + aw.g_r[i]) + sum_f c_abs*aw_f*|g_l[j,f]+g_r[i,f]|
            # (exact LeakyReLU decomposition; no 3-D intermediate).
            e = br_ref[h] + bl_ref[h]                         # [ti,1]+[1,tj] -> [ti,tj]
            for f in range(Fh):
                x = glT_h[f:f + 1, :] + gri_h[:, f:f + 1]     # [1,tj]+[ti,1] -> [ti,tj]
                e = e + d[f:f + 1, :] * jnp.abs(x)

            # Online softmax over the j grid axis.  e stays unmasked (shift
            # invariance keeps the result exact); the adjacency mask is applied
            # once to p, which also reproduces nan_to_num for edge-less rows.
            m_prev = m_sc[h]                                  # [ti, 1]
            m_new = jnp.maximum(m_prev, jnp.max(e, axis=1, keepdims=True))
            alpha = jnp.exp(m_prev - m_new)
            p = jnp.exp((e - m_new).astype(exp_dtype))
            p = jnp.where(adj_h != 0, p, jnp.zeros_like(p))
            l_sc[h] = alpha * l_sc[h] + jnp.sum(
                p.astype(jnp.float32), axis=1, keepdims=True)
            acc_sc[h] = alpha * acc_sc[h] + jnp.dot(
                p.astype(jnp.bfloat16),
                grj_ref[:, h * Fh:(h + 1) * Fh].astype(jnp.bfloat16),
                preferred_element_type=jnp.float32)
            m_sc[h] = m_new

        @pl.when(j == pl.num_programs(1) - 1)
        def _finalize():
            pieces = []
            for h in range(H):
                l = l_sc[h]
                l_safe = jnp.where(l > 0.0, l, 1.0)           # fully-masked rows -> 0
                pieces.append(acc_sc[h] * pl.reciprocal(l_safe, approx=True))
            # Single lane-dense store of the whole [ti, H*Fh] tile.
            out_ref[...] = jnp.concatenate(pieces, axis=-1).astype(out_ref.dtype)

    return kernel


def gatv2_forward(h, adj, w_l, w_r, attn_w, n_heads, n_hidden, is_concat=True,
                  block_i=256, block_j=1024, neg_slope=NEG_SLOPE,
                  use_bf16_exp=True):
    """GATv2 forward.

    h: [N, Fin]; adj: [N, N, H] or [N, N, 1] (0/1); w_l/w_r: [Fin, H*Fh];
    attn_w: [1, Fh].  Set use_bf16_exp=False on v5e (no bf16 EUP).
    """
    n_nodes, _ = h.shape
    H, Fh = n_heads, n_hidden
    assert adj.shape[0] == n_nodes and adj.shape[1] == n_nodes
    adj_heads = adj.shape[2]
    assert adj_heads in (1, H)

    # ---- projections (transpose fused into the matmul output layout) --------
    g_lT = jnp.einsum('fk,nf->kn', w_l, h).reshape(H, Fh, n_nodes)   # [H, Fh, N]
    g_r = jnp.dot(h, w_r)                                            # [N, H*Fh]

    aw = attn_w.reshape(Fh).astype(jnp.float32)
    c_lin = 0.5 * (1.0 + neg_slope)       # aw*leaky(z) = c_lin*aw*z + c_abs*aw*|z|
    c_abs = 0.5 * (1.0 - neg_slope)
    bl = c_lin * jnp.einsum('hfn,f->hn', g_lT, aw)                           # [H, N]
    br = c_lin * jnp.einsum('nhf,f->hn', g_r.reshape(n_nodes, H, Fh), aw)    # [H, N]
    d_col = (c_abs * aw).reshape(Fh, 1)                                      # [Fh, 1]

    # Head-major int8 adjacency (4x less DMA than f32).
    # TODO(synk): production callers should store adjacency head-major int8 (or
    # bit-packed for v5e) so this O(H*N^2) transpose/cast pass is not paid per call.
    adj_hm = jnp.transpose(adj, (2, 0, 1)).astype(jnp.int8)          # [Ha, N, N]

    # ---- padding (no full-N block fallback) & tiling -------------------------
    n_pad = _round_up(n_nodes, 128)
    pad = n_pad - n_nodes
    if pad:
        g_lT = jnp.pad(g_lT, ((0, 0), (0, 0), (0, pad)))
        g_r = jnp.pad(g_r, ((0, pad), (0, 0)))
        bl = jnp.pad(bl, ((0, 0), (0, pad)))
        br = jnp.pad(br, ((0, 0), (0, pad)))
        adj_hm = jnp.pad(adj_hm, ((0, 0), (0, pad), (0, pad)))  # zeros -> masked out

    ti = _pick_tile(n_pad, block_i)
    tj = _pick_tile(n_pad, block_j)
    grid = (n_pad // ti, n_pad // tj)   # v7x note: keep the i extent >= 2 when sizing ti

    bl3 = bl.reshape(H, 1, n_pad)
    br3 = br.reshape(H, n_pad, 1)

    kernel = _make_gatv2_kernel(H, Fh, adj_heads, use_bf16_exp)

    out = pl.pallas_call(
        kernel,
        out_shape=jax.ShapeDtypeStruct((n_pad, H * Fh), jnp.float32),
        grid_spec=pltpu.PrefetchScalarGridSpec(
            num_scalar_prefetch=0,
            grid=grid,
            in_specs=[
                pl.BlockSpec((H, Fh, tj), lambda i, j: (0, 0, j)),          # g_l^T (j slice)
                pl.BlockSpec((ti, H * Fh), lambda i, j: (i, 0)),            # g_r   (i slice)
                pl.BlockSpec((tj, H * Fh), lambda i, j: (j, 0)),            # g_r   (j slice)
                pl.BlockSpec((H, 1, tj), lambda i, j: (0, 0, j)),           # bl    (j slice)
                pl.BlockSpec((H, ti, 1), lambda i, j: (0, i, 0)),           # br    (i slice)
                pl.BlockSpec((Fh, 1), lambda i, j: (0, 0)),                 # |.|-term coeffs
                pl.BlockSpec((adj_heads, ti, tj), lambda i, j: (0, i, j)),  # adjacency int8
            ],
            out_specs=pl.BlockSpec((ti, H * Fh), lambda i, j: (i, 0)),
            scratch_shapes=[
                pltpu.VMEM((H, ti, 1), jnp.float32),    # running max m
                pltpu.VMEM((H, ti, 1), jnp.float32),    # running sum l
                pltpu.VMEM((H, ti, Fh), jnp.float32),   # output accumulator
            ],
        ),
        compiler_params=pltpu.CompilerParams(
            dimension_semantics=("parallel", "arbitrary"),
            vmem_limit_bytes=32 * 1024 * 1024,
        ),
    )(g_lT, g_r, g_r, bl3, br3, d_col, adj_hm)

    out = out[:n_nodes]
    if is_concat:
        return out                                   # [N, H*Fh], lane-dense
    return out.reshape(n_nodes, H, Fh).mean(axis=1)
    # TODO(synk): output_att=True extra returns (e, g_sum) not exposed by this wrapper.


def gatv2_reference(h, adj, w_l, w_r, attn_w, n_heads, n_hidden):
    """Pure-JAX f32 mirror of the PyTorch forward (is_concat=True path)."""
    n = h.shape[0]
    g_l = (h @ w_l).reshape(n, n_heads, n_hidden)
    g_r = (h @ w_r).reshape(n, n_heads, n_hidden)
    g_sum = g_l[None, :, :, :] + g_r[:, None, :, :]            # [i, j, h, f]
    act = jnp.where(g_sum >= 0, g_sum, NEG_SLOPE * g_sum)
    e = jnp.einsum('ijhf,f->ijh', act, attn_w[0])
    e = jnp.where(adj == 0, -jnp.inf, e)
    row_max = jnp.max(e, axis=1, keepdims=True)
    p = jnp.exp(e - row_max)
    a = jnp.nan_to_num(p / jnp.sum(p, axis=1, keepdims=True))
    attn_res = jnp.einsum('ijh,jhf->ihf', a, g_r)
    return attn_res.reshape(n, n_heads * n_hidden)


if __name__ == "__main__":
    n_nodes, in_features, out_features, n_heads = 64, 32, 32, 4
    n_hidden = out_features // n_heads  # is_concat=True

    key = jax.random.PRNGKey(0)
    k1, k2, k3, k4, k5 = jax.random.split(key, 5)
    h = jax.random.normal(k1, (n_nodes, in_features), dtype=jnp.float32)
    # Deterministic "linear" weights (share_weights=False): [Fin, H*Fh]
    w_l = 0.1 * jax.random.normal(k2, (in_features, n_heads * n_hidden), jnp.float32)
    w_r = 0.1 * jax.random.normal(k3, (in_features, n_heads * n_hidden), jnp.float32)
    attn_w = 0.1 * jax.random.normal(k4, (1, n_hidden), jnp.float32)
    # Adjacency [N, N, H]; zero node 0's outgoing row to exercise nan_to_num.
    adj = (jax.random.uniform(k5, (n_nodes, n_nodes, n_heads)) > 0.5).astype(jnp.float32)
    adj = adj.at[0, :, :].set(0.0)

    out = gatv2_forward(h, adj, w_l, w_r, attn_w, n_heads, n_hidden, is_concat=True)
    out = jax.block_until_ready(out)

    ref = gatv2_reference(h, adj, w_l, w_r, attn_w, n_heads, n_hidden)
    assert out.shape == (n_nodes, out_features)
    # bf16 exp + bf16 aggregation operands + approx reciprocal -> loose tolerance.
    assert jnp.allclose(out, ref, atol=2e-2, rtol=2e-2), "mismatch vs reference"
    print("KERNEL_OK")
</pallas_src>

<mosaic_0001>
module attributes {stable_mosaic.version = 11 : i64} {
  func.func @kernel(%arg0: i32, %arg1: i32, %arg2: memref<4x8x128xf32, #tpu.memory_space<vmem>>, %arg3: memref<128x32xf32, #tpu.memory_space<vmem>>, %arg4: memref<128x32xf32, #tpu.memory_space<vmem>>, %arg5: memref<4x1x128xf32, #tpu.memory_space<vmem>>, %arg6: memref<4x128x1xf32, #tpu.memory_space<vmem>>, %arg7: memref<8x1xf32, #tpu.memory_space<vmem>>, %arg8: memref<4x128x128xi8, #tpu.memory_space<vmem>>, %arg9: memref<128x32xf32, #tpu.memory_space<vmem>>, %arg10: memref<4x128x1xf32, #tpu.memory_space<vmem>>, %arg11: memref<4x128x1xf32, #tpu.memory_space<vmem>>, %arg12: memref<4x128x8xf32, #tpu.memory_space<vmem>>) attributes {dimension_semantics = [#tpu.dimension_semantics<parallel>, #tpu.dimension_semantics<arbitrary>], iteration_bounds = array<i64: 1, 1>, scalar_prefetch = 0 : i64, scratch_operands = 3 : i64, tpu.core_type = #tpu.core_type<tc>, window_params = [{transform_indices = @transform_0, window_bounds = array<i64: 4, 8, 128>}, {transform_indices = @transform_1, window_bounds = array<i64: 128, 32>}, {transform_indices = @transform_2, window_bounds = array<i64: 128, 32>}, {transform_indices = @transform_3, window_bounds = array<i64: 4, 1, 128>}, {transform_indices = @transform_4, window_bounds = array<i64: 4, 128, 1>}, {pipeline_mode = #tpu.pipeline_mode<synchronous>, transform_indices = @transform_5, window_bounds = array<i64: 8, 1>}, {transform_indices = @transform_6, window_bounds = array<i64: 4, 128, 128>}, {transform_indices = @transform_7, window_bounds = array<i64: 128, 32>}]} {
    %c0_i32 = arith.constant 0 : i32
    %0 = arith.cmpi eq, %arg1, %c0_i32 : i32
    %1 = arith.extui %0 : i1 to i32
    %c0_i32_0 = arith.constant 0 : i32
    %2 = arith.cmpi ne, %1, %c0_i32_0 : i32
    scf.if %2 {
      %cst_152 = arith.constant -1.000000e+30 : f32
      %531 = vector.broadcast %cst_152 : f32 to vector<4x128x1xf32>
      %c0_153 = arith.constant 0 : index
      %c0_154 = arith.constant 0 : index
      %c0_155 = arith.constant 0 : index
      %532 = vector.load %arg10[%c0_153, %c0_154, %c0_155] : memref<4x128x1xf32, #tpu.memory_space<vmem>>, vector<4x128x1xf32>
      tpu.vector_store %arg10[%c0_153, %c0_154, %c0_155], %531 {strides = array<i32>} : memref<4x128x1xf32, #tpu.memory_space<vmem>>, vector<4x128x1xf32>,
      %cst_156 = arith.constant 0.000000e+00 : f32
      %533 = vector.broadcast %cst_156 : f32 to vector<4x128x1xf32>
      %c0_157 = arith.constant 0 : index
      %c0_158 = arith.constant 0 : index
      %c0_159 = arith.constant 0 : index
      %534 = vector.load %arg11[%c0_157, %c0_158, %c0_159] : memref<4x128x1xf32, #tpu.memory_space<vmem>>, vector<4x128x1xf32>
      tpu.vector_store %arg11[%c0_157, %c0_158, %c0_159], %533 {strides = array<i32>} : memref<4x128x1xf32, #tpu.memory_space<vmem>>, vector<4x128x1xf32>,
      %cst_160 = arith.constant 0.000000e+00 : f32
      %535 = vector.broadcast %cst_160 : f32 to vector<4x128x8xf32>
      %c0_161 = arith.constant 0 : index
      %c0_162 = arith.constant 0 : index
      %c0_163 = arith.constant 0 : index
      %536 = vector.load %arg12[%c0_161, %c0_162, %c0_163] : memref<4x128x8xf32, #tpu.memory_space<vmem>>, vector<4x128x8xf32>
      tpu.vector_store %arg12[%c0_161, %c0_162, %c0_163], %535 {strides = array<i32>} : memref<4x128x8xf32, #tpu.memory_space<vmem>>, vector<4x128x8xf32>,
    } else {
    }
    %c0 = arith.constant 0 : index
    %c0_1 = arith.constant 0 : index
    %3 = vector.load %arg7[%c0, %c0_1] : memref<8x1xf32, #tpu.memory_space<vmem>>, vector<8x1xf32>
    %c0_2 = arith.constant 0 : index
    %c0_3 = arith.constant 0 : index
    %c0_4 = arith.constant 0 : index
    %4 = vector.load %arg2[%c0_2, %c0_3, %c0_4] : memref<4x8x128xf32, #tpu.memory_space<vmem>>, vector<1x8x128xf32>
    %5 = vector.shape_cast %4 : vector<1x8x128xf32> to vector<8x128xf32>
    %c0_5 = arith.constant 0 : index
    %c0_6 = arith.constant 0 : index
    %6 = vector.load %arg3[%c0_5, %c0_6] : memref<128x32xf32, #tpu.memory_space<vmem>>, vector<128x8xf32>
    %c0_7 = arith.constant 0 : index
    %c0_8 = arith.constant 0 : index
    %c0_9 = arith.constant 0 : index
    %7 = vector.load %arg8[%c0_7, %c0_8, %c0_9] : memref<4x128x128xi8, #tpu.memory_space<vmem>>, vector<1x128x128xi8>
    %8 = vector.shape_cast %7 : vector<1x128x128xi8> to vector<128x128xi8>
    %c0_10 = arith.constant 0 : index
    %c0_11 = arith.constant 0 : index
    %c0_12 = arith.constant 0 : index
    %9 = vector.load %arg6[%c0_10, %c0_11, %c0_12] : memref<4x128x1xf32, #tpu.memory_space<vmem>>, vector<1x128x1xf32>
    %10 = vector.shape_cast %9 : vector<1x128x1xf32> to vector<128x1xf32>
    %c0_13 = arith.constant 0 : index
    %c0_14 = arith.constant 0 : index
    %c0_15 = arith.constant 0 : index
    %11 = vector.load %arg5[%c0_13, %c0_14, %c0_15] : memref<4x1x128xf32, #tpu.memory_space<vmem>>, vector<1x1x128xf32>
    %12 = vector.shape_cast %11 : vector<1x1x128xf32> to vector<1x128xf32>
    %13 = vector.broadcast %10 : vector<128x1xf32> to vector<128x128xf32>
    %14 = vector.broadcast %12 : vector<1x128xf32> to vector<128x128xf32>
    %15 = arith.addf %13, %14 : vector<128x128xf32>
    %16 = vector.extract_strided_slice %5 {offsets = [0, 0], sizes = [1, 128], strides = [1, 1]} : vector<8x128xf32> to vector<1x128xf32>
    %17 = vector.extract_strided_slice %6 {offsets = [0, 0], sizes = [128, 1], strides = [1, 1]} : vector<128x8xf32> to vector<128x1xf32>
    %18 = vector.broadcast %16 : vector<1x128xf32> to vector<128x128xf32>
    %19 = vector.broadcast %17 : vector<128x1xf32> to vector<128x128xf32>
    %20 = arith.addf %18, %19 : vector<128x128xf32>
    %21 = vector.extract_strided_slice %3 {offsets = [0, 0], sizes = [1, 1], strides = [1, 1]} : vector<8x1xf32> to vector<1x1xf32>
    %22 = math.absf %20 : vector<128x128xf32>
    %23 = vector.broadcast %21 : vector<1x1xf32> to vector<128x128xf32>
    %24 = arith.mulf %23, %22 : vector<128x128xf32>
    %25 = arith.addf %15, %24 : vector<128x128xf32>
    %26 = vector.extract_strided_slice %5 {offsets = [1, 0], sizes = [1, 128], strides = [1, 1]} : vector<8x128xf32> to vector<1x128xf32>
    %27 = vector.extract_strided_slice %6 {offsets = [0, 1], sizes = [128, 1], strides = [1, 1]} : vector<128x8xf32> to vector<128x1xf32>
    %28 = vector.broadcast %26 : vector<1x128xf32> to vector<128x128xf32>
    %29 = vector.broadcast %27 : vector<128x1xf32> to vector<128x128xf32>
    %30 = arith.addf %28, %29 : vector<128x128xf32>
    %31 = vector.extract_strided_slice %3 {offsets = [1, 0], sizes = [1, 1], strides = [1, 1]} : vector<8x1xf32> to vector<1x1xf32>
    %32 = math.absf %30 : vector<128x128xf32>
    %33 = vector.broadcast %31 : vector<1x1xf32> to vector<128x128xf32>
    %34 = arith.mulf %33, %32 : vector<128x128xf32>
    %35 = arith.addf %25, %34 : vector<128x128xf32>
    %36 = vector.extract_strided_slice %5 {offsets = [2, 0], sizes = [1, 128], strides = [1, 1]} : vector<8x128xf32> to vector<1x128xf32>
    %37 = vector.extract_strided_slice %6 {offsets = [0, 2], sizes = [128, 1], strides = [1, 1]} : vector<128x8xf32> to vector<128x1xf32>
    %38 = vector.broadcast %36 : vector<1x128xf32> to vector<128x128xf32>
    %39 = vector.broadcast %37 : vector<128x1xf32> to vector<128x128xf32>
    %40 = arith.addf %38, %39 : vector<128x128xf32>
    %41 = vector.extract_strided_slice %3 {offsets = [2, 0], sizes = [1, 1], strides = [1, 1]} : vector<8x1xf32> to vector<1x1xf32>
    %42 = math.absf %40 : vector<128x128xf32>
    %43 = vector.broadcast %41 : vector<1x1xf32> to vector<128x128xf32>
    %44 = arith.mulf %43, %42 : vector<128x128xf32>
    %45 = arith.addf %35, %44 : vector<128x128xf32>
    %46 = vector.extract_strided_slice %5 {offsets = [3, 0], sizes = [1, 128], strides = [1, 1]} : vector<8x128xf32> to vector<1x128xf32>
    %47 = vector.extract_strided_slice %6 {offsets = [0, 3], sizes = [128, 1], strides = [1, 1]} : vector<128x8xf32> to vector<128x1xf32>
    %48 = vector.broadcast %46 : vector<1x128xf32> to vector<128x128xf32>
    %49 = vector.broadcast %47 : vector<128x1xf32> to vector<128x128xf32>
    %50 = arith.addf %48, %49 : vector<128x128xf32>
    %51 = vector.extract_strided_slice %3 {offsets = [3, 0], sizes = [1, 1], strides = [1, 1]} : vector<8x1xf32> to vector<1x1xf32>
    %52 = math.absf %50 : vector<128x128xf32>
    %53 = vector.broadcast %51 : vector<1x1xf32> to vector<128x128xf32>
    %54 = arith.mulf %53, %52 : vector<128x128xf32>
    %55 = arith.addf %45, %54 : vector<128x128xf32>
    %56 = vector.extract_strided_slice %5 {offsets = [4, 0], sizes = [1, 128], strides = [1, 1]} : vector<8x128xf32> to vector<1x128xf32>
    %57 = vector.extract_strided_slice %6 {offsets = [0, 4], sizes = [128, 1], strides = [1, 1]} : vector<128x8xf32> to vector<128x1xf32>
    %58 = vector.broadcast %56 : vector<1x128xf32> to vector<128x128xf32>
    %59 = vector.broadcast %57 : vector<128x1xf32> to vector<128x128xf32>
    %60 = arith.addf %58, %59 : vector<128x128xf32>
    %61 = vector.extract_strided_slice %3 {offsets = [4, 0], sizes = [1, 1], strides = [1, 1]} : vector<8x1xf32> to vector<1x1xf32>
    %62 = math.absf %60 : vector<128x128xf32>
    %63 = vector.broadcast %61 : vector<1x1xf32> to vector<128x128xf32>
    %64 = arith.mulf %63, %62 : vector<128x128xf32>
    %65 = arith.addf %55, %64 : vector<128x128xf32>
    %66 = vector.extract_strided_slice %5 {offsets = [5, 0], sizes = [1, 128], strides = [1, 1]} : vector<8x128xf32> to vector<1x128xf32>
    %67 = vector.extract_strided_slice %6 {offsets = [0, 5], sizes = [128, 1], strides = [1, 1]} : vector<128x8xf32> to vector<128x1xf32>
    %68 = vector.broadcast %66 : vector<1x128xf32> to vector<128x128xf32>
    %69 = vector.broadcast %67 : vector<128x1xf32> to vector<128x128xf32>
    %70 = arith.addf %68, %69 : vector<128x128xf32>
    %71 = vector.extract_strided_slice %3 {offsets = [5, 0], sizes = [1, 1], strides = [1, 1]} : vector<8x1xf32> to vector<1x1xf32>
    %72 = math.absf %70 : vector<128x128xf32>
    %73 = vector.broadcast %71 : vector<1x1xf32> to vector<128x128xf32>
    %74 = arith.mulf %73, %72 : vector<128x128xf32>
    %75 = arith.addf %65, %74 : vector<128x128xf32>
    %76 = vector.extract_strided_slice %5 {offsets = [6, 0], sizes = [1, 128], strides = [1, 1]} : vector<8x128xf32> to vector<1x128xf32>
    %77 = vector.extract_strided_slice %6 {offsets = [0, 6], sizes = [128, 1], strides = [1, 1]} : vector<128x8xf32> to vector<128x1xf32>
    %78 = vector.broadcast %76 : vector<1x128xf32> to vector<128x128xf32>
    %79 = vector.broadcast %77 : vector<128x1xf32> to vector<128x128xf32>
    %80 = arith.addf %78, %79 : vector<128x128xf32>
    %81 = vector.extract_strided_slice %3 {offsets = [6, 0], sizes = [1, 1], strides = [1, 1]} : vector<8x1xf32> to vector<1x1xf32>
    %82 = math.absf %80 : vector<128x128xf32>
    %83 = vector.broadcast %81 : vector<1x1xf32> to vector<128x128xf32>
    %84 = arith.mulf %83, %82 : vector<128x128xf32>
    %85 = arith.addf %75, %84 : vector<128x128xf32>
    %86 = vector.extract_strided_slice %5 {offsets = [7, 0], sizes = [1, 128], strides = [1, 1]} : vector<8x128xf32> to vector<1x128xf32>
    %87 = vector.extract_strided_slice %6 {offsets = [0, 7], sizes = [128, 1], strides = [1, 1]} : vector<128x8xf32> to vector<128x1xf32>
    %88 = vector.broadcast %86 : vector<1x128xf32> to vector<128x128xf32>
    %89 = vector.broadcast %87 : vector<128x1xf32> to vector<128x128xf32>
    %90 = arith.addf %88, %89 : vector<128x128xf32>
    %91 = vector.extract_strided_slice %3 {offsets = [7, 0], sizes = [1, 1], strides = [1, 1]} : vector<8x1xf32> to vector<1x1xf32>
    %92 = math.absf %90 : vector<128x128xf32>
    %93 = vector.broadcast %91 : vector<1x1xf32> to vector<128x128xf32>
    %94 = arith.mulf %93, %92 : vector<128x128xf32>
    %95 = arith.addf %85, %94 : vector<128x128xf32>
    %c0_16 = arith.constant 0 : index
    %c0_17 = arith.constant 0 : index
    %c0_18 = arith.constant 0 : index
    %96 = vector.load %arg10[%c0_16, %c0_17, %c0_18] : memref<4x128x1xf32, #tpu.memory_space<vmem>>, vector<1x128x1xf32>
    %97 = vector.shape_cast %96 : vector<1x128x1xf32> to vector<128x1xf32>
    %cst = arith.constant dense<0xFF800000> : vector<128xf32>
    %98 = vector.multi_reduction <maximumf>, %95, %cst [1] : vector<128x128xf32> to vector<128xf32>
    %99 = vector.shape_cast %98 : vector<128xf32> to vector<128x1xf32>
    %100 = arith.maximumf %97, %99 : vector<128x1xf32>
    %101 = arith.subf %97, %100 : vector<128x1xf32>
    %102 = math.exp %101 : vector<128x1xf32>
    %103 = vector.broadcast %100 : vector<128x1xf32> to vector<128x128xf32>
    %104 = arith.subf %95, %103 : vector<128x128xf32>
    %105 = arith.truncf %104 : vector<128x128xf32> to vector<128x128xbf16>
    %106 = math.exp %105 : vector<128x128xbf16>
    %c0_i8 = arith.constant 0 : i8
    %107 = vector.broadcast %c0_i8 : i8 to vector<128x128xi8>
    %108 = arith.cmpi ne, %8, %107 : vector<128x128xi8>
    %cst_19 = arith.constant 0.000000e+00 : bf16
    %109 = vector.broadcast %cst_19 : bf16 to vector<128x128xbf16>
    %110 = arith.select %108, %106, %109 : vector<128x128xi1>, vector<128x128xbf16>
    %c0_20 = arith.constant 0 : index
    %c0_21 = arith.constant 0 : index
    %c0_22 = arith.constant 0 : index
    %111 = vector.load %arg11[%c0_20, %c0_21, %c0_22] : memref<4x128x1xf32, #tpu.memory_space<vmem>>, vector<1x128x1xf32>
    %112 = vector.shape_cast %111 : vector<1x128x1xf32> to vector<128x1xf32>
    %113 = arith.mulf %102, %112 : vector<128x1xf32>
    %114 = arith.extf %110 : vector<128x128xbf16> to vector<128x128xf32>
    %cst_23 = arith.constant dense<0.000000e+00> : vector<128xf32>
    %115 = vector.multi_reduction <add>, %114, %cst_23 [1] : vector<128x128xf32> to vector<128xf32>
    %116 = vector.shape_cast %115 : vector<128xf32> to vector<128x1xf32>
    %117 = arith.addf %113, %116 : vector<128x1xf32>
    %c0_24 = arith.constant 0 : index
    %c0_25 = arith.constant 0 : index
    %c0_26 = arith.constant 0 : index
    %118 = vector.load %arg11[%c0_24, %c0_25, %c0_26] : memref<4x128x1xf32, #tpu.memory_space<vmem>>, vector<1x128x1xf32>
    %119 = vector.shape_cast %118 : vector<1x128x1xf32> to vector<128x1xf32>
    %120 = vector.shape_cast %117 : vector<128x1xf32> to vector<1x128x1xf32>
    tpu.vector_store %arg11[%c0_24, %c0_25, %c0_26], %120 {strides = array<i32>} : memref<4x128x1xf32, #tpu.memory_space<vmem>>, vector<1x128x1xf32>,
    %c0_27 = arith.constant 0 : index
    %c0_28 = arith.constant 0 : index
    %c0_29 = arith.constant 0 : index
    %121 = vector.load %arg12[%c0_27, %c0_28, %c0_29] : memref<4x128x8xf32, #tpu.memory_space<vmem>>, vector<1x128x8xf32>
    %122 = vector.shape_cast %121 : vector<1x128x8xf32> to vector<128x8xf32>
    %123 = vector.broadcast %102 : vector<128x1xf32> to vector<128x8xf32>
    %124 = arith.mulf %123, %122 : vector<128x8xf32>
    %c0_30 = arith.constant 0 : index
    %c0_31 = arith.constant 0 : index
    %125 = vector.load %arg4[%c0_30, %c0_31] : memref<128x32xf32, #tpu.memory_space<vmem>>, vector<128x8xf32>
    %126 = arith.truncf %125 : vector<128x8xf32> to vector<128x8xbf16>
    %cst_32 = arith.constant dense<0.000000e+00> : vector<128x8xf32>
    %127 = tpu.matmul %110, %126, %cst_32 {dimension_numbers = #tpu.dot_dimension_numbers<[1], [0], [0], [1], [0, 0, 1, 1], [], []>} : vector<128x128xbf16>, vector<128x8xbf16>, vector<128x8xf32> -> vector<128x8xf32>
    %128 = arith.addf %124, %127 : vector<128x8xf32>
    %c0_33 = arith.constant 0 : index
    %c0_34 = arith.constant 0 : index
    %c0_35 = arith.constant 0 : index
    %129 = vector.load %arg12[%c0_33, %c0_34, %c0_35] : memref<4x128x8xf32, #tpu.memory_space<vmem>>, vector<1x128x8xf32>
    %130 = vector.shape_cast %129 : vector<1x128x8xf32> to vector<128x8xf32>
    %131 = vector.shape_cast %128 : vector<128x8xf32> to vector<1x128x8xf32>
    tpu.vector_store %arg12[%c0_33, %c0_34, %c0_35], %131 {strides = array<i32>} : memref<4x128x8xf32, #tpu.memory_space<vmem>>, vector<1x128x8xf32>,
    %c0_36 = arith.constant 0 : index
    %c0_37 = arith.constant 0 : index
    %c0_38 = arith.constant 0 : index
    %132 = vector.load %arg10[%c0_36, %c0_37, %c0_38] : memref<4x128x1xf32, #tpu.memory_space<vmem>>, vector<1x128x1xf32>
    %133 = vector.shape_cast %132 : vector<1x128x1xf32> to vector<128x1xf32>
    %134 = vector.shape_cast %100 : vector<128x1xf32> to vector<1x128x1xf32>
    tpu.vector_store %arg10[%c0_36, %c0_37, %c0_38], %134 {strides = array<i32>} : memref<4x128x1xf32, #tpu.memory_space<vmem>>, vector<1x128x1xf32>,
    %c1 = arith.constant 1 : index
    %c0_39 = arith.constant 0 : index
    %c0_40 = arith.constant 0 : index
    %135 = vector.load %arg2[%c1, %c0_39, %c0_40] : memref<4x8x128xf32, #tpu.memory_space<vmem>>, vector<1x8x128xf32>
    %136 = vector.shape_cast %135 : vector<1x8x128xf32> to vector<8x128xf32>
    %c0_41 = arith.constant 0 : index
    %c8 = arith.constant 8 : index
    %137 = vector.load %arg3[%c0_41, %c8] : memref<128x32xf32, #tpu.memory_space<vmem>>, vector<128x8xf32>
    %c1_42 = arith.constant 1 : index
    %c0_43 = arith.constant 0 : index
    %c0_44 = arith.constant 0 : index
    %138 = vector.load %arg8[%c1_42, %c0_43, %c0_44] : memref<4x128x128xi8, #tpu.memory_space<vmem>>, vector<1x128x128xi8>
    %139 = vector.shape_cast %138 : vector<1x128x128xi8> to vector<128x128xi8>
    %c1_45 = arith.constant 1 : index
    %c0_46 = arith.constant 0 : index
    %c0_47 = arith.constant 0 : index
    %140 = vector.load %arg6[%c1_45, %c0_46, %c0_47] : memref<4x128x1xf32, #tpu.memory_space<vmem>>, vector<1x128x1xf32>
    %141 = vector.shape_cast %140 : vector<1x128x1xf32> to vector<128x1xf32>
    %c1_48 = arith.constant 1 : index
    %c0_49 = arith.constant 0 : index
    %c0_50 = arith.constant 0 : index
    %142 = vector.load %arg5[%c1_48, %c0_49, %c0_50] : memref<4x1x128xf32, #tpu.memory_space<vmem>>, vector<1x1x128xf32>
    %143 = vector.shape_cast %142 : vector<1x1x128xf32> to vector<1x128xf32>
    %144 = vector.broadcast %141 : vector<128x1xf32> to vector<128x128xf32>
    %145 = vector.broadcast %143 : vector<1x128xf32> to vector<128x128xf32>
    %146 = arith.addf %144, %145 : vector<128x128xf32>
    %147 = vector.extract_strided_slice %136 {offsets = [0, 0], sizes = [1, 128], strides = [1, 1]} : vector<8x128xf32> to vector<1x128xf32>
    %148 = vector.extract_strided_slice %137 {offsets = [0, 0], sizes = [128, 1], strides = [1, 1]} : vector<128x8xf32> to vector<128x1xf32>
    %149 = vector.broadcast %147 : vector<1x128xf32> to vector<128x128xf32>
    %150 = vector.broadcast %148 : vector<128x1xf32> to vector<128x128xf32>
    %151 = arith.addf %149, %150 : vector<128x128xf32>
    %152 = vector.extract_strided_slice %3 {offsets = [0, 0], sizes = [1, 1], strides = [1, 1]} : vector<8x1xf32> to vector<1x1xf32>
    %153 = math.absf %151 : vector<128x128xf32>
    %154 = vector.broadcast %152 : vector<1x1xf32> to vector<128x128xf32>
    %155 = arith.mulf %154, %153 : vector<128x128xf32>
    %156 = arith.addf %146, %155 : vector<128x128xf32>
    %157 = vector.extract_strided_slice %136 {offsets = [1, 0], sizes = [1, 128], strides = [1, 1]} : vector<8x128xf32> to vector<1x128xf32>
    %158 = vector.extract_strided_slice %137 {offsets = [0, 1], sizes = [128, 1], strides = [1, 1]} : vector<128x8xf32> to vector<128x1xf32>
    %159 = vector.broadcast %157 : vector<1x128xf32> to vector<128x128xf32>
    %160 = vector.broadcast %158 : vector<128x1xf32> to vector<128x128xf32>
    %161 = arith.addf %159, %160 : vector<128x128xf32>
    %162 = vector.extract_strided_slice %3 {offsets = [1, 0], sizes = [1, 1], strides = [1, 1]} : vector<8x1xf32> to vector<1x1xf32>
    %163 = math.absf %161 : vector<128x128xf32>
    %164 = vector.broadcast %162 : vector<1x1xf32> to vector<128x128xf32>
    %165 = arith.mulf %164, %163 : vector<128x128xf32>
    %166 = arith.addf %156, %165 : vector<128x128xf32>
    %167 = vector.extract_strided_slice %136 {offsets = [2, 0], sizes = [1, 128], strides = [1, 1]} : vector<8x128xf32> to vector<1x128xf32>
    %168 = vector.extract_strided_slice %137 {offsets = [0, 2], sizes = [128, 1], strides = [1, 1]} : vector<128x8xf32> to vector<128x1xf32>
    %169 = vector.broadcast %167 : vector<1x128xf32> to vector<128x128xf32>
    %170 = vector.broadcast %168 : vector<128x1xf32> to vector<128x128xf32>
    %171 = arith.addf %169, %170 : vector<128x128xf32>
    %172 = vector.extract_strided_slice %3 {offsets = [2, 0], sizes = [1, 1], strides = [1, 1]} : vector<8x1xf32> to vector<1x1xf32>
    %173 = math.absf %171 : vector<128x128xf32>
    %174 = vector.broadcast %172 : vector<1x1xf32> to vector<128x128xf32>
    %175 = arith.mulf %174, %173 : vector<128x128xf32>
    %176 = arith.addf %166, %175 : vector<128x128xf32>
    %177 = vector.extract_strided_slice %136 {offsets = [3, 0], sizes = [1, 128], strides = [1, 1]} : vector<8x128xf32> to vector<1x128xf32>
    %178 = vector.extract_strided_slice %137 {offsets = [0, 3], sizes = [128, 1], strides = [1, 1]} : vector<128x8xf32> to vector<128x1xf32>
    %179 = vector.broadcast %177 : vector<1x128xf32> to vector<128x128xf32>
    %180 = vector.broadcast %178 : vector<128x1xf32> to vector<128x128xf32>
    %181 = arith.addf %179, %180 : vector<128x128xf32>
    %182 = vector.extract_strided_slice %3 {offsets = [3, 0], sizes = [1, 1], strides = [1, 1]} : vector<8x1xf32> to vector<1x1xf32>
    %183 = math.absf %181 : vector<128x128xf32>
    %184 = vector.broadcast %182 : vector<1x1xf32> to vector<128x128xf32>
    %185 = arith.mulf %184, %183 : vector<128x128xf32>
    %186 = arith.addf %176, %185 : vector<128x128xf32>
    %187 = vector.extract_strided_slice %136 {offsets = [4, 0], sizes = [1, 128], strides = [1, 1]} : vector<8x128xf32> to vector<1x128xf32>
    %188 = vector.extract_strided_slice %137 {offsets = [0, 4], sizes = [128, 1], strides = [1, 1]} : vector<128x8xf32> to vector<128x1xf32>
    %189 = vector.broadcast %187 : vector<1x128xf32> to vector<128x128xf32>
    %190 = vector.broadcast %188 : vector<128x1xf32> to vector<128x128xf32>
    %191 = arith.addf %189, %190 : vector<128x128xf32>
    %192 = vector.extract_strided_slice %3 {offsets = [4, 0], sizes = [1, 1], strides = [1, 1]} : vector<8x1xf32> to vector<1x1xf32>
    %193 = math.absf %191 : vector<128x128xf32>
    %194 = vector.broadcast %192 : vector<1x1xf32> to vector<128x128xf32>
    %195 = arith.mulf %194, %193 : vector<128x128xf32>
    %196 = arith.addf %186, %195 : vector<128x128xf32>
    %197 = vector.extract_strided_slice %136 {offsets = [5, 0], sizes = [1, 128], strides = [1, 1]} : vector<8x128xf32> to vector<1x128xf32>
    %198 = vector.extract_strided_slice %137 {offsets = [0, 5], sizes = [128, 1], strides = [1, 1]} : vector<128x8xf32> to vector<128x1xf32>
    %199 = vector.broadcast %197 : vector<1x128xf32> to vector<128x128xf32>
    %200 = vector.broadcast %198 : vector<128x1xf32> to vector<128x128xf32>
    %201 = arith.addf %199, %200 : vector<128x128xf32>
    %202 = vector.extract_strided_slice %3 {offsets = [5, 0], sizes = [1, 1], strides = [1, 1]} : vector<8x1xf32> to vector<1x1xf32>
    %203 = math.absf %201 : vector<128x128xf32>
    %204 = vector.broadcast %202 : vector<1x1xf32> to vector<128x128xf32>
    %205 = arith.mulf %204, %203 : vector<128x128xf32>
    %206 = arith.addf %196, %205 : vector<128x128xf32>
    %207 = vector.extract_strided_slice %136 {offsets = [6, 0], sizes = [1, 128], strides = [1, 1]} : vector<8x128xf32> to vector<1x128xf32>
    %208 = vector.extract_strided_slice %137 {offsets = [0, 6], sizes = [128, 1], strides = [1, 1]} : vector<128x8xf32> to vector<128x1xf32>
    %209 = vector.broadcast %207 : vector<1x128xf32> to vector<128x128xf32>
    %210 = vector.broadcast %208 : vector<128x1xf32> to vector<128x128xf32>
    %211 = arith.addf %209, %210 : vector<128x128xf32>
    %212 = vector.extract_strided_slice %3 {offsets = [6, 0], sizes = [1, 1], strides = [1, 1]} : vector<8x1xf32> to vector<1x1xf32>
    %213 = math.absf %211 : vector<128x128xf32>
    %214 = vector.broadcast %212 : vector<1x1xf32> to vector<128x128xf32>
    %215 = arith.mulf %214, %213 : vector<128x128xf32>
    %216 = arith.addf %206, %215 : vector<128x128xf32>
    %217 = vector.extract_strided_slice %136 {offsets = [7, 0], sizes = [1, 128], strides = [1, 1]} : vector<8x128xf32> to vector<1x128xf32>
    %218 = vector.extract_strided_slice %137 {offsets = [0, 7], sizes = [128, 1], strides = [1, 1]} : vector<128x8xf32> to vector<128x1xf32>
    %219 = vector.broadcast %217 : vector<1x128xf32> to vector<128x128xf32>
    %220 = vector.broadcast %218 : vector<128x1xf32> to vector<128x128xf32>
    %221 = arith.addf %219, %220 : vector<128x128xf32>
    %222 = vector.extract_strided_slice %3 {offsets = [7, 0], sizes = [1, 1], strides = [1, 1]} : vector<8x1xf32> to vector<1x1xf32>
    %223 = math.absf %221 : vector<128x128xf32>
    %224 = vector.broadcast %222 : vector<1x1xf32> to vector<128x128xf32>
    %225 = arith.mulf %224, %223 : vector<128x128xf32>
    %226 = arith.addf %216, %225 : vector<128x128xf32>
    %c1_51 = arith.constant 1 : index
    %c0_52 = arith.constant 0 : index
    %c0_53 = arith.constant 0 : index
    %227 = vector.load %arg10[%c1_51, %c0_52, %c0_53] : memref<4x128x1xf32, #tpu.memory_space<vmem>>, vector<1x128x1xf32>
    %228 = vector.shape_cast %227 : vector<1x128x1xf32> to vector<128x1xf32>
    %cst_54 = arith.constant dense<0xFF800000> : vector<128xf32>
    %229 = vector.multi_reduction <maximumf>, %226, %cst_54 [1] : vector<128x128xf32> to vector<128xf32>
    %230 = vector.shape_cast %229 : vector<128xf32> to vector<128x1xf32>
    %231 = arith.maximumf %228, %230 : vector<128x1xf32>
    %232 = arith.subf %228, %231 : vector<128x1xf32>
    %233 = math.exp %232 : vector<128x1xf32>
    %234 = vector.broadcast %231 : vector<128x1xf32> to vector<128x128xf32>
    %235 = arith.subf %226, %234 : vector<128x128xf32>
    %236 = arith.truncf %235 : vector<128x128xf32> to vector<128x128xbf16>
    %237 = math.exp %236 : vector<128x128xbf16>
    %c0_i8_55 = arith.constant 0 : i8
    %238 = vector.broadcast %c0_i8_55 : i8 to vector<128x128xi8>
    %239 = arith.cmpi ne, %139, %238 : vector<128x128xi8>
    %cst_56 = arith.constant 0.000000e+00 : bf16
    %240 = vector.broadcast %cst_56 : bf16 to vector<128x128xbf16>
    %241 = arith.select %239, %237, %240 : vector<128x128xi1>, vector<128x128xbf16>
    %c1_57 = arith.constant 1 : index
    %c0_58 = arith.constant 0 : index
    %c0_59 = arith.constant 0 : index
    %242 = vector.load %arg11[%c1_57, %c0_58, %c0_59] : memref<4x128x1xf32, #tpu.memory_space<vmem>>, vector<1x128x1xf32>
    %243 = vector.shape_cast %242 : vector<1x128x1xf32> to vector<128x1xf32>
    %244 = arith.mulf %233, %243 : vector<128x1xf32>
    %245 = arith.extf %241 : vector<128x128xbf16> to vector<128x128xf32>
    %cst_60 = arith.constant dense<0.000000e+00> : vector<128xf32>
    %246 = vector.multi_reduction <add>, %245, %cst_60 [1] : vector<128x128xf32> to vector<128xf32>
    %247 = vector.shape_cast %246 : vector<128xf32> to vector<128x1xf32>
    %248 = arith.addf %244, %247 : vector<128x1xf32>
    %c1_61 = arith.constant 1 : index
    %c0_62 = arith.constant 0 : index
    %c0_63 = arith.constant 0 : index
    %249 = vector.load %arg11[%c1_61, %c0_62, %c0_63] : memref<4x128x1xf32, #tpu.memory_space<vmem>>, vector<1x128x1xf32>
    %250 = vector.shape_cast %249 : vector<1x128x1xf32> to vector<128x1xf32>
    %251 = vector.shape_cast %248 : vector<128x1xf32> to vector<1x128x1xf32>
    tpu.vector_store %arg11[%c1_61, %c0_62, %c0_63], %251 {strides = array<i32>} : memref<4x128x1xf32, #tpu.memory_space<vmem>>, vector<1x128x1xf32>,
    %c1_64 = arith.constant 1 : index
    %c0_65 = arith.constant 0 : index
    %c0_66 = arith.constant 0 : index
    %252 = vector.load %arg12[%c1_64, %c0_65, %c0_66] : memref<4x128x8xf32, #tpu.memory_space<vmem>>, vector<1x128x8xf32>
    %253 = vector.shape_cast %252 : vector<1x128x8xf32> to vector<128x8xf32>
    %254 = vector.broadcast %233 : vector<128x1xf32> to vector<128x8xf32>
    %255 = arith.mulf %254, %253 : vector<128x8xf32>
    %c0_67 = arith.constant 0 : index
    %c8_68 = arith.constant 8 : index
    %256 = vector.load %arg4[%c0_67, %c8_68] : memref<128x32xf32, #tpu.memory_space<vmem>>, vector<128x8xf32>
    %257 = arith.truncf %256 : vector<128x8xf32> to vector<128x8xbf16>
    %cst_69 = arith.constant dense<0.000000e+00> : vector<128x8xf32>
    %258 = tpu.matmul %241, %257, %cst_69 {dimension_numbers = #tpu.dot_dimension_numbers<[1], [0], [0], [1], [0, 0, 1, 1], [], []>} : vector<128x128xbf16>, vector<128x8xbf16>, vector<128x8xf32> -> vector<128x8xf32>
    %259 = arith.addf %255, %258 : vector<128x8xf32>
    %c1_70 = arith.constant 1 : index
    %c0_71 = arith.constant 0 : index
    %c0_72 = arith.constant 0 : index
    %260 = vector.load %arg12[%c1_70, %c0_71, %c0_72] : memref<4x128x8xf32, #tpu.memory_space<vmem>>, vector<1x128x8xf32>
    %261 = vector.shape_cast %260 : vector<1x128x8xf32> to vector<128x8xf32>
    %262 = vector.shape_cast %259 : vector<128x8xf32> to vector<1x128x8xf32>
    tpu.vector_store %arg12[%c1_70, %c0_71, %c0_72], %262 {strides = array<i32>} : memref<4x128x8xf32, #tpu.memory_space<vmem>>, vector<1x128x8xf32>,
    %c1_73 = arith.constant 1 : index
    %c0_74 = arith.constant 0 : index
    %c0_75 = arith.constant 0 : index
    %263 = vector.load %arg10[%c1_73, %c0_74, %c0_75] : memref<4x128x1xf32, #tpu.memory_space<vmem>>, vector<1x128x1xf32>
    %264 = vector.shape_cast %263 : vector<1x128x1xf32> to vector<128x1xf32>
    %265 = vector.shape_cast %231 : vector<128x1xf32> to vector<1x128x1xf32>
    tpu.vector_store %arg10[%c1_73, %c0_74, %c0_75], %265 {strides = array<i32>} : memref<4x128x1xf32, #tpu.memory_space<vmem>>, vector<1x128x1xf32>,
    %c2 = arith.constant 2 : index
    %c0_76 = arith.constant 0 : index
    %c0_77 = arith.constant 0 : index
    %266 = vector.load %arg2[%c2, %c0_76, %c0_77] : memref<4x8x128xf32, #tpu.memory_space<vmem>>, vector<1x8x128xf32>
    %267 = vector.shape_cast %266 : vector<1x8x128xf32> to vector<8x128xf32>
    %c0_78 = arith.constant 0 : index
    %c16 = arith.constant 16 : index
    %268 = vector.load %arg3[%c0_78, %c16] : memref<128x32xf32, #tpu.memory_space<vmem>>, vector<128x8xf32>
    %c2_79 = arith.constant 2 : index
    %c0_80 = arith.constant 0 : index
    %c0_81 = arith.constant 0 : index
    %269 = vector.load %arg8[%c2_79, %c0_80, %c0_81] : memref<4x128x128xi8, #tpu.memory_space<vmem>>, vector<1x128x128xi8>
    %270 = vector.shape_cast %269 : vector<1x128x128xi8> to vector<128x128xi8>
    %c2_82 = arith.constant 2 : index
    %c0_83 = arith.constant 0 : index
    %c0_84 = arith.constant 0 : index
    %271 = vector.load %arg6[%c2_82, %c0_83, %c0_84] : memref<4x128x1xf32, #tpu.memory_space<vmem>>, vector<1x128x1xf32>
    %272 = vector.shape_cast %271 : vector<1x128x1xf32> to vector<128x1xf32>
    %c2_85 = arith.constant 2 : index
    %c0_86 = arith.constant 0 : index
    %c0_87 = arith.constant 0 : index
    %273 = vector.load %arg5[%c2_85, %c0_86, %c0_87] : memref<4x1x128xf32, #tpu.memory_space<vmem>>, vector<1x1x128xf32>
    %274 = vector.shape_cast %273 : vector<1x1x128xf32> to vector<1x128xf32>
    %275 = vector.broadcast %272 : vector<128x1xf32> to vector<128x128xf32>
    %276 = vector.broadcast %274 : vector<1x128xf32> to vector<128x128xf32>
    %277 = arith.addf %275, %276 : vector<128x128xf32>
    %278 = vector.extract_strided_slice %267 {offsets = [0, 0], sizes = [1, 128], strides = [1, 1]} : vector<8x128xf32> to vector<1x128xf32>
    %279 = vector.extract_strided_slice %268 {offsets = [0, 0], sizes = [128, 1], strides = [1, 1]} : vector<128x8xf32> to vector<128x1xf32>
    %280 = vector.broadcast %278 : vector<1x128xf32> to vector<128x128xf32>
    %281 = vector.broadcast %279 : vector<128x1xf32> to vector<128x128xf32>
    %282 = arith.addf %280, %281 : vector<128x128xf32>
    %283 = vector.extract_strided_slice %3 {offsets = [0, 0], sizes = [1, 1], strides = [1, 1]} : vector<8x1xf32> to vector<1x1xf32>
    %284 = math.absf %282 : vector<128x128xf32>
    %285 = vector.broadcast %283 : vector<1x1xf32> to vector<128x128xf32>
    %286 = arith.mulf %285, %284 : vector<128x128xf32>
    %287 = arith.addf %277, %286 : vector<128x128xf32>
    %288 = vector.extract_strided_slice %267 {offsets = [1, 0], sizes = [1, 128], strides = [1, 1]} : vector<8x128xf32> to vector<1x128xf32>
    %289 = vector.extract_strided_slice %268 {offsets = [0, 1], sizes = [128, 1], strides = [1, 1]} : vector<128x8xf32> to vector<128x1xf32>
    %290 = vector.broadcast %288 : vector<1x128xf32> to vector<128x128xf32>
    %291 = vector.broadcast %289 : vector<128x1xf32> to vector<128x128xf32>
    %292 = arith.addf %290, %291 : vector<128x128xf32>
    %293 = vector.extract_strided_slice %3 {offsets = [1, 0], sizes = [1, 1], strides = [1, 1]} : vector<8x1xf32> to vector<1x1xf32>
    %294 = math.absf %292 : vector<128x128xf32>
    %295 = vector.broadcast %293 : vector<1x1xf32> to vector<128x128xf32>
    %296 = arith.mulf %295, %294 : vector<128x128xf32>
    %297 = arith.addf %287, %296 : vector<128x128xf32>
    %298 = vector.extract_strided_slice %267 {offsets = [2, 0], sizes = [1, 128], strides = [1, 1]} : vector<8x128xf32> to vector<1x128xf32>
    %299 = vector.extract_strided_slice %268 {offsets = [0, 2], sizes = [128, 1], strides = [1, 1]} : vector<128x8xf32> to vector<128x1xf32>
    %300 = vector.broadcast %298 : vector<1x128xf32> to vector<128x128xf32>
    %301 = vector.broadcast %299 : vector<128x1xf32> to vector<128x128xf32>
    %302 = arith.addf %300, %301 : vector<128x128xf32>
    %303 = vector.extract_strided_slice %3 {offsets = [2, 0], sizes = [1, 1], strides = [1, 1]} : vector<8x1xf32> to vector<1x1xf32>
    %304 = math.absf %302 : vector<128x128xf32>
    %305 = vector.broadcast %303 : vector<1x1xf32> to vector<128x128xf32>
    %306 = arith.mulf %305, %304 : vector<128x128xf32>
    %307 = arith.addf %297, %306 : vector<128x128xf32>
    %308 = vector.extract_strided_slice %267 {offsets = [3, 0], sizes = [1, 128], strides = [1, 1]} : vector<8x128xf32> to vector<1x128xf32>
    %309 = vector.extract_strided_slice %268 {offsets = [0, 3], sizes = [128, 1], strides = [1, 1]} : vector<128x8xf32> to vector<128x1xf32>
    %310 = vector.broadcast %308 : vector<1x128xf32> to vector<128x128xf32>
    %311 = vector.broadcast %309 : vector<128x1xf32> to vector<128x128xf32>
    %312 = arith.addf %310, %311 : vector<128x128xf32>
    %313 = vector.extract_strided_slice %3 {offsets = [3, 0], sizes = [1, 1], strides = [1, 1]} : vector<8x1xf32> to vector<1x1xf32>
    %314 = math.absf %312 : vector<128x128xf32>
    %315 = vector.broadcast %313 : vector<1x1xf32> to vector<128x128xf32>
    %316 = arith.mulf %315, %314 : vector<128x128xf32>
    %317 = arith.addf %307, %316 : vector<128x128xf32>
    %318 = vector.extract_strided_slice %267 {offsets = [4, 0], sizes = [1, 128], strides = [1, 1]} : vector<8x128xf32> to vector<1x128xf32>
    %319 = vector.extract_strided_slice %268 {offsets = [0, 4], sizes = [128, 1], strides = [1, 1]} : vector<128x8xf32> to vector<128x1xf32>
    %320 = vector.broadcast %318 : vector<1x128xf32> to vector<128x128xf32>
    %321 = vector.broadcast %319 : vector<128x1xf32> to vector<128x128xf32>
    %322 = arith.addf %320, %321 : vector<128x128xf32>
    %323 = vector.extract_strided_slice %3 {offsets = [4, 0], sizes = [1, 1], strides = [1, 1]} : vector<8x1xf32> to vector<1x1xf32>
    %324 = math.absf %322 : vector<128x128xf32>
    %325 = vector.broadcast %323 : vector<1x1xf32> to vector<128x128xf32>
    %326 = arith.mulf %325, %324 : vector<128x128xf32>
    %327 = arith.addf %317, %326 : vector<128x128xf32>
    %328 = vector.extract_strided_slice %267 {offsets = [5, 0], sizes = [1, 128], strides = [1, 1]} : vector<8x128xf32> to vector<1x128xf32>
    %329 = vector.extract_strided_slice %268 {offsets = [0, 5], sizes = [128, 1], strides = [1, 1]} : vector<128x8xf32> to vector<128x1xf32>
    %330 = vector.broadcast %328 : vector<1x128xf32> to vector<128x128xf32>
    %331 = vector.broadcast %329 : vector<128x1xf32> to vector<128x128xf32>
    %332 = arith.addf %330, %331 : vector<128x128xf32>
    %333 = vector.extract_strided_slice %3 {offsets = [5, 0], sizes = [1, 1], strides = [1, 1]} : vector<8x1xf32> to vector<1x1xf32>
    %334 = math.absf %332 : vector<128x128xf32>
    %335 = vector.broadcast %333 : vector<1x1xf32> to vector<128x128xf32>
    %336 = arith.mulf %335, %334 : vector<128x128xf32>
    %337 = arith.addf %327, %336 : vector<128x128xf32>
    %338 = vector.extract_strided_slice %267 {offsets = [6, 0], sizes = [1, 128], strides = [1, 1]} : vector<8x128xf32> to vector<1x128xf32>
    %339 = vector.extract_strided_slice %268 {offsets = [0, 6], sizes = [128, 1], strides = [1, 1]} : vector<128x8xf32> to vector<128x1xf32>
    %340 = vector.broadcast %338 : vector<1x128xf32> to vector<128x128xf32>
    %341 = vector.broadcast %339 : vector<128x1xf32> to vector<128x128xf32>
    %342 = arith.addf %340, %341 : vector<128x128xf32>
    %343 = vector.extract_strided_slice %3 {offsets = [6, 0], sizes = [1, 1], strides = [1, 1]} : vector<8x1xf32> to vector<1x1xf32>
    %344 = math.absf %342 : vector<128x128xf32>
    %345 = vector.broadcast %343 : vector<1x1xf32> to vector<128x128xf32>
    %346 = arith.mulf %345, %344 : vector<128x128xf32>
    %347 = arith.addf %337, %346 : vector<128x128xf32>
    %348 = vector.extract_strided_slice %267 {offsets = [7, 0], sizes = [1, 128], strides = [1, 1]} : vector<8x128xf32> to vector<1x128xf32>
    %349 = vector.extract_strided_slice %268 {offsets = [0, 7], sizes = [128, 1], strides = [1, 1]} : vector<128x8xf32> to vector<128x1xf32>
    %350 = vector.broadcast %348 : vector<1x128xf32> to vector<128x128xf32>
    %351 = vector.broadcast %349 : vector<128x1xf32> to vector<128x128xf32>
    %352 = arith.addf %350, %351 : vector<128x128xf32>
    %353 = vector.extract_strided_slice %3 {offsets = [7, 0], sizes = [1, 1], strides = [1, 1]} : vector<8x1xf32> to vector<1x1xf32>
    %354 = math.absf %352 : vector<128x128xf32>
    %355 = vector.broadcast %353 : vector<1x1xf32> to vector<128x128xf32>
    %356 = arith.mulf %355, %354 : vector<128x128xf32>
    %357 = arith.addf %347, %356 : vector<128x128xf32>
    %c2_88 = arith.constant 2 : index
    %c0_89 = arith.constant 0 : index
    %c0_90 = arith.constant 0 : index
    %358 = vector.load %arg10[%c2_88, %c0_89, %c0_90] : memref<4x128x1xf32, #tpu.memory_space<vmem>>, vector<1x128x1xf32>
    %359 = vector.shape_cast %358 : vector<1x128x1xf32> to vector<128x1xf32>
    %cst_91 = arith.constant dense<0xFF800000> : vector<128xf32>
    %360 = vector.multi_reduction <maximumf>, %357, %cst_91 [1] : vector<128x128xf32> to vector<128xf32>
    %361 = vector.shape_cast %360 : vector<128xf32> to vector<128x1xf32>
    %362 = arith.maximumf %359, %361 : vector<128x1xf32>
    %363 = arith.subf %359, %362 : vector<128x1xf32>
    %364 = math.exp %363 : vector<128x1xf32>
    %365 = vector.broadcast %362 : vector<128x1xf32> to vector<128x128xf32>
    %366 = arith.subf %357, %365 : vector<128x128xf32>
    %367 = arith.truncf %366 : vector<128x128xf32> to vector<128x128xbf16>
    %368 = math.exp %367 : vector<128x128xbf16>
    %c0_i8_92 = arith.constant 0 : i8
    %369 = vector.broadcast %c0_i8_92 : i8 to vector<128x128xi8>
    %370 = arith.cmpi ne, %270, %369 : vector<128x128xi8>
    %cst_93 = arith.constant 0.000000e+00 : bf16
    %371 = vector.broadcast %cst_93 : bf16 to vector<128x128xbf16>
    %372 = arith.select %370, %368, %371 : vector<128x128xi1>, vector<128x128xbf16>
    %c2_94 = arith.constant 2 : index
    %c0_95 = arith.constant 0 : index
    %c0_96 = arith.constant 0 : index
    %373 = vector.load %arg11[%c2_94, %c0_95, %c0_96] : memref<4x128x1xf32, #tpu.memory_space<vmem>>, vector<1x128x1xf32>
    %374 = vector.shape_cast %373 : vector<1x128x1xf32> to vector<128x1xf32>
    %375 = arith.mulf %364, %374 : vector<128x1xf32>
    %376 = arith.extf %372 : vector<128x128xbf16> to vector<128x128xf32>
    %cst_97 = arith.constant dense<0.000000e+00> : vector<128xf32>
    %377 = vector.multi_reduction <add>, %376, %cst_97 [1] : vector<128x128xf32> to vector<128xf32>
    %378 = vector.shape_cast %377 : vector<128xf32> to vector<128x1xf32>
    %379 = arith.addf %375, %378 : vector<128x1xf32>
    %c2_98 = arith.constant 2 : index
    %c0_99 = arith.constant 0 : index
    %c0_100 = arith.constant 0 : index
    %380 = vector.load %arg11[%c2_98, %c0_99, %c0_100] : memref<4x128x1xf32, #tpu.memory_space<vmem>>, vector<1x128x1xf32>
    %381 = vector.shape_cast %380 : vector<1x128x1xf32> to vector<128x1xf32>
    %382 = vector.shape_cast %379 : vector<128x1xf32> to vector<1x128x1xf32>
    tpu.vector_store %arg11[%c2_98, %c0_99, %c0_100], %382 {strides = array<i32>} : memref<4x128x1xf32, #tpu.memory_space<vmem>>, vector<1x128x1xf32>,
    %c2_101 = arith.constant 2 : index
    %c0_102 = arith.constant 0 : index
    %c0_103 = arith.constant 0 : index
    %383 = vector.load %arg12[%c2_101, %c0_102, %c0_103] : memref<4x128x8xf32, #tpu.memory_space<vmem>>, vector<1x128x8xf32>
    %384 = vector.shape_cast %383 : vector<1x128x8xf32> to vector<128x8xf32>
    %385 = vector.broadcast %364 : vector<128x1xf32> to vector<128x8xf32>
    %386 = arith.mulf %385, %384 : vector<128x8xf32>
    %c0_104 = arith.constant 0 : index
    %c16_105 = arith.constant 16 : index
    %387 = vector.load %arg4[%c0_104, %c16_105] : memref<128x32xf32, #tpu.memory_space<vmem>>, vector<128x8xf32>
    %388 = arith.truncf %387 : vector<128x8xf32> to vector<128x8xbf16>
    %cst_106 = arith.constant dense<0.000000e+00> : vector<128x8xf32>
    %389 = tpu.matmul %372, %388, %cst_106 {dimension_numbers = #tpu.dot_dimension_numbers<[1], [0], [0], [1], [0, 0, 1, 1], [], []>} : vector<128x128xbf16>, vector<128x8xbf16>, vector<128x8xf32> -> vector<128x8xf32>
    %390 = arith.addf %386, %389 : vector<128x8xf32>
    %c2_107 = arith.constant 2 : index
    %c0_108 = arith.constant 0 : index
    %c0_109 = arith.constant 0 : index
    %391 = vector.load %arg12[%c2_107, %c0_108, %c0_109] : memref<4x128x8xf32, #tpu.memory_space<vmem>>, vector<1x128x8xf32>
    %392 = vector.shape_cast %391 : vector<1x128x8xf32> to vector<128x8xf32>
    %393 = vector.shape_cast %390 : vector<128x8xf32> to vector<1x128x8xf32>
    tpu.vector_store %arg12[%c2_107, %c0_108, %c0_109], %393 {strides = array<i32>} : memref<4x128x8xf32, #tpu.memory_space<vmem>>, vector<1x128x8xf32>,
    %c2_110 = arith.constant 2 : index
    %c0_111 = arith.constant 0 : index
    %c0_112 = arith.constant 0 : index
    %394 = vector.load %arg10[%c2_110, %c0_111, %c0_112] : memref<4x128x1xf32, #tpu.memory_space<vmem>>, vector<1x128x1xf32>
    %395 = vector.shape_cast %394 : vector<1x128x1xf32> to vector<128x1xf32>
    %396 = vector.shape_cast %362 : vector<128x1xf32> to vector<1x128x1xf32>
    tpu.vector_store %arg10[%c2_110, %c0_111, %c0_112], %396 {strides = array<i32>} : memref<4x128x1xf32, #tpu.memory_space<vmem>>, vector<1x128x1xf32>,
    %c3 = arith.constant 3 : index
    %c0_113 = arith.constant 0 : index
    %c0_114 = arith.constant 0 : index
    %397 = vector.load %arg2[%c3, %c0_113, %c0_114] : memref<4x8x128xf32, #tpu.memory_space<vmem>>, vector<1x8x128xf32>
    %398 = vector.shape_cast %397 : vector<1x8x128xf32> to vector<8x128xf32>
    %c0_115 = arith.constant 0 : index
    %c24 = arith.constant 24 : index
    %399 = vector.load %arg3[%c0_115, %c24] : memref<128x32xf32, #tpu.memory_space<vmem>>, vector<128x8xf32>
    %c3_116 = arith.constant 3 : index
    %c0_117 = arith.constant 0 : index
    %c0_118 = arith.constant 0 : index
    %400 = vector.load %arg8[%c3_116, %c0_117, %c0_118] : memref<4x128x128xi8, #tpu.memory_space<vmem>>, vector<1x128x128xi8>
    %401 = vector.shape_cast %400 : vector<1x128x128xi8> to vector<128x128xi8>
    %c3_119 = arith.constant 3 : index
    %c0_120 = arith.constant 0 : index
    %c0_121 = arith.constant 0 : index
    %402 = vector.load %arg6[%c3_119, %c0_120, %c0_121] : memref<4x128x1xf32, #tpu.memory_space<vmem>>, vector<1x128x1xf32>
    %403 = vector.shape_cast %402 : vector<1x128x1xf32> to vector<128x1xf32>
    %c3_122 = arith.constant 3 : index
    %c0_123 = arith.constant 0 : index
    %c0_124 = arith.constant 0 : index
    %404 = vector.load %arg5[%c3_122, %c0_123, %c0_124] : memref<4x1x128xf32, #tpu.memory_space<vmem>>, vector<1x1x128xf32>
    %405 = vector.shape_cast %404 : vector<1x1x128xf32> to vector<1x128xf32>
    %406 = vector.broadcast %403 : vector<128x1xf32> to vector<128x128xf32>
    %407 = vector.broadcast %405 : vector<1x128xf32> to vector<128x128xf32>
    %408 = arith.addf %406, %407 : vector<128x128xf32>
    %409 = vector.extract_strided_slice %398 {offsets = [0, 0], sizes = [1, 128], strides = [1, 1]} : vector<8x128xf32> to vector<1x128xf32>
    %410 = vector.extract_strided_slice %399 {offsets = [0, 0], sizes = [128, 1], strides = [1, 1]} : vector<128x8xf32> to vector<128x1xf32>
    %411 = vector.broadcast %409 : vector<1x128xf32> to vector<128x128xf32>
    %412 = vector.broadcast %410 : vector<128x1xf32> to vector<128x128xf32>
    %413 = arith.addf %411, %412 : vector<128x128xf32>
    %414 = vector.extract_strided_slice %3 {offsets = [0, 0], sizes = [1, 1], strides = [1, 1]} : vector<8x1xf32> to vector<1x1xf32>
    %415 = math.absf %413 : vector<128x128xf32>
    %416 = vector.broadcast %414 : vector<1x1xf32> to vector<128x128xf32>
    %417 = arith.mulf %416, %415 : vector<128x128xf32>
    %418 = arith.addf %408, %417 : vector<128x128xf32>
    %419 = vector.extract_strided_slice %398 {offsets = [1, 0], sizes = [1, 128], strides = [1, 1]} : vector<8x128xf32> to vector<1x128xf32>
    %420 = vector.extract_strided_slice %399 {offsets = [0, 1], sizes = [128, 1], strides = [1, 1]} : vector<128x8xf32> to vector<128x1xf32>
    %421 = vector.broadcast %419 : vector<1x128xf32> to vector<128x128xf32>
    %422 = vector.broadcast %420 : vector<128x1xf32> to vector<128x128xf32>
    %423 = arith.addf %421, %422 : vector<128x128xf32>
    %424 = vector.extract_strided_slice %3 {offsets = [1, 0], sizes = [1, 1], strides = [1, 1]} : vector<8x1xf32> to vector<1x1xf32>
    %425 = math.absf %423 : vector<128x128xf32>
    %426 = vector.broadcast %424 : vector<1x1xf32> to vector<128x128xf32>
    %427 = arith.mulf %426, %425 : vector<128x128xf32>
    %428 = arith.addf %418, %427 : vector<128x128xf32>
    %429 = vector.extract_strided_slice %398 {offsets = [2, 0], sizes = [1, 128], strides = [1, 1]} : vector<8x128xf32> to vector<1x128xf32>
    %430 = vector.extract_strided_slice %399 {offsets = [0, 2], sizes = [128, 1], strides = [1, 1]} : vector<128x8xf32> to vector<128x1xf32>
    %431 = vector.broadcast %429 : vector<1x128xf32> to vector<128x128xf32>
    %432 = vector.broadcast %430 : vector<128x1xf32> to vector<128x128xf32>
    %433 = arith.addf %431, %432 : vector<128x128xf32>
    %434 = vector.extract_strided_slice %3 {offsets = [2, 0], sizes = [1, 1], strides = [1, 1]} : vector<8x1xf32> to vector<1x1xf32>
    %435 = math.absf %433 : vector<128x128xf32>
    %436 = vector.broadcast %434 : vector<1x1xf32> to vector<128x128xf32>
    %437 = arith.mulf %436, %435 : vector<128x128xf32>
    %438 = arith.addf %428, %437 : vector<128x128xf32>
    %439 = vector.extract_strided_slice %398 {offsets = [3, 0], sizes = [1, 128], strides = [1, 1]} : vector<8x128xf32> to vector<1x128xf32>
    %440 = vector.extract_strided_slice %399 {offsets = [0, 3], sizes = [128, 1], strides = [1, 1]} : vector<128x8xf32> to vector<128x1xf32>
    %441 = vector.broadcast %439 : vector<1x128xf32> to vector<128x128xf32>
    %442 = vector.broadcast %440 : vector<128x1xf32> to vector<128x128xf32>
    %443 = arith.addf %441, %442 : vector<128x128xf32>
    %444 = vector.extract_strided_slice %3 {offsets = [3, 0], sizes = [1, 1], strides = [1, 1]} : vector<8x1xf32> to vector<1x1xf32>
    %445 = math.absf %443 : vector<128x128xf32>
    %446 = vector.broadcast %444 : vector<1x1xf32> to vector<128x128xf32>
    %447 = arith.mulf %446, %445 : vector<128x128xf32>
    %448 = arith.addf %438, %447 : vector<128x128xf32>
    %449 = vector.extract_strided_slice %398 {offsets = [4, 0], sizes = [1, 128], strides = [1, 1]} : vector<8x128xf32> to vector<1x128xf32>
    %450 = vector.extract_strided_slice %399 {offsets = [0, 4], sizes = [128, 1], strides = [1, 1]} : vector<128x8xf32> to vector<128x1xf32>
    %451 = vector.broadcast %449 : vector<1x128xf32> to vector<128x128xf32>
    %452 = vector.broadcast %450 : vector<128x1xf32> to vector<128x128xf32>
    %453 = arith.addf %451, %452 : vector<128x128xf32>
    %454 = vector.extract_strided_slice %3 {offsets = [4, 0], sizes = [1, 1], strides = [1, 1]} : vector<8x1xf32> to vector<1x1xf32>
    %455 = math.absf %453 : vector<128x128xf32>
    %456 = vector.broadcast %454 : vector<1x1xf32> to vector<128x128xf32>
    %457 = arith.mulf %456, %455 : vector<128x128xf32>
    %458 = arith.addf %448, %457 : vector<128x128xf32>
    %459 = vector.extract_strided_slice %398 {offsets = [5, 0], sizes = [1, 128], strides = [1, 1]} : vector<8x128xf32> to vector<1x128xf32>
    %460 = vector.extract_strided_slice %399 {offsets = [0, 5], sizes = [128, 1], strides = [1, 1]} : vector<128x8xf32> to vector<128x1xf32>
    %461 = vector.broadcast %459 : vector<1x128xf32> to vector<128x128xf32>
    %462 = vector.broadcast %460 : vector<128x1xf32> to vector<128x128xf32>
    %463 = arith.addf %461, %462 : vector<128x128xf32>
    %464 = vector.extract_strided_slice %3 {offsets = [5, 0], sizes = [1, 1], strides = [1, 1]} : vector<8x1xf32> to vector<1x1xf32>
    %465 = math.absf %463 : vector<128x128xf32>
    %466 = vector.broadcast %464 : vector<1x1xf32> to vector<128x128xf32>
    %467 = arith.mulf %466, %465 : vector<128x128xf32>
    %468 = arith.addf %458, %467 : vector<128x128xf32>
    %469 = vector.extract_strided_slice %398 {offsets = [6, 0], sizes = [1, 128], strides = [1, 1]} : vector<8x128xf32> to vector<1x128xf32>
    %470 = vector.extract_strided_slice %399 {offsets = [0, 6], sizes = [128, 1], strides = [1, 1]} : vector<128x8xf32> to vector<128x1xf32>
    %471 = vector.broadcast %469 : vector<1x128xf32> to vector<128x128xf32>
    %472 = vector.broadcast %470 : vector<128x1xf32> to vector<128x128xf32>
    %473 = arith.addf %471, %472 : vector<128x128xf32>
    %474 = vector.extract_strided_slice %3 {offsets = [6, 0], sizes = [1, 1], strides = [1, 1]} : vector<8x1xf32> to vector<1x1xf32>
    %475 = math.absf %473 : vector<128x128xf32>
    %476 = vector.broadcast %474 : vector<1x1xf32> to vector<128x128xf32>
    %477 = arith.mulf %476, %475 : vector<128x128xf32>
    %478 = arith.addf %468, %477 : vector<128x128xf32>
    %479 = vector.extract_strided_slice %398 {offsets = [7, 0], sizes = [1, 128], strides = [1, 1]} : vector<8x128xf32> to vector<1x128xf32>
    %480 = vector.extract_strided_slice %399 {offsets = [0, 7], sizes = [128, 1], strides = [1, 1]} : vector<128x8xf32> to vector<128x1xf32>
    %481 = vector.broadcast %479 : vector<1x128xf32> to vector<128x128xf32>
    %482 = vector.broadcast %480 : vector<128x1xf32> to vector<128x128xf32>
    %483 = arith.addf %481, %482 : vector<128x128xf32>
    %484 = vector.extract_strided_slice %3 {offsets = [7, 0], sizes = [1, 1], strides = [1, 1]} : vector<8x1xf32> to vector<1x1xf32>
    %485 = math.absf %483 : vector<128x128xf32>
    %486 = vector.broadcast %484 : vector<1x1xf32> to vector<128x128xf32>
    %487 = arith.mulf %486, %485 : vector<128x128xf32>
    %488 = arith.addf %478, %487 : vector<128x128xf32>
    %c3_125 = arith.constant 3 : index
    %c0_126 = arith.constant 0 : index
    %c0_127 = arith.constant 0 : index
    %489 = vector.load %arg10[%c3_125, %c0_126, %c0_127] : memref<4x128x1xf32, #tpu.memory_space<vmem>>, vector<1x128x1xf32>
    %490 = vector.shape_cast %489 : vector<1x128x1xf32> to vector<128x1xf32>
    %cst_128 = arith.constant dense<0xFF800000> : vector<128xf32>
    %491 = vector.multi_reduction <maximumf>, %488, %cst_128 [1] : vector<128x128xf32> to vector<128xf32>
    %492 = vector.shape_cast %491 : vector<128xf32> to vector<128x1xf32>
    %493 = arith.maximumf %490, %492 : vector<128x1xf32>
    %494 = arith.subf %490, %493 : vector<128x1xf32>
    %495 = math.exp %494 : vector<128x1xf32>
    %496 = vector.broadcast %493 : vector<128x1xf32> to vector<128x128xf32>
    %497 = arith.subf %488, %496 : vector<128x128xf32>
    %498 = arith.truncf %497 : vector<128x128xf32> to vector<128x128xbf16>
    %499 = math.exp %498 : vector<128x128xbf16>
    %c0_i8_129 = arith.constant 0 : i8
    %500 = vector.broadcast %c0_i8_129 : i8 to vector<128x128xi8>
    %501 = arith.cmpi ne, %401, %500 : vector<128x128xi8>
    %cst_130 = arith.constant 0.000000e+00 : bf16
    %502 = vector.broadcast %cst_130 : bf16 to vector<128x128xbf16>
    %503 = arith.select %501, %499, %502 : vector<128x128xi1>, vector<128x128xbf16>
    %c3_131 = arith.constant 3 : index
    %c0_132 = arith.constant 0 : index
    %c0_133 = arith.constant 0 : index
    %504 = vector.load %arg11[%c3_131, %c0_132, %c0_133] : memref<4x128x1xf32, #tpu.memory_space<vmem>>, vector<1x128x1xf32>
    %505 = vector.shape_cast %504 : vector<1x128x1xf32> to vector<128x1xf32>
    %506 = arith.mulf %495, %505 : vector<128x1xf32>
    %507 = arith.extf %503 : vector<128x128xbf16> to vector<128x128xf32>
    %cst_134 = arith.constant dense<0.000000e+00> : vector<128xf32>
    %508 = vector.multi_reduction <add>, %507, %cst_134 [1] : vector<128x128xf32> to vector<128xf32>
    %509 = vector.shape_cast %508 : vector<128xf32> to vector<128x1xf32>
    %510 = arith.addf %506, %509 : vector<128x1xf32>
    %c3_135 = arith.constant 3 : index
    %c0_136 = arith.constant 0 : index
    %c0_137 = arith.constant 0 : index
    %511 = vector.load %arg11[%c3_135, %c0_136, %c0_137] : memref<4x128x1xf32, #tpu.memory_space<vmem>>, vector<1x128x1xf32>
    %512 = vector.shape_cast %511 : vector<1x128x1xf32> to vector<128x1xf32>
    %513 = vector.shape_cast %510 : vector<128x1xf32> to vector<1x128x1xf32>
    tpu.vector_store %arg11[%c3_135, %c0_136, %c0_137], %513 {strides = array<i32>} : memref<4x128x1xf32, #tpu.memory_space<vmem>>, vector<1x128x1xf32>,
    %c3_138 = arith.constant 3 : index
    %c0_139 = arith.constant 0 : index
    %c0_140 = arith.constant 0 : index
    %514 = vector.load %arg12[%c3_138, %c0_139, %c0_140] : memref<4x128x8xf32, #tpu.memory_space<vmem>>, vector<1x128x8xf32>
    %515 = vector.shape_cast %514 : vector<1x128x8xf32> to vector<128x8xf32>
    %516 = vector.broadcast %495 : vector<128x1xf32> to vector<128x8xf32>
    %517 = arith.mulf %516, %515 : vector<128x8xf32>
    %c0_141 = arith.constant 0 : index
    %c24_142 = arith.constant 24 : index
    %518 = vector.load %arg4[%c0_141, %c24_142] : memref<128x32xf32, #tpu.memory_space<vmem>>, vector<128x8xf32>
    %519 = arith.truncf %518 : vector<128x8xf32> to vector<128x8xbf16>
    %cst_143 = arith.constant dense<0.000000e+00> : vector<128x8xf32>
    %520 = tpu.matmul %503, %519, %cst_143 {dimension_numbers = #tpu.dot_dimension_numbers<[1], [0], [0], [1], [0, 0, 1, 1], [], []>} : vector<128x128xbf16>, vector<128x8xbf16>, vector<128x8xf32> -> vector<128x8xf32>
    %521 = arith.addf %517, %520 : vector<128x8xf32>
    %c3_144 = arith.constant 3 : index
    %c0_145 = arith.constant 0 : index
    %c0_146 = arith.constant 0 : index
    %522 = vector.load %arg12[%c3_144, %c0_145, %c0_146] : memref<4x128x8xf32, #tpu.memory_space<vmem>>, vector<1x128x8xf32>
    %523 = vector.shape_cast %522 : vector<1x128x8xf32> to vector<128x8xf32>
    %524 = vector.shape_cast %521 : vector<128x8xf32> to vector<1x128x8xf32>
    tpu.vector_store %arg12[%c3_144, %c0_145, %c0_146], %524 {strides = array<i32>} : memref<4x128x8xf32, #tpu.memory_space<vmem>>, vector<1x128x8xf32>,
    %c3_147 = arith.constant 3 : index
    %c0_148 = arith.constant 0 : index
    %c0_149 = arith.constant 0 : index
    %525 = vector.load %arg10[%c3_147, %c0_148, %c0_149] : memref<4x128x1xf32, #tpu.memory_space<vmem>>, vector<1x128x1xf32>
    %526 = vector.shape_cast %525 : vector<1x128x1xf32> to vector<128x1xf32>
    %527 = vector.shape_cast %493 : vector<128x1xf32> to vector<1x128x1xf32>
    tpu.vector_store %arg10[%c3_147, %c0_148, %c0_149], %527 {strides = array<i32>} : memref<4x128x1xf32, #tpu.memory_space<vmem>>, vector<1x128x1xf32>,
    %c0_i32_150 = arith.constant 0 : i32
    %528 = arith.cmpi eq, %arg1, %c0_i32_150 : i32
    %529 = arith.extui %528 : i1 to i32
    %c0_i32_151 = arith.constant 0 : i32
    %530 = arith.cmpi ne, %529, %c0_i32_151 : i32
    scf.if %530 {
      %c0_152 = arith.constant 0 : index
      %c0_153 = arith.constant 0 : index
      %c0_154 = arith.constant 0 : index
      %531 = vector.load %arg11[%c0_152, %c0_153, %c0_154] : memref<4x128x1xf32, #tpu.memory_space<vmem>>, vector<1x128x1xf32>
      %532 = vector.shape_cast %531 : vector<1x128x1xf32> to vector<128x1xf32>
      %cst_155 = arith.constant 0.000000e+00 : f32
      %533 = vector.broadcast %cst_155 : f32 to vector<128x1xf32>
      %534 = arith.cmpf ogt, %532, %533 : vector<128x1xf32>
      %cst_156 = arith.constant 1.000000e+00 : f32
      %535 = vector.broadcast %cst_156 : f32 to vector<128x1xf32>
      %536 = arith.select %534, %532, %535 : vector<128x1xi1>, vector<128x1xf32>
      %c0_157 = arith.constant 0 : index
      %c0_158 = arith.constant 0 : index
      %c0_159 = arith.constant 0 : index
      %537 = vector.load %arg12[%c0_157, %c0_158, %c0_159] : memref<4x128x8xf32, #tpu.memory_space<vmem>>, vector<1x128x8xf32>
      %538 = vector.shape_cast %537 : vector<1x128x8xf32> to vector<128x8xf32>
      %539 = tpu.reciprocal %536 {approx = true} : vector<128x1xf32> -> vector<128x1xf32>
      %540 = vector.broadcast %539 : vector<128x1xf32> to vector<128x8xf32>
      %541 = arith.mulf %538, %540 : vector<128x8xf32>
      %c1_160 = arith.constant 1 : index
      %c0_161 = arith.constant 0 : index
      %c0_162 = arith.constant 0 : index
      %542 = vector.load %arg11[%c1_160, %c0_161, %c0_162] : memref<4x128x1xf32, #tpu.memory_space<vmem>>, vector<1x128x1xf32>
      %543 = vector.shape_cast %542 : vector<1x128x1xf32> to vector<128x1xf32>
      %cst_163 = arith.constant 0.000000e+00 : f32
      %544 = vector.broadcast %cst_163 : f32 to vector<128x1xf32>
      %545 = arith.cmpf ogt, %543, %544 : vector<128x1xf32>
      %cst_164 = arith.constant 1.000000e+00 : f32
      %546 = vector.broadcast %cst_164 : f32 to vector<128x1xf32>
      %547 = arith.select %545, %543, %546 : vector<128x1xi1>, vector<128x1xf32>
      %c1_165 = arith.constant 1 : index
      %c0_166 = arith.constant 0 : index
      %c0_167 = arith.constant 0 : index
      %548 = vector.load %arg12[%c1_165, %c0_166, %c0_167] : memref<4x128x8xf32, #tpu.memory_space<vmem>>, vector<1x128x8xf32>
      %549 = vector.shape_cast %548 : vector<1x128x8xf32> to vector<128x8xf32>
      %550 = tpu.reciprocal %547 {approx = true} : vector<128x1xf32> -> vector<128x1xf32>
      %551 = vector.broadcast %550 : vector<128x1xf32> to vector<128x8xf32>
      %552 = arith.mulf %549, %551 : vector<128x8xf32>
      %c2_168 = arith.constant 2 : index
      %c0_169 = arith.constant 0 : index
      %c0_170 = arith.constant 0 : index
      %553 = vector.load %arg11[%c2_168, %c0_169, %c0_170] : memref<4x128x1xf32, #tpu.memory_space<vmem>>, vector<1x128x1xf32>
      %554 = vector.shape_cast %553 : vector<1x128x1xf32> to vector<128x1xf32>
      %cst_171 = arith.constant 0.000000e+00 : f32
      %555 = vector.broadcast %cst_171 : f32 to vector<128x1xf32>
      %556 = arith.cmpf ogt, %554, %555 : vector<128x1xf32>
      %cst_172 = arith.constant 1.000000e+00 : f32
      %557 = vector.broadcast %cst_172 : f32 to vector<128x1xf32>
      %558 = arith.select %556, %554, %557 : vector<128x1xi1>, vector<128x1xf32>
      %c2_173 = arith.constant 2 : index
      %c0_174 = arith.constant 0 : index
      %c0_175 = arith.constant 0 : index
      %559 = vector.load %arg12[%c2_173, %c0_174, %c0_175] : memref<4x128x8xf32, #tpu.memory_space<vmem>>, vector<1x128x8xf32>
      %560 = vector.shape_cast %559 : vector<1x128x8xf32> to vector<128x8xf32>
      %561 = tpu.reciprocal %558 {approx = true} : vector<128x1xf32> -> vector<128x1xf32>
      %562 = vector.broadcast %561 : vector<128x1xf32> to vector<128x8xf32>
      %563 = arith.mulf %560, %562 : vector<128x8xf32>
      %c3_176 = arith.constant 3 : index
      %c0_177 = arith.constant 0 : index
      %c0_178 = arith.constant 0 : index
      %564 = vector.load %arg11[%c3_176, %c0_177, %c0_178] : memref<4x128x1xf32, #tpu.memory_space<vmem>>, vector<1x128x1xf32>
      %565 = vector.shape_cast %564 : vector<1x128x1xf32> to vector<128x1xf32>
      %cst_179 = arith.constant 0.000000e+00 : f32
      %566 = vector.broadcast %cst_179 : f32 to vector<128x1xf32>
      %567 = arith.cmpf ogt, %565, %566 : vector<128x1xf32>
      %cst_180 = arith.constant 1.000000e+00 : f32
      %568 = vector.broadcast %cst_180 : f32 to vector<128x1xf32>
      %569 = arith.select %567, %565, %568 : vector<128x1xi1>, vector<128x1xf32>
      %c3_181 = arith.constant 3 : index
      %c0_182 = arith.constant 0 : index
      %c0_183 = arith.constant 0 : index
      %570 = vector.load %arg12[%c3_181, %c0_182, %c0_183] : memref<4x128x8xf32, #tpu.memory_space<vmem>>, vector<1x128x8xf32>
      %571 = vector.shape_cast %570 : vector<1x128x8xf32> to vector<128x8xf32>
      %572 = tpu.reciprocal %569 {approx = true} : vector<128x1xf32> -> vector<128x1xf32>
      %573 = vector.broadcast %572 : vector<128x1xf32> to vector<128x8xf32>
      %574 = arith.mulf %571, %573 : vector<128x8xf32>
      %575 = tpu.concatenate %541, %552, %563, %574 in 1 : vector<128x8xf32>, vector<128x8xf32>, vector<128x8xf32>, vector<128x8xf32> -> vector<128x32xf32>
      %c0_184 = arith.constant 0 : index
      %c0_185 = arith.constant 0 : index
      %576 = vector.load %arg9[%c0_184, %c0_185] : memref<128x32xf32, #tpu.memory_space<vmem>>, vector<128x32xf32>
      tpu.vector_store %arg9[%c0_184, %c0_185], %575 {strides = array<i32>} : memref<128x32xf32, #tpu.memory_space<vmem>>, vector<128x32xf32>,
    } else {
    }
    return
  }
  func.func @transform_0(%arg0: i32, %arg1: i32) -> (i32, i32, i32) {
    %c0_i32 = arith.constant 0 : i32
    %c0_i32_0 = arith.constant 0 : i32
    %c0_i32_1 = arith.constant 0 : i32
    return %c0_i32, %c0_i32_0, %arg1 : i32, i32, i32
  }
  func.func @transform_1(%arg0: i32, %arg1: i32) -> (i32, i32) {
    %c0_i32 = arith.constant 0 : i32
    %c0_i32_0 = arith.constant 0 : i32
    return %arg0, %c0_i32 : i32, i32
  }
  func.func @transform_2(%arg0: i32, %arg1: i32) -> (i32, i32) {
    %c0_i32 = arith.constant 0 : i32
    %c0_i32_0 = arith.constant 0 : i32
    return %arg1, %c0_i32 : i32, i32
  }
  func.func @transform_3(%arg0: i32, %arg1: i32) -> (i32, i32, i32) {
    %c0_i32 = arith.constant 0 : i32
    %c0_i32_0 = arith.constant 0 : i32
    %c0_i32_1 = arith.constant 0 : i32
    return %c0_i32, %c0_i32_0, %arg1 : i32, i32, i32
  }
  func.func @transform_4(%arg0: i32, %arg1: i32) -> (i32, i32, i32) {
    %c0_i32 = arith.constant 0 : i32
    %c0_i32_0 = arith.constant 0 : i32
    %c0_i32_1 = arith.constant 0 : i32
    return %c0_i32, %arg0, %c0_i32_0 : i32, i32, i32
  }
  func.func @transform_5(%arg0: i32, %arg1: i32) -> (i32, i32) {
    %c0_i32 = arith.constant 0 : i32
    %c0_i32_0 = arith.constant 0 : i32
    %c0_i32_1 = arith.constant 0 : i32
    return %c0_i32, %c0_i32_0 : i32, i32
  }
  func.func @transform_6(%arg0: i32, %arg1: i32) -> (i32, i32, i32) {
    %c0_i32 = arith.constant 0 : i32
    %c0_i32_0 = arith.constant 0 : i32
    return %c0_i32, %arg0, %arg1 : i32, i32, i32
  }
  func.func @transform_7(%arg0: i32, %arg1: i32) -> (i32, i32) {
    %c0_i32 = arith.constant 0 : i32
    %c0_i32_0 = arith.constant 0 : i32
    return %arg0, %c0_i32 : i32, i32
  }
}

</mosaic_0001>

<llo_original>
// kernel: tpu_custom_call.1
$region0: #{tpu_custom_call.1}
  #allocation0 [shape = 'u32[]', space=smem, size = 0x4, offset = 0x4, fixed_abs, tag = 'smem constant byte address 0x4 - core index']
  #allocation1 [shape = 'u32[144,128]{1,0:T(1,128)}', space=vmem, size = 0x12000, scoped, tag = 'internal scratch']
  #allocation2 [shape = 'f32[4,128,1]{2,1,0:T(8,128)}', space=vmem, size = 0x40000, scoped, tag = 'scratch operand']
  #allocation3 [shape = 'f32[4,128,1]{2,1,0:T(8,128)}', space=vmem, size = 0x40000, scoped, tag = 'scratch operand']
  #allocation4 [shape = 'f32[4,128,8]{2,1,0:T(8,128)}', space=vmem, size = 0x40000, scoped, tag = 'scratch operand']
  %s0 = inlined_call_operand.vmem [shape: f32[4,8,128], index: 0, kind: input, shape index: {}]
  %s1 = inlined_call_operand.vmem [shape: f32[128,32], index: 1, kind: input, shape index: {}]
  %s2 = inlined_call_operand.vmem [shape: f32[128,32], index: 2, kind: input, shape index: {}]
  %s3 = inlined_call_operand.vmem [shape: f32[4,1,128], index: 3, kind: input, shape index: {}]
  %s4 = inlined_call_operand.vmem [shape: f32[4,128,1], index: 4, kind: input, shape index: {}]
  %s5 = inlined_call_operand.vmem [shape: f32[8,1], index: 5, kind: input, shape index: {}]
  %s6 = inlined_call_operand.vmem [shape: s8[4,128,128], index: 6, kind: input, shape index: {}]
  %s7 = inlined_call_operand.vmem [shape: f32[128,32], index: 7, kind: output, shape index: {}]
  %s8 = sld [smem:[#allocation0]]
  $region46: #{tpu_custom_call.1} parent=0
    _
  %s10 = ssub.s32 1, %s8
  %s11 = scalar_select 0, %s10, %s8
  // Predicated region
  $region2: #{tpu_custom_call.1} parent=0 // pred_check
    _
  $region3: #{tpu_custom_call.1} parent=0 // pred_check_branch
    %13 = sbr.rel (0) target = $region5
  $region4: #{tpu_custom_call.1} parent=0 // pred_region
    _
  $region5: #{tpu_custom_call.1} parent=0 // pred_fallthru
    _
  // Predicated region
  $region6: #{tpu_custom_call.1} parent=0 // pred_check
    _
  $region7: #{tpu_custom_call.1} parent=0 // pred_check_branch
    %15 = sbr.rel (0) target = $region9
  $region8: #{tpu_custom_call.1} parent=0 // pred_region
    _
  $region9: #{tpu_custom_call.1} parent=0 // pred_fallthru
    _
  // Predicated region
  $region10: #{tpu_custom_call.1} parent=0 // pred_check
    _
  $region11: #{tpu_custom_call.1} parent=0 // pred_check_branch
    %17 = sbr.rel (0) target = $region13
  $region12: #{tpu_custom_call.1} parent=0 // pred_region
    _
  $region13: #{tpu_custom_call.1} parent=0 // pred_fallthru
    _
  // Predicated region
  $region14: #{tpu_custom_call.1} parent=0 // pred_check
    _
  $region15: #{tpu_custom_call.1} parent=0 // pred_check_branch
    %19 = sbr.rel (0) target = $region17
  $region16: #{tpu_custom_call.1} parent=0 // pred_region
    _
  $region17: #{tpu_custom_call.1} parent=0 // pred_fallthru
    _
  // Predicated region
  $region18: #{tpu_custom_call.1} parent=0 // pred_check
    _
  $region19: #{tpu_custom_call.1} parent=0 // pred_check_branch
    %21 = sbr.rel (0) target = $region21
  $region20: #{tpu_custom_call.1} parent=0 // pred_region
    _
  $region21: #{tpu_custom_call.1} parent=0 // pred_fallthru
    _
  // Predicated region
  $region22: #{tpu_custom_call.1} parent=0 // pred_check
    _
  $region23: #{tpu_custom_call.1} parent=0 // pred_check_branch
    %23 = sbr.rel (0) target = $region25
  $region24: #{tpu_custom_call.1} parent=0 // pred_region
    _
  $region25: #{tpu_custom_call.1} parent=0 // pred_fallthru
    _
  // Predicated region
  $region26: #{tpu_custom_call.1} parent=0 // pred_check
    _
  $region27: #{tpu_custom_call.1} parent=0 // pred_check_branch
    %25 = sbr.rel (0) target = $region29
  $region28: #{tpu_custom_call.1} parent=0 // pred_region
    _
  $region29: #{tpu_custom_call.1} parent=0 // pred_fallthru
    _
  %p30 = scmp.eq.s32.totalorder 0, 0
  // Predicated region
  $region30: #{tpu_custom_call.1} parent=0 // pred_check
    %p31 = pneg %p30
  $region31: #{tpu_custom_call.1} parent=0 // pred_check_branch
    %33 = sbr.rel (%p31) target = $region33
  $region32: #{tpu_custom_call.1} parent=0 // pred_region
    %vm34 = vcmask 7168
    %35 = vst.msk [vmem:[#allocation2] sm:$0xff] %vm34, -1e+30
    %36 = vst.msk [vmem:[#allocation2 + $0x8] sm:$0xff] %vm34, -1e+30
    %37 = vst.msk [vmem:[#allocation2 + $0x10] sm:$0xff] %vm34, -1e+30
    %38 = vst.msk [vmem:[#allocation2 + $0x18] sm:$0xff] %vm34, -1e+30
    %39 = vst.msk [vmem:[#allocation2 + $0x20] sm:$0xff] %vm34, -1e+30
    %40 = vst.msk [vmem:[#allocation2 + $0x28] sm:$0xff] %vm34, -1e+30
    %41 = vst.msk [vmem:[#allocation2 + $0x30] sm:$0xff] %vm34, -1e+30
    %42 = vst.msk [vmem:[#allocation2 + $0x38] sm:$0xff] %vm34, -1e+30
    %43 = vst.msk [vmem:[#allocation2 + $0x40] sm:$0xff] %vm34, -1e+30
    %44 = vst.msk [vmem:[#allocation2 + $0x48] sm:$0xff] %vm34, -1e+30
    %45 = vst.msk [vmem:[#allocation2 + $0x50] sm:$0xff] %vm34, -1e+30
    %46 = vst.msk [vmem:[#allocation2 + $0x58] sm:$0xff] %vm34, -1e+30
    %47 = vst.msk [vmem:[#allocation2 + $0x60] sm:$0xff] %vm34, -1e+30
    %48 = vst.msk [vmem:[#allocation2 + $0x68] sm:$0xff] %vm34, -1e+30
    %49 = vst.msk [vmem:[#allocation2 + $0x70] sm:$0xff] %vm34, -1e+30
    %50 = vst.msk [vmem:[#allocation2 + $0x78] sm:$0xff] %vm34, -1e+30
    %51 = vst.msk [vmem:[#allocation2 + $0x80] sm:$0xff] %vm34, -1e+30
    %52 = vst.msk [vmem:[#allocation2 + $0x88] sm:$0xff] %vm34, -1e+30
    %53 = vst.msk [vmem:[#allocation2 + $0x90] sm:$0xff] %vm34, -1e+30
    %54 = vst.msk [vmem:[#allocation2 + $0x98] sm:$0xff] %vm34, -1e+30
    %55 = vst.msk [vmem:[#allocation2 + $0xa0] sm:$0xff] %vm34, -1e+30
    %56 = vst.msk [vmem:[#allocation2 + $0xa8] sm:$0xff] %vm34, -1e+30
    %57 = vst.msk [vmem:[#allocation2 + $0xb0] sm:$0xff] %vm34, -1e+30
    %58 = vst.msk [vmem:[#allocation2 + $0xb8] sm:$0xff] %vm34, -1e+30
    %59 = vst.msk [vmem:[#allocation2 + $0xc0] sm:$0xff] %vm34, -1e+30
    %60 = vst.msk [vmem:[#allocation2 + $0xc8] sm:$0xff] %vm34, -1e+30
    %61 = vst.msk [vmem:[#allocation2 + $0xd0] sm:$0xff] %vm34, -1e+30
    %62 = vst.msk [vmem:[#allocation2 + $0xd8] sm:$0xff] %vm34, -1e+30
    %63 = vst.msk [vmem:[#allocation2 + $0xe0] sm:$0xff] %vm34, -1e+30
    %64 = vst.msk [vmem:[#allocation2 + $0xe8] sm:$0xff] %vm34, -1e+30
    %65 = vst.msk [vmem:[#allocation2 + $0xf0] sm:$0xff] %vm34, -1e+30
    %66 = vst.msk [vmem:[#allocation2 + $0xf8] sm:$0xff] %vm34, -1e+30
    %67 = vst.msk [vmem:[#allocation2 + $0x100] sm:$0xff] %vm34, -1e+30
    %68 = vst.msk [vmem:[#allocation2 + $0x108] sm:$0xff] %vm34, -1e+30
    %69 = vst.msk [vmem:[#allocation2 + $0x110] sm:$0xff] %vm34, -1e+30
    %70 = vst.msk [vmem:[#allocation2 + $0x118] sm:$0xff] %vm34, -1e+30
    %71 = vst.msk [vmem:[#allocation2 + $0x120] sm:$0xff] %vm34, -1e+30
    %72 = vst.msk [vmem:[#allocation2 + $0x128] sm:$0xff] %vm34, -1e+30
    %73 = vst.msk [vmem:[#allocation2 + $0x130] sm:$0xff] %vm34, -1e+30
    %74 = vst.msk [vmem:[#allocation2 + $0x138] sm:$0xff] %vm34, -1e+30
    %75 = vst.msk [vmem:[#allocation2 + $0x140] sm:$0xff] %vm34, -1e+30
    %76 = vst.msk [vmem:[#allocation2 + $0x148] sm:$0xff] %vm34, -1e+30
    %77 = vst.msk [vmem:[#allocation2 + $0x150] sm:$0xff] %vm34, -1e+30
    %78 = vst.msk [vmem:[#allocation2 + $0x158] sm:$0xff] %vm34, -1e+30
    %79 = vst.msk [vmem:[#allocation2 + $0x160] sm:$0xff] %vm34, -1e+30
    %80 = vst.msk [vmem:[#allocation2 + $0x168] sm:$0xff] %vm34, -1e+30
    %81 = vst.msk [vmem:[#allocation2 + $0x170] sm:$0xff] %vm34, -1e+30
    %82 = vst.msk [vmem:[#allocation2 + $0x178] sm:$0xff] %vm34, -1e+30
    %83 = vst.msk [vmem:[#allocation2 + $0x180] sm:$0xff] %vm34, -1e+30
    %84 = vst.msk [vmem:[#allocation2 + $0x188] sm:$0xff] %vm34, -1e+30
    %85 = vst.msk [vmem:[#allocation2 + $0x190] sm:$0xff] %vm34, -1e+30
    %86 = vst.msk [vmem:[#allocation2 + $0x198] sm:$0xff] %vm34, -1e+30
    %87 = vst.msk [vmem:[#allocation2 + $0x1a0] sm:$0xff] %vm34, -1e+30
    %88 = vst.msk [vmem:[#allocation2 + $0x1a8] sm:$0xff] %vm34, -1e+30
    %89 = vst.msk [vmem:[#allocation2 + $0x1b0] sm:$0xff] %vm34, -1e+30
    %90 = vst.msk [vmem:[#allocation2 + $0x1b8] sm:$0xff] %vm34, -1e+30
    %91 = vst.msk [vmem:[#allocation2 + $0x1c0] sm:$0xff] %vm34, -1e+30
    %92 = vst.msk [vmem:[#allocation2 + $0x1c8] sm:$0xff] %vm34, -1e+30
    %93 = vst.msk [vmem:[#allocation2 + $0x1d0] sm:$0xff] %vm34, -1e+30
    %94 = vst.msk [vmem:[#allocation2 + $0x1d8] sm:$0xff] %vm34, -1e+30
    %95 = vst.msk [vmem:[#allocation2 + $0x1e0] sm:$0xff] %vm34, -1e+30
    %96 = vst.msk [vmem:[#allocation2 + $0x1e8] sm:$0xff] %vm34, -1e+30
    %97 = vst.msk [vmem:[#allocation2 + $0x1f0] sm:$0xff] %vm34, -1e+30
    %98 = vst.msk [vmem:[#allocation2 + $0x1f8] sm:$0xff] %vm34, -1e+30
    %99 = vst.msk [vmem:[#allocation3] sm:$0xff] %vm34, 0.0
    %100 = vst.msk [vmem:[#allocation3 + $0x8] sm:$0xff] %vm34, 0.0
    %101 = vst.msk [vmem:[#allocation3 + $0x10] sm:$0xff] %vm34, 0.0
    %102 = vst.msk [vmem:[#allocation3 + $0x18] sm:$0xff] %vm34, 0.0
    %103 = vst.msk [vmem:[#allocation3 + $0x20] sm:$0xff] %vm34, 0.0
    %104 = vst.msk [vmem:[#allocation3 + $0x28] sm:$0xff] %vm34, 0.0
    %105 = vst.msk [vmem:[#allocation3 + $0x30] sm:$0xff] %vm34, 0.0
    %106 = vst.msk [vmem:[#allocation3 + $0x38] sm:$0xff] %vm34, 0.0
    %107 = vst.msk [vmem:[#allocation3 + $0x40] sm:$0xff] %vm34, 0.0
    %108 = vst.msk [vmem:[#allocation3 + $0x48] sm:$0xff] %vm34, 0.0
    %109 = vst.msk [vmem:[#allocation3 + $0x50] sm:$0xff] %vm34, 0.0
    %110 = vst.msk [vmem:[#allocation3 + $0x58] sm:$0xff] %vm34, 0.0
    %111 = vst.msk [vmem:[#allocation3 + $0x60] sm:$0xff] %vm34, 0.0
    %112 = vst.msk [vmem:[#allocation3 + $0x68] sm:$0xff] %vm34, 0.0
    %113 = vst.msk [vmem:[#allocation3 + $0x70] sm:$0xff] %vm34, 0.0
    %114 = vst.msk [vmem:[#allocation3 + $0x78] sm:$0xff] %vm34, 0.0
    %115 = vst.msk [vmem:[#allocation3 + $0x80] sm:$0xff] %vm34, 0.0
    %116 = vst.msk [vmem:[#allocation3 + $0x88] sm:$0xff] %vm34, 0.0
    %117 = vst.msk [vmem:[#allocation3 + $0x90] sm:$0xff] %vm34, 0.0
    %118 = vst.msk [vmem:[#allocation3 + $0x98] sm:$0xff] %vm34, 0.0
    %119 = vst.msk [vmem:[#allocation3 + $0xa0] sm:$0xff] %vm34, 0.0
    %120 = vst.msk [vmem:[#allocation3 + $0xa8] sm:$0xff] %vm34, 0.0
    %121 = vst.msk [vmem:[#allocation3 + $0xb0] sm:$0xff] %vm34, 0.0
    %122 = vst.msk [vmem:[#allocation3 + $0xb8] sm:$0xff] %vm34, 0.0
    %123 = vst.msk [vmem:[#allocation3 + $0xc0] sm:$0xff] %vm34, 0.0
    %124 = vst.msk [vmem:[#allocation3 + $0xc8] sm:$0xff] %vm34, 0.0
    %125 = vst.msk [vmem:[#allocation3 + $0xd0] sm:$0xff] %vm34, 0.0
    %126 = vst.msk [vmem:[#allocation3 + $0xd8] sm:$0xff] %vm34, 0.0
    %127 = vst.msk [vmem:[#allocation3 + $0xe0] sm:$0xff] %vm34, 0.0
    %128 = vst.msk [vmem:[#allocation3 + $0xe8] sm:$0xff] %vm34, 0.0
    %129 = vst.msk [vmem:[#allocation3 + $0xf0] sm:$0xff] %vm34, 0.0
    %130 = vst.msk [vmem:[#allocation3 + $0xf8] sm:$0xff] %vm34, 0.0
    %131 = vst.msk [vmem:[#allocation3 + $0x100] sm:$0xff] %vm34, 0.0
    %132 = vst.msk [vmem:[#allocation3 + $0x108] sm:$0xff] %vm34, 0.0
    %133 = vst.msk [vmem:[#allocation3 + $0x110] sm:$0xff] %vm34, 0.0
    %134 = vst.msk [vmem:[#allocation3 + $0x118] sm:$0xff] %vm34, 0.0
    %135 = vst.msk [vmem:[#allocation3 + $0x120] sm:$0xff] %vm34, 0.0
    %136 = vst.msk [vmem:[#allocation3 + $0x128] sm:$0xff] %vm34, 0.0
    %137 = vst.msk [vmem:[#allocation3 + $0x130] sm:$0xff] %vm34, 0.0
    %138 = vst.msk [vmem:[#allocation3 + $0x138] sm:$0xff] %vm34, 0.0
    %139 = vst.msk [vmem:[#allocation3 + $0x140] sm:$0xff] %vm34, 0.0
    %140 = vst.msk [vmem:[#allocation3 + $0x148] sm:$0xff] %vm34, 0.0
    %141 = vst.msk [vmem:[#allocation3 + $0x150] sm:$0xff] %vm34, 0.0
    %142 = vst.msk [vmem:[#allocation3 + $0x158] sm:$0xff] %vm34, 0.0
    %143 = vst.msk [vmem:[#allocation3 + $0x160] sm:$0xff] %vm34, 0.0
    %144 = vst.msk [vmem:[#allocation3 + $0x168] sm:$0xff] %vm34, 0.0
    %145 = vst.msk [vmem:[#allocation3 + $0x170] sm:$0xff] %vm34, 0.0
    %146 = vst.msk [vmem:[#allocation3 + $0x178] sm:$0xff] %vm34, 0.0
    %147 = vst.msk [vmem:[#allocation3 + $0x180] sm:$0xff] %vm34, 0.0
    %148 = vst.msk [vmem:[#allocation3 + $0x188] sm:$0xff] %vm34, 0.0
    %149 = vst.msk [vmem:[#allocation3 + $0x190] sm:$0xff] %vm34, 0.0
    %150 = vst.msk [vmem:[#allocation3 + $0x198] sm:$0xff] %vm34, 0.0
    %151 = vst.msk [vmem:[#allocation3 + $0x1a0] sm:$0xff] %vm34, 0.0
    %152 = vst.msk [vmem:[#allocation3 + $0x1a8] sm:$0xff] %vm34, 0.0
    %153 = vst.msk [vmem:[#allocation3 + $0x1b0] sm:$0xff] %vm34, 0.0
    %154 = vst.msk [vmem:[#allocation3 + $0x1b8] sm:$0xff] %vm34, 0.0
    %155 = vst.msk [vmem:[#allocation3 + $0x1c0] sm:$0xff] %vm34, 0.0
    %156 = vst.msk [vmem:[#allocation3 + $0x1c8] sm:$0xff] %vm34, 0.0
    %157 = vst.msk [vmem:[#allocation3 + $0x1d0] sm:$0xff] %vm34, 0.0
    %158 = vst.msk [vmem:[#allocation3 + $0x1d8] sm:$0xff] %vm34, 0.0
    %159 = vst.msk [vmem:[#allocation3 + $0x1e0] sm:$0xff] %vm34, 0.0
    %160 = vst.msk [vmem:[#allocation3 + $0x1e8] sm:$0xff] %vm34, 0.0
    %161 = vst.msk [vmem:[#allocation3 + $0x1f0] sm:$0xff] %vm34, 0.0
    %162 = vst.msk [vmem:[#allocation3 + $0x1f8] sm:$0xff] %vm34, 0.0
    %vm163 = vcmask 64512
    %164 = vst.msk [vmem:[#allocation4] sm:$0xff] %vm163, 0.0
    %165 = vst.msk [vmem:[#allocation4 + $0x8] sm:$0xff] %vm163, 0.0
    %166 = vst.msk [vmem:[#allocation4 + $0x10] sm:$0xff] %vm163, 0.0
    %167 = vst.msk [vmem:[#allocation4 + $0x18] sm:$0xff] %vm163, 0.0
    %168 = vst.msk [vmem:[#allocation4 + $0x20] sm:$0xff] %vm163, 0.0
    %169 = vst.msk [vmem:[#allocation4 + $0x28] sm:$0xff] %vm163, 0.0
    %170 = vst.msk [vmem:[#allocation4 + $0x30] sm:$0xff] %vm163, 0.0
    %171 = vst.msk [vmem:[#allocation4 + $0x38] sm:$0xff] %vm163, 0.0
    %172 = vst.msk [vmem:[#allocation4 + $0x40] sm:$0xff] %vm163, 0.0
    %173 = vst.msk [vmem:[#allocation4 + $0x48] sm:$0xff] %vm163, 0.0
    %174 = vst.msk [vmem:[#allocation4 + $0x50] sm:$0xff] %vm163, 0.0
    %175 = vst.msk [vmem:[#allocation4 + $0x58] sm:$0xff] %vm163, 0.0
    %176 = vst.msk [vmem:[#allocation4 + $0x60] sm:$0xff] %vm163, 0.0
    %177 = vst.msk [vmem:[#allocation4 + $0x68] sm:$0xff] %vm163, 0.0
    %178 = vst.msk [vmem:[#allocation4 + $0x70] sm:$0xff] %vm163, 0.0
    %179 = vst.msk [vmem:[#allocation4 + $0x78] sm:$0xff] %vm163, 0.0
    %180 = vst.msk [vmem:[#allocation4 + $0x80] sm:$0xff] %vm163, 0.0
    %181 = vst.msk [vmem:[#allocation4 + $0x88] sm:$0xff] %vm163, 0.0
    %182 = vst.msk [vmem:[#allocation4 + $0x90] sm:$0xff] %vm163, 0.0
    %183 = vst.msk [vmem:[#allocation4 + $0x98] sm:$0xff] %vm163, 0.0
    %184 = vst.msk [vmem:[#allocation4 + $0xa0] sm:$0xff] %vm163, 0.0
    %185 = vst.msk [vmem:[#allocation4 + $0xa8] sm:$0xff] %vm163, 0.0
    %186 = vst.msk [vmem:[#allocation4 + $0xb0] sm:$0xff] %vm163, 0.0
    %187 = vst.msk [vmem:[#allocation4 + $0xb8] sm:$0xff] %vm163, 0.0
    %188 = vst.msk [vmem:[#allocation4 + $0xc0] sm:$0xff] %vm163, 0.0
    %189 = vst.msk [vmem:[#allocation4 + $0xc8] sm:$0xff] %vm163, 0.0
    %190 = vst.msk [vmem:[#allocation4 + $0xd0] sm:$0xff] %vm163, 0.0
    %191 = vst.msk [vmem:[#allocation4 + $0xd8] sm:$0xff] %vm163, 0.0
    %192 = vst.msk [vmem:[#allocation4 + $0xe0] sm:$0xff] %vm163, 0.0
    %193 = vst.msk [vmem:[#allocation4 + $0xe8] sm:$0xff] %vm163, 0.0
    %194 = vst.msk [vmem:[#allocation4 + $0xf0] sm:$0xff] %vm163, 0.0
    %195 = vst.msk [vmem:[#allocation4 + $0xf8] sm:$0xff] %vm163, 0.0
    %196 = vst.msk [vmem:[#allocation4 + $0x100] sm:$0xff] %vm163, 0.0
    %197 = vst.msk [vmem:[#allocation4 + $0x108] sm:$0xff] %vm163, 0.0
    %198 = vst.msk [vmem:[#allocation4 + $0x110] sm:$0xff] %vm163, 0.0
    %199 = vst.msk [vmem:[#allocation4 + $0x118] sm:$0xff] %vm163, 0.0
    %200 = vst.msk [vmem:[#allocation4 + $0x120] sm:$0xff] %vm163, 0.0
    %201 = vst.msk [vmem:[#allocation4 + $0x128] sm:$0xff] %vm163, 0.0
    %202 = vst.msk [vmem:[#allocation4 + $0x130] sm:$0xff] %vm163, 0.0
    %203 = vst.msk [vmem:[#allocation4 + $0x138] sm:$0xff] %vm163, 0.0
    %204 = vst.msk [vmem:[#allocation4 + $0x140] sm:$0xff] %vm163, 0.0
    %205 = vst.msk [vmem:[#allocation4 + $0x148] sm:$0xff] %vm163, 0.0
    %206 = vst.msk [vmem:[#allocation4 + $0x150] sm:$0xff] %vm163, 0.0
    %207 = vst.msk [vmem:[#allocation4 + $0x158] sm:$0xff] %vm163, 0.0
    %208 = vst.msk [vmem:[#allocation4 + $0x160] sm:$0xff] %vm163, 0.0
    %209 = vst.msk [vmem:[#allocation4 + $0x168] sm:$0xff] %vm163, 0.0
    %210 = vst.msk [vmem:[#allocation4 + $0x170] sm:$0xff] %vm163, 0.0
    %211 = vst.msk [vmem:[#allocation4 + $0x178] sm:$0xff] %vm163, 0.0
    %212 = vst.msk [vmem:[#allocation4 + $0x180] sm:$0xff] %vm163, 0.0
    %213 = vst.msk [vmem:[#allocation4 + $0x188] sm:$0xff] %vm163, 0.0
    %214 = vst.msk [vmem:[#allocation4 + $0x190] sm:$0xff] %vm163, 0.0
    %215 = vst.msk [vmem:[#allocation4 + $0x198] sm:$0xff] %vm163, 0.0
    %216 = vst.msk [vmem:[#allocation4 + $0x1a0] sm:$0xff] %vm163, 0.0
    %217 = vst.msk [vmem:[#allocation4 + $0x1a8] sm:$0xff] %vm163, 0.0
    %218 = vst.msk [vmem:[#allocation4 + $0x1b0] sm:$0xff] %vm163, 0.0
    %219 = vst.msk [vmem:[#allocation4 + $0x1b8] sm:$0xff] %vm163, 0.0
    %220 = vst.msk [vmem:[#allocation4 + $0x1c0] sm:$0xff] %vm163, 0.0
    %221 = vst.msk [vmem:[#allocation4 + $0x1c8] sm:$0xff] %vm163, 0.0
    %222 = vst.msk [vmem:[#allocation4 + $0x1d0] sm:$0xff] %vm163, 0.0
    %223 = vst.msk [vmem:[#allocation4 + $0x1d8] sm:$0xff] %vm163, 0.0
    %224 = vst.msk [vmem:[#allocation4 + $0x1e0] sm:$0xff] %vm163, 0.0
    %225 = vst.msk [vmem:[#allocation4 + $0x1e8] sm:$0xff] %vm163, 0.0
    %226 = vst.msk [vmem:[#allocation4 + $0x1f0] sm:$0xff] %vm163, 0.0
    %227 = vst.msk [vmem:[#allocation4 + $0x1f8] sm:$0xff] %vm163, 0.0
  $region33: #{tpu_custom_call.1} parent=0 // pred_fallthru
    _
  %v228 = vld [vmem:[%s5] sm:$0xff]
  %v229 = vld [vmem:[%s0] sm:$0xff]
  %v230 = vld [vmem:[%s1] sm:$0xff]
  %v231 = vld [vmem:[%s1 + $0x8] sm:$0xff]
  %v232 = vld [vmem:[%s1 + $0x10] sm:$0xff]
  %v233 = vld [vmem:[%s1 + $0x18] sm:$0xff]
  %v234 = vld [vmem:[%s1 + $0x20] sm:$0xff]
  %v235 = vld [vmem:[%s1 + $0x28] sm:$0xff]
  %v236 = vld [vmem:[%s1 + $0x30] sm:$0xff]
  %v237 = vld [vmem:[%s1 + $0x38] sm:$0xff]
  %v238 = vld [vmem:[%s1 + $0x40] sm:$0xff]
  %v239 = vld [vmem:[%s1 + $0x48] sm:$0xff]
  %v240 = vld [vmem:[%s1 + $0x50] sm:$0xff]
  %v241 = vld [vmem:[%s1 + $0x58] sm:$0xff]
  %v242 = vld [vmem:[%s1 + $0x60] sm:$0xff]
  %v243 = vld [vmem:[%s1 + $0x68] sm:$0xff]
  %v244 = vld [vmem:[%s1 + $0x70] sm:$0xff]
  %v245 = vld [vmem:[%s1 + $0x78] sm:$0xff]
  %v246 = vld [vmem:[%s6] sm:$0xff]
  %v247 = vld [vmem:[%s6 + $0x8] sm:$0xff]
  %v248 = vld [vmem:[%s6 + $0x10] sm:$0xff]
  %v249 = vld [vmem:[%s6 + $0x18] sm:$0xff]
  %v250 = vld [vmem:[%s4] sm:$0xff]
  %v251 = vld [vmem:[%s4 + $0x8] sm:$0xff]
  %v252 = vld [vmem:[%s4 + $0x10] sm:$0xff]
  %v253 = vld [vmem:[%s4 + $0x18] sm:$0xff]
  %v254 = vld [vmem:[%s4 + $0x20] sm:$0xff]
  %v255 = vld [vmem:[%s4 + $0x28] sm:$0xff]
  %v256 = vld [vmem:[%s4 + $0x30] sm:$0xff]
  %v257 = vld [vmem:[%s4 + $0x38] sm:$0xff]
  %v258 = vld [vmem:[%s4 + $0x40] sm:$0xff]
  %v259 = vld [vmem:[%s4 + $0x48] sm:$0xff]
  %v260 = vld [vmem:[%s4 + $0x50] sm:$0xff]
  %v261 = vld [vmem:[%s4 + $0x58] sm:$0xff]
  %v262 = vld [vmem:[%s4 + $0x60] sm:$0xff]
  %v263 = vld [vmem:[%s4 + $0x68] sm:$0xff]
  %v264 = vld [vmem:[%s4 + $0x70] sm:$0xff]
  %v265 = vld [vmem:[%s4 + $0x78] sm:$0xff]
  %v266 = vld [vmem:[%s3] sm:$0x1]
  %268 = vset.pattern.permute.xlu0 0
  %269 = vperm.xlu0 %268, %v250
  %v270 = vpop.permute.xlu0 %269
  %273 = vset.pattern.permute.xlu0 0
  %274 = vperm.xlu0 %273, %v251
  %v275 = vpop.permute.xlu0 %274
  %278 = vset.pattern.permute.xlu0 0
  %279 = vperm.xlu0 %278, %v252
  %v280 = vpop.permute.xlu0 %279
  %283 = vset.pattern.permute.xlu0 0
  %284 = vperm.xlu0 %283, %v253
  %v285 = vpop.permute.xlu0 %284
  %288 = vset.pattern.permute.xlu0 0
  %289 = vperm.xlu0 %288, %v254
  %v290 = vpop.permute.xlu0 %289
  %293 = vset.pattern.permute.xlu0 0
  %294 = vperm.xlu0 %293, %v255
  %v295 = vpop.permute.xlu0 %294
  %298 = vset.pattern.permute.xlu0 0
  %299 = vperm.xlu0 %298, %v256
  %v300 = vpop.permute.xlu0 %299
  %303 = vset.pattern.permute.xlu0 0
  %304 = vperm.xlu0 %303, %v257
  %v305 = vpop.permute.xlu0 %304
  %308 = vset.pattern.permute.xlu0 0
  %309 = vperm.xlu0 %308, %v258
  %v310 = vpop.permute.xlu0 %309
  %313 = vset.pattern.permute.xlu0 0
  %314 = vperm.xlu0 %313, %v259
  %v315 = vpop.permute.xlu0 %314
  %318 = vset.pattern.permute.xlu0 0
  %319 = vperm.xlu0 %318, %v260
  %v320 = vpop.permute.xlu0 %319
  %323 = vset.pattern.permute.xlu0 0
  %324 = vperm.xlu0 %323, %v261
  %v325 = vpop.permute.xlu0 %324
  %328 = vset.pattern.permute.xlu0 0
  %329 = vperm.xlu0 %328, %v262
  %v330 = vpop.permute.xlu0 %329
  %333 = vset.pattern.permute.xlu0 0
  %334 = vperm.xlu0 %333, %v263
  %v335 = vpop.permute.xlu0 %334
  %338 = vset.pattern.permute.xlu0 0
  %339 = vperm.xlu0 %338, %v264
  %v340 = vpop.permute.xlu0 %339
  %343 = vset.pattern.permute.xlu0 0
  %344 = vperm.xlu0 %343, %v265
  %v345 = vpop.permute.xlu0 %344
  %v348 = vlaneseq
  %v349 = vshrl.u32 %v348, 7
  %v350 = vsub.s32 0, %v349
  %v351 = vrot.slane %v266, %v350
  %v353 = vadd.f32 %v270, %v351
  %v354 = vadd.f32 %v275, %v351
  %v355 = vadd.f32 %v280, %v351
  %v356 = vadd.f32 %v285, %v351
  %v357 = vadd.f32 %v290, %v351
  %v358 = vadd.f32 %v295, %v351
  %v359 = vadd.f32 %v300, %v351
  %v360 = vadd.f32 %v305, %v351
  %v361 = vadd.f32 %v310, %v351
  %v362 = vadd.f32 %v315, %v351
  %v363 = vadd.f32 %v320, %v351
  %v364 = vadd.f32 %v325, %v351
  %v365 = vadd.f32 %v330, %v351
  %v366 = vadd.f32 %v335, %v351
  %v367 = vadd.f32 %v340, %v351
  %v368 = vadd.f32 %v345, %v351
  %v369 = vlaneseq
  %v370 = vshrl.u32 %v369, 7
  %v371 = vsub.s32 0, %v370
  %v372 = vrot.slane %v229, %v371
  %374 = vset.pattern.permute.xlu0 0
  %375 = vperm.xlu0 %374, %v230
  %v376 = vpop.permute.xlu0 %375
  %379 = vset.pattern.permute.xlu0 0
  %380 = vperm.xlu0 %379, %v231
  %v381 = vpop.permute.xlu0 %380
  %384 = vset.pattern.permute.xlu0 0
  %385 = vperm.xlu0 %384, %v232
  %v386 = vpop.permute.xlu0 %385
  %389 = vset.pattern.permute.xlu0 0
  %390 = vperm.xlu0 %389, %v233
  %v391 = vpop.permute.xlu0 %390
  %394 = vset.pattern.permute.xlu0 0
  %395 = vperm.xlu0 %394, %v234
  %v396 = vpop.permute.xlu0 %395
  %399 = vset.pattern.permute.xlu0 0
  %400 = vperm.xlu0 %399, %v235
  %v401 = vpop.permute.xlu0 %400
  %404 = vset.pattern.permute.xlu0 0
  %405 = vperm.xlu0 %404, %v236
  %v406 = vpop.permute.xlu0 %405
  %409 = vset.pattern.permute.xlu0 0
  %410 = vperm.xlu0 %409, %v237
  %v411 = vpop.permute.xlu0 %410
  %414 = vset.pattern.permute.xlu0 0
  %415 = vperm.xlu0 %414, %v238
  %v416 = vpop.permute.xlu0 %415
  %419 = vset.pattern.permute.xlu0 0
  %420 = vperm.xlu0 %419, %v239
  %v421 = vpop.permute.xlu0 %420
  %424 = vset.pattern.permute.xlu0 0
  %425 = vperm.xlu0 %424, %v240
  %v426 = vpop.permute.xlu0 %425
  %429 = vset.pattern.permute.xlu0 0
  %430 = vperm.xlu0 %429, %v241
  %v431 = vpop.permute.xlu0 %430
  %434 = vset.pattern.permute.xlu0 0
  %435 = vperm.xlu0 %434, %v242
  %v436 = vpop.permute.xlu0 %435
  %439 = vset.pattern.permute.xlu0 0
  %440 = vperm.xlu0 %439, %v243
  %v441 = vpop.permute.xlu0 %440
  %444 = vset.pattern.permute.xlu0 0
  %445 = vperm.xlu0 %444, %v244
  %v446 = vpop.permute.xlu0 %445
  %449 = vset.pattern.permute.xlu0 0
  %450 = vperm.xlu0 %449, %v245
  %v451 = vpop.permute.xlu0 %450
  %v453 = vadd.f32 %v372, %v376
  %v454 = vadd.f32 %v372, %v381
  %v455 = vadd.f32 %v372, %v386
  %v456 = vadd.f32 %v372, %v391
  %v457 = vadd.f32 %v372, %v396
  %v458 = vadd.f32 %v372, %v401
  %v459 = vadd.f32 %v372, %v406
  %v460 = vadd.f32 %v372, %v411
  %v461 = vadd.f32 %v372, %v416
  %v462 = vadd.f32 %v372, %v421
  %v463 = vadd.f32 %v372, %v426
  %v464 = vadd.f32 %v372, %v431
  %v465 = vadd.f32 %v372, %v436
  %v466 = vadd.f32 %v372, %v441
  %v467 = vadd.f32 %v372, %v446
  %v468 = vadd.f32 %v372, %v451
  %v469 = vand.u32 2147483647, %v453
  %v470 = vand.u32 2147483647, %v454
  %v471 = vand.u32 2147483647, %v455
  %v472 = vand.u32 2147483647, %v456
  %v473 = vand.u32 2147483647, %v457
  %v474 = vand.u32 2147483647, %v458
  %v475 = vand.u32 2147483647, %v459
  %v476 = vand.u32 2147483647, %v460
  %v477 = vand.u32 2147483647, %v461
  %v478 = vand.u32 2147483647, %v462
  %v479 = vand.u32 2147483647, %v463
  %v480 = vand.u32 2147483647, %v464
  %v481 = vand.u32 2147483647, %v465
  %v482 = vand.u32 2147483647, %v466
  %v483 = vand.u32 2147483647, %v467
  %v484 = vand.u32 2147483647, %v468
  %s486 = vtos %v228
  %v487 = vstv %s486
  %v489 = vmul.f32 %v487, %v469
  %v490 = vmul.f32 %v487, %v470
  %v491 = vmul.f32 %v487, %v471
  %v492 = vmul.f32 %v487, %v472
  %v493 = vmul.f32 %v487, %v473
  %v494 = vmul.f32 %v487, %v474
  %v495 = vmul.f32 %v487, %v475
  %v496 = vmul.f32 %v487, %v476
  %v497 = vmul.f32 %v487, %v477
  %v498 = vmul.f32 %v487, %v478
  %v499 = vmul.f32 %v487, %v479
  %v500 = vmul.f32 %v487, %v480
  %v501 = vmul.f32 %v487, %v481
  %v502 = vmul.f32 %v487, %v482
  %v503 = vmul.f32 %v487, %v483
  %v504 = vmul.f32 %v487, %v484
  %v505 = vadd.f32 %v353, %v489
  %v506 = vadd.f32 %v354, %v490
  %v507 = vadd.f32 %v355, %v491
  %v508 = vadd.f32 %v356, %v492
  %v509 = vadd.f32 %v357, %v493
  %v510 = vadd.f32 %v358, %v494
  %v511 = vadd.f32 %v359, %v495
  %v512 = vadd.f32 %v360, %v496
  %v513 = vadd.f32 %v361, %v497
  %v514 = vadd.f32 %v362, %v498
  %v515 = vadd.f32 %v363, %v499
  %v516 = vadd.f32 %v364, %v500
  %v517 = vadd.f32 %v365, %v501
  %v518 = vadd.f32 %v366, %v502
  %v519 = vadd.f32 %v367, %v503
  %v520 = vadd.f32 %v368, %v504
  %v521 = vlaneseq
  %v522 = vshrl.u32 %v521, 7
  %v523 = vsub.s32 1, %v522
  %v524 = vrot.slane %v229, %v523
  %525 = vset.pattern.permute.xlu0 1
  %526 = vperm.xlu0 %525, %v230
  %v527 = vpop.permute.xlu0 %526
  %529 = vset.pattern.permute.xlu0 1
  %530 = vperm.xlu0 %529, %v231
  %v531 = vpop.permute.xlu0 %530
  %533 = vset.pattern.permute.xlu0 1
  %534 = vperm.xlu0 %533, %v232
  %v535 = vpop.permute.xlu0 %534
  %537 = vset.pattern.permute.xlu0 1
  %538 = vperm.xlu0 %537, %v233
  %v539 = vpop.permute.xlu0 %538
  %541 = vset.pattern.permute.xlu0 1
  %542 = vperm.xlu0 %541, %v234
  %v543 = vpop.permute.xlu0 %542
  %545 = vset.pattern.permute.xlu0 1
  %546 = vperm.xlu0 %545, %v235
  %v547 = vpop.permute.xlu0 %546
  %549 = vset.pattern.permute.xlu0 1
  %550 = vperm.xlu0 %549, %v236
  %v551 = vpop.permute.xlu0 %550
  %553 = vset.pattern.permute.xlu0 1
  %554 = vperm.xlu0 %553, %v237
  %v555 = vpop.permute.xlu0 %554
  %557 = vset.pattern.permute.xlu0 1
  %558 = vperm.xlu0 %557, %v238
  %v559 = vpop.permute.xlu0 %558
  %561 = vset.pattern.permute.xlu0 1
  %562 = vperm.xlu0 %561, %v239
  %v563 = vpop.permute.xlu0 %562
  %565 = vset.pattern.permute.xlu0 1
  %566 = vperm.xlu0 %565, %v240
  %v567 = vpop.permute.xlu0 %566
  %569 = vset.pattern.permute.xlu0 1
  %570 = vperm.xlu0 %569, %v241
  %v571 = vpop.permute.xlu0 %570
  %573 = vset.pattern.permute.xlu0 1
  %574 = vperm.xlu0 %573, %v242
  %v575 = vpop.permute.xlu0 %574
  %577 = vset.pattern.permute.xlu0 1
  %578 = vperm.xlu0 %577, %v243
  %v579 = vpop.permute.xlu0 %578
  %581 = vset.pattern.permute.xlu0 1
  %582 = vperm.xlu0 %581, %v244
  %v583 = vpop.permute.xlu0 %582
  %585 = vset.pattern.permute.xlu0 1
  %586 = vperm.xlu0 %585, %v245
  %v587 = vpop.permute.xlu0 %586
  %v589 = vadd.f32 %v524, %v527
  %v590 = vadd.f32 %v524, %v531
  %v591 = vadd.f32 %v524, %v535
  %v592 = vadd.f32 %v524, %v539
  %v593 = vadd.f32 %v524, %v543
  %v594 = vadd.f32 %v524, %v547
  %v595 = vadd.f32 %v524, %v551
  %v596 = vadd.f32 %v524, %v555
  %v597 = vadd.f32 %v524, %v559
  %v598 = vadd.f32 %v524, %v563
  %v599 = vadd.f32 %v524, %v567
  %v600 = vadd.f32 %v524, %v571
  %v601 = vadd.f32 %v524, %v575
  %v602 = vadd.f32 %v524, %v579
  %v603 = vadd.f32 %v524, %v583
  %v604 = vadd.f32 %v524, %v587
  %v605 = vand.u32 2147483647, %v589
  %v606 = vand.u32 2147483647, %v590
  %v607 = vand.u32 2147483647, %v591
  %v608 = vand.u32 2147483647, %v592
  %v609 = vand.u32 2147483647, %v593
  %v610 = vand.u32 2147483647, %v594
  %v611 = vand.u32 2147483647, %v595
  %v612 = vand.u32 2147483647, %v596
  %v613 = vand.u32 2147483647, %v597
  %v614 = vand.u32 2147483647, %v598
  %v615 = vand.u32 2147483647, %v599
  %v616 = vand.u32 2147483647, %v600
  %v617 = vand.u32 2147483647, %v601
  %v618 = vand.u32 2147483647, %v602
  %v619 = vand.u32 2147483647, %v603
  %v620 = vand.u32 2147483647, %v604
  %v621 = vrot.slane %v228, 1
  %s622 = vtos %v621
  %v623 = vstv %s622
  %v625 = vmul.f32 %v623, %v605
  %v626 = vmul.f32 %v623, %v606
  %v627 = vmul.f32 %v623, %v607
  %v628 = vmul.f32 %v623, %v608
  %v629 = vmul.f32 %v623, %v609
  %v630 = vmul.f32 %v623, %v610
  %v631 = vmul.f32 %v623, %v611
  %v632 = vmul.f32 %v623, %v612
  %v633 = vmul.f32 %v623, %v613
  %v634 = vmul.f32 %v623, %v614
  %v635 = vmul.f32 %v623, %v615
  %v636 = vmul.f32 %v623, %v616
  %v637 = vmul.f32 %v623, %v617
  %v638 = vmul.f32 %v623, %v618
  %v639 = vmul.f32 %v623, %v619
  %v640 = vmul.f32 %v623, %v620
  %v641 = vadd.f32 %v505, %v625
  %v642 = vadd.f32 %v506, %v626
  %v643 = vadd.f32 %v507, %v627
  %v644 = vadd.f32 %v508, %v628
  %v645 = vadd.f32 %v509, %v629
  %v646 = vadd.f32 %v510, %v630
  %v647 = vadd.f32 %v511, %v631
  %v648 = vadd.f32 %v512, %v632
  %v649 = vadd.f32 %v513, %v633
  %v650 = vadd.f32 %v514, %v634
  %v651 = vadd.f32 %v515, %v635
  %v652 = vadd.f32 %v516, %v636
  %v653 = vadd.f32 %v517, %v637
  %v654 = vadd.f32 %v518, %v638
  %v655 = vadd.f32 %v519, %v639
  %v656 = vadd.f32 %v520, %v640
  %v657 = vlaneseq
  %v658 = vshrl.u32 %v657, 7
  %v659 = vsub.s32 2, %v658
  %v660 = vrot.slane %v229, %v659
  %661 = vset.pattern.permute.xlu0 2
  %662 = vperm.xlu0 %661, %v230
  %v663 = vpop.permute.xlu0 %662
  %665 = vset.pattern.permute.xlu0 2
  %666 = vperm.xlu0 %665, %v231
  %v667 = vpop.permute.xlu0 %666
  %669 = vset.pattern.permute.xlu0 2
  %670 = vperm.xlu0 %669, %v232
  %v671 = vpop.permute.xlu0 %670
  %673 = vset.pattern.permute.xlu0 2
  %674 = vperm.xlu0 %673, %v233
  %v675 = vpop.permute.xlu0 %674
  %677 = vset.pattern.permute.xlu0 2
  %678 = vperm.xlu0 %677, %v234
  %v679 = vpop.permute.xlu0 %678
  %681 = vset.pattern.permute.xlu0 2
  %682 = vperm.xlu0 %681, %v235
  %v683 = vpop.permute.xlu0 %682
  %685 = vset.pattern.permute.xlu0 2
  %686 = vperm.xlu0 %685, %v236
  %v687 = vpop.permute.xlu0 %686
  %689 = vset.pattern.permute.xlu0 2
  %690 = vperm.xlu0 %689, %v237
  %v691 = vpop.permute.xlu0 %690
  %693 = vset.pattern.permute.xlu0 2
  %694 = vperm.xlu0 %693, %v238
  %v695 = vpop.permute.xlu0 %694
  %697 = vset.pattern.permute.xlu0 2
  %698 = vperm.xlu0 %697, %v239
  %v699 = vpop.permute.xlu0 %698
  %701 = vset.pattern.permute.xlu0 2
  %702 = vperm.xlu0 %701, %v240
  %v703 = vpop.permute.xlu0 %702
  %705 = vset.pattern.permute.xlu0 2
  %706 = vperm.xlu0 %705, %v241
  %v707 = vpop.permute.xlu0 %706
  %709 = vset.pattern.permute.xlu0 2
  %710 = vperm.xlu0 %709, %v242
  %v711 = vpop.permute.xlu0 %710
  %713 = vset.pattern.permute.xlu0 2
  %714 = vperm.xlu0 %713, %v243
  %v715 = vpop.permute.xlu0 %714
  %717 = vset.pattern.permute.xlu0 2
  %718 = vperm.xlu0 %717, %v244
  %v719 = vpop.permute.xlu0 %718
  %721 = vset.pattern.permute.xlu0 2
  %722 = vperm.xlu0 %721, %v245
  %v723 = vpop.permute.xlu0 %722
  %v725 = vadd.f32 %v660, %v663
  %v726 = vadd.f32 %v660, %v667
  %v727 = vadd.f32 %v660, %v671
  %v728 = vadd.f32 %v660, %v675
  %v729 = vadd.f32 %v660, %v679
  %v730 = vadd.f32 %v660, %v683
  %v731 = vadd.f32 %v660, %v687
  %v732 = vadd.f32 %v660, %v691
  %v733 = vadd.f32 %v660, %v695
  %v734 = vadd.f32 %v660, %v699
  %v735 = vadd.f32 %v660, %v703
  %v736 = vadd.f32 %v660, %v707
  %v737 = vadd.f32 %v660, %v711
  %v738 = vadd.f32 %v660, %v715
  %v739 = vadd.f32 %v660, %v719
  %v740 = vadd.f32 %v660, %v723
  %v741 = vand.u32 2147483647, %v725
  %v742 = vand.u32 2147483647, %v726
  %v743 = vand.u32 2147483647, %v727
  %v744 = vand.u32 2147483647, %v728
  %v745 = vand.u32 2147483647, %v729
  %v746 = vand.u32 2147483647, %v730
  %v747 = vand.u32 2147483647, %v731
  %v748 = vand.u32 2147483647, %v732
  %v749 = vand.u32 2147483647, %v733
  %v750 = vand.u32 2147483647, %v734
  %v751 = vand.u32 2147483647, %v735
  %v752 = vand.u32 2147483647, %v736
  %v753 = vand.u32 2147483647, %v737
  %v754 = vand.u32 2147483647, %v738
  %v755 = vand.u32 2147483647, %v739
  %v756 = vand.u32 2147483647, %v740
  %v757 = vrot.slane %v228, 2
  %s758 = vtos %v757
  %v759 = vstv %s758
  %v761 = vmul.f32 %v759, %v741
  %v762 = vmul.f32 %v759, %v742
  %v763 = vmul.f32 %v759, %v743
  %v764 = vmul.f32 %v759, %v744
  %v765 = vmul.f32 %v759, %v745
  %v766 = vmul.f32 %v759, %v746
  %v767 = vmul.f32 %v759, %v747
  %v768 = vmul.f32 %v759, %v748
  %v769 = vmul.f32 %v759, %v749
  %v770 = vmul.f32 %v759, %v750
  %v771 = vmul.f32 %v759, %v751
  %v772 = vmul.f32 %v759, %v752
  %v773 = vmul.f32 %v759, %v753
  %v774 = vmul.f32 %v759, %v754
  %v775 = vmul.f32 %v759, %v755
  %v776 = vmul.f32 %v759, %v756
  %v777 = vadd.f32 %v641, %v761
  %v778 = vadd.f32 %v642, %v762
  %v779 = vadd.f32 %v643, %v763
  %v780 = vadd.f32 %v644, %v764
  %v781 = vadd.f32 %v645, %v765
  %v782 = vadd.f32 %v646, %v766
  %v783 = vadd.f32 %v647, %v767
  %v784 = vadd.f32 %v648, %v768
  %v785 = vadd.f32 %v649, %v769
  %v786 = vadd.f32 %v650, %v770
  %v787 = vadd.f32 %v651, %v771
  %v788 = vadd.f32 %v652, %v772
  %v789 = vadd.f32 %v653, %v773
  %v790 = vadd.f32 %v654, %v774
  %v791 = vadd.f32 %v655, %v775
  %v792 = vadd.f32 %v656, %v776
  %v793 = vlaneseq
  %v794 = vshrl.u32 %v793, 7
  %v795 = vsub.s32 3, %v794
  %v796 = vrot.slane %v229, %v795
  %797 = vset.pattern.permute.xlu0 3
  %798 = vperm.xlu0 %797, %v230
  %v799 = vpop.permute.xlu0 %798
  %801 = vset.pattern.permute.xlu0 3
  %802 = vperm.xlu0 %801, %v231
  %v803 = vpop.permute.xlu0 %802
  %805 = vset.pattern.permute.xlu0 3
  %806 = vperm.xlu0 %805, %v232
  %v807 = vpop.permute.xlu0 %806
  %809 = vset.pattern.permute.xlu0 3
  %810 = vperm.xlu0 %809, %v233
  %v811 = vpop.permute.xlu0 %810
  %813 = vset.pattern.permute.xlu0 3
  %814 = vperm.xlu0 %813, %v234
  %v815 = vpop.permute.xlu0 %814
  %817 = vset.pattern.permute.xlu0 3
  %818 = vperm.xlu0 %817, %v235
  %v819 = vpop.permute.xlu0 %818
  %821 = vset.pattern.permute.xlu0 3
  %822 = vperm.xlu0 %821, %v236
  %v823 = vpop.permute.xlu0 %822
  %825 = vset.pattern.permute.xlu0 3
  %826 = vperm.xlu0 %825, %v237
  %v827 = vpop.permute.xlu0 %826
  %829 = vset.pattern.permute.xlu0 3
  %830 = vperm.xlu0 %829, %v238
  %v831 = vpop.permute.xlu0 %830
  %833 = vset.pattern.permute.xlu0 3
  %834 = vperm.xlu0 %833, %v239
  %v835 = vpop.permute.xlu0 %834
  %837 = vset.pattern.permute.xlu0 3
  %838 = vperm.xlu0 %837, %v240
  %v839 = vpop.permute.xlu0 %838
  %841 = vset.pattern.permute.xlu0 3
  %842 = vperm.xlu0 %841, %v241
  %v843 = vpop.permute.xlu0 %842
  %845 = vset.pattern.permute.xlu0 3
  %846 = vperm.xlu0 %845, %v242
  %v847 = vpop.permute.xlu0 %846
  %849 = vset.pattern.permute.xlu0 3
  %850 = vperm.xlu0 %849, %v243
  %v851 = vpop.permute.xlu0 %850
  %853 = vset.pattern.permute.xlu0 3
  %854 = vperm.xlu0 %853, %v244
  %v855 = vpop.permute.xlu0 %854
  %857 = vset.pattern.permute.xlu0 3
  %858 = vperm.xlu0 %857, %v245
  %v859 = vpop.permute.xlu0 %858
  %v861 = vadd.f32 %v796, %v799
  %v862 = vadd.f32 %v796, %v803
  %v863 = vadd.f32 %v796, %v807
  %v864 = vadd.f32 %v796, %v811
  %v865 = vadd.f32 %v796, %v815
  %v866 = vadd.f32 %v796, %v819
  %v867 = vadd.f32 %v796, %v823
  %v868 = vadd.f32 %v796, %v827
  %v869 = vadd.f32 %v796, %v831
  %v870 = vadd.f32 %v796, %v835
  %v871 = vadd.f32 %v796, %v839
  %v872 = vadd.f32 %v796, %v843
  %v873 = vadd.f32 %v796, %v847
  %v874 = vadd.f32 %v796, %v851
  %v875 = vadd.f32 %v796, %v855
  %v876 = vadd.f32 %v796, %v859
  %v877 = vand.u32 2147483647, %v861
  %v878 = vand.u32 2147483647, %v862
  %v879 = vand.u32 2147483647, %v863
  %v880 = vand.u32 2147483647, %v864
  %v881 = vand.u32 2147483647, %v865
  %v882 = vand.u32 2147483647, %v866
  %v883 = vand.u32 2147483647, %v867
  %v884 = vand.u32 2147483647, %v868
  %v885 = vand.u32 2147483647, %v869
  %v886 = vand.u32 2147483647, %v870
  %v887 = vand.u32 2147483647, %v871
  %v888 = vand.u32 2147483647, %v872
  %v889 = vand.u32 2147483647, %v873
  %v890 = vand.u32 2147483647, %v874
  %v891 = vand.u32 2147483647, %v875
  %v892 = vand.u32 2147483647, %v876
  %v893 = vrot.slane %v228, 3
  %s894 = vtos %v893
  %v895 = vstv %s894
  %v897 = vmul.f32 %v895, %v877
  %v898 = vmul.f32 %v895, %v878
  %v899 = vmul.f32 %v895, %v879
  %v900 = vmul.f32 %v895, %v880
  %v901 = vmul.f32 %v895, %v881
  %v902 = vmul.f32 %v895, %v882
  %v903 = vmul.f32 %v895, %v883
  %v904 = vmul.f32 %v895, %v884
  %v905 = vmul.f32 %v895, %v885
  %v906 = vmul.f32 %v895, %v886
  %v907 = vmul.f32 %v895, %v887
  %v908 = vmul.f32 %v895, %v888
  %v909 = vmul.f32 %v895, %v889
  %v910 = vmul.f32 %v895, %v890
  %v911 = vmul.f32 %v895, %v891
  %v912 = vmul.f32 %v895, %v892
  %v913 = vadd.f32 %v777, %v897
  %v914 = vadd.f32 %v778, %v898
  %v915 = vadd.f32 %v779, %v899
  %v916 = vadd.f32 %v780, %v900
  %v917 = vadd.f32 %v781, %v901
  %v918 = vadd.f32 %v782, %v902
  %v919 = vadd.f32 %v783, %v903
  %v920 = vadd.f32 %v784, %v904
  %v921 = vadd.f32 %v785, %v905
  %v922 = vadd.f32 %v786, %v906
  %v923 = vadd.f32 %v787, %v907
  %v924 = vadd.f32 %v788, %v908
  %v925 = vadd.f32 %v789, %v909
  %v926 = vadd.f32 %v790, %v910
  %v927 = vadd.f32 %v791, %v911
  %v928 = vadd.f32 %v792, %v912
  %v929 = vlaneseq
  %v930 = vshrl.u32 %v929, 7
  %v931 = vsub.s32 4, %v930
  %v932 = vrot.slane %v229, %v931
  %933 = vset.pattern.permute.xlu0 4
  %934 = vperm.xlu0 %933, %v230
  %v935 = vpop.permute.xlu0 %934
  %937 = vset.pattern.permute.xlu0 4
  %938 = vperm.xlu0 %937, %v231
  %v939 = vpop.permute.xlu0 %938
  %941 = vset.pattern.permute.xlu0 4
  %942 = vperm.xlu0 %941, %v232
  %v943 = vpop.permute.xlu0 %942
  %945 = vset.pattern.permute.xlu0 4
  %946 = vperm.xlu0 %945, %v233
  %v947 = vpop.permute.xlu0 %946
  %949 = vset.pattern.permute.xlu0 4
  %950 = vperm.xlu0 %949, %v234
  %v951 = vpop.permute.xlu0 %950
  %953 = vset.pattern.permute.xlu0 4
  %954 = vperm.xlu0 %953, %v235
  %v955 = vpop.permute.xlu0 %954
  %957 = vset.pattern.permute.xlu0 4
  %958 = vperm.xlu0 %957, %v236
  %v959 = vpop.permute.xlu0 %958
  %961 = vset.pattern.permute.xlu0 4
  %962 = vperm.xlu0 %961, %v237
  %v963 = vpop.permute.xlu0 %962
  %965 = vset.pattern.permute.xlu0 4
  %966 = vperm.xlu0 %965, %v238
  %v967 = vpop.permute.xlu0 %966
  %969 = vset.pattern.permute.xlu0 4
  %970 = vperm.xlu0 %969, %v239
  %v971 = vpop.permute.xlu0 %970
  %973 = vset.pattern.permute.xlu0 4
  %974 = vperm.xlu0 %973, %v240
  %v975 = vpop.permute.xlu0 %974
  %977 = vset.pattern.permute.xlu0 4
  %978 = vperm.xlu0 %977, %v241
  %v979 = vpop.permute.xlu0 %978
  %981 = vset.pattern.permute.xlu0 4
  %982 = vperm.xlu0 %981, %v242
  %v983 = vpop.permute.xlu0 %982
  %985 = vset.pattern.permute.xlu0 4
  %986 = vperm.xlu0 %985, %v243
  %v987 = vpop.permute.xlu0 %986
  %989 = vset.pattern.permute.xlu0 4
  %990 = vperm.xlu0 %989, %v244
  %v991 = vpop.permute.xlu0 %990
  %993 = vset.pattern.permute.xlu0 4
  %994 = vperm.xlu0 %993, %v245
  %v995 = vpop.permute.xlu0 %994
  %v997 = vadd.f32 %v932, %v935
  %v998 = vadd.f32 %v932, %v939
  %v999 = vadd.f32 %v932, %v943
  %v1000 = vadd.f32 %v932, %v947
  %v1001 = vadd.f32 %v932, %v951
  %v1002 = vadd.f32 %v932, %v955
  %v1003 = vadd.f32 %v932, %v959
  %v1004 = vadd.f32 %v932, %v963
  %v1005 = vadd.f32 %v932, %v967
  %v1006 = vadd.f32 %v932, %v971
  %v1007 = vadd.f32 %v932, %v975
  %v1008 = vadd.f32 %v932, %v979
  %v1009 = vadd.f32 %v932, %v983
  %v1010 = vadd.f32 %v932, %v987
  %v1011 = vadd.f32 %v932, %v991
  %v1012 = vadd.f32 %v932, %v995
  %v1013 = vand.u32 2147483647, %v997
  %v1014 = vand.u32 2147483647, %v998
  %v1015 = vand.u32 2147483647, %v999
  %v1016 = vand.u32 2147483647, %v1000
  %v1017 = vand.u32 2147483647, %v1001
  %v1018 = vand.u32 2147483647, %v1002
  %v1019 = vand.u32 2147483647, %v1003
  %v1020 = vand.u32 2147483647, %v1004
  %v1021 = vand.u32 2147483647, %v1005
  %v1022 = vand.u32 2147483647, %v1006
  %v1023 = vand.u32 2147483647, %v1007
  %v1024 = vand.u32 2147483647, %v1008
  %v1025 = vand.u32 2147483647, %v1009
  %v1026 = vand.u32 2147483647, %v1010
  %v1027 = vand.u32 2147483647, %v1011
  %v1028 = vand.u32 2147483647, %v1012
  %v1029 = vrot.slane %v228, 4
  %s1030 = vtos %v1029
  %v1031 = vstv %s1030
  %v1033 = vmul.f32 %v1031, %v1013
  %v1034 = vmul.f32 %v1031, %v1014
  %v1035 = vmul.f32 %v1031, %v1015
  %v1036 = vmul.f32 %v1031, %v1016
  %v1037 = vmul.f32 %v1031, %v1017
  %v1038 = vmul.f32 %v1031, %v1018
  %v1039 = vmul.f32 %v1031, %v1019
  %v1040 = vmul.f32 %v1031, %v1020
  %v1041 = vmul.f32 %v1031, %v1021
  %v1042 = vmul.f32 %v1031, %v1022
  %v1043 = vmul.f32 %v1031, %v1023
  %v1044 = vmul.f32 %v1031, %v1024
  %v1045 = vmul.f32 %v1031, %v1025
  %v1046 = vmul.f32 %v1031, %v1026
  %v1047 = vmul.f32 %v1031, %v1027
  %v1048 = vmul.f32 %v1031, %v1028
  %v1049 = vadd.f32 %v913, %v1033
  %v1050 = vadd.f32 %v914, %v1034
  %v1051 = vadd.f32 %v915, %v1035
  %v1052 = vadd.f32 %v916, %v1036
  %v1053 = vadd.f32 %v917, %v1037
  %v1054 = vadd.f32 %v918, %v1038
  %v1055 = vadd.f32 %v919, %v1039
  %v1056 = vadd.f32 %v920, %v1040
  %v1057 = vadd.f32 %v921, %v1041
  %v1058 = vadd.f32 %v922, %v1042
  %v1059 = vadd.f32 %v923, %v1043
  %v1060 = vadd.f32 %v924, %v1044
  %v1061 = vadd.f32 %v925, %v1045
  %v1062 = vadd.f32 %v926, %v1046
  %v1063 = vadd.f32 %v927, %v1047
  %v1064 = vadd.f32 %v928, %v1048
  %v1065 = vlaneseq
  %v1066 = vshrl.u32 %v1065, 7
  %v1067 = vsub.s32 5, %v1066
  %v1068 = vrot.slane %v229, %v1067
  %1069 = vset.pattern.permute.xlu0 5
  %1070 = vperm.xlu0 %1069, %v230
  %v1071 = vpop.permute.xlu0 %1070
  %1073 = vset.pattern.permute.xlu0 5
  %1074 = vperm.xlu0 %1073, %v231
  %v1075 = vpop.permute.xlu0 %1074
  %1077 = vset.pattern.permute.xlu0 5
  %1078 = vperm.xlu0 %1077, %v232
  %v1079 = vpop.permute.xlu0 %1078
  %1081 = vset.pattern.permute.xlu0 5
  %1082 = vperm.xlu0 %1081, %v233
  %v1083 = vpop.permute.xlu0 %1082
  %1085 = vset.pattern.permute.xlu0 5
  %1086 = vperm.xlu0 %1085, %v234
  %v1087 = vpop.permute.xlu0 %1086
  %1089 = vset.pattern.permute.xlu0 5
  %1090 = vperm.xlu0 %1089, %v235
  %v1091 = vpop.permute.xlu0 %1090
  %1093 = vset.pattern.permute.xlu0 5
  %1094 = vperm.xlu0 %1093, %v236
  %v1095 = vpop.permute.xlu0 %1094
  %1097 = vset.pattern.permute.xlu0 5
  %1098 = vperm.xlu0 %1097, %v237
  %v1099 = vpop.permute.xlu0 %1098
  %1101 = vset.pattern.permute.xlu0 5
  %1102 = vperm.xlu0 %1101, %v238
  %v1103 = vpop.permute.xlu0 %1102
  %1105 = vset.pattern.permute.xlu0 5
  %1106 = vperm.xlu0 %1105, %v239
  %v1107 = vpop.permute.xlu0 %1106
  %1109 = vset.pattern.permute.xlu0 5
  %1110 = vperm.xlu0 %1109, %v240
  %v1111 = vpop.permute.xlu0 %1110
  %1113 = vset.pattern.permute.xlu0 5
  %1114 = vperm.xlu0 %1113, %v241
  %v1115 = vpop.permute.xlu0 %1114
  %1117 = vset.pattern.permute.xlu0 5
  %1118 = vperm.xlu0 %1117, %v242
  %v1119 = vpop.permute.xlu0 %1118
  %1121 = vset.pattern.permute.xlu0 5
  %1122 = vperm.xlu0 %1121, %v243
  %v1123 = vpop.permute.xlu0 %1122
  %1125 = vset.pattern.permute.xlu0 5
  %1126 = vperm.xlu0 %1125, %v244
  %v1127 = vpop.permute.xlu0 %1126
  %1129 = vset.pattern.permute.xlu0 5
  %1130 = vperm.xlu0 %1129, %v245
  %v1131 = vpop.permute.xlu0 %1130
  %v1133 = vadd.f32 %v1068, %v1071
  %v1134 = vadd.f32 %v1068, %v1075
  %v1135 = vadd.f32 %v1068, %v1079
  %v1136 = vadd.f32 %v1068, %v1083
  %v1137 = vadd.f32 %v1068, %v1087
  %v1138 = vadd.f32 %v1068, %v1091
  %v1139 = vadd.f32 %v1068, %v1095
  %v1140 = vadd.f32 %v1068, %v1099
  %v1141 = vadd.f32 %v1068, %v1103
  %v1142 = vadd.f32 %v1068, %v1107
  %v1143 = vadd.f32 %v1068, %v1111
  %v1144 = vadd.f32 %v1068, %v1115
  %v1145 = vadd.f32 %v1068, %v1119
  %v1146 = vadd.f32 %v1068, %v1123
  %v1147 = vadd.f32 %v1068, %v1127
  %v1148 = vadd.f32 %v1068, %v1131
  %v1149 = vand.u32 2147483647, %v1133
  %v1150 = vand.u32 2147483647, %v1134
  %v1151 = vand.u32 2147483647, %v1135
  %v1152 = vand.u32 2147483647, %v1136
  %v1153 = vand.u32 2147483647, %v1137
  %v1154 = vand.u32 2147483647, %v1138
  %v1155 = vand.u32 2147483647, %v1139
  %v1156 = vand.u32 2147483647, %v1140
  %v1157 = vand.u32 2147483647, %v1141
  %v1158 = vand.u32 2147483647, %v1142
  %v1159 = vand.u32 2147483647, %v1143
  %v1160 = vand.u32 2147483647, %v1144
  %v1161 = vand.u32 2147483647, %v1145
  %v1162 = vand.u32 2147483647, %v1146
  %v1163 = vand.u32 2147483647, %v1147
  %v1164 = vand.u32 2147483647, %v1148
  %v1165 = vrot.slane %v228, 5
  %s1166 = vtos %v1165
  %v1167 = vstv %s1166
  %v1169 = vmul.f32 %v1167, %v1149
  %v1170 = vmul.f32 %v1167, %v1150
  %v1171 = vmul.f32 %v1167, %v1151
  %v1172 = vmul.f32 %v1167, %v1152
  %v1173 = vmul.f32 %v1167, %v1153
  %v1174 = vmul.f32 %v1167, %v1154
  %v1175 = vmul.f32 %v1167, %v1155
  %v1176 = vmul.f32 %v1167, %v1156
  %v1177 = vmul.f32 %v1167, %v1157
  %v1178 = vmul.f32 %v1167, %v1158
  %v1179 = vmul.f32 %v1167, %v1159
  %v1180 = vmul.f32 %v1167, %v1160
  %v1181 = vmul.f32 %v1167, %v1161
  %v1182 = vmul.f32 %v1167, %v1162
  %v1183 = vmul.f32 %v1167, %v1163
  %v1184 = vmul.f32 %v1167, %v1164
  %v1185 = vadd.f32 %v1049, %v1169
  %v1186 = vadd.f32 %v1050, %v1170
  %v1187 = vadd.f32 %v1051, %v1171
  %v1188 = vadd.f32 %v1052, %v1172
  %v1189 = vadd.f32 %v1053, %v1173
  %v1190 = vadd.f32 %v1054, %v1174
  %v1191 = vadd.f32 %v1055, %v1175
  %v1192 = vadd.f32 %v1056, %v1176
  %v1193 = vadd.f32 %v1057, %v1177
  %v1194 = vadd.f32 %v1058, %v1178
  %v1195 = vadd.f32 %v1059, %v1179
  %v1196 = vadd.f32 %v1060, %v1180
  %v1197 = vadd.f32 %v1061, %v1181
  %v1198 = vadd.f32 %v1062, %v1182
  %v1199 = vadd.f32 %v1063, %v1183
  %v1200 = vadd.f32 %v1064, %v1184
  %v1201 = vlaneseq
  %v1202 = vshrl.u32 %v1201, 7
  %v1203 = vsub.s32 6, %v1202
  %v1204 = vrot.slane %v229, %v1203
  %1205 = vset.pattern.permute.xlu0 6
  %1206 = vperm.xlu0 %1205, %v230
  %v1207 = vpop.permute.xlu0 %1206
  %1209 = vset.pattern.permute.xlu0 6
  %1210 = vperm.xlu0 %1209, %v231
  %v1211 = vpop.permute.xlu0 %1210
  %1213 = vset.pattern.permute.xlu0 6
  %1214 = vperm.xlu0 %1213, %v232
  %v1215 = vpop.permute.xlu0 %1214
  %1217 = vset.pattern.permute.xlu0 6
  %1218 = vperm.xlu0 %1217, %v233
  %v1219 = vpop.permute.xlu0 %1218
  %1221 = vset.pattern.permute.xlu0 6
  %1222 = vperm.xlu0 %1221, %v234
  %v1223 = vpop.permute.xlu0 %1222
  %1225 = vset.pattern.permute.xlu0 6
  %1226 = vperm.xlu0 %1225, %v235
  %v1227 = vpop.permute.xlu0 %1226
  %1229 = vset.pattern.permute.xlu0 6
  %1230 = vperm.xlu0 %1229, %v236
  %v1231 = vpop.permute.xlu0 %1230
  %1233 = vset.pattern.permute.xlu0 6
  %1234 = vperm.xlu0 %1233, %v237
  %v1235 = vpop.permute.xlu0 %1234
  %1237 = vset.pattern.permute.xlu0 6
  %1238 = vperm.xlu0 %1237, %v238
  %v1239 = vpop.permute.xlu0 %1238
  %1241 = vset.pattern.permute.xlu0 6
  %1242 = vperm.xlu0 %1241, %v239
  %v1243 = vpop.permute.xlu0 %1242
  %1245 = vset.pattern.permute.xlu0 6
  %1246 = vperm.xlu0 %1245, %v240
  %v1247 = vpop.permute.xlu0 %1246
  %1249 = vset.pattern.permute.xlu0 6
  %1250 = vperm.xlu0 %1249, %v241
  %v1251 = vpop.permute.xlu0 %1250
  %1253 = vset.pattern.permute.xlu0 6
  %1254 = vperm.xlu0 %1253, %v242
  %v1255 = vpop.permute.xlu0 %1254
  %1257 = vset.pattern.permute.xlu0 6
  %1258 = vperm.xlu0 %1257, %v243
  %v1259 = vpop.permute.xlu0 %1258
  %1261 = vset.pattern.permute.xlu0 6
  %1262 = vperm.xlu0 %1261, %v244
  %v1263 = vpop.permute.xlu0 %1262
  %1265 = vset.pattern.permute.xlu0 6
  %1266 = vperm.xlu0 %1265, %v245
  %v1267 = vpop.permute.xlu0 %1266
  %v1269 = vadd.f32 %v1204, %v1207
  %v1270 = vadd.f32 %v1204, %v1211
  %v1271 = vadd.f32 %v1204, %v1215
  %v1272 = vadd.f32 %v1204, %v1219
  %v1273 = vadd.f32 %v1204, %v1223
  %v1274 = vadd.f32 %v1204, %v1227
  %v1275 = vadd.f32 %v1204, %v1231
  %v1276 = vadd.f32 %v1204, %v1235
  %v1277 = vadd.f32 %v1204, %v1239
  %v1278 = vadd.f32 %v1204, %v1243
  %v1279 = vadd.f32 %v1204, %v1247
  %v1280 = vadd.f32 %v1204, %v1251
  %v1281 = vadd.f32 %v1204, %v1255
  %v1282 = vadd.f32 %v1204, %v1259
  %v1283 = vadd.f32 %v1204, %v1263
  %v1284 = vadd.f32 %v1204, %v1267
  %v1285 = vand.u32 2147483647, %v1269
  %v1286 = vand.u32 2147483647, %v1270
  %v1287 = vand.u32 2147483647, %v1271
  %v1288 = vand.u32 2147483647, %v1272
  %v1289 = vand.u32 2147483647, %v1273
  %v1290 = vand.u32 2147483647, %v1274
  %v1291 = vand.u32 2147483647, %v1275
  %v1292 = vand.u32 2147483647, %v1276
  %v1293 = vand.u32 2147483647, %v1277
  %v1294 = vand.u32 2147483647, %v1278
  %v1295 = vand.u32 2147483647, %v1279
  %v1296 = vand.u32 2147483647, %v1280
  %v1297 = vand.u32 2147483647, %v1281
  %v1298 = vand.u32 2147483647, %v1282
  %v1299 = vand.u32 2147483647, %v1283
  %v1300 = vand.u32 2147483647, %v1284
  %v1301 = vrot.slane %v228, 6
  %s1302 = vtos %v1301
  %v1303 = vstv %s1302
  %v1305 = vmul.f32 %v1303, %v1285
  %v1306 = vmul.f32 %v1303, %v1286
  %v1307 = vmul.f32 %v1303, %v1287
  %v1308 = vmul.f32 %v1303, %v1288
  %v1309 = vmul.f32 %v1303, %v1289
  %v1310 = vmul.f32 %v1303, %v1290
  %v1311 = vmul.f32 %v1303, %v1291
  %v1312 = vmul.f32 %v1303, %v1292
  %v1313 = vmul.f32 %v1303, %v1293
  %v1314 = vmul.f32 %v1303, %v1294
  %v1315 = vmul.f32 %v1303, %v1295
  %v1316 = vmul.f32 %v1303, %v1296
  %v1317 = vmul.f32 %v1303, %v1297
  %v1318 = vmul.f32 %v1303, %v1298
  %v1319 = vmul.f32 %v1303, %v1299
  %v1320 = vmul.f32 %v1303, %v1300
  %v1321 = vadd.f32 %v1185, %v1305
  %v1322 = vadd.f32 %v1186, %v1306
  %v1323 = vadd.f32 %v1187, %v1307
  %v1324 = vadd.f32 %v1188, %v1308
  %v1325 = vadd.f32 %v1189, %v1309
  %v1326 = vadd.f32 %v1190, %v1310
  %v1327 = vadd.f32 %v1191, %v1311
  %v1328 = vadd.f32 %v1192, %v1312
  %v1329 = vadd.f32 %v1193, %v1313
  %v1330 = vadd.f32 %v1194, %v1314
  %v1331 = vadd.f32 %v1195, %v1315
  %v1332 = vadd.f32 %v1196, %v1316
  %v1333 = vadd.f32 %v1197, %v1317
  %v1334 = vadd.f32 %v1198, %v1318
  %v1335 = vadd.f32 %v1199, %v1319
  %v1336 = vadd.f32 %v1200, %v1320
  %v1337 = vlaneseq
  %v1338 = vshrl.u32 %v1337, 7
  %v1339 = vsub.s32 7, %v1338
  %v1340 = vrot.slane %v229, %v1339
  %1341 = vset.pattern.permute.xlu0 7
  %1342 = vperm.xlu0 %1341, %v230
  %v1343 = vpop.permute.xlu0 %1342
  %1345 = vset.pattern.permute.xlu0 7
  %1346 = vperm.xlu0 %1345, %v231
  %v1347 = vpop.permute.xlu0 %1346
  %1349 = vset.pattern.permute.xlu0 7
  %1350 = vperm.xlu0 %1349, %v232
  %v1351 = vpop.permute.xlu0 %1350
  %1353 = vset.pattern.permute.xlu0 7
  %1354 = vperm.xlu0 %1353, %v233
  %v1355 = vpop.permute.xlu0 %1354
  %1357 = vset.pattern.permute.xlu0 7
  %1358 = vperm.xlu0 %1357, %v234
  %v1359 = vpop.permute.xlu0 %1358
  %1361 = vset.pattern.permute.xlu0 7
  %1362 = vperm.xlu0 %1361, %v235
  %v1363 = vpop.permute.xlu0 %1362
  %1365 = vset.pattern.permute.xlu0 7
  %1366 = vperm.xlu0 %1365, %v236
  %v1367 = vpop.permute.xlu0 %1366
  %1369 = vset.pattern.permute.xlu0 7
  %1370 = vperm.xlu0 %1369, %v237
  %v1371 = vpop.permute.xlu0 %1370
  %1373 = vset.pattern.permute.xlu0 7
  %1374 = vperm.xlu0 %1373, %v238
  %v1375 = vpop.permute.xlu0 %1374
  %1377 = vset.pattern.permute.xlu0 7
  %1378 = vperm.xlu0 %1377, %v239
  %v1379 = vpop.permute.xlu0 %1378
  %1381 = vset.pattern.permute.xlu0 7
  %1382 = vperm.xlu0 %1381, %v240
  %v1383 = vpop.permute.xlu0 %1382
  %1385 = vset.pattern.permute.xlu0 7
  %1386 = vperm.xlu0 %1385, %v241
  %v1387 = vpop.permute.xlu0 %1386
  %1389 = vset.pattern.permute.xlu0 7
  %1390 = vperm.xlu0 %1389, %v242
  %v1391 = vpop.permute.xlu0 %1390
  %1393 = vset.pattern.permute.xlu0 7
  %1394 = vperm.xlu0 %1393, %v243
  %v1395 = vpop.permute.xlu0 %1394
  %1397 = vset.pattern.permute.xlu0 7
  %1398 = vperm.xlu0 %1397, %v244
  %v1399 = vpop.permute.xlu0 %1398
  %1401 = vset.pattern.permute.xlu0 7
  %1402 = vperm.xlu0 %1401, %v245
  %v1403 = vpop.permute.xlu0 %1402
  %v1405 = vadd.f32 %v1340, %v1343
  %v1406 = vadd.f32 %v1340, %v1347
  %v1407 = vadd.f32 %v1340, %v1351
  %v1408 = vadd.f32 %v1340, %v1355
  %v1409 = vadd.f32 %v1340, %v1359
  %v1410 = vadd.f32 %v1340, %v1363
  %v1411 = vadd.f32 %v1340, %v1367
  %v1412 = vadd.f32 %v1340, %v1371
  %v1413 = vadd.f32 %v1340, %v1375
  %v1414 = vadd.f32 %v1340, %v1379
  %v1415 = vadd.f32 %v1340, %v1383
  %v1416 = vadd.f32 %v1340, %v1387
  %v1417 = vadd.f32 %v1340, %v1391
  %v1418 = vadd.f32 %v1340, %v1395
  %v1419 = vadd.f32 %v1340, %v1399
  %v1420 = vadd.f32 %v1340, %v1403
  %v1421 = vand.u32 2147483647, %v1405
  %v1422 = vand.u32 2147483647, %v1406
  %v1423 = vand.u32 2147483647, %v1407
  %v1424 = vand.u32 2147483647, %v1408
  %v1425 = vand.u32 2147483647, %v1409
  %v1426 = vand.u32 2147483647, %v1410
  %v1427 = vand.u32 2147483647, %v1411
  %v1428 = vand.u32 2147483647, %v1412
  %v1429 = vand.u32 2147483647, %v1413
  %v1430 = vand.u32 2147483647, %v1414
  %v1431 = vand.u32 2147483647, %v1415
  %v1432 = vand.u32 2147483647, %v1416
  %v1433 = vand.u32 2147483647, %v1417
  %v1434 = vand.u32 2147483647, %v1418
  %v1435 = vand.u32 2147483647, %v1419
  %v1436 = vand.u32 2147483647, %v1420
  %v1437 = vrot.slane %v228, 7
  %s1438 = vtos %v1437
  %v1439 = vstv %s1438
  %v1441 = vmul.f32 %v1439, %v1421
  %v1442 = vmul.f32 %v1439, %v1422
  %v1443 = vmul.f32 %v1439, %v1423
  %v1444 = vmul.f32 %v1439, %v1424
  %v1445 = vmul.f32 %v1439, %v1425
  %v1446 = vmul.f32 %v1439, %v1426
  %v1447 = vmul.f32 %v1439, %v1427
  %v1448 = vmul.f32 %v1439, %v1428
  %v1449 = vmul.f32 %v1439, %v1429
  %v1450 = vmul.f32 %v1439, %v1430
  %v1451 = vmul.f32 %v1439, %v1431
  %v1452 = vmul.f32 %v1439, %v1432
  %v1453 = vmul.f32 %v1439, %v1433
  %v1454 = vmul.f32 %v1439, %v1434
  %v1455 = vmul.f32 %v1439, %v1435
  %v1456 = vmul.f32 %v1439, %v1436
  %v1457 = vadd.f32 %v1321, %v1441
  %v1458 = vadd.f32 %v1322, %v1442
  %v1459 = vadd.f32 %v1323, %v1443
  %v1460 = vadd.f32 %v1324, %v1444
  %v1461 = vadd.f32 %v1325, %v1445
  %v1462 = vadd.f32 %v1326, %v1446
  %v1463 = vadd.f32 %v1327, %v1447
  %v1464 = vadd.f32 %v1328, %v1448
  %v1465 = vadd.f32 %v1329, %v1449
  %v1466 = vadd.f32 %v1330, %v1450
  %v1467 = vadd.f32 %v1331, %v1451
  %v1468 = vadd.f32 %v1332, %v1452
  %v1469 = vadd.f32 %v1333, %v1453
  %v1470 = vadd.f32 %v1334, %v1454
  %v1471 = vadd.f32 %v1335, %v1455
  %v1472 = vadd.f32 %v1336, %v1456
  %v1473 = vld [vmem:[#allocation2] sm:$0xff]
  %v1474 = vld [vmem:[#allocation2 + $0x8] sm:$0xff]
  %v1475 = vld [vmem:[#allocation2 + $0x10] sm:$0xff]
  %v1476 = vld [vmem:[#allocation2 + $0x18] sm:$0xff]
  %v1477 = vld [vmem:[#allocation2 + $0x20] sm:$0xff]
  %v1478 = vld [vmem:[#allocation2 + $0x28] sm:$0xff]
  %v1479 = vld [vmem:[#allocation2 + $0x30] sm:$0xff]
  %v1480 = vld [vmem:[#allocation2 + $0x38] sm:$0xff]
  %v1481 = vld [vmem:[#allocation2 + $0x40] sm:$0xff]
  %v1482 = vld [vmem:[#allocation2 + $0x48] sm:$0xff]
  %v1483 = vld [vmem:[#allocation2 + $0x50] sm:$0xff]
  %v1484 = vld [vmem:[#allocation2 + $0x58] sm:$0xff]
  %v1485 = vld [vmem:[#allocation2 + $0x60] sm:$0xff]
  %v1486 = vld [vmem:[#allocation2 + $0x68] sm:$0xff]
  %v1487 = vld [vmem:[#allocation2 + $0x70] sm:$0xff]
  %v1488 = vld [vmem:[#allocation2 + $0x78] sm:$0xff]
  %1489 = vmax.xlane.f32.xlu0 %v1457
  %v1490 = vpop.xlane.xlu0 %1489
  %1491 = vmax.xlane.f32.xlu0 %v1458
  %v1492 = vpop.xlane.xlu0 %1491
  %1493 = vmax.xlane.f32.xlu0 %v1459
  %v1494 = vpop.xlane.xlu0 %1493
  %1495 = vmax.xlane.f32.xlu0 %v1460
  %v1496 = vpop.xlane.xlu0 %1495
  %1497 = vmax.xlane.f32.xlu0 %v1461
  %v1498 = vpop.xlane.xlu0 %1497
  %1499 = vmax.xlane.f32.xlu0 %v1462
  %v1500 = vpop.xlane.xlu0 %1499
  %1501 = vmax.xlane.f32.xlu0 %v1463
  %v1502 = vpop.xlane.xlu0 %1501
  %1503 = vmax.xlane.f32.xlu0 %v1464
  %v1504 = vpop.xlane.xlu0 %1503
  %1505 = vmax.xlane.f32.xlu0 %v1465
  %v1506 = vpop.xlane.xlu0 %1505
  %1507 = vmax.xlane.f32.xlu0 %v1466
  %v1508 = vpop.xlane.xlu0 %1507
  %1509 = vmax.xlane.f32.xlu0 %v1467
  %v1510 = vpop.xlane.xlu0 %1509
  %1511 = vmax.xlane.f32.xlu0 %v1468
  %v1512 = vpop.xlane.xlu0 %1511
  %1513 = vmax.xlane.f32.xlu0 %v1469
  %v1514 = vpop.xlane.xlu0 %1513
  %1515 = vmax.xlane.f32.xlu0 %v1470
  %v1516 = vpop.xlane.xlu0 %1515
  %1517 = vmax.xlane.f32.xlu0 %v1471
  %v1518 = vpop.xlane.xlu0 %1517
  %1519 = vmax.xlane.f32.xlu0 %v1472
  %v1520 = vpop.xlane.xlu0 %1519
  %v1521 = vmax.f32 %v1473, %v1490
  %v1522 = vmax.f32 %v1474, %v1492
  %v1523 = vmax.f32 %v1475, %v1494
  %v1524 = vmax.f32 %v1476, %v1496
  %v1525 = vmax.f32 %v1477, %v1498
  %v1526 = vmax.f32 %v1478, %v1500
  %v1527 = vmax.f32 %v1479, %v1502
  %v1528 = vmax.f32 %v1480, %v1504
  %v1529 = vmax.f32 %v1481, %v1506
  %v1530 = vmax.f32 %v1482, %v1508
  %v1531 = vmax.f32 %v1483, %v1510
  %v1532 = vmax.f32 %v1484, %v1512
  %v1533 = vmax.f32 %v1485, %v1514
  %v1534 = vmax.f32 %v1486, %v1516
  %v1535 = vmax.f32 %v1487, %v1518
  %v1536 = vmax.f32 %v1488, %v1520
  %v1537 = vsub.f32 %v1473, %v1521
  %v1538 = vsub.f32 %v1474, %v1522
  %v1539 = vsub.f32 %v1475, %v1523
  %v1540 = vsub.f32 %v1476, %v1524
  %v1541 = vsub.f32 %v1477, %v1525
  %v1542 = vsub.f32 %v1478, %v1526
  %v1543 = vsub.f32 %v1479, %v1527
  %v1544 = vsub.f32 %v1480, %v1528
  %v1545 = vsub.f32 %v1481, %v1529
  %v1546 = vsub.f32 %v1482, %v1530
  %v1547 = vsub.f32 %v1483, %v1531
  %v1548 = vsub.f32 %v1484, %v1532
  %v1549 = vsub.f32 %v1485, %v1533
  %v1550 = vsub.f32 %v1486, %v1534
  %v1551 = vsub.f32 %v1487, %v1535
  %v1552 = vsub.f32 %v1488, %v1536
  %v1553 = vmul.f32 %v1537, 1.442695
  %v1554 = vpow.pop %v1553
  %v1555 = vmul.f32 %v1538, 1.442695
  %v1556 = vpow.pop %v1555
  %v1557 = vmul.f32 %v1539, 1.442695
  %v1558 = vpow.pop %v1557
  %v1559 = vmul.f32 %v1540, 1.442695
  %v1560 = vpow.pop %v1559
  %v1561 = vmul.f32 %v1541, 1.442695
  %v1562 = vpow.pop %v1561
  %v1563 = vmul.f32 %v1542, 1.442695
  %v1564 = vpow.pop %v1563
  %v1565 = vmul.f32 %v1543, 1.442695
  %v1566 = vpow.pop %v1565
  %v1567 = vmul.f32 %v1544, 1.442695
  %v1568 = vpow.pop %v1567
  %v1569 = vmul.f32 %v1545, 1.442695
  %v1570 = vpow.pop %v1569
  %v1571 = vmul.f32 %v1546, 1.442695
  %v1572 = vpow.pop %v1571
  %v1573 = vmul.f32 %v1547, 1.442695
  %v1574 = vpow.pop %v1573
  %v1575 = vmul.f32 %v1548, 1.442695
  %v1576 = vpow.pop %v1575
  %v1577 = vmul.f32 %v1549, 1.442695
  %v1578 = vpow.pop %v1577
  %v1579 = vmul.f32 %v1550, 1.442695
  %v1580 = vpow.pop %v1579
  %v1581 = vmul.f32 %v1551, 1.442695
  %v1582 = vpow.pop %v1581
  %v1583 = vmul.f32 %v1552, 1.442695
  %v1584 = vpow.pop %v1583
  %1586 = vset.pattern.permute.xlu0 0
  %1587 = vperm.xlu0 %1586, %v1521
  %v1588 = vpop.permute.xlu0 %1587
  %1591 = vset.pattern.permute.xlu0 0
  %1592 = vperm.xlu0 %1591, %v1522
  %v1593 = vpop.permute.xlu0 %1592
  %1596 = vset.pattern.permute.xlu0 0
  %1597 = vperm.xlu0 %1596, %v1523
  %v1598 = vpop.permute.xlu0 %1597
  %1601 = vset.pattern.permute.xlu0 0
  %1602 = vperm.xlu0 %1601, %v1524
  %v1603 = vpop.permute.xlu0 %1602
  %1606 = vset.pattern.permute.xlu0 0
  %1607 = vperm.xlu0 %1606, %v1525
  %v1608 = vpop.permute.xlu0 %1607
  %1611 = vset.pattern.permute.xlu0 0
  %1612 = vperm.xlu0 %1611, %v1526
  %v1613 = vpop.permute.xlu0 %1612
  %1616 = vset.pattern.permute.xlu0 0
  %1617 = vperm.xlu0 %1616, %v1527
  %v1618 = vpop.permute.xlu0 %1617
  %1621 = vset.pattern.permute.xlu0 0
  %1622 = vperm.xlu0 %1621, %v1528
  %v1623 = vpop.permute.xlu0 %1622
  %1626 = vset.pattern.permute.xlu0 0
  %1627 = vperm.xlu0 %1626, %v1529
  %v1628 = vpop.permute.xlu0 %1627
  %1631 = vset.pattern.permute.xlu0 0
  %1632 = vperm.xlu0 %1631, %v1530
  %v1633 = vpop.permute.xlu0 %1632
  %1636 = vset.pattern.permute.xlu0 0
  %1637 = vperm.xlu0 %1636, %v1531
  %v1638 = vpop.permute.xlu0 %1637
  %1641 = vset.pattern.permute.xlu0 0
  %1642 = vperm.xlu0 %1641, %v1532
  %v1643 = vpop.permute.xlu0 %1642
  %1646 = vset.pattern.permute.xlu0 0
  %1647 = vperm.xlu0 %1646, %v1533
  %v1648 = vpop.permute.xlu0 %1647
  %1651 = vset.pattern.permute.xlu0 0
  %1652 = vperm.xlu0 %1651, %v1534
  %v1653 = vpop.permute.xlu0 %1652
  %1656 = vset.pattern.permute.xlu0 0
  %1657 = vperm.xlu0 %1656, %v1535
  %v1658 = vpop.permute.xlu0 %1657
  %1661 = vset.pattern.permute.xlu0 0
  %1662 = vperm.xlu0 %1661, %v1536
  %v1663 = vpop.permute.xlu0 %1662
  %v1665 = vsub.f32 %v1457, %v1588
  %v1666 = vsub.f32 %v1458, %v1593
  %v1667 = vsub.f32 %v1459, %v1598
  %v1668 = vsub.f32 %v1460, %v1603
  %v1669 = vsub.f32 %v1461, %v1608
  %v1670 = vsub.f32 %v1462, %v1613
  %v1671 = vsub.f32 %v1463, %v1618
  %v1672 = vsub.f32 %v1464, %v1623
  %v1673 = vsub.f32 %v1465, %v1628
  %v1674 = vsub.f32 %v1466, %v1633
  %v1675 = vsub.f32 %v1467, %v1638
  %v1676 = vsub.f32 %v1468, %v1643
  %v1677 = vsub.f32 %v1469, %v1648
  %v1678 = vsub.f32 %v1470, %v1653
  %v1679 = vsub.f32 %v1471, %v1658
  %v1680 = vsub.f32 %v1472, %v1663
  %v1681 = vpack.c.bf16 %v1666, %v1665
  %v1682 = vpack.c.bf16 %v1668, %v1667
  %v1683 = vpack.c.bf16 %v1670, %v1669
  %v1684 = vpack.c.bf16 %v1672, %v1671
  %v1685 = vpack.c.bf16 %v1674, %v1673
  %v1686 = vpack.c.bf16 %v1676, %v1675
  %v1687 = vpack.c.bf16 %v1678, %v1677
  %v1688 = vpack.c.bf16 %v1680, %v1679
  %v1690 = vmul.bf16 %v1681, 1069105081
  %v1691 = vpow.bf16.pop %v1690
  %v1693 = vmul.bf16 %v1682, 1069105081
  %v1694 = vpow.bf16.pop %v1693
  %v1696 = vmul.bf16 %v1683, 1069105081
  %v1697 = vpow.bf16.pop %v1696
  %v1699 = vmul.bf16 %v1684, 1069105081
  %v1700 = vpow.bf16.pop %v1699
  %v1702 = vmul.bf16 %v1685, 1069105081
  %v1703 = vpow.bf16.pop %v1702
  %v1705 = vmul.bf16 %v1686, 1069105081
  %v1706 = vpow.bf16.pop %v1705
  %v1708 = vmul.bf16 %v1687, 1069105081
  %v1709 = vpow.bf16.pop %v1708
  %v1711 = vmul.bf16 %v1688, 1069105081
  %v1712 = vpow.bf16.pop %v1711
  %vm1713 = vnez %v246
  %vm1714 = vnez %v247
  %vm1715 = vnez %v248
  %vm1716 = vnez %v249
  %v1717 = vsel %vm1713, 16843009, 0
  %v1718 = vsel %vm1714, 16843009, 0
  %v1719 = vsel %vm1715, 16843009, 0
  %v1720 = vsel %vm1716, 16843009, 0
  %v1721 = vcombine.high %v1717, %v1717
  %v1722 = vcombine.high %v1718, %v1718
  %v1723 = vcombine.high %v1719, %v1719
  %v1724 = vcombine.high %v1720, %v1720
  %vm1725 = vnez %v1721
  %vm1726 = vnez %v1722
  %vm1727 = vnez %v1723
  %vm1728 = vnez %v1724
  %v1729 = vsel %vm1725, 16843009, 0
  %v1730 = vsel %vm1726, 16843009, 0
  %v1731 = vsel %vm1727, 16843009, 0
  %v1732 = vsel %vm1728, 16843009, 0
  %v1733 = vunpack.c.1.s8 %v1717
  %v1734 = vunpack.c.0.s8 %v1717
  %v1735 = vpack.c.b16 %v1733, %v1734
  %v1736 = vunpack.c.1.s8 %v1729
  %v1737 = vunpack.c.0.s8 %v1729
  %v1738 = vpack.c.b16 %v1736, %v1737
  %v1739 = vunpack.c.1.s8 %v1718
  %v1740 = vunpack.c.0.s8 %v1718
  %v1741 = vpack.c.b16 %v1739, %v1740
  %v1742 = vunpack.c.1.s8 %v1730
  %v1743 = vunpack.c.0.s8 %v1730
  %v1744 = vpack.c.b16 %v1742, %v1743
  %v1745 = vunpack.c.1.s8 %v1719
  %v1746 = vunpack.c.0.s8 %v1719
  %v1747 = vpack.c.b16 %v1745, %v1746
  %v1748 = vunpack.c.1.s8 %v1731
  %v1749 = vunpack.c.0.s8 %v1731
  %v1750 = vpack.c.b16 %v1748, %v1749
  %v1751 = vunpack.c.1.s8 %v1720
  %v1752 = vunpack.c.0.s8 %v1720
  %v1753 = vpack.c.b16 %v1751, %v1752
  %v1754 = vunpack.c.1.s8 %v1732
  %v1755 = vunpack.c.0.s8 %v1732
  %v1756 = vpack.c.b16 %v1754, %v1755
  %vm1757 = vcmp.ne.s16.totalorder %v1735, 0
  %vm1758 = vcmp.ne.s16.totalorder %v1738, 0
  %vm1759 = vcmp.ne.s16.totalorder %v1741, 0
  %vm1760 = vcmp.ne.s16.totalorder %v1744, 0
  %vm1761 = vcmp.ne.s16.totalorder %v1747, 0
  %vm1762 = vcmp.ne.s16.totalorder %v1750, 0
  %vm1763 = vcmp.ne.s16.totalorder %v1753, 0
  %vm1764 = vcmp.ne.s16.totalorder %v1756, 0
  %v1765 = vsel %vm1757, %v1691, 0
  %v1766 = vsel %vm1758, %v1694, 0
  %v1767 = vsel %vm1759, %v1697, 0
  %v1768 = vsel %vm1760, %v1700, 0
  %v1769 = vsel %vm1761, %v1703, 0
  %v1770 = vsel %vm1762, %v1706, 0
  %v1771 = vsel %vm1763, %v1709, 0
  %v1772 = vsel %vm1764, %v1712, 0
  %v1773 = vld [vmem:[#allocation3] sm:$0xff]
  %v1774 = vld [vmem:[#allocation3 + $0x8] sm:$0xff]
  %v1775 = vld [vmem:[#allocation3 + $0x10] sm:$0xff]
  %v1776 = vld [vmem:[#allocation3 + $0x18] sm:$0xff]
  %v1777 = vld [vmem:[#allocation3 + $0x20] sm:$0xff]
  %v1778 = vld [vmem:[#allocation3 + $0x28] sm:$0xff]
  %v1779 = vld [vmem:[#allocation3 + $0x30] sm:$0xff]
  %v1780 = vld [vmem:[#allocation3 + $0x38] sm:$0xff]
  %v1781 = vld [vmem:[#allocation3 + $0x40] sm:$0xff]
  %v1782 = vld [vmem:[#allocation3 + $0x48] sm:$0xff]
  %v1783 = vld [vmem:[#allocation3 + $0x50] sm:$0xff]
  %v1784 = vld [vmem:[#allocation3 + $0x58] sm:$0xff]
  %v1785 = vld [vmem:[#allocation3 + $0x60] sm:$0xff]
  %v1786 = vld [vmem:[#allocation3 + $0x68] sm:$0xff]
  %v1787 = vld [vmem:[#allocation3 + $0x70] sm:$0xff]
  %v1788 = vld [vmem:[#allocation3 + $0x78] sm:$0xff]
  %v1789 = vmul.f32 %v1554, %v1773
  %v1790 = vmul.f32 %v1556, %v1774
  %v1791 = vmul.f32 %v1558, %v1775
  %v1792 = vmul.f32 %v1560, %v1776
  %v1793 = vmul.f32 %v1562, %v1777
  %v1794 = vmul.f32 %v1564, %v1778
  %v1795 = vmul.f32 %v1566, %v1779
  %v1796 = vmul.f32 %v1568, %v1780
  %v1797 = vmul.f32 %v1570, %v1781
  %v1798 = vmul.f32 %v1572, %v1782
  %v1799 = vmul.f32 %v1574, %v1783
  %v1800 = vmul.f32 %v1576, %v1784
  %v1801 = vmul.f32 %v1578, %v1785
  %v1802 = vmul.f32 %v1580, %v1786
  %v1803 = vmul.f32 %v1582, %v1787
  %v1804 = vmul.f32 %v1584, %v1788
  %v1805 = vunpack.c.l.bf16 %v1765
  %v1806 = vunpack.c.h.bf16 %v1765
  %v1807 = vunpack.c.l.bf16 %v1766
  %v1808 = vunpack.c.h.bf16 %v1766
  %v1809 = vunpack.c.l.bf16 %v1767
  %v1810 = vunpack.c.h.bf16 %v1767
  %v1811 = vunpack.c.l.bf16 %v1768
  %v1812 = vunpack.c.h.bf16 %v1768
  %v1813 = vunpack.c.l.bf16 %v1769
  %v1814 = vunpack.c.h.bf16 %v1769
  %v1815 = vunpack.c.l.bf16 %v1770
  %v1816 = vunpack.c.h.bf16 %v1770
  %v1817 = vunpack.c.l.bf16 %v1771
  %v1818 = vunpack.c.h.bf16 %v1771
  %v1819 = vunpack.c.l.bf16 %v1772
  %v1820 = vunpack.c.h.bf16 %v1772
  %1821 = vadd.xlane.f32.xlu0 %v1805
  %v1822 = vpop.xlane.xlu0 %1821
  %1823 = vadd.xlane.f32.xlu0 %v1806
  %v1824 = vpop.xlane.xlu0 %1823
  %1825 = vadd.xlane.f32.xlu0 %v1807
  %v1826 = vpop.xlane.xlu0 %1825
  %1827 = vadd.xlane.f32.xlu0 %v1808
  %v1828 = vpop.xlane.xlu0 %1827
  %1829 = vadd.xlane.f32.xlu0 %v1809
  %v1830 = vpop.xlane.xlu0 %1829
  %1831 = vadd.xlane.f32.xlu0 %v1810
  %v1832 = vpop.xlane.xlu0 %1831
  %1833 = vadd.xlane.f32.xlu0 %v1811
  %v1834 = vpop.xlane.xlu0 %1833
  %1835 = vadd.xlane.f32.xlu0 %v1812
  %v1836 = vpop.xlane.xlu0 %1835
  %1837 = vadd.xlane.f32.xlu0 %v1813
  %v1838 = vpop.xlane.xlu0 %1837
  %1839 = vadd.xlane.f32.xlu0 %v1814
  %v1840 = vpop.xlane.xlu0 %1839
  %1841 = vadd.xlane.f32.xlu0 %v1815
  %v1842 = vpop.xlane.xlu0 %1841
  %1843 = vadd.xlane.f32.xlu0 %v1816
  %v1844 = vpop.xlane.xlu0 %1843
  %1845 = vadd.xlane.f32.xlu0 %v1817
  %v1846 = vpop.xlane.xlu0 %1845
  %1847 = vadd.xlane.f32.xlu0 %v1818
  %v1848 = vpop.xlane.xlu0 %1847
  %1849 = vadd.xlane.f32.xlu0 %v1819
  %v1850 = vpop.xlane.xlu0 %1849
  %1851 = vadd.xlane.f32.xlu0 %v1820
  %v1852 = vpop.xlane.xlu0 %1851
  %v1853 = vadd.f32 %v1789, %v1822
  %v1854 = vadd.f32 %v1790, %v1824
  %v1855 = vadd.f32 %v1791, %v1826
  %v1856 = vadd.f32 %v1792, %v1828
  %v1857 = vadd.f32 %v1793, %v1830
  %v1858 = vadd.f32 %v1794, %v1832
  %v1859 = vadd.f32 %v1795, %v1834
  %v1860 = vadd.f32 %v1796, %v1836
  %v1861 = vadd.f32 %v1797, %v1838
  %v1862 = vadd.f32 %v1798, %v1840
  %v1863 = vadd.f32 %v1799, %v1842
  %v1864 = vadd.f32 %v1800, %v1844
  %v1865 = vadd.f32 %v1801, %v1846
  %v1866 = vadd.f32 %v1802, %v1848
  %v1867 = vadd.f32 %v1803, %v1850
  %v1868 = vadd.f32 %v1804, %v1852
  %vm1869 = vcmask 7168
  %1870 = vst.msk [vmem:[#allocation3] sm:$0xff] %vm1869, %v1853
  %1871 = vst.msk [vmem:[#allocation3 + $0x8] sm:$0xff] %vm1869, %v1854
  %1872 = vst.msk [vmem:[#allocation3 + $0x10] sm:$0xff] %vm1869, %v1855
  %1873 = vst.msk [vmem:[#allocation3 + $0x18] sm:$0xff] %vm1869, %v1856
  %1874 = vst.msk [vmem:[#allocation3 + $0x20] sm:$0xff] %vm1869, %v1857
  %1875 = vst.msk [vmem:[#allocation3 + $0x28] sm:$0xff] %vm1869, %v1858
  %1876 = vst.msk [vmem:[#allocation3 + $0x30] sm:$0xff] %vm1869, %v1859
  %1877 = vst.msk [vmem:[#allocation3 + $0x38] sm:$0xff] %vm1869, %v1860
  %1878 = vst.msk [vmem:[#allocation3 + $0x40] sm:$0xff] %vm1869, %v1861
  %1879 = vst.msk [vmem:[#allocation3 + $0x48] sm:$0xff] %vm1869, %v1862
  %1880 = vst.msk [vmem:[#allocation3 + $0x50] sm:$0xff] %vm1869, %v1863
  %1881 = vst.msk [vmem:[#allocation3 + $0x58] sm:$0xff] %vm1869, %v1864
  %1882 = vst.msk [vmem:[#allocation3 + $0x60] sm:$0xff] %vm1869, %v1865
  %1883 = vst.msk [vmem:[#allocation3 + $0x68] sm:$0xff] %vm1869, %v1866
  %1884 = vst.msk [vmem:[#allocation3 + $0x70] sm:$0xff] %vm1869, %v1867
  %1885 = vst.msk [vmem:[#allocation3 + $0x78] sm:$0xff] %vm1869, %v1868
  %v1886 = vld [vmem:[#allocation4] sm:$0xff]
  %v1887 = vld [vmem:[#allocation4 + $0x8] sm:$0xff]
  %v1888 = vld [vmem:[#allocation4 + $0x10] sm:$0xff]
  %v1889 = vld [vmem:[#allocation4 + $0x18] sm:$0xff]
  %v1890 = vld [vmem:[#allocation4 + $0x20] sm:$0xff]
  %v1891 = vld [vmem:[#allocation4 + $0x28] sm:$0xff]
  %v1892 = vld [vmem:[#allocation4 + $0x30] sm:$0xff]
  %v1893 = vld [vmem:[#allocation4 + $0x38] sm:$0xff]
  %v1894 = vld [vmem:[#allocation4 + $0x40] sm:$0xff]
  %v1895 = vld [vmem:[#allocation4 + $0x48] sm:$0xff]
  %v1896 = vld [vmem:[#allocation4 + $0x50] sm:$0xff]
  %v1897 = vld [vmem:[#allocation4 + $0x58] sm:$0xff]
  %v1898 = vld [vmem:[#allocation4 + $0x60] sm:$0xff]
  %v1899 = vld [vmem:[#allocation4 + $0x68] sm:$0xff]
  %v1900 = vld [vmem:[#allocation4 + $0x70] sm:$0xff]
  %v1901 = vld [vmem:[#allocation4 + $0x78] sm:$0xff]
  %1903 = vset.pattern.permute.xlu0 0
  %1904 = vperm.xlu0 %1903, %v1554
  %v1905 = vpop.permute.xlu0 %1904
  %1908 = vset.pattern.permute.xlu0 0
  %1909 = vperm.xlu0 %1908, %v1556
  %v1910 = vpop.permute.xlu0 %1909
  %1913 = vset.pattern.permute.xlu0 0
  %1914 = vperm.xlu0 %1913, %v1558
  %v1915 = vpop.permute.xlu0 %1914
  %1918 = vset.pattern.permute.xlu0 0
  %1919 = vperm.xlu0 %1918, %v1560
  %v1920 = vpop.permute.xlu0 %1919
  %1923 = vset.pattern.permute.xlu0 0
  %1924 = vperm.xlu0 %1923, %v1562
  %v1925 = vpop.permute.xlu0 %1924
  %1928 = vset.pattern.permute.xlu0 0
  %1929 = vperm.xlu0 %1928, %v1564
  %v1930 = vpop.permute.xlu0 %1929
  %1933 = vset.pattern.permute.xlu0 0
  %1934 = vperm.xlu0 %1933, %v1566
  %v1935 = vpop.permute.xlu0 %1934
  %1938 = vset.pattern.permute.xlu0 0
  %1939 = vperm.xlu0 %1938, %v1568
  %v1940 = vpop.permute.xlu0 %1939
  %1943 = vset.pattern.permute.xlu0 0
  %1944 = vperm.xlu0 %1943, %v1570
  %v1945 = vpop.permute.xlu0 %1944
  %1948 = vset.pattern.permute.xlu0 0
  %1949 = vperm.xlu0 %1948, %v1572
  %v1950 = vpop.permute.xlu0 %1949
  %1953 = vset.pattern.permute.xlu0 0
  %1954 = vperm.xlu0 %1953, %v1574
  %v1955 = vpop.permute.xlu0 %1954
  %1958 = vset.pattern.permute.xlu0 0
  %1959 = vperm.xlu0 %1958, %v1576
  %v1960 = vpop.permute.xlu0 %1959
  %1963 = vset.pattern.permute.xlu0 0
  %1964 = vperm.xlu0 %1963, %v1578
  %v1965 = vpop.permute.xlu0 %1964
  %1968 = vset.pattern.permute.xlu0 0
  %1969 = vperm.xlu0 %1968, %v1580
  %v1970 = vpop.permute.xlu0 %1969
  %1973 = vset.pattern.permute.xlu0 0
  %1974 = vperm.xlu0 %1973, %v1582
  %v1975 = vpop.permute.xlu0 %1974
  %1978 = vset.pattern.permute.xlu0 0
  %1979 = vperm.xlu0 %1978, %v1584
  %v1980 = vpop.permute.xlu0 %1979
  %v1982 = vmul.f32 %v1905, %v1886
  %v1983 = vmul.f32 %v1910, %v1887
  %v1984 = vmul.f32 %v1915, %v1888
  %v1985 = vmul.f32 %v1920, %v1889
  %v1986 = vmul.f32 %v1925, %v1890
  %v1987 = vmul.f32 %v1930, %v1891
  %v1988 = vmul.f32 %v1935, %v1892
  %v1989 = vmul.f32 %v1940, %v1893
  %v1990 = vmul.f32 %v1945, %v1894
  %v1991 = vmul.f32 %v1950, %v1895
  %v1992 = vmul.f32 %v1955, %v1896
  %v1993 = vmul.f32 %v1960, %v1897
  %v1994 = vmul.f32 %v1965, %v1898
  %v1995 = vmul.f32 %v1970, %v1899
  %v1996 = vmul.f32 %v1975, %v1900
  %v1997 = vmul.f32 %v1980, %v1901
  %v1998 = vld [vmem:[%s2] sm:$0xff]
  %v1999 = vld [vmem:[%s2 + $0x8] sm:$0xff]
  %v2000 = vld [vmem:[%s2 + $0x10] sm:$0xff]
  %v2001 = vld [vmem:[%s2 + $0x18] sm:$0xff]
  %v2002 = vld [vmem:[%s2 + $0x20] sm:$0xff]
  %v2003 = vld [vmem:[%s2 + $0x28] sm:$0xff]
  %v2004 = vld [vmem:[%s2 + $0x30] sm:$0xff]
  %v2005 = vld [vmem:[%s2 + $0x38] sm:$0xff]
  %v2006 = vld [vmem:[%s2 + $0x40] sm:$0xff]
  %v2007 = vld [vmem:[%s2 + $0x48] sm:$0xff]
  %v2008 = vld [vmem:[%s2 + $0x50] sm:$0xff]
  %v2009 = vld [vmem:[%s2 + $0x58] sm:$0xff]
  %v2010 = vld [vmem:[%s2 + $0x60] sm:$0xff]
  %v2011 = vld [vmem:[%s2 + $0x68] sm:$0xff]
  %v2012 = vld [vmem:[%s2 + $0x70] sm:$0xff]
  %v2013 = vld [vmem:[%s2 + $0x78] sm:$0xff]
  %v2014 = vpack.c.bf16 %v1999, %v1998
  %v2015 = vpack.c.bf16 %v2001, %v2000
  %v2016 = vpack.c.bf16 %v2003, %v2002
  %v2017 = vpack.c.bf16 %v2005, %v2004
  %v2018 = vpack.c.bf16 %v2007, %v2006
  %v2019 = vpack.c.bf16 %v2009, %v2008
  %v2020 = vpack.c.bf16 %v2011, %v2010
  %v2021 = vpack.c.bf16 %v2013, %v2012
  %2022 = vmatprep.subr.bf16.mxu0 0
  %2023 = vmatpush1.bf16.msra.mxu0 %v2021
  %2024 = vmatprep.subr.bf16.mxu0 0
  %2025 = vmatpush1.bf16.msra.mxu0 %v2020
  %2026 = vmatprep.subr.bf16.mxu0 0
  %2027 = vmatpush1.bf16.msra.mxu0 %v2019
  %2028 = vmatprep.subr.bf16.mxu0 0
  %2029 = vmatpush1.bf16.msra.mxu0 %v2018
  %2030 = vmatprep.subr.bf16.mxu0 0
  %2031 = vmatpush1.bf16.msra.mxu0 %v2017
  %2032 = vmatprep.subr.bf16.mxu0 0
  %2033 = vmatpush1.bf16.msra.mxu0 %v2016
  %2034 = vmatprep.subr.bf16.mxu0 0
  %2035 = vmatpush1.bf16.msra.mxu0 %v2015
  %2036 = vmatprep.subr.bf16.mxu0 0
  %2037 = vmatpush1.bf16.msra.mxu0 %v2014
  %2038 = vmatprep.subr.bf16.mxu0 0
  %2039 = vmatpush2.bf16.msra.mxu0 0
  %2040 = vmatprep.subr.bf16.mxu0 0
  %2041 = vmatpush2.bf16.msra.mxu0 0
  %2042 = vmatprep.subr.bf16.mxu0 0
  %2043 = vmatpush2.bf16.msra.mxu0 0
  %2044 = vmatprep.subr.bf16.mxu0 0
  %2045 = vmatpush2.bf16.msra.mxu0 0
  %2046 = vmatprep.subr.bf16.mxu0 0
  %2047 = vmatpush2.bf16.msra.mxu0 0
  %2048 = vmatprep.subr.bf16.mxu0 0
  %2049 = vmatpush2.bf16.msra.mxu0 0
  %2050 = vmatprep.subr.bf16.mxu0 0
  %2051 = vmatpush2.bf16.msra.mxu0 0
  %2052 = vmatprep.subr.bf16.mxu0 0
  %2053 = vmatpush2.bf16.msra.mxu0 0
  %2054 = vmatprep.mubr.bf16.mxu0 0
  %2055 = vmatmul.mubr.bf16.gmra.mxu0 %v1765
  %v2056 = vpop.f32.mrf.mxu0
  %v2057 = vadd.f32 0.0, %v2056
  %v2058 = vpop.f32.mrf.mxu0
  %v2059 = vpop.f32.mrf.mxu0
  %v2060 = vadd.f32 0.0, %v2059
  %v2061 = vpop.f32.mrf.mxu0
  %2062 = vmatprep.mubr.bf16.mxu0 0
  %2063 = vmatmul.mubr.bf16.gmra.mxu0 %v1766
  %v2064 = vpop.f32.mrf.mxu0
  %v2065 = vadd.f32 0.0, %v2064
  %v2066 = vpop.f32.mrf.mxu0
  %v2067 = vpop.f32.mrf.mxu0
  %v2068 = vadd.f32 0.0, %v2067
  %v2069 = vpop.f32.mrf.mxu0
  %2070 = vmatprep.mubr.bf16.mxu0 0
  %2071 = vmatmul.mubr.bf16.gmra.mxu0 %v1767
  %v2072 = vpop.f32.mrf.mxu0
  %v2073 = vadd.f32 0.0, %v2072
  %v2074 = vpop.f32.mrf.mxu0
  %v2075 = vpop.f32.mrf.mxu0
  %v2076 = vadd.f32 0.0, %v2075
  %v2077 = vpop.f32.mrf.mxu0
  %2078 = vmatprep.mubr.bf16.mxu0 0
  %2079 = vmatmul.mubr.bf16.gmra.mxu0 %v1768
  %v2080 = vpop.f32.mrf.mxu0
  %v2081 = vadd.f32 0.0, %v2080
  %v2082 = vpop.f32.mrf.mxu0
  %v2083 = vpop.f32.mrf.mxu0
  %v2084 = vadd.f32 0.0, %v2083
  %v2085 = vpop.f32.mrf.mxu0
  %2086 = vmatprep.mubr.bf16.mxu0 0
  %2087 = vmatmul.mubr.bf16.gmra.mxu0 %v1769
  %v2088 = vpop.f32.mrf.mxu0
  %v2089 = vadd.f32 0.0, %v2088
  %v2090 = vpop.f32.mrf.mxu0
  %v2091 = vpop.f32.mrf.mxu0
  %v2092 = vadd.f32 0.0, %v2091
  %v2093 = vpop.f32.mrf.mxu0
  %2094 = vmatprep.mubr.bf16.mxu0 0
  %2095 = vmatmul.mubr.bf16.gmra.mxu0 %v1770
  %v2096 = vpop.f32.mrf.mxu0
  %v2097 = vadd.f32 0.0, %v2096
  %v2098 = vpop.f32.mrf.mxu0
  %v2099 = vpop.f32.mrf.mxu0
  %v2100 = vadd.f32 0.0, %v2099
  %v2101 = vpop.f32.mrf.mxu0
  %2102 = vmatprep.mubr.bf16.mxu0 0
  %2103 = vmatmul.mubr.bf16.gmra.mxu0 %v1771
  %v2104 = vpop.f32.mrf.mxu0
  %v2105 = vadd.f32 0.0, %v2104
  %v2106 = vpop.f32.mrf.mxu0
  %v2107 = vpop.f32.mrf.mxu0
  %v2108 = vadd.f32 0.0, %v2107
  %v2109 = vpop.f32.mrf.mxu0
  %2110 = vmatprep.mubr.bf16.mxu0 0
  %2111 = vmatmul.mubr.bf16.gmra.mxu0 %v1772
  %v2112 = vpop.f32.mrf.mxu0
  %v2113 = vadd.f32 0.0, %v2112
  %v2114 = vpop.f32.mrf.mxu0
  %v2115 = vpop.f32.mrf.mxu0
  %v2116 = vadd.f32 0.0, %v2115
  %v2117 = vpop.f32.mrf.mxu0
  %2118 = vdwg.mxu0
  %v2119 = vadd.f32 %v1982, %v2057
  %v2120 = vadd.f32 %v1983, %v2060
  %v2121 = vadd.f32 %v1984, %v2065
  %v2122 = vadd.f32 %v1985, %v2068
  %v2123 = vadd.f32 %v1986, %v2073
  %v2124 = vadd.f32 %v1987, %v2076
  %v2125 = vadd.f32 %v1988, %v2081
  %v2126 = vadd.f32 %v1989, %v2084
  %v2127 = vadd.f32 %v1990, %v2089
  %v2128 = vadd.f32 %v1991, %v2092
  %v2129 = vadd.f32 %v1992, %v2097
  %v2130 = vadd.f32 %v1993, %v2100
  %v2131 = vadd.f32 %v1994, %v2105
  %v2132 = vadd.f32 %v1995, %v2108
  %v2133 = vadd.f32 %v1996, %v2113
  %v2134 = vadd.f32 %v1997, %v2116
  %vm2135 = vcmask 64512
  %2136 = vst.msk [vmem:[#allocation4] sm:$0xff] %vm2135, %v2119
  %2137 = vst.msk [vmem:[#allocation4 + $0x8] sm:$0xff] %vm2135, %v2120
  %2138 = vst.msk [vmem:[#allocation4 + $0x10] sm:$0xff] %vm2135, %v2121
  %2139 = vst.msk [vmem:[#allocation4 + $0x18] sm:$0xff] %vm2135, %v2122
  %2140 = vst.msk [vmem:[#allocation4 + $0x20] sm:$0xff] %vm2135, %v2123
  %2141 = vst.msk [vmem:[#allocation4 + $0x28] sm:$0xff] %vm2135, %v2124
  %2142 = vst.msk [vmem:[#allocation4 + $0x30] sm:$0xff] %vm2135, %v2125
  %2143 = vst.msk [vmem:[#allocation4 + $0x38] sm:$0xff] %vm2135, %v2126
  %2144 = vst.msk [vmem:[#allocation4 + $0x40] sm:$0xff] %vm2135, %v2127
  %2145 = vst.msk [vmem:[#allocation4 + $0x48] sm:$0xff] %vm2135, %v2128
  %2146 = vst.msk [vmem:[#allocation4 + $0x50] sm:$0xff] %vm2135, %v2129
  %2147 = vst.msk [vmem:[#allocation4 + $0x58] sm:$0xff] %vm2135, %v2130
  %2148 = vst.msk [vmem:[#allocation4 + $0x60] sm:$0xff] %vm2135, %v2131
  %2149 = vst.msk [vmem:[#allocation4 + $0x68] sm:$0xff] %vm2135, %v2132
  %2150 = vst.msk [vmem:[#allocation4 + $0x70] sm:$0xff] %vm2135, %v2133
  %2151 = vst.msk [vmem:[#allocation4 + $0x78] sm:$0xff] %vm2135, %v2134
  %2152 = vst.msk [vmem:[#allocation2] sm:$0xff] %vm1869, %v1521
  %2153 = vst.msk [vmem:[#allocation2 + $0x8] sm:$0xff] %vm1869, %v1522
  %2154 = vst.msk [vmem:[#allocation2 + $0x10] sm:$0xff] %vm1869, %v1523
  %2155 = vst.msk [vmem:[#allocation2 + $0x18] sm:$0xff] %vm1869, %v1524
  %2156 = vst.msk [vmem:[#allocation2 + $0x20] sm:$0xff] %vm1869, %v1525
  %2157 = vst.msk [vmem:[#allocation2 + $0x28] sm:$0xff] %vm1869, %v1526
  %2158 = vst.msk [vmem:[#allocation2 + $0x30] sm:$0xff] %vm1869, %v1527
  %2159 = vst.msk [vmem:[#allocation2 + $0x38] sm:$0xff] %vm1869, %v1528
  %2160 = vst.msk [vmem:[#allocation2 + $0x40] sm:$0xff] %vm1869, %v1529
  %2161 = vst.msk [vmem:[#allocation2 + $0x48] sm:$0xff] %vm1869, %v1530
  %2162 = vst.msk [vmem:[#allocation2 + $0x50] sm:$0xff] %vm1869, %v1531
  %2163 = vst.msk [vmem:[#allocation2 + $0x58] sm:$0xff] %vm1869, %v1532
  %2164 = vst.msk [vmem:[#allocation2 + $0x60] sm:$0xff] %vm1869, %v1533
  %2165 = vst.msk [vmem:[#allocation2 + $0x68] sm:$0xff] %vm1869, %v1534
  %2166 = vst.msk [vmem:[#allocation2 + $0x70] sm:$0xff] %vm1869, %v1535
  %2167 = vst.msk [vmem:[#allocation2 + $0x78] sm:$0xff] %vm1869, %v1536
  %s2168 = scalar_lea.vmem %s0, 8
  %v2169 = vld [vmem:[%s2168] sm:$0xff]
  %v2170 = vld [vmem:[%s1] sm:$0xff]
  %v2171 = vld [vmem:[%s1 + $0x8] sm:$0xff]
  %v2172 = vld [vmem:[%s1 + $0x10] sm:$0xff]
  %v2173 = vld [vmem:[%s1 + $0x18] sm:$0xff]
  %v2174 = vld [vmem:[%s1 + $0x20] sm:$0xff]
  %v2175 = vld [vmem:[%s1 + $0x28] sm:$0xff]
  %v2176 = vld [vmem:[%s1 + $0x30] sm:$0xff]
  %v2177 = vld [vmem:[%s1 + $0x38] sm:$0xff]
  %v2178 = vld [vmem:[%s1 + $0x40] sm:$0xff]
  %v2179 = vld [vmem:[%s1 + $0x48] sm:$0xff]
  %v2180 = vld [vmem:[%s1 + $0x50] sm:$0xff]
  %v2181 = vld [vmem:[%s1 + $0x58] sm:$0xff]
  %v2182 = vld [vmem:[%s1 + $0x60] sm:$0xff]
  %v2183 = vld [vmem:[%s1 + $0x68] sm:$0xff]
  %v2184 = vld [vmem:[%s1 + $0x70] sm:$0xff]
  %v2185 = vld [vmem:[%s1 + $0x78] sm:$0xff]
  %s2186 = scalar_lea.vmem %s6, 32
  %v2187 = vld [vmem:[%s2186] sm:$0xff]
  %v2188 = vld [vmem:[%s2186 + $0x8] sm:$0xff]
  %v2189 = vld [vmem:[%s2186 + $0x10] sm:$0xff]
  %v2190 = vld [vmem:[%s2186 + $0x18] sm:$0xff]
  %s2191 = scalar_lea.vmem %s4, 128
  %v2192 = vld [vmem:[%s2191] sm:$0xff]
  %v2193 = vld [vmem:[%s2191 + $0x8] sm:$0xff]
  %v2194 = vld [vmem:[%s2191 + $0x10] sm:$0xff]
  %v2195 = vld [vmem:[%s2191 + $0x18] sm:$0xff]
  %v2196 = vld [vmem:[%s2191 + $0x20] sm:$0xff]
  %v2197 = vld [vmem:[%s2191 + $0x28] sm:$0xff]
  %v2198 = vld [vmem:[%s2191 + $0x30] sm:$0xff]
  %v2199 = vld [vmem:[%s2191 + $0x38] sm:$0xff]
  %v2200 = vld [vmem:[%s2191 + $0x40] sm:$0xff]
  %v2201 = vld [vmem:[%s2191 + $0x48] sm:$0xff]
  %v2202 = vld [vmem:[%s2191 + $0x50] sm:$0xff]
  %v2203 = vld [vmem:[%s2191 + $0x58] sm:$0xff]
  %v2204 = vld [vmem:[%s2191 + $0x60] sm:$0xff]
  %v2205 = vld [vmem:[%s2191 + $0x68] sm:$0xff]
  %v2206 = vld [vmem:[%s2191 + $0x70] sm:$0xff]
  %v2207 = vld [vmem:[%s2191 + $0x78] sm:$0xff]
  %s2208 = scalar_lea.vmem %s3, 1
  %v2209 = vld [vmem:[%s2208] sm:$0x1]
  %2211 = vset.pattern.permute.xlu0 0
  %2212 = vperm.xlu0 %2211, %v2192
  %v2213 = vpop.permute.xlu0 %2212
  %2216 = vset.pattern.permute.xlu0 0
  %2217 = vperm.xlu0 %2216, %v2193
  %v2218 = vpop.permute.xlu0 %2217
  %2221 = vset.pattern.permute.xlu0 0
  %2222 = vperm.xlu0 %2221, %v2194
  %v2223 = vpop.permute.xlu0 %2222
  %2226 = vset.pattern.permute.xlu0 0
  %2227 = vperm.xlu0 %2226, %v2195
  %v2228 = vpop.permute.xlu0 %2227
  %2231 = vset.pattern.permute.xlu0 0
  %2232 = vperm.xlu0 %2231, %v2196
  %v2233 = vpop.permute.xlu0 %2232
  %2236 = vset.pattern.permute.xlu0 0
  %2237 = vperm.xlu0 %2236, %v2197
  %v2238 = vpop.permute.xlu0 %2237
  %2241 = vset.pattern.permute.xlu0 0
  %2242 = vperm.xlu0 %2241, %v2198
  %v2243 = vpop.permute.xlu0 %2242
  %2246 = vset.pattern.permute.xlu0 0
  %2247 = vperm.xlu0 %2246, %v2199
  %v2248 = vpop.permute.xlu0 %2247
  %2251 = vset.pattern.permute.xlu0 0
  %2252 = vperm.xlu0 %2251, %v2200
  %v2253 = vpop.permute.xlu0 %2252
  %2256 = vset.pattern.permute.xlu0 0
  %2257 = vperm.xlu0 %2256, %v2201
  %v2258 = vpop.permute.xlu0 %2257
  %2261 = vset.pattern.permute.xlu0 0
  %2262 = vperm.xlu0 %2261, %v2202
  %v2263 = vpop.permute.xlu0 %2262
  %2266 = vset.pattern.permute.xlu0 0
  %2267 = vperm.xlu0 %2266, %v2203
  %v2268 = vpop.permute.xlu0 %2267
  %2271 = vset.pattern.permute.xlu0 0
  %2272 = vperm.xlu0 %2271, %v2204
  %v2273 = vpop.permute.xlu0 %2272
  %2276 = vset.pattern.permute.xlu0 0
  %2277 = vperm.xlu0 %2276, %v2205
  %v2278 = vpop.permute.xlu0 %2277
  %2281 = vset.pattern.permute.xlu0 0
  %2282 = vperm.xlu0 %2281, %v2206
  %v2283 = vpop.permute.xlu0 %2282
  %2286 = vset.pattern.permute.xlu0 0
  %2287 = vperm.xlu0 %2286, %v2207
  %v2288 = vpop.permute.xlu0 %2287
  %v2291 = vlaneseq
  %v2292 = vshrl.u32 %v2291, 7
  %v2293 = vsub.s32 0, %v2292
  %v2294 = vrot.slane %v2209, %v2293
  %v2296 = vadd.f32 %v2213, %v2294
  %v2297 = vadd.f32 %v2218, %v2294
  %v2298 = vadd.f32 %v2223, %v2294
  %v2299 = vadd.f32 %v2228, %v2294
  %v2300 = vadd.f32 %v2233, %v2294
  %v2301 = vadd.f32 %v2238, %v2294
  %v2302 = vadd.f32 %v2243, %v2294
  %v2303 = vadd.f32 %v2248, %v2294
  %v2304 = vadd.f32 %v2253, %v2294
  %v2305 = vadd.f32 %v2258, %v2294
  %v2306 = vadd.f32 %v2263, %v2294
  %v2307 = vadd.f32 %v2268, %v2294
  %v2308 = vadd.f32 %v2273, %v2294
  %v2309 = vadd.f32 %v2278, %v2294
  %v2310 = vadd.f32 %v2283, %v2294
  %v2311 = vadd.f32 %v2288, %v2294
  %v2312 = vlaneseq
  %v2313 = vshrl.u32 %v2312, 7
  %v2314 = vsub.s32 0, %v2313
  %v2315 = vrot.slane %v2169, %v2314
  %2317 = vset.pattern.permute.xlu0 8
  %2318 = vperm.xlu0 %2317, %v2170
  %v2319 = vpop.permute.xlu0 %2318
  %2322 = vset.pattern.permute.xlu0 8
  %2323 = vperm.xlu0 %2322, %v2171
  %v2324 = vpop.permute.xlu0 %2323
  %2327 = vset.pattern.permute.xlu0 8
  %2328 = vperm.xlu0 %2327, %v2172
  %v2329 = vpop.permute.xlu0 %2328
  %2332 = vset.pattern.permute.xlu0 8
  %2333 = vperm.xlu0 %2332, %v2173
  %v2334 = vpop.permute.xlu0 %2333
  %2337 = vset.pattern.permute.xlu0 8
  %2338 = vperm.xlu0 %2337, %v2174
  %v2339 = vpop.permute.xlu0 %2338
  %2342 = vset.pattern.permute.xlu0 8
  %2343 = vperm.xlu0 %2342, %v2175
  %v2344 = vpop.permute.xlu0 %2343
  %2347 = vset.pattern.permute.xlu0 8
  %2348 = vperm.xlu0 %2347, %v2176
  %v2349 = vpop.permute.xlu0 %2348
  %2352 = vset.pattern.permute.xlu0 8
  %2353 = vperm.xlu0 %2352, %v2177
  %v2354 = vpop.permute.xlu0 %2353
  %2357 = vset.pattern.permute.xlu0 8
  %2358 = vperm.xlu0 %2357, %v2178
  %v2359 = vpop.permute.xlu0 %2358
  %2362 = vset.pattern.permute.xlu0 8
  %2363 = vperm.xlu0 %2362, %v2179
  %v2364 = vpop.permute.xlu0 %2363
  %2367 = vset.pattern.permute.xlu0 8
  %2368 = vperm.xlu0 %2367, %v2180
  %v2369 = vpop.permute.xlu0 %2368
  %2372 = vset.pattern.permute.xlu0 8
  %2373 = vperm.xlu0 %2372, %v2181
  %v2374 = vpop.permute.xlu0 %2373
  %2377 = vset.pattern.permute.xlu0 8
  %2378 = vperm.xlu0 %2377, %v2182
  %v2379 = vpop.permute.xlu0 %2378
  %2382 = vset.pattern.permute.xlu0 8
  %2383 = vperm.xlu0 %2382, %v2183
  %v2384 = vpop.permute.xlu0 %2383
  %2387 = vset.pattern.permute.xlu0 8
  %2388 = vperm.xlu0 %2387, %v2184
  %v2389 = vpop.permute.xlu0 %2388
  %2392 = vset.pattern.permute.xlu0 8
  %2393 = vperm.xlu0 %2392, %v2185
  %v2394 = vpop.permute.xlu0 %2393
  %v2396 = vadd.f32 %v2315, %v2319
  %v2397 = vadd.f32 %v2315, %v2324
  %v2398 = vadd.f32 %v2315, %v2329
  %v2399 = vadd.f32 %v2315, %v2334
  %v2400 = vadd.f32 %v2315, %v2339
  %v2401 = vadd.f32 %v2315, %v2344
  %v2402 = vadd.f32 %v2315, %v2349
  %v2403 = vadd.f32 %v2315, %v2354
  %v2404 = vadd.f32 %v2315, %v2359
  %v2405 = vadd.f32 %v2315, %v2364
  %v2406 = vadd.f32 %v2315, %v2369
  %v2407 = vadd.f32 %v2315, %v2374
  %v2408 = vadd.f32 %v2315, %v2379
  %v2409 = vadd.f32 %v2315, %v2384
  %v2410 = vadd.f32 %v2315, %v2389
  %v2411 = vadd.f32 %v2315, %v2394
  %v2412 = vand.u32 2147483647, %v2396
  %v2413 = vand.u32 2147483647, %v2397
  %v2414 = vand.u32 2147483647, %v2398
  %v2415 = vand.u32 2147483647, %v2399
  %v2416 = vand.u32 2147483647, %v2400
  %v2417 = vand.u32 2147483647, %v2401
  %v2418 = vand.u32 2147483647, %v2402
  %v2419 = vand.u32 2147483647, %v2403
  %v2420 = vand.u32 2147483647, %v2404
  %v2421 = vand.u32 2147483647, %v2405
  %v2422 = vand.u32 2147483647, %v2406
  %v2423 = vand.u32 2147483647, %v2407
  %v2424 = vand.u32 2147483647, %v2408
  %v2425 = vand.u32 2147483647, %v2409
  %v2426 = vand.u32 2147483647, %v2410
  %v2427 = vand.u32 2147483647, %v2411
  %v2428 = vmul.f32 %v487, %v2412
  %v2429 = vmul.f32 %v487, %v2413
  %v2430 = vmul.f32 %v487, %v2414
  %v2431 = vmul.f32 %v487, %v2415
  %v2432 = vmul.f32 %v487, %v2416
  %v2433 = vmul.f32 %v487, %v2417
  %v2434 = vmul.f32 %v487, %v2418
  %v2435 = vmul.f32 %v487, %v2419
  %v2436 = vmul.f32 %v487, %v2420
  %v2437 = vmul.f32 %v487, %v2421
  %v2438 = vmul.f32 %v487, %v2422
  %v2439 = vmul.f32 %v487, %v2423
  %v2440 = vmul.f32 %v487, %v2424
  %v2441 = vmul.f32 %v487, %v2425
  %v2442 = vmul.f32 %v487, %v2426
  %v2443 = vmul.f32 %v487, %v2427
  %v2444 = vadd.f32 %v2296, %v2428
  %v2445 = vadd.f32 %v2297, %v2429
  %v2446 = vadd.f32 %v2298, %v2430
  %v2447 = vadd.f32 %v2299, %v2431
  %v2448 = vadd.f32 %v2300, %v2432
  %v2449 = vadd.f32 %v2301, %v2433
  %v2450 = vadd.f32 %v2302, %v2434
  %v2451 = vadd.f32 %v2303, %v2435
  %v2452 = vadd.f32 %v2304, %v2436
  %v2453 = vadd.f32 %v2305, %v2437
  %v2454 = vadd.f32 %v2306, %v2438
  %v2455 = vadd.f32 %v2307, %v2439
  %v2456 = vadd.f32 %v2308, %v2440
  %v2457 = vadd.f32 %v2309, %v2441
  %v2458 = vadd.f32 %v2310, %v2442
  %v2459 = vadd.f32 %v2311, %v2443
  %v2460 = vlaneseq
  %v2461 = vshrl.u32 %v2460, 7
  %v2462 = vsub.s32 1, %v2461
  %v2463 = vrot.slane %v2169, %v2462
  %2464 = vset.pattern.permute.xlu0 9
  %2465 = vperm.xlu0 %2464, %v2170
  %v2466 = vpop.permute.xlu0 %2465
  %2468 = vset.pattern.permute.xlu0 9
  %2469 = vperm.xlu0 %2468, %v2171
  %v2470 = vpop.permute.xlu0 %2469
  %2472 = vset.pattern.permute.xlu0 9
  %2473 = vperm.xlu0 %2472, %v2172
  %v2474 = vpop.permute.xlu0 %2473
  %2476 = vset.pattern.permute.xlu0 9
  %2477 = vperm.xlu0 %2476, %v2173
  %v2478 = vpop.permute.xlu0 %2477
  %2480 = vset.pattern.permute.xlu0 9
  %2481 = vperm.xlu0 %2480, %v2174
  %v2482 = vpop.permute.xlu0 %2481
  %2484 = vset.pattern.permute.xlu0 9
  %2485 = vperm.xlu0 %2484, %v2175
  %v2486 = vpop.permute.xlu0 %2485
  %2488 = vset.pattern.permute.xlu0 9
  %2489 = vperm.xlu0 %2488, %v2176
  %v2490 = vpop.permute.xlu0 %2489
  %2492 = vset.pattern.permute.xlu0 9
  %2493 = vperm.xlu0 %2492, %v2177
  %v2494 = vpop.permute.xlu0 %2493
  %2496 = vset.pattern.permute.xlu0 9
  %2497 = vperm.xlu0 %2496, %v2178
  %v2498 = vpop.permute.xlu0 %2497
  %2500 = vset.pattern.permute.xlu0 9
  %2501 = vperm.xlu0 %2500, %v2179
  %v2502 = vpop.permute.xlu0 %2501
  %2504 = vset.pattern.permute.xlu0 9
  %2505 = vperm.xlu0 %2504, %v2180
  %v2506 = vpop.permute.xlu0 %2505
  %2508 = vset.pattern.permute.xlu0 9
  %2509 = vperm.xlu0 %2508, %v2181
  %v2510 = vpop.permute.xlu0 %2509
  %2512 = vset.pattern.permute.xlu0 9
  %2513 = vperm.xlu0 %2512, %v2182
  %v2514 = vpop.permute.xlu0 %2513
  %2516 = vset.pattern.permute.xlu0 9
  %2517 = vperm.xlu0 %2516, %v2183
  %v2518 = vpop.permute.xlu0 %2517
  %2520 = vset.pattern.permute.xlu0 9
  %2521 = vperm.xlu0 %2520, %v2184
  %v2522 = vpop.permute.xlu0 %2521
  %2524 = vset.pattern.permute.xlu0 9
  %2525 = vperm.xlu0 %2524, %v2185
  %v2526 = vpop.permute.xlu0 %2525
  %v2528 = vadd.f32 %v2463, %v2466
  %v2529 = vadd.f32 %v2463, %v2470
  %v2530 = vadd.f32 %v2463, %v2474
  %v2531 = vadd.f32 %v2463, %v2478
  %v2532 = vadd.f32 %v2463, %v2482
  %v2533 = vadd.f32 %v2463, %v2486
  %v2534 = vadd.f32 %v2463, %v2490
  %v2535 = vadd.f32 %v2463, %v2494
  %v2536 = vadd.f32 %v2463, %v2498
  %v2537 = vadd.f32 %v2463, %v2502
  %v2538 = vadd.f32 %v2463, %v2506
  %v2539 = vadd.f32 %v2463, %v2510
  %v2540 = vadd.f32 %v2463, %v2514
  %v2541 = vadd.f32 %v2463, %v2518
  %v2542 = vadd.f32 %v2463, %v2522
  %v2543 = vadd.f32 %v2463, %v2526
  %v2544 = vand.u32 2147483647, %v2528
  %v2545 = vand.u32 2147483647, %v2529
  %v2546 = vand.u32 2147483647, %v2530
  %v2547 = vand.u32 2147483647, %v2531
  %v2548 = vand.u32 2147483647, %v2532
  %v2549 = vand.u32 2147483647, %v2533
  %v2550 = vand.u32 2147483647, %v2534
  %v2551 = vand.u32 2147483647, %v2535
  %v2552 = vand.u32 2147483647, %v2536
  %v2553 = vand.u32 2147483647, %v2537
  %v2554 = vand.u32 2147483647, %v2538
  %v2555 = vand.u32 2147483647, %v2539
  %v2556 = vand.u32 2147483647, %v2540
  %v2557 = vand.u32 2147483647, %v2541
  %v2558 = vand.u32 2147483647, %v2542
  %v2559 = vand.u32 2147483647, %v2543
  %v2560 = vmul.f32 %v623, %v2544
  %v2561 = vmul.f32 %v623, %v2545
  %v2562 = vmul.f32 %v623, %v2546
  %v2563 = vmul.f32 %v623, %v2547
  %v2564 = vmul.f32 %v623, %v2548
  %v2565 = vmul.f32 %v623, %v2549
  %v2566 = vmul.f32 %v623, %v2550
  %v2567 = vmul.f32 %v623, %v2551
  %v2568 = vmul.f32 %v623, %v2552
  %v2569 = vmul.f32 %v623, %v2553
  %v2570 = vmul.f32 %v623, %v2554
  %v2571 = vmul.f32 %v623, %v2555
  %v2572 = vmul.f32 %v623, %v2556
  %v2573 = vmul.f32 %v623, %v2557
  %v2574 = vmul.f32 %v623, %v2558
  %v2575 = vmul.f32 %v623, %v2559
  %v2576 = vadd.f32 %v2444, %v2560
  %v2577 = vadd.f32 %v2445, %v2561
  %v2578 = vadd.f32 %v2446, %v2562
  %v2579 = vadd.f32 %v2447, %v2563
  %v2580 = vadd.f32 %v2448, %v2564
  %v2581 = vadd.f32 %v2449, %v2565
  %v2582 = vadd.f32 %v2450, %v2566
  %v2583 = vadd.f32 %v2451, %v2567
  %v2584 = vadd.f32 %v2452, %v2568
  %v2585 = vadd.f32 %v2453, %v2569
  %v2586 = vadd.f32 %v2454, %v2570
  %v2587 = vadd.f32 %v2455, %v2571
  %v2588 = vadd.f32 %v2456, %v2572
  %v2589 = vadd.f32 %v2457, %v2573
  %v2590 = vadd.f32 %v2458, %v2574
  %v2591 = vadd.f32 %v2459, %v2575
  %v2592 = vlaneseq
  %v2593 = vshrl.u32 %v2592, 7
  %v2594 = vsub.s32 2, %v2593
  %v2595 = vrot.slane %v2169, %v2594
  %2596 = vset.pattern.permute.xlu0 10
  %2597 = vperm.xlu0 %2596, %v2170
  %v2598 = vpop.permute.xlu0 %2597
  %2600 = vset.pattern.permute.xlu0 10
  %2601 = vperm.xlu0 %2600, %v2171
  %v2602 = vpop.permute.xlu0 %2601
  %2604 = vset.pattern.permute.xlu0 10
  %2605 = vperm.xlu0 %2604, %v2172
  %v2606 = vpop.permute.xlu0 %2605
  %2608 = vset.pattern.permute.xlu0 10
  %2609 = vperm.xlu0 %2608, %v2173
  %v2610 = vpop.permute.xlu0 %2609
  %2612 = vset.pattern.permute.xlu0 10
  %2613 = vperm.xlu0 %2612, %v2174
  %v2614 = vpop.permute.xlu0 %2613
  %2616 = vset.pattern.permute.xlu0 10
  %2617 = vperm.xlu0 %2616, %v2175
  %v2618 = vpop.permute.xlu0 %2617
  %2620 = vset.pattern.permute.xlu0 10
  %2621 = vperm.xlu0 %2620, %v2176
  %v2622 = vpop.permute.xlu0 %2621
  %2624 = vset.pattern.permute.xlu0 10
  %2625 = vperm.xlu0 %2624, %v2177
  %v2626 = vpop.permute.xlu0 %2625
  %2628 = vset.pattern.permute.xlu0 10
  %2629 = vperm.xlu0 %2628, %v2178
  %v2630 = vpop.permute.xlu0 %2629
  %2632 = vset.pattern.permute.xlu0 10
  %2633 = vperm.xlu0 %2632, %v2179
  %v2634 = vpop.permute.xlu0 %2633
  %2636 = vset.pattern.permute.xlu0 10
  %2637 = vperm.xlu0 %2636, %v2180
  %v2638 = vpop.permute.xlu0 %2637
  %2640 = vset.pattern.permute.xlu0 10
  %2641 = vperm.xlu0 %2640, %v2181
  %v2642 = vpop.permute.xlu0 %2641
  %2644 = vset.pattern.permute.xlu0 10
  %2645 = vperm.xlu0 %2644, %v2182
  %v2646 = vpop.permute.xlu0 %2645
  %2648 = vset.pattern.permute.xlu0 10
  %2649 = vperm.xlu0 %2648, %v2183
  %v2650 = vpop.permute.xlu0 %2649
  %2652 = vset.pattern.permute.xlu0 10
  %2653 = vperm.xlu0 %2652, %v2184
  %v2654 = vpop.permute.xlu0 %2653
  %2656 = vset.pattern.permute.xlu0 10
  %2657 = vperm.xlu0 %2656, %v2185
  %v2658 = vpop.permute.xlu0 %2657
  %v2660 = vadd.f32 %v2595, %v2598
  %v2661 = vadd.f32 %v2595, %v2602
  %v2662 = vadd.f32 %v2595, %v2606
  %v2663 = vadd.f32 %v2595, %v2610
  %v2664 = vadd.f32 %v2595, %v2614
  %v2665 = vadd.f32 %v2595, %v2618
  %v2666 = vadd.f32 %v2595, %v2622
  %v2667 = vadd.f32 %v2595, %v2626
  %v2668 = vadd.f32 %v2595, %v2630
  %v2669 = vadd.f32 %v2595, %v2634
  %v2670 = vadd.f32 %v2595, %v2638
  %v2671 = vadd.f32 %v2595, %v2642
  %v2672 = vadd.f32 %v2595, %v2646
  %v2673 = vadd.f32 %v2595, %v2650
  %v2674 = vadd.f32 %v2595, %v2654
  %v2675 = vadd.f32 %v2595, %v2658
  %v2676 = vand.u32 2147483647, %v2660
  %v2677 = vand.u32 2147483647, %v2661
  %v2678 = vand.u32 2147483647, %v2662
  %v2679 = vand.u32 2147483647, %v2663
  %v2680 = vand.u32 2147483647, %v2664
  %v2681 = vand.u32 2147483647, %v2665
  %v2682 = vand.u32 2147483647, %v2666
  %v2683 = vand.u32 2147483647, %v2667
  %v2684 = vand.u32 2147483647, %v2668
  %v2685 = vand.u32 2147483647, %v2669
  %v2686 = vand.u32 2147483647, %v2670
  %v2687 = vand.u32 2147483647, %v2671
  %v2688 = vand.u32 2147483647, %v2672
  %v2689 = vand.u32 2147483647, %v2673
  %v2690 = vand.u32 2147483647, %v2674
  %v2691 = vand.u32 2147483647, %v2675
  %v2692 = vmul.f32 %v759, %v2676
  %v2693 = vmul.f32 %v759, %v2677
  %v2694 = vmul.f32 %v759, %v2678
  %v2695 = vmul.f32 %v759, %v2679
  %v2696 = vmul.f32 %v759, %v2680
  %v2697 = vmul.f32 %v759, %v2681
  %v2698 = vmul.f32 %v759, %v2682
  %v2699 = vmul.f32 %v759, %v2683
  %v2700 = vmul.f32 %v759, %v2684
  %v2701 = vmul.f32 %v759, %v2685
  %v2702 = vmul.f32 %v759, %v2686
  %v2703 = vmul.f32 %v759, %v2687
  %v2704 = vmul.f32 %v759, %v2688
  %v2705 = vmul.f32 %v759, %v2689
  %v2706 = vmul.f32 %v759, %v2690
  %v2707 = vmul.f32 %v759, %v2691
  %v2708 = vadd.f32 %v2576, %v2692
  %v2709 = vadd.f32 %v2577, %v2693
  %v2710 = vadd.f32 %v2578, %v2694
  %v2711 = vadd.f32 %v2579, %v2695
  %v2712 = vadd.f32 %v2580, %v2696
  %v2713 = vadd.f32 %v2581, %v2697
  %v2714 = vadd.f32 %v2582, %v2698
  %v2715 = vadd.f32 %v2583, %v2699
  %v2716 = vadd.f32 %v2584, %v2700
  %v2717 = vadd.f32 %v2585, %v2701
  %v2718 = vadd.f32 %v2586, %v2702
  %v2719 = vadd.f32 %v2587, %v2703
  %v2720 = vadd.f32 %v2588, %v2704
  %v2721 = vadd.f32 %v2589, %v2705
  %v2722 = vadd.f32 %v2590, %v2706
  %v2723 = vadd.f32 %v2591, %v2707
  %v2724 = vlaneseq
  %v2725 = vshrl.u32 %v2724, 7
  %v2726 = vsub.s32 3, %v2725
  %v2727 = vrot.slane %v2169, %v2726
  %2728 = vset.pattern.permute.xlu0 11
  %2729 = vperm.xlu0 %2728, %v2170
  %v2730 = vpop.permute.xlu0 %2729
  %2732 = vset.pattern.permute.xlu0 11
  %2733 = vperm.xlu0 %2732, %v2171
  %v2734 = vpop.permute.xlu0 %2733
  %2736 = vset.pattern.permute.xlu0 11
  %2737 = vperm.xlu0 %2736, %v2172
  %v2738 = vpop.permute.xlu0 %2737
  %2740 = vset.pattern.permute.xlu0 11
  %2741 = vperm.xlu0 %2740, %v2173
  %v2742 = vpop.permute.xlu0 %2741
  %2744 = vset.pattern.permute.xlu0 11
  %2745 = vperm.xlu0 %2744, %v2174
  %v2746 = vpop.permute.xlu0 %2745
  %2748 = vset.pattern.permute.xlu0 11
  %2749 = vperm.xlu0 %2748, %v2175
  %v2750 = vpop.permute.xlu0 %2749
  %2752 = vset.pattern.permute.xlu0 11
  %2753 = vperm.xlu0 %2752, %v2176
  %v2754 = vpop.permute.xlu0 %2753
  %2756 = vset.pattern.permute.xlu0 11
  %2757 = vperm.xlu0 %2756, %v2177
  %v2758 = vpop.permute.xlu0 %2757
  %2760 = vset.pattern.permute.xlu0 11
  %2761 = vperm.xlu0 %2760, %v2178
  %v2762 = vpop.permute.xlu0 %2761
  %2764 = vset.pattern.permute.xlu0 11
  %2765 = vperm.xlu0 %2764, %v2179
  %v2766 = vpop.permute.xlu0 %2765
  %2768 = vset.pattern.permute.xlu0 11
  %2769 = vperm.xlu0 %2768, %v2180
  %v2770 = vpop.permute.xlu0 %2769
  %2772 = vset.pattern.permute.xlu0 11
  %2773 = vperm.xlu0 %2772, %v2181
  %v2774 = vpop.permute.xlu0 %2773
  %2776 = vset.pattern.permute.xlu0 11
  %2777 = vperm.xlu0 %2776, %v2182
  %v2778 = vpop.permute.xlu0 %2777
  %2780 = vset.pattern.permute.xlu0 11
  %2781 = vperm.xlu0 %2780, %v2183
  %v2782 = vpop.permute.xlu0 %2781
  %2784 = vset.pattern.permute.xlu0 11
  %2785 = vperm.xlu0 %2784, %v2184
  %v2786 = vpop.permute.xlu0 %2785
  %2788 = vset.pattern.permute.xlu0 11
  %2789 = vperm.xlu0 %2788, %v2185
  %v2790 = vpop.permute.xlu0 %2789
  %v2792 = vadd.f32 %v2727, %v2730
  %v2793 = vadd.f32 %v2727, %v2734
  %v2794 = vadd.f32 %v2727, %v2738
  %v2795 = vadd.f32 %v2727, %v2742
  %v2796 = vadd.f32 %v2727, %v2746
  %v2797 = vadd.f32 %v2727, %v2750
  %v2798 = vadd.f32 %v2727, %v2754
  %v2799 = vadd.f32 %v2727, %v2758
  %v2800 = vadd.f32 %v2727, %v2762
  %v2801 = vadd.f32 %v2727, %v2766
  %v2802 = vadd.f32 %v2727, %v2770
  %v2803 = vadd.f32 %v2727, %v2774
  %v2804 = vadd.f32 %v2727, %v2778
  %v2805 = vadd.f32 %v2727, %v2782
  %v2806 = vadd.f32 %v2727, %v2786
  %v2807 = vadd.f32 %v2727, %v2790
  %v2808 = vand.u32 2147483647, %v2792
  %v2809 = vand.u32 2147483647, %v2793
  %v2810 = vand.u32 2147483647, %v2794
  %v2811 = vand.u32 2147483647, %v2795
  %v2812 = vand.u32 2147483647, %v2796
  %v2813 = vand.u32 2147483647, %v2797
  %v2814 = vand.u32 2147483647, %v2798
  %v2815 = vand.u32 2147483647, %v2799
  %v2816 = vand.u32 2147483647, %v2800
  %v2817 = vand.u32 2147483647, %v2801
  %v2818 = vand.u32 2147483647, %v2802
  %v2819 = vand.u32 2147483647, %v2803
  %v2820 = vand.u32 2147483647, %v2804
  %v2821 = vand.u32 2147483647, %v2805
  %v2822 = vand.u32 2147483647, %v2806
  %v2823 = vand.u32 2147483647, %v2807
  %v2824 = vmul.f32 %v895, %v2808
  %v2825 = vmul.f32 %v895, %v2809
  %v2826 = vmul.f32 %v895, %v2810
  %v2827 = vmul.f32 %v895, %v2811
  %v2828 = vmul.f32 %v895, %v2812
  %v2829 = vmul.f32 %v895, %v2813
  %v2830 = vmul.f32 %v895, %v2814
  %v2831 = vmul.f32 %v895, %v2815
  %v2832 = vmul.f32 %v895, %v2816
  %v2833 = vmul.f32 %v895, %v2817
  %v2834 = vmul.f32 %v895, %v2818
  %v2835 = vmul.f32 %v895, %v2819
  %v2836 = vmul.f32 %v895, %v2820
  %v2837 = vmul.f32 %v895, %v2821
  %v2838 = vmul.f32 %v895, %v2822
  %v2839 = vmul.f32 %v895, %v2823
  %v2840 = vadd.f32 %v2708, %v2824
  %v2841 = vadd.f32 %v2709, %v2825
  %v2842 = vadd.f32 %v2710, %v2826
  %v2843 = vadd.f32 %v2711, %v2827
  %v2844 = vadd.f32 %v2712, %v2828
  %v2845 = vadd.f32 %v2713, %v2829
  %v2846 = vadd.f32 %v2714, %v2830
  %v2847 = vadd.f32 %v2715, %v2831
  %v2848 = vadd.f32 %v2716, %v2832
  %v2849 = vadd.f32 %v2717, %v2833
  %v2850 = vadd.f32 %v2718, %v2834
  %v2851 = vadd.f32 %v2719, %v2835
  %v2852 = vadd.f32 %v2720, %v2836
  %v2853 = vadd.f32 %v2721, %v2837
  %v2854 = vadd.f32 %v2722, %v2838
  %v2855 = vadd.f32 %v2723, %v2839
  %v2856 = vlaneseq
  %v2857 = vshrl.u32 %v2856, 7
  %v2858 = vsub.s32 4, %v2857
  %v2859 = vrot.slane %v2169, %v2858
  %2860 = vset.pattern.permute.xlu0 12
  %2861 = vperm.xlu0 %2860, %v2170
  %v2862 = vpop.permute.xlu0 %2861
  %2864 = vset.pattern.permute.xlu0 12
  %2865 = vperm.xlu0 %2864, %v2171
  %v2866 = vpop.permute.xlu0 %2865
  %2868 = vset.pattern.permute.xlu0 12
  %2869 = vperm.xlu0 %2868, %v2172
  %v2870 = vpop.permute.xlu0 %2869
  %2872 = vset.pattern.permute.xlu0 12
  %2873 = vperm.xlu0 %2872, %v2173
  %v2874 = vpop.permute.xlu0 %2873
  %2876 = vset.pattern.permute.xlu0 12
  %2877 = vperm.xlu0 %2876, %v2174
  %v2878 = vpop.permute.xlu0 %2877
  %2880 = vset.pattern.permute.xlu0 12
  %2881 = vperm.xlu0 %2880, %v2175
  %v2882 = vpop.permute.xlu0 %2881
  %2884 = vset.pattern.permute.xlu0 12
  %2885 = vperm.xlu0 %2884, %v2176
  %v2886 = vpop.permute.xlu0 %2885
  %2888 = vset.pattern.permute.xlu0 12
  %2889 = vperm.xlu0 %2888, %v2177
  %v2890 = vpop.permute.xlu0 %2889
  %2892 = vset.pattern.permute.xlu0 12
  %2893 = vperm.xlu0 %2892, %v2178
  %v2894 = vpop.permute.xlu0 %2893
  %2896 = vset.pattern.permute.xlu0 12
  %2897 = vperm.xlu0 %2896, %v2179
  %v2898 = vpop.permute.xlu0 %2897
  %2900 = vset.pattern.permute.xlu0 12
  %2901 = vperm.xlu0 %2900, %v2180
  %v2902 = vpop.permute.xlu0 %2901
  %2904 = vset.pattern.permute.xlu0 12
  %2905 = vperm.xlu0 %2904, %v2181
  %v2906 = vpop.permute.xlu0 %2905
  %2908 = vset.pattern.permute.xlu0 12
  %2909 = vperm.xlu0 %2908, %v2182
  %v2910 = vpop.permute.xlu0 %2909
  %2912 = vset.pattern.permute.xlu0 12
  %2913 = vperm.xlu0 %2912, %v2183
  %v2914 = vpop.permute.xlu0 %2913
  %2916 = vset.pattern.permute.xlu0 12
  %2917 = vperm.xlu0 %2916, %v2184
  %v2918 = vpop.permute.xlu0 %2917
  %2920 = vset.pattern.permute.xlu0 12
  %2921 = vperm.xlu0 %2920, %v2185
  %v2922 = vpop.permute.xlu0 %2921
  %v2924 = vadd.f32 %v2859, %v2862
  %v2925 = vadd.f32 %v2859, %v2866
  %v2926 = vadd.f32 %v2859, %v2870
  %v2927 = vadd.f32 %v2859, %v2874
  %v2928 = vadd.f32 %v2859, %v2878
  %v2929 = vadd.f32 %v2859, %v2882
  %v2930 = vadd.f32 %v2859, %v2886
  %v2931 = vadd.f32 %v2859, %v2890
  %v2932 = vadd.f32 %v2859, %v2894
  %v2933 = vadd.f32 %v2859, %v2898
  %v2934 = vadd.f32 %v2859, %v2902
  %v2935 = vadd.f32 %v2859, %v2906
  %v2936 = vadd.f32 %v2859, %v2910
  %v2937 = vadd.f32 %v2859, %v2914
  %v2938 = vadd.f32 %v2859, %v2918
  %v2939 = vadd.f32 %v2859, %v2922
  %v2940 = vand.u32 2147483647, %v2924
  %v2941 = vand.u32 2147483647, %v2925
  %v2942 = vand.u32 2147483647, %v2926
  %v2943 = vand.u32 2147483647, %v2927
  %v2944 = vand.u32 2147483647, %v2928
  %v2945 = vand.u32 2147483647, %v2929
  %v2946 = vand.u32 2147483647, %v2930
  %v2947 = vand.u32 2147483647, %v2931
  %v2948 = vand.u32 2147483647, %v2932
  %v2949 = vand.u32 2147483647, %v2933
  %v2950 = vand.u32 2147483647, %v2934
  %v2951 = vand.u32 2147483647, %v2935
  %v2952 = vand.u32 2147483647, %v2936
  %v2953 = vand.u32 2147483647, %v2937
  %v2954 = vand.u32 2147483647, %v2938
  %v2955 = vand.u32 2147483647, %v2939
  %v2956 = vmul.f32 %v1031, %v2940
  %v2957 = vmul.f32 %v1031, %v2941
  %v2958 = vmul.f32 %v1031, %v2942
  %v2959 = vmul.f32 %v1031, %v2943
  %v2960 = vmul.f32 %v1031, %v2944
  %v2961 = vmul.f32 %v1031, %v2945
  %v2962 = vmul.f32 %v1031, %v2946
  %v2963 = vmul.f32 %v1031, %v2947
  %v2964 = vmul.f32 %v1031, %v2948
  %v2965 = vmul.f32 %v1031, %v2949
  %v2966 = vmul.f32 %v1031, %v2950
  %v2967 = vmul.f32 %v1031, %v2951
  %v2968 = vmul.f32 %v1031, %v2952
  %v2969 = vmul.f32 %v1031, %v2953
  %v2970 = vmul.f32 %v1031, %v2954
  %v2971 = vmul.f32 %v1031, %v2955
  %v2972 = vadd.f32 %v2840, %v2956
  %v2973 = vadd.f32 %v2841, %v2957
  %v2974 = vadd.f32 %v2842, %v2958
  %v2975 = vadd.f32 %v2843, %v2959
  %v2976 = vadd.f32 %v2844, %v2960
  %v2977 = vadd.f32 %v2845, %v2961
  %v2978 = vadd.f32 %v2846, %v2962
  %v2979 = vadd.f32 %v2847, %v2963
  %v2980 = vadd.f32 %v2848, %v2964
  %v2981 = vadd.f32 %v2849, %v2965
  %v2982 = vadd.f32 %v2850, %v2966
  %v2983 = vadd.f32 %v2851, %v2967
  %v2984 = vadd.f32 %v2852, %v2968
  %v2985 = vadd.f32 %v2853, %v2969
  %v2986 = vadd.f32 %v2854, %v2970
  %v2987 = vadd.f32 %v2855, %v2971
  %v2988 = vlaneseq
  %v2989 = vshrl.u32 %v2988, 7
  %v2990 = vsub.s32 5, %v2989
  %v2991 = vrot.slane %v2169, %v2990
  %2992 = vset.pattern.permute.xlu0 13
  %2993 = vperm.xlu0 %2992, %v2170
  %v2994 = vpop.permute.xlu0 %2993
  %2996 = vset.pattern.permute.xlu0 13
  %2997 = vperm.xlu0 %2996, %v2171
  %v2998 = vpop.permute.xlu0 %2997
  %3000 = vset.pattern.permute.xlu0 13
  %3001 = vperm.xlu0 %3000, %v2172
  %v3002 = vpop.permute.xlu0 %3001
  %3004 = vset.pattern.permute.xlu0 13
  %3005 = vperm.xlu0 %3004, %v2173
  %v3006 = vpop.permute.xlu0 %3005
  %3008 = vset.pattern.permute.xlu0 13
  %3009 = vperm.xlu0 %3008, %v2174
  %v3010 = vpop.permute.xlu0 %3009
  %3012 = vset.pattern.permute.xlu0 13
  %3013 = vperm.xlu0 %3012, %v2175
  %v3014 = vpop.permute.xlu0 %3013
  %3016 = vset.pattern.permute.xlu0 13
  %3017 = vperm.xlu0 %3016, %v2176
  %v3018 = vpop.permute.xlu0 %3017
  %3020 = vset.pattern.permute.xlu0 13
  %3021 = vperm.xlu0 %3020, %v2177
  %v3022 = vpop.permute.xlu0 %3021
  %3024 = vset.pattern.permute.xlu0 13
  %3025 = vperm.xlu0 %3024, %v2178
  %v3026 = vpop.permute.xlu0 %3025
  %3028 = vset.pattern.permute.xlu0 13
  %3029 = vperm.xlu0 %3028, %v2179
  %v3030 = vpop.permute.xlu0 %3029
  %3032 = vset.pattern.permute.xlu0 13
  %3033 = vperm.xlu0 %3032, %v2180
  %v3034 = vpop.permute.xlu0 %3033
  %3036 = vset.pattern.permute.xlu0 13
  %3037 = vperm.xlu0 %3036, %v2181
  %v3038 = vpop.permute.xlu0 %3037
  %3040 = vset.pattern.permute.xlu0 13
  %3041 = vperm.xlu0 %3040, %v2182
  %v3042 = vpop.permute.xlu0 %3041
  %3044 = vset.pattern.permute.xlu0 13
  %3045 = vperm.xlu0 %3044, %v2183
  %v3046 = vpop.permute.xlu0 %3045
  %3048 = vset.pattern.permute.xlu0 13
  %3049 = vperm.xlu0 %3048, %v2184
  %v3050 = vpop.permute.xlu0 %3049
  %3052 = vset.pattern.permute.xlu0 13
  %3053 = vperm.xlu0 %3052, %v2185
  %v3054 = vpop.permute.xlu0 %3053
  %v3056 = vadd.f32 %v2991, %v2994
  %v3057 = vadd.f32 %v2991, %v2998
  %v3058 = vadd.f32 %v2991, %v3002
  %v3059 = vadd.f32 %v2991, %v3006
  %v3060 = vadd.f32 %v2991, %v3010
  %v3061 = vadd.f32 %v2991, %v3014
  %v3062 = vadd.f32 %v2991, %v3018
  %v3063 = vadd.f32 %v2991, %v3022
  %v3064 = vadd.f32 %v2991, %v3026
  %v3065 = vadd.f32 %v2991, %v3030
  %v3066 = vadd.f32 %v2991, %v3034
  %v3067 = vadd.f32 %v2991, %v3038
  %v3068 = vadd.f32 %v2991, %v3042
  %v3069 = vadd.f32 %v2991, %v3046
  %v3070 = vadd.f32 %v2991, %v3050
  %v3071 = vadd.f32 %v2991, %v3054
  %v3072 = vand.u32 2147483647, %v3056
  %v3073 = vand.u32 2147483647, %v3057
  %v3074 = vand.u32 2147483647, %v3058
  %v3075 = vand.u32 2147483647, %v3059
  %v3076 = vand.u32 2147483647, %v3060
  %v3077 = vand.u32 2147483647, %v3061
  %v3078 = vand.u32 2147483647, %v3062
  %v3079 = vand.u32 2147483647, %v3063
  %v3080 = vand.u32 2147483647, %v3064
  %v3081 = vand.u32 2147483647, %v3065
  %v3082 = vand.u32 2147483647, %v3066
  %v3083 = vand.u32 2147483647, %v3067
  %v3084 = vand.u32 2147483647, %v3068
  %v3085 = vand.u32 2147483647, %v3069
  %v3086 = vand.u32 2147483647, %v3070
  %v3087 = vand.u32 2147483647, %v3071
  %v3088 = vmul.f32 %v1167, %v3072
  %v3089 = vmul.f32 %v1167, %v3073
  %v3090 = vmul.f32 %v1167, %v3074
  %v3091 = vmul.f32 %v1167, %v3075
  %v3092 = vmul.f32 %v1167, %v3076
  %v3093 = vmul.f32 %v1167, %v3077
  %v3094 = vmul.f32 %v1167, %v3078
  %v3095 = vmul.f32 %v1167, %v3079
  %v3096 = vmul.f32 %v1167, %v3080
  %v3097 = vmul.f32 %v1167, %v3081
  %v3098 = vmul.f32 %v1167, %v3082
  %v3099 = vmul.f32 %v1167, %v3083
  %v3100 = vmul.f32 %v1167, %v3084
  %v3101 = vmul.f32 %v1167, %v3085
  %v3102 = vmul.f32 %v1167, %v3086
  %v3103 = vmul.f32 %v1167, %v3087
  %v3104 = vadd.f32 %v2972, %v3088
  %v3105 = vadd.f32 %v2973, %v3089
  %v3106 = vadd.f32 %v2974, %v3090
  %v3107 = vadd.f32 %v2975, %v3091
  %v3108 = vadd.f32 %v2976, %v3092
  %v3109 = vadd.f32 %v2977, %v3093
  %v3110 = vadd.f32 %v2978, %v3094
  %v3111 = vadd.f32 %v2979, %v3095
  %v3112 = vadd.f32 %v2980, %v3096
  %v3113 = vadd.f32 %v2981, %v3097
  %v3114 = vadd.f32 %v2982, %v3098
  %v3115 = vadd.f32 %v2983, %v3099
  %v3116 = vadd.f32 %v2984, %v3100
  %v3117 = vadd.f32 %v2985, %v3101
  %v3118 = vadd.f32 %v2986, %v3102
  %v3119 = vadd.f32 %v2987, %v3103
  %v3120 = vlaneseq
  %v3121 = vshrl.u32 %v3120, 7
  %v3122 = vsub.s32 6, %v3121
  %v3123 = vrot.slane %v2169, %v3122
  %3124 = vset.pattern.permute.xlu0 14
  %3125 = vperm.xlu0 %3124, %v2170
  %v3126 = vpop.permute.xlu0 %3125
  %3128 = vset.pattern.permute.xlu0 14
  %3129 = vperm.xlu0 %3128, %v2171
  %v3130 = vpop.permute.xlu0 %3129
  %3132 = vset.pattern.permute.xlu0 14
  %3133 = vperm.xlu0 %3132, %v2172
  %v3134 = vpop.permute.xlu0 %3133
  %3136 = vset.pattern.permute.xlu0 14
  %3137 = vperm.xlu0 %3136, %v2173
  %v3138 = vpop.permute.xlu0 %3137
  %3140 = vset.pattern.permute.xlu0 14
  %3141 = vperm.xlu0 %3140, %v2174
  %v3142 = vpop.permute.xlu0 %3141
  %3144 = vset.pattern.permute.xlu0 14
  %3145 = vperm.xlu0 %3144, %v2175
  %v3146 = vpop.permute.xlu0 %3145
  %3148 = vset.pattern.permute.xlu0 14
  %3149 = vperm.xlu0 %3148, %v2176
  %v3150 = vpop.permute.xlu0 %3149
  %3152 = vset.pattern.permute.xlu0 14
  %3153 = vperm.xlu0 %3152, %v2177
  %v3154 = vpop.permute.xlu0 %3153
  %3156 = vset.pattern.permute.xlu0 14
  %3157 = vperm.xlu0 %3156, %v2178
  %v3158 = vpop.permute.xlu0 %3157
  %3160 = vset.pattern.permute.xlu0 14
  %3161 = vperm.xlu0 %3160, %v2179
  %v3162 = vpop.permute.xlu0 %3161
  %3164 = vset.pattern.permute.xlu0 14
  %3165 = vperm.xlu0 %3164, %v2180
  %v3166 = vpop.permute.xlu0 %3165
  %3168 = vset.pattern.permute.xlu0 14
  %3169 = vperm.xlu0 %3168, %v2181
  %v3170 = vpop.permute.xlu0 %3169
  %3172 = vset.pattern.permute.xlu0 14
  %3173 = vperm.xlu0 %3172, %v2182
  %v3174 = vpop.permute.xlu0 %3173
  %3176 = vset.pattern.permute.xlu0 14
  %3177 = vperm.xlu0 %3176, %v2183
  %v3178 = vpop.permute.xlu0 %3177
  %3180 = vset.pattern.permute.xlu0 14
  %3181 = vperm.xlu0 %3180, %v2184
  %v3182 = vpop.permute.xlu0 %3181
  %3184 = vset.pattern.permute.xlu0 14
  %3185 = vperm.xlu0 %3184, %v2185
  %v3186 = vpop.permute.xlu0 %3185
  %v3188 = vadd.f32 %v3123, %v3126
  %v3189 = vadd.f32 %v3123, %v3130
  %v3190 = vadd.f32 %v3123, %v3134
  %v3191 = vadd.f32 %v3123, %v3138
  %v3192 = vadd.f32 %v3123, %v3142
  %v3193 = vadd.f32 %v3123, %v3146
  %v3194 = vadd.f32 %v3123, %v3150
  %v3195 = vadd.f32 %v3123, %v3154
  %v3196 = vadd.f32 %v3123, %v3158
  %v3197 = vadd.f32 %v3123, %v3162
  %v3198 = vadd.f32 %v3123, %v3166
  %v3199 = vadd.f32 %v3123, %v3170
  %v3200 = vadd.f32 %v3123, %v3174
  %v3201 = vadd.f32 %v3123, %v3178
  %v3202 = vadd.f32 %v3123, %v3182
  %v3203 = vadd.f32 %v3123, %v3186
  %v3204 = vand.u32 2147483647, %v3188
  %v3205 = vand.u32 2147483647, %v3189
  %v3206 = vand.u32 2147483647, %v3190
  %v3207 = vand.u32 2147483647, %v3191
  %v3208 = vand.u32 2147483647, %v3192
  %v3209 = vand.u32 2147483647, %v3193
  %v3210 = vand.u32 2147483647, %v3194
  %v3211 = vand.u32 2147483647, %v3195
  %v3212 = vand.u32 2147483647, %v3196
  %v3213 = vand.u32 2147483647, %v3197
  %v3214 = vand.u32 2147483647, %v3198
  %v3215 = vand.u32 2147483647, %v3199
  %v3216 = vand.u32 2147483647, %v3200
  %v3217 = vand.u32 2147483647, %v3201
  %v3218 = vand.u32 2147483647, %v3202
  %v3219 = vand.u32 2147483647, %v3203
  %v3220 = vmul.f32 %v1303, %v3204
  %v3221 = vmul.f32 %v1303, %v3205
  %v3222 = vmul.f32 %v1303, %v3206
  %v3223 = vmul.f32 %v1303, %v3207
  %v3224 = vmul.f32 %v1303, %v3208
  %v3225 = vmul.f32 %v1303, %v3209
  %v3226 = vmul.f32 %v1303, %v3210
  %v3227 = vmul.f32 %v1303, %v3211
  %v3228 = vmul.f32 %v1303, %v3212
  %v3229 = vmul.f32 %v1303, %v3213
  %v3230 = vmul.f32 %v1303, %v3214
  %v3231 = vmul.f32 %v1303, %v3215
  %v3232 = vmul.f32 %v1303, %v3216
  %v3233 = vmul.f32 %v1303, %v3217
  %v3234 = vmul.f32 %v1303, %v3218
  %v3235 = vmul.f32 %v1303, %v3219
  %v3236 = vadd.f32 %v3104, %v3220
  %v3237 = vadd.f32 %v3105, %v3221
  %v3238 = vadd.f32 %v3106, %v3222
  %v3239 = vadd.f32 %v3107, %v3223
  %v3240 = vadd.f32 %v3108, %v3224
  %v3241 = vadd.f32 %v3109, %v3225
  %v3242 = vadd.f32 %v3110, %v3226
  %v3243 = vadd.f32 %v3111, %v3227
  %v3244 = vadd.f32 %v3112, %v3228
  %v3245 = vadd.f32 %v3113, %v3229
  %v3246 = vadd.f32 %v3114, %v3230
  %v3247 = vadd.f32 %v3115, %v3231
  %v3248 = vadd.f32 %v3116, %v3232
  %v3249 = vadd.f32 %v3117, %v3233
  %v3250 = vadd.f32 %v3118, %v3234
  %v3251 = vadd.f32 %v3119, %v3235
  %v3252 = vlaneseq
  %v3253 = vshrl.u32 %v3252, 7
  %v3254 = vsub.s32 7, %v3253
  %v3255 = vrot.slane %v2169, %v3254
  %3256 = vset.pattern.permute.xlu0 15
  %3257 = vperm.xlu0 %3256, %v2170
  %v3258 = vpop.permute.xlu0 %3257
  %3260 = vset.pattern.permute.xlu0 15
  %3261 = vperm.xlu0 %3260, %v2171
  %v3262 = vpop.permute.xlu0 %3261
  %3264 = vset.pattern.permute.xlu0 15
  %3265 = vperm.xlu0 %3264, %v2172
  %v3266 = vpop.permute.xlu0 %3265
  %3268 = vset.pattern.permute.xlu0 15
  %3269 = vperm.xlu0 %3268, %v2173
  %v3270 = vpop.permute.xlu0 %3269
  %3272 = vset.pattern.permute.xlu0 15
  %3273 = vperm.xlu0 %3272, %v2174
  %v3274 = vpop.permute.xlu0 %3273
  %3276 = vset.pattern.permute.xlu0 15
  %3277 = vperm.xlu0 %3276, %v2175
  %v3278 = vpop.permute.xlu0 %3277
  %3280 = vset.pattern.permute.xlu0 15
  %3281 = vperm.xlu0 %3280, %v2176
  %v3282 = vpop.permute.xlu0 %3281
  %3284 = vset.pattern.permute.xlu0 15
  %3285 = vperm.xlu0 %3284, %v2177
  %v3286 = vpop.permute.xlu0 %3285
  %3288 = vset.pattern.permute.xlu0 15
  %3289 = vperm.xlu0 %3288, %v2178
  %v3290 = vpop.permute.xlu0 %3289
  %3292 = vset.pattern.permute.xlu0 15
  %3293 = vperm.xlu0 %3292, %v2179
  %v3294 = vpop.permute.xlu0 %3293
  %3296 = vset.pattern.permute.xlu0 15
  %3297 = vperm.xlu0 %3296, %v2180
  %v3298 = vpop.permute.xlu0 %3297
  %3300 = vset.pattern.permute.xlu0 15
  %3301 = vperm.xlu0 %3300, %v2181
  %v3302 = vpop.permute.xlu0 %3301
  %3304 = vset.pattern.permute.xlu0 15
  %3305 = vperm.xlu0 %3304, %v2182
  %v3306 = vpop.permute.xlu0 %3305
  %3308 = vset.pattern.permute.xlu0 15
  %3309 = vperm.xlu0 %3308, %v2183
  %v3310 = vpop.permute.xlu0 %3309
  %3312 = vset.pattern.permute.xlu0 15
  %3313 = vperm.xlu0 %3312, %v2184
  %v3314 = vpop.permute.xlu0 %3313
  %3316 = vset.pattern.permute.xlu0 15
  %3317 = vperm.xlu0 %3316, %v2185
  %v3318 = vpop.permute.xlu0 %3317
  %v3320 = vadd.f32 %v3255, %v3258
  %v3321 = vadd.f32 %v3255, %v3262
  %v3322 = vadd.f32 %v3255, %v3266
  %v3323 = vadd.f32 %v3255, %v3270
  %v3324 = vadd.f32 %v3255, %v3274
  %v3325 = vadd.f32 %v3255, %v3278
  %v3326 = vadd.f32 %v3255, %v3282
  %v3327 = vadd.f32 %v3255, %v3286
  %v3328 = vadd.f32 %v3255, %v3290
  %v3329 = vadd.f32 %v3255, %v3294
  %v3330 = vadd.f32 %v3255, %v3298
  %v3331 = vadd.f32 %v3255, %v3302
  %v3332 = vadd.f32 %v3255, %v3306
  %v3333 = vadd.f32 %v3255, %v3310
  %v3334 = vadd.f32 %v3255, %v3314
  %v3335 = vadd.f32 %v3255, %v3318
  %v3336 = vand.u32 2147483647, %v3320
  %v3337 = vand.u32 2147483647, %v3321
  %v3338 = vand.u32 2147483647, %v3322
  %v3339 = vand.u32 2147483647, %v3323
  %v3340 = vand.u32 2147483647, %v3324
  %v3341 = vand.u32 2147483647, %v3325
  %v3342 = vand.u32 2147483647, %v3326
  %v3343 = vand.u32 2147483647, %v3327
  %v3344 = vand.u32 2147483647, %v3328
  %v3345 = vand.u32 2147483647, %v3329
  %v3346 = vand.u32 2147483647, %v3330
  %v3347 = vand.u32 2147483647, %v3331
  %v3348 = vand.u32 2147483647, %v3332
  %v3349 = vand.u32 2147483647, %v3333
  %v3350 = vand.u32 2147483647, %v3334
  %v3351 = vand.u32 2147483647, %v3335
  %v3352 = vmul.f32 %v1439, %v3336
  %v3353 = vmul.f32 %v1439, %v3337
  %v3354 = vmul.f32 %v1439, %v3338
  %v3355 = vmul.f32 %v1439, %v3339
  %v3356 = vmul.f32 %v1439, %v3340
  %v3357 = vmul.f32 %v1439, %v3341
  %v3358 = vmul.f32 %v1439, %v3342
  %v3359 = vmul.f32 %v1439, %v3343
  %v3360 = vmul.f32 %v1439, %v3344
  %v3361 = vmul.f32 %v1439, %v3345
  %v3362 = vmul.f32 %v1439, %v3346
  %v3363 = vmul.f32 %v1439, %v3347
  %v3364 = vmul.f32 %v1439, %v3348
  %v3365 = vmul.f32 %v1439, %v3349
  %v3366 = vmul.f32 %v1439, %v3350
  %v3367 = vmul.f32 %v1439, %v3351
  %v3368 = vadd.f32 %v3236, %v3352
  %v3369 = vadd.f32 %v3237, %v3353
  %v3370 = vadd.f32 %v3238, %v3354
  %v3371 = vadd.f32 %v3239, %v3355
  %v3372 = vadd.f32 %v3240, %v3356
  %v3373 = vadd.f32 %v3241, %v3357
  %v3374 = vadd.f32 %v3242, %v3358
  %v3375 = vadd.f32 %v3243, %v3359
  %v3376 = vadd.f32 %v3244, %v3360
  %v3377 = vadd.f32 %v3245, %v3361
  %v3378 = vadd.f32 %v3246, %v3362
  %v3379 = vadd.f32 %v3247, %v3363
  %v3380 = vadd.f32 %v3248, %v3364
  %v3381 = vadd.f32 %v3249, %v3365
  %v3382 = vadd.f32 %v3250, %v3366
  %v3383 = vadd.f32 %v3251, %v3367
  %s3384 = scalar_lea.vmem [#allocation2], 128
  %v3385 = vld [vmem:[%s3384] sm:$0xff]
  %v3386 = vld [vmem:[%s3384 + $0x8] sm:$0xff]
  %v3387 = vld [vmem:[%s3384 + $0x10] sm:$0xff]
  %v3388 = vld [vmem:[%s3384 + $0x18] sm:$0xff]
  %v3389 = vld [vmem:[%s3384 + $0x20] sm:$0xff]
  %v3390 = vld [vmem:[%s3384 + $0x28] sm:$0xff]
  %v3391 = vld [vmem:[%s3384 + $0x30] sm:$0xff]
  %v3392 = vld [vmem:[%s3384 + $0x38] sm:$0xff]
  %v3393 = vld [vmem:[%s3384 + $0x40] sm:$0xff]
  %v3394 = vld [vmem:[%s3384 + $0x48] sm:$0xff]
  %v3395 = vld [vmem:[%s3384 + $0x50] sm:$0xff]
  %v3396 = vld [vmem:[%s3384 + $0x58] sm:$0xff]
  %v3397 = vld [vmem:[%s3384 + $0x60] sm:$0xff]
  %v3398 = vld [vmem:[%s3384 + $0x68] sm:$0xff]
  %v3399 = vld [vmem:[%s3384 + $0x70] sm:$0xff]
  %v3400 = vld [vmem:[%s3384 + $0x78] sm:$0xff]
  %3401 = vmax.xlane.f32.xlu0 %v3368
  %v3402 = vpop.xlane.xlu0 %3401
  %3403 = vmax.xlane.f32.xlu0 %v3369
  %v3404 = vpop.xlane.xlu0 %3403
  %3405 = vmax.xlane.f32.xlu0 %v3370
  %v3406 = vpop.xlane.xlu0 %3405
  %3407 = vmax.xlane.f32.xlu0 %v3371
  %v3408 = vpop.xlane.xlu0 %3407
  %3409 = vmax.xlane.f32.xlu0 %v3372
  %v3410 = vpop.xlane.xlu0 %3409
  %3411 = vmax.xlane.f32.xlu0 %v3373
  %v3412 = vpop.xlane.xlu0 %3411
  %3413 = vmax.xlane.f32.xlu0 %v3374
  %v3414 = vpop.xlane.xlu0 %3413
  %3415 = vmax.xlane.f32.xlu0 %v3375
  %v3416 = vpop.xlane.xlu0 %3415
  %3417 = vmax.xlane.f32.xlu0 %v3376
  %v3418 = vpop.xlane.xlu0 %3417
  %3419 = vmax.xlane.f32.xlu0 %v3377
  %v3420 = vpop.xlane.xlu0 %3419
  %3421 = vmax.xlane.f32.xlu0 %v3378
  %v3422 = vpop.xlane.xlu0 %3421
  %3423 = vmax.xlane.f32.xlu0 %v3379
  %v3424 = vpop.xlane.xlu0 %3423
  %3425 = vmax.xlane.f32.xlu0 %v3380
  %v3426 = vpop.xlane.xlu0 %3425
  %3427 = vmax.xlane.f32.xlu0 %v3381
  %v3428 = vpop.xlane.xlu0 %3427
  %3429 = vmax.xlane.f32.xlu0 %v3382
  %v3430 = vpop.xlane.xlu0 %3429
  %3431 = vmax.xlane.f32.xlu0 %v3383
  %v3432 = vpop.xlane.xlu0 %3431
  %v3433 = vmax.f32 %v3385, %v3402
  %v3434 = vmax.f32 %v3386, %v3404
  %v3435 = vmax.f32 %v3387, %v3406
  %v3436 = vmax.f32 %v3388, %v3408
  %v3437 = vmax.f32 %v3389, %v3410
  %v3438 = vmax.f32 %v3390, %v3412
  %v3439 = vmax.f32 %v3391, %v3414
  %v3440 = vmax.f32 %v3392, %v3416
  %v3441 = vmax.f32 %v3393, %v3418
  %v3442 = vmax.f32 %v3394, %v3420
  %v3443 = vmax.f32 %v3395, %v3422
  %v3444 = vmax.f32 %v3396, %v3424
  %v3445 = vmax.f32 %v3397, %v3426
  %v3446 = vmax.f32 %v3398, %v3428
  %v3447 = vmax.f32 %v3399, %v3430
  %v3448 = vmax.f32 %v3400, %v3432
  %v3449 = vsub.f32 %v3385, %v3433
  %v3450 = vsub.f32 %v3386, %v3434
  %v3451 = vsub.f32 %v3387, %v3435
  %v3452 = vsub.f32 %v3388, %v3436
  %v3453 = vsub.f32 %v3389, %v3437
  %v3454 = vsub.f32 %v3390, %v3438
  %v3455 = vsub.f32 %v3391, %v3439
  %v3456 = vsub.f32 %v3392, %v3440
  %v3457 = vsub.f32 %v3393, %v3441
  %v3458 = vsub.f32 %v3394, %v3442
  %v3459 = vsub.f32 %v3395, %v3443
  %v3460 = vsub.f32 %v3396, %v3444
  %v3461 = vsub.f32 %v3397, %v3445
  %v3462 = vsub.f32 %v3398, %v3446
  %v3463 = vsub.f32 %v3399, %v3447
  %v3464 = vsub.f32 %v3400, %v3448
  %v3465 = vmul.f32 %v3449, 1.442695
  %v3466 = vpow.pop %v3465
  %v3467 = vmul.f32 %v3450, 1.442695
  %v3468 = vpow.pop %v3467
  %v3469 = vmul.f32 %v3451, 1.442695
  %v3470 = vpow.pop %v3469
  %v3471 = vmul.f32 %v3452, 1.442695
  %v3472 = vpow.pop %v3471
  %v3473 = vmul.f32 %v3453, 1.442695
  %v3474 = vpow.pop %v3473
  %v3475 = vmul.f32 %v3454, 1.442695
  %v3476 = vpow.pop %v3475
  %v3477 = vmul.f32 %v3455, 1.442695
  %v3478 = vpow.pop %v3477
  %v3479 = vmul.f32 %v3456, 1.442695
  %v3480 = vpow.pop %v3479
  %v3481 = vmul.f32 %v3457, 1.442695
  %v3482 = vpow.pop %v3481
  %v3483 = vmul.f32 %v3458, 1.442695
  %v3484 = vpow.pop %v3483
  %v3485 = vmul.f32 %v3459, 1.442695
  %v3486 = vpow.pop %v3485
  %v3487 = vmul.f32 %v3460, 1.442695
  %v3488 = vpow.pop %v3487
  %v3489 = vmul.f32 %v3461, 1.442695
  %v3490 = vpow.pop %v3489
  %v3491 = vmul.f32 %v3462, 1.442695
  %v3492 = vpow.pop %v3491
  %v3493 = vmul.f32 %v3463, 1.442695
  %v3494 = vpow.pop %v3493
  %v3495 = vmul.f32 %v3464, 1.442695
  %v3496 = vpow.pop %v3495
  %3498 = vset.pattern.permute.xlu0 0
  %3499 = vperm.xlu0 %3498, %v3433
  %v3500 = vpop.permute.xlu0 %3499
  %3503 = vset.pattern.permute.xlu0 0
  %3504 = vperm.xlu0 %3503, %v3434
  %v3505 = vpop.permute.xlu0 %3504
  %3508 = vset.pattern.permute.xlu0 0
  %3509 = vperm.xlu0 %3508, %v3435
  %v3510 = vpop.permute.xlu0 %3509
  %3513 = vset.pattern.permute.xlu0 0
  %3514 = vperm.xlu0 %3513, %v3436
  %v3515 = vpop.permute.xlu0 %3514
  %3518 = vset.pattern.permute.xlu0 0
  %3519 = vperm.xlu0 %3518, %v3437
  %v3520 = vpop.permute.xlu0 %3519
  %3523 = vset.pattern.permute.xlu0 0
  %3524 = vperm.xlu0 %3523, %v3438
  %v3525 = vpop.permute.xlu0 %3524
  %3528 = vset.pattern.permute.xlu0 0
  %3529 = vperm.xlu0 %3528, %v3439
  %v3530 = vpop.permute.xlu0 %3529
  %3533 = vset.pattern.permute.xlu0 0
  %3534 = vperm.xlu0 %3533, %v3440
  %v3535 = vpop.permute.xlu0 %3534
  %3538 = vset.pattern.permute.xlu0 0
  %3539 = vperm.xlu0 %3538, %v3441
  %v3540 = vpop.permute.xlu0 %3539
  %3543 = vset.pattern.permute.xlu0 0
  %3544 = vperm.xlu0 %3543, %v3442
  %v3545 = vpop.permute.xlu0 %3544
  %3548 = vset.pattern.permute.xlu0 0
  %3549 = vperm.xlu0 %3548, %v3443
  %v3550 = vpop.permute.xlu0 %3549
  %3553 = vset.pattern.permute.xlu0 0
  %3554 = vperm.xlu0 %3553, %v3444
  %v3555 = vpop.permute.xlu0 %3554
  %3558 = vset.pattern.permute.xlu0 0
  %3559 = vperm.xlu0 %3558, %v3445
  %v3560 = vpop.permute.xlu0 %3559
  %3563 = vset.pattern.permute.xlu0 0
  %3564 = vperm.xlu0 %3563, %v3446
  %v3565 = vpop.permute.xlu0 %3564
  %3568 = vset.pattern.permute.xlu0 0
  %3569 = vperm.xlu0 %3568, %v3447
  %v3570 = vpop.permute.xlu0 %3569
  %3573 = vset.pattern.permute.xlu0 0
  %3574 = vperm.xlu0 %3573, %v3448
  %v3575 = vpop.permute.xlu0 %3574
  %v3577 = vsub.f32 %v3368, %v3500
  %v3578 = vsub.f32 %v3369, %v3505
  %v3579 = vsub.f32 %v3370, %v3510
  %v3580 = vsub.f32 %v3371, %v3515
  %v3581 = vsub.f32 %v3372, %v3520
  %v3582 = vsub.f32 %v3373, %v3525
  %v3583 = vsub.f32 %v3374, %v3530
  %v3584 = vsub.f32 %v3375, %v3535
  %v3585 = vsub.f32 %v3376, %v3540
  %v3586 = vsub.f32 %v3377, %v3545
  %v3587 = vsub.f32 %v3378, %v3550
  %v3588 = vsub.f32 %v3379, %v3555
  %v3589 = vsub.f32 %v3380, %v3560
  %v3590 = vsub.f32 %v3381, %v3565
  %v3591 = vsub.f32 %v3382, %v3570
  %v3592 = vsub.f32 %v3383, %v3575
  %v3593 = vpack.c.bf16 %v3578, %v3577
  %v3594 = vpack.c.bf16 %v3580, %v3579
  %v3595 = vpack.c.bf16 %v3582, %v3581
  %v3596 = vpack.c.bf16 %v3584, %v3583
  %v3597 = vpack.c.bf16 %v3586, %v3585
  %v3598 = vpack.c.bf16 %v3588, %v3587
  %v3599 = vpack.c.bf16 %v3590, %v3589
  %v3600 = vpack.c.bf16 %v3592, %v3591
  %v3602 = vmul.bf16 %v3593, 1069105081
  %v3603 = vpow.bf16.pop %v3602
  %v3605 = vmul.bf16 %v3594, 1069105081
  %v3606 = vpow.bf16.pop %v3605
  %v3608 = vmul.bf16 %v3595, 1069105081
  %v3609 = vpow.bf16.pop %v3608
  %v3611 = vmul.bf16 %v3596, 1069105081
  %v3612 = vpow.bf16.pop %v3611
  %v3614 = vmul.bf16 %v3597, 1069105081
  %v3615 = vpow.bf16.pop %v3614
  %v3617 = vmul.bf16 %v3598, 1069105081
  %v3618 = vpow.bf16.pop %v3617
  %v3620 = vmul.bf16 %v3599, 1069105081
  %v3621 = vpow.bf16.pop %v3620
  %v3623 = vmul.bf16 %v3600, 1069105081
  %v3624 = vpow.bf16.pop %v3623
  %vm3625 = vnez %v2187
  %vm3626 = vnez %v2188
  %vm3627 = vnez %v2189
  %vm3628 = vnez %v2190
  %v3629 = vsel %vm3625, 16843009, 0
  %v3630 = vsel %vm3626, 16843009, 0
  %v3631 = vsel %vm3627, 16843009, 0
  %v3632 = vsel %vm3628, 16843009, 0
  %v3633 = vcombine.high %v3629, %v3629
  %v3634 = vcombine.high %v3630, %v3630
  %v3635 = vcombine.high %v3631, %v3631
  %v3636 = vcombine.high %v3632, %v3632
  %vm3637 = vnez %v3633
  %vm3638 = vnez %v3634
  %vm3639 = vnez %v3635
  %vm3640 = vnez %v3636
  %v3641 = vsel %vm3637, 16843009, 0
  %v3642 = vsel %vm3638, 16843009, 0
  %v3643 = vsel %vm3639, 16843009, 0
  %v3644 = vsel %vm3640, 16843009, 0
  %v3645 = vunpack.c.1.s8 %v3629
  %v3646 = vunpack.c.0.s8 %v3629
  %v3647 = vpack.c.b16 %v3645, %v3646
  %v3648 = vunpack.c.1.s8 %v3641
  %v3649 = vunpack.c.0.s8 %v3641
  %v3650 = vpack.c.b16 %v3648, %v3649
  %v3651 = vunpack.c.1.s8 %v3630
  %v3652 = vunpack.c.0.s8 %v3630
  %v3653 = vpack.c.b16 %v3651, %v3652
  %v3654 = vunpack.c.1.s8 %v3642
  %v3655 = vunpack.c.0.s8 %v3642
  %v3656 = vpack.c.b16 %v3654, %v3655
  %v3657 = vunpack.c.1.s8 %v3631
  %v3658 = vunpack.c.0.s8 %v3631
  %v3659 = vpack.c.b16 %v3657, %v3658
  %v3660 = vunpack.c.1.s8 %v3643
  %v3661 = vunpack.c.0.s8 %v3643
  %v3662 = vpack.c.b16 %v3660, %v3661
  %v3663 = vunpack.c.1.s8 %v3632
  %v3664 = vunpack.c.0.s8 %v3632
  %v3665 = vpack.c.b16 %v3663, %v3664
  %v3666 = vunpack.c.1.s8 %v3644
  %v3667 = vunpack.c.0.s8 %v3644
  %v3668 = vpack.c.b16 %v3666, %v3667
  %vm3669 = vcmp.ne.s16.totalorder %v3647, 0
  %vm3670 = vcmp.ne.s16.totalorder %v3650, 0
  %vm3671 = vcmp.ne.s16.totalorder %v3653, 0
  %vm3672 = vcmp.ne.s16.totalorder %v3656, 0
  %vm3673 = vcmp.ne.s16.totalorder %v3659, 0
  %vm3674 = vcmp.ne.s16.totalorder %v3662, 0
  %vm3675 = vcmp.ne.s16.totalorder %v3665, 0
  %vm3676 = vcmp.ne.s16.totalorder %v3668, 0
  %v3677 = vsel %vm3669, %v3603, 0
  %v3678 = vsel %vm3670, %v3606, 0
  %v3679 = vsel %vm3671, %v3609, 0
  %v3680 = vsel %vm3672, %v3612, 0
  %v3681 = vsel %vm3673, %v3615, 0
  %v3682 = vsel %vm3674, %v3618, 0
  %v3683 = vsel %vm3675, %v3621, 0
  %v3684 = vsel %vm3676, %v3624, 0
  %s3685 = scalar_lea.vmem [#allocation3], 128
  %v3686 = vld [vmem:[%s3685] sm:$0xff]
  %v3687 = vld [vmem:[%s3685 + $0x8] sm:$0xff]
  %v3688 = vld [vmem:[%s3685 + $0x10] sm:$0xff]
  %v3689 = vld [vmem:[%s3685 + $0x18] sm:$0xff]
  %v3690 = vld [vmem:[%s3685 + $0x20] sm:$0xff]
  %v3691 = vld [vmem:[%s3685 + $0x28] sm:$0xff]
  %v3692 = vld [vmem:[%s3685 + $0x30] sm:$0xff]
  %v3693 = vld [vmem:[%s3685 + $0x38] sm:$0xff]
  %v3694 = vld [vmem:[%s3685 + $0x40] sm:$0xff]
  %v3695 = vld [vmem:[%s3685 + $0x48] sm:$0xff]
  %v3696 = vld [vmem:[%s3685 + $0x50] sm:$0xff]
  %v3697 = vld [vmem:[%s3685 + $0x58] sm:$0xff]
  %v3698 = vld [vmem:[%s3685 + $0x60] sm:$0xff]
  %v3699 = vld [vmem:[%s3685 + $0x68] sm:$0xff]
  %v3700 = vld [vmem:[%s3685 + $0x70] sm:$0xff]
  %v3701 = vld [vmem:[%s3685 + $0x78] sm:$0xff]
  %v3702 = vmul.f32 %v3466, %v3686
  %v3703 = vmul.f32 %v3468, %v3687
  %v3704 = vmul.f32 %v3470, %v3688
  %v3705 = vmul.f32 %v3472, %v3689
  %v3706 = vmul.f32 %v3474, %v3690
  %v3707 = vmul.f32 %v3476, %v3691
  %v3708 = vmul.f32 %v3478, %v3692
  %v3709 = vmul.f32 %v3480, %v3693
  %v3710 = vmul.f32 %v3482, %v3694
  %v3711 = vmul.f32 %v3484, %v3695
  %v3712 = vmul.f32 %v3486, %v3696
  %v3713 = vmul.f32 %v3488, %v3697
  %v3714 = vmul.f32 %v3490, %v3698
  %v3715 = vmul.f32 %v3492, %v3699
  %v3716 = vmul.f32 %v3494, %v3700
  %v3717 = vmul.f32 %v3496, %v3701
  %v3718 = vunpack.c.l.bf16 %v3677
  %v3719 = vunpack.c.h.bf16 %v3677
  %v3720 = vunpack.c.l.bf16 %v3678
  %v3721 = vunpack.c.h.bf16 %v3678
  %v3722 = vunpack.c.l.bf16 %v3679
  %v3723 = vunpack.c.h.bf16 %v3679
  %v3724 = vunpack.c.l.bf16 %v3680
  %v3725 = vunpack.c.h.bf16 %v3680
  %v3726 = vunpack.c.l.bf16 %v3681
  %v3727 = vunpack.c.h.bf16 %v3681
  %v3728 = vunpack.c.l.bf16 %v3682
  %v3729 = vunpack.c.h.bf16 %v3682
  %v3730 = vunpack.c.l.bf16 %v3683
  %v3731 = vunpack.c.h.bf16 %v3683
  %v3732 = vunpack.c.l.bf16 %v3684
  %v3733 = vunpack.c.h.bf16 %v3684
  %3734 = vadd.xlane.f32.xlu0 %v3718
  %v3735 = vpop.xlane.xlu0 %3734
  %3736 = vadd.xlane.f32.xlu0 %v3719
  %v3737 = vpop.xlane.xlu0 %3736
  %3738 = vadd.xlane.f32.xlu0 %v3720
  %v3739 = vpop.xlane.xlu0 %3738
  %3740 = vadd.xlane.f32.xlu0 %v3721
  %v3741 = vpop.xlane.xlu0 %3740
  %3742 = vadd.xlane.f32.xlu0 %v3722
  %v3743 = vpop.xlane.xlu0 %3742
  %3744 = vadd.xlane.f32.xlu0 %v3723
  %v3745 = vpop.xlane.xlu0 %3744
  %3746 = vadd.xlane.f32.xlu0 %v3724
  %v3747 = vpop.xlane.xlu0 %3746
  %3748 = vadd.xlane.f32.xlu0 %v3725
  %v3749 = vpop.xlane.xlu0 %3748
  %3750 = vadd.xlane.f32.xlu0 %v3726
  %v3751 = vpop.xlane.xlu0 %3750
  %3752 = vadd.xlane.f32.xlu0 %v3727
  %v3753 = vpop.xlane.xlu0 %3752
  %3754 = vadd.xlane.f32.xlu0 %v3728
  %v3755 = vpop.xlane.xlu0 %3754
  %3756 = vadd.xlane.f32.xlu0 %v3729
  %v3757 = vpop.xlane.xlu0 %3756
  %3758 = vadd.xlane.f32.xlu0 %v3730
  %v3759 = vpop.xlane.xlu0 %3758
  %3760 = vadd.xlane.f32.xlu0 %v3731
  %v3761 = vpop.xlane.xlu0 %3760
  %3762 = vadd.xlane.f32.xlu0 %v3732
  %v3763 = vpop.xlane.xlu0 %3762
  %3764 = vadd.xlane.f32.xlu0 %v3733
  %v3765 = vpop.xlane.xlu0 %3764
  %v3766 = vadd.f32 %v3702, %v3735
  %v3767 = vadd.f32 %v3703, %v3737
  %v3768 = vadd.f32 %v3704, %v3739
  %v3769 = vadd.f32 %v3705, %v3741
  %v3770 = vadd.f32 %v3706, %v3743
  %v3771 = vadd.f32 %v3707, %v3745
  %v3772 = vadd.f32 %v3708, %v3747
  %v3773 = vadd.f32 %v3709, %v3749
  %v3774 = vadd.f32 %v3710, %v3751
  %v3775 = vadd.f32 %v3711, %v3753
  %v3776 = vadd.f32 %v3712, %v3755
  %v3777 = vadd.f32 %v3713, %v3757
  %v3778 = vadd.f32 %v3714, %v3759
  %v3779 = vadd.f32 %v3715, %v3761
  %v3780 = vadd.f32 %v3716, %v3763
  %v3781 = vadd.f32 %v3717, %v3765
  %3782 = vst.msk [vmem:[%s3685] sm:$0xff] %vm1869, %v3766
  %3783 = vst.msk [vmem:[%s3685 + $0x8] sm:$0xff] %vm1869, %v3767
  %3784 = vst.msk [vmem:[%s3685 + $0x10] sm:$0xff] %vm1869, %v3768
  %3785 = vst.msk [vmem:[%s3685 + $0x18] sm:$0xff] %vm1869, %v3769
  %3786 = vst.msk [vmem:[%s3685 + $0x20] sm:$0xff] %vm1869, %v3770
  %3787 = vst.msk [vmem:[%s3685 + $0x28] sm:$0xff] %vm1869, %v3771
  %3788 = vst.msk [vmem:[%s3685 + $0x30] sm:$0xff] %vm1869, %v3772
  %3789 = vst.msk [vmem:[%s3685 + $0x38] sm:$0xff] %vm1869, %v3773
  %3790 = vst.msk [vmem:[%s3685 + $0x40] sm:$0xff] %vm1869, %v3774
  %3791 = vst.msk [vmem:[%s3685 + $0x48] sm:$0xff] %vm1869, %v3775
  %3792 = vst.msk [vmem:[%s3685 + $0x50] sm:$0xff] %vm1869, %v3776
  %3793 = vst.msk [vmem:[%s3685 + $0x58] sm:$0xff] %vm1869, %v3777
  %3794 = vst.msk [vmem:[%s3685 + $0x60] sm:$0xff] %vm1869, %v3778
  %3795 = vst.msk [vmem:[%s3685 + $0x68] sm:$0xff] %vm1869, %v3779
  %3796 = vst.msk [vmem:[%s3685 + $0x70] sm:$0xff] %vm1869, %v3780
  %3797 = vst.msk [vmem:[%s3685 + $0x78] sm:$0xff] %vm1869, %v3781
  %s3798 = scalar_lea.vmem [#allocation4], 128
  %v3799 = vld [vmem:[%s3798] sm:$0xff]
  %v3800 = vld [vmem:[%s3798 + $0x8] sm:$0xff]
  %v3801 = vld [vmem:[%s3798 + $0x10] sm:$0xff]
  %v3802 = vld [vmem:[%s3798 + $0x18] sm:$0xff]
  %v3803 = vld [vmem:[%s3798 + $0x20] sm:$0xff]
  %v3804 = vld [vmem:[%s3798 + $0x28] sm:$0xff]
  %v3805 = vld [vmem:[%s3798 + $0x30] sm:$0xff]
  %v3806 = vld [vmem:[%s3798 + $0x38] sm:$0xff]
  %v3807 = vld [vmem:[%s3798 + $0x40] sm:$0xff]
  %v3808 = vld [vmem:[%s3798 + $0x48] sm:$0xff]
  %v3809 = vld [vmem:[%s3798 + $0x50] sm:$0xff]
  %v3810 = vld [vmem:[%s3798 + $0x58] sm:$0xff]
  %v3811 = vld [vmem:[%s3798 + $0x60] sm:$0xff]
  %v3812 = vld [vmem:[%s3798 + $0x68] sm:$0xff]
  %v3813 = vld [vmem:[%s3798 + $0x70] sm:$0xff]
  %v3814 = vld [vmem:[%s3798 + $0x78] sm:$0xff]
  %3816 = vset.pattern.permute.xlu0 0
  %3817 = vperm.xlu0 %3816, %v3466
  %v3818 = vpop.permute.xlu0 %3817
  %3821 = vset.pattern.permute.xlu0 0
  %3822 = vperm.xlu0 %3821, %v3468
  %v3823 = vpop.permute.xlu0 %3822
  %3826 = vset.pattern.permute.xlu0 0
  %3827 = vperm.xlu0 %3826, %v3470
  %v3828 = vpop.permute.xlu0 %3827
  %3831 = vset.pattern.permute.xlu0 0
  %3832 = vperm.xlu0 %3831, %v3472
  %v3833 = vpop.permute.xlu0 %3832
  %3836 = vset.pattern.permute.xlu0 0
  %3837 = vperm.xlu0 %3836, %v3474
  %v3838 = vpop.permute.xlu0 %3837
  %3841 = vset.pattern.permute.xlu0 0
  %3842 = vperm.xlu0 %3841, %v3476
  %v3843 = vpop.permute.xlu0 %3842
  %3846 = vset.pattern.permute.xlu0 0
  %3847 = vperm.xlu0 %3846, %v3478
  %v3848 = vpop.permute.xlu0 %3847
  %3851 = vset.pattern.permute.xlu0 0
  %3852 = vperm.xlu0 %3851, %v3480
  %v3853 = vpop.permute.xlu0 %3852
  %3856 = vset.pattern.permute.xlu0 0
  %3857 = vperm.xlu0 %3856, %v3482
  %v3858 = vpop.permute.xlu0 %3857
  %3861 = vset.pattern.permute.xlu0 0
  %3862 = vperm.xlu0 %3861, %v3484
  %v3863 = vpop.permute.xlu0 %3862
  %3866 = vset.pattern.permute.xlu0 0
  %3867 = vperm.xlu0 %3866, %v3486
  %v3868 = vpop.permute.xlu0 %3867
  %3871 = vset.pattern.permute.xlu0 0
  %3872 = vperm.xlu0 %3871, %v3488
  %v3873 = vpop.permute.xlu0 %3872
  %3876 = vset.pattern.permute.xlu0 0
  %3877 = vperm.xlu0 %3876, %v3490
  %v3878 = vpop.permute.xlu0 %3877
  %3881 = vset.pattern.permute.xlu0 0
  %3882 = vperm.xlu0 %3881, %v3492
  %v3883 = vpop.permute.xlu0 %3882
  %3886 = vset.pattern.permute.xlu0 0
  %3887 = vperm.xlu0 %3886, %v3494
  %v3888 = vpop.permute.xlu0 %3887
  %3891 = vset.pattern.permute.xlu0 0
  %3892 = vperm.xlu0 %3891, %v3496
  %v3893 = vpop.permute.xlu0 %3892
  %v3895 = vmul.f32 %v3818, %v3799
  %v3896 = vmul.f32 %v3823, %v3800
  %v3897 = vmul.f32 %v3828, %v3801
  %v3898 = vmul.f32 %v3833, %v3802
  %v3899 = vmul.f32 %v3838, %v3803
  %v3900 = vmul.f32 %v3843, %v3804
  %v3901 = vmul.f32 %v3848, %v3805
  %v3902 = vmul.f32 %v3853, %v3806
  %v3903 = vmul.f32 %v3858, %v3807
  %v3904 = vmul.f32 %v3863, %v3808
  %v3905 = vmul.f32 %v3868, %v3809
  %v3906 = vmul.f32 %v3873, %v3810
  %v3907 = vmul.f32 %v3878, %v3811
  %v3908 = vmul.f32 %v3883, %v3812
  %v3909 = vmul.f32 %v3888, %v3813
  %v3910 = vmul.f32 %v3893, %v3814
  %v3911 = vld [vmem:[%s2] sm:$0xff]
  %v3912 = vld [vmem:[%s2 + $0x8] sm:$0xff]
  %v3913 = vld [vmem:[%s2 + $0x10] sm:$0xff]
  %v3914 = vld [vmem:[%s2 + $0x18] sm:$0xff]
  %v3915 = vld [vmem:[%s2 + $0x20] sm:$0xff]
  %v3916 = vld [vmem:[%s2 + $0x28] sm:$0xff]
  %v3917 = vld [vmem:[%s2 + $0x30] sm:$0xff]
  %v3918 = vld [vmem:[%s2 + $0x38] sm:$0xff]
  %v3919 = vld [vmem:[%s2 + $0x40] sm:$0xff]
  %v3920 = vld [vmem:[%s2 + $0x48] sm:$0xff]
  %v3921 = vld [vmem:[%s2 + $0x50] sm:$0xff]
  %v3922 = vld [vmem:[%s2 + $0x58] sm:$0xff]
  %v3923 = vld [vmem:[%s2 + $0x60] sm:$0xff]
  %v3924 = vld [vmem:[%s2 + $0x68] sm:$0xff]
  %v3925 = vld [vmem:[%s2 + $0x70] sm:$0xff]
  %v3926 = vld [vmem:[%s2 + $0x78] sm:$0xff]
  %v3927 = vpack.c.bf16 %v3912, %v3911
  %v3928 = vpack.c.bf16 %v3914, %v3913
  %v3929 = vpack.c.bf16 %v3916, %v3915
  %v3930 = vpack.c.bf16 %v3918, %v3917
  %v3931 = vpack.c.bf16 %v3920, %v3919
  %v3932 = vpack.c.bf16 %v3922, %v3921
  %v3933 = vpack.c.bf16 %v3924, %v3923
  %v3934 = vpack.c.bf16 %v3926, %v3925
  %3943 = vrot.lane.b32.xlu0 %v3927, 120
  %v3944 = vpop.permute.xlu0 %3943
  %3945 = vrot.lane.b32.xlu0 %v3928, 120
  %v3946 = vpop.permute.xlu0 %3945
  %3947 = vrot.lane.b32.xlu0 %v3929, 120
  %v3948 = vpop.permute.xlu0 %3947
  %3949 = vrot.lane.b32.xlu0 %v3930, 120
  %v3950 = vpop.permute.xlu0 %3949
  %3951 = vrot.lane.b32.xlu0 %v3931, 120
  %v3952 = vpop.permute.xlu0 %3951
  %3953 = vrot.lane.b32.xlu0 %v3932, 120
  %v3954 = vpop.permute.xlu0 %3953
  %3955 = vrot.lane.b32.xlu0 %v3933, 120
  %v3956 = vpop.permute.xlu0 %3955
  %3957 = vrot.lane.b32.xlu0 %v3934, 120
  %v3958 = vpop.permute.xlu0 %3957
  %3967 = vmatprep.subr.bf16.mxu0 0
  %3968 = vmatpush1.bf16.msra.mxu0 %v3958
  %3969 = vmatprep.subr.bf16.mxu0 0
  %3970 = vmatpush1.bf16.msra.mxu0 %v3956
  %3971 = vmatprep.subr.bf16.mxu0 0
  %3972 = vmatpush1.bf16.msra.mxu0 %v3954
  %3973 = vmatprep.subr.bf16.mxu0 0
  %3974 = vmatpush1.bf16.msra.mxu0 %v3952
  %3975 = vmatprep.subr.bf16.mxu0 0
  %3976 = vmatpush1.bf16.msra.mxu0 %v3950
  %3977 = vmatprep.subr.bf16.mxu0 0
  %3978 = vmatpush1.bf16.msra.mxu0 %v3948
  %3979 = vmatprep.subr.bf16.mxu0 0
  %3980 = vmatpush1.bf16.msra.mxu0 %v3946
  %3981 = vmatprep.subr.bf16.mxu0 0
  %3982 = vmatpush1.bf16.msra.mxu0 %v3944
  %3983 = vmatprep.subr.bf16.mxu0 0
  %3984 = vmatpush2.bf16.msra.mxu0 0
  %3985 = vmatprep.subr.bf16.mxu0 0
  %3986 = vmatpush2.bf16.msra.mxu0 0
  %3987 = vmatprep.subr.bf16.mxu0 0
  %3988 = vmatpush2.bf16.msra.mxu0 0
  %3989 = vmatprep.subr.bf16.mxu0 0
  %3990 = vmatpush2.bf16.msra.mxu0 0
  %3991 = vmatprep.subr.bf16.mxu0 0
  %3992 = vmatpush2.bf16.msra.mxu0 0
  %3993 = vmatprep.subr.bf16.mxu0 0
  %3994 = vmatpush2.bf16.msra.mxu0 0
  %3995 = vmatprep.subr.bf16.mxu0 0
  %3996 = vmatpush2.bf16.msra.mxu0 0
  %3997 = vmatprep.subr.bf16.mxu0 0
  %3998 = vmatpush2.bf16.msra.mxu0 0
  %3999 = vmatprep.mubr.bf16.mxu0 0
  %4000 = vmatmul.mubr.bf16.gmra.mxu0 %v3677
  %v4001 = vpop.f32.mrf.mxu0
  %v4002 = vadd.f32 0.0, %v4001
  %v4003 = vpop.f32.mrf.mxu0
  %v4004 = vpop.f32.mrf.mxu0
  %v4005 = vadd.f32 0.0, %v4004
  %v4006 = vpop.f32.mrf.mxu0
  %4007 = vmatprep.mubr.bf16.mxu0 0
  %4008 = vmatmul.mubr.bf16.gmra.mxu0 %v3678
  %v4009 = vpop.f32.mrf.mxu0
  %v4010 = vadd.f32 0.0, %v4009
  %v4011 = vpop.f32.mrf.mxu0
  %v4012 = vpop.f32.mrf.mxu0
  %v4013 = vadd.f32 0.0, %v4012
  %v4014 = vpop.f32.mrf.mxu0
  %4015 = vmatprep.mubr.bf16.mxu0 0
  %4016 = vmatmul.mubr.bf16.gmra.mxu0 %v3679
  %v4017 = vpop.f32.mrf.mxu0
  %v4018 = vadd.f32 0.0, %v4017
  %v4019 = vpop.f32.mrf.mxu0
  %v4020 = vpop.f32.mrf.mxu0
  %v4021 = vadd.f32 0.0, %v4020
  %v4022 = vpop.f32.mrf.mxu0
  %4023 = vmatprep.mubr.bf16.mxu0 0
  %4024 = vmatmul.mubr.bf16.gmra.mxu0 %v3680
  %v4025 = vpop.f32.mrf.mxu0
  %v4026 = vadd.f32 0.0, %v4025
  %v4027 = vpop.f32.mrf.mxu0
  %v4028 = vpop.f32.mrf.mxu0
  %v4029 = vadd.f32 0.0, %v4028
  %v4030 = vpop.f32.mrf.mxu0
  %4031 = vmatprep.mubr.bf16.mxu0 0
  %4032 = vmatmul.mubr.bf16.gmra.mxu0 %v3681
  %v4033 = vpop.f32.mrf.mxu0
  %v4034 = vadd.f32 0.0, %v4033
  %v4035 = vpop.f32.mrf.mxu0
  %v4036 = vpop.f32.mrf.mxu0
  %v4037 = vadd.f32 0.0, %v4036
  %v4038 = vpop.f32.mrf.mxu0
  %4039 = vmatprep.mubr.bf16.mxu0 0
  %4040 = vmatmul.mubr.bf16.gmra.mxu0 %v3682
  %v4041 = vpop.f32.mrf.mxu0
  %v4042 = vadd.f32 0.0, %v4041
  %v4043 = vpop.f32.mrf.mxu0
  %v4044 = vpop.f32.mrf.mxu0
  %v4045 = vadd.f32 0.0, %v4044
  %v4046 = vpop.f32.mrf.mxu0
  %4047 = vmatprep.mubr.bf16.mxu0 0
  %4048 = vmatmul.mubr.bf16.gmra.mxu0 %v3683
  %v4049 = vpop.f32.mrf.mxu0
  %v4050 = vadd.f32 0.0, %v4049
  %v4051 = vpop.f32.mrf.mxu0
  %v4052 = vpop.f32.mrf.mxu0
  %v4053 = vadd.f32 0.0, %v4052
  %v4054 = vpop.f32.mrf.mxu0
  %4055 = vmatprep.mubr.bf16.mxu0 0
  %4056 = vmatmul.mubr.bf16.gmra.mxu0 %v3684
  %v4057 = vpop.f32.mrf.mxu0
  %v4058 = vadd.f32 0.0, %v4057
  %v4059 = vpop.f32.mrf.mxu0
  %v4060 = vpop.f32.mrf.mxu0
  %v4061 = vadd.f32 0.0, %v4060
  %v4062 = vpop.f32.mrf.mxu0
  %4063 = vdwg.mxu0
  %v4064 = vadd.f32 %v3895, %v4002
  %v4065 = vadd.f32 %v3896, %v4005
  %v4066 = vadd.f32 %v3897, %v4010
  %v4067 = vadd.f32 %v3898, %v4013
  %v4068 = vadd.f32 %v3899, %v4018
  %v4069 = vadd.f32 %v3900, %v4021
  %v4070 = vadd.f32 %v3901, %v4026
  %v4071 = vadd.f32 %v3902, %v4029
  %v4072 = vadd.f32 %v3903, %v4034
  %v4073 = vadd.f32 %v3904, %v4037
  %v4074 = vadd.f32 %v3905, %v4042
  %v4075 = vadd.f32 %v3906, %v4045
  %v4076 = vadd.f32 %v3907, %v4050
  %v4077 = vadd.f32 %v3908, %v4053
  %v4078 = vadd.f32 %v3909, %v4058
  %v4079 = vadd.f32 %v3910, %v4061
  %4080 = vst.msk [vmem:[%s3798] sm:$0xff] %vm2135, %v4064
  %4081 = vst.msk [vmem:[%s3798 + $0x8] sm:$0xff] %vm2135, %v4065
  %4082 = vst.msk [vmem:[%s3798 + $0x10] sm:$0xff] %vm2135, %v4066
  %4083 = vst.msk [vmem:[%s3798 + $0x18] sm:$0xff] %vm2135, %v4067
  %4084 = vst.msk [vmem:[%s3798 + $0x20] sm:$0xff] %vm2135, %v4068
  %4085 = vst.msk [vmem:[%s3798 + $0x28] sm:$0xff] %vm2135, %v4069
  %4086 = vst.msk [vmem:[%s3798 + $0x30] sm:$0xff] %vm2135, %v4070
  %4087 = vst.msk [vmem:[%s3798 + $0x38] sm:$0xff] %vm2135, %v4071
  %4088 = vst.msk [vmem:[%s3798 + $0x40] sm:$0xff] %vm2135, %v4072
  %4089 = vst.msk [vmem:[%s3798 + $0x48] sm:$0xff] %vm2135, %v4073
  %4090 = vst.msk [vmem:[%s3798 + $0x50] sm:$0xff] %vm2135, %v4074
  %4091 = vst.msk [vmem:[%s3798 + $0x58] sm:$0xff] %vm2135, %v4075
  %4092 = vst.msk [vmem:[%s3798 + $0x60] sm:$0xff] %vm2135, %v4076
  %4093 = vst.msk [vmem:[%s3798 + $0x68] sm:$0xff] %vm2135, %v4077
  %4094 = vst.msk [vmem:[%s3798 + $0x70] sm:$0xff] %vm2135, %v4078
  %4095 = vst.msk [vmem:[%s3798 + $0x78] sm:$0xff] %vm2135, %v4079
  %4096 = vst.msk [vmem:[%s3384] sm:$0xff] %vm1869, %v3433
  %4097 = vst.msk [vmem:[%s3384 + $0x8] sm:$0xff] %vm1869, %v3434
  %4098 = vst.msk [vmem:[%s3384 + $0x10] sm:$0xff] %vm1869, %v3435
  %4099 = vst.msk [vmem:[%s3384 + $0x18] sm:$0xff] %vm1869, %v3436
  %4100 = vst.msk [vmem:[%s3384 + $0x20] sm:$0xff] %vm1869, %v3437
  %4101 = vst.msk [vmem:[%s3384 + $0x28] sm:$0xff] %vm1869, %v3438
  %4102 = vst.msk [vmem:[%s3384 + $0x30] sm:$0xff] %vm1869, %v3439
  %4103 = vst.msk [vmem:[%s3384 + $0x38] sm:$0xff] %vm1869, %v3440
  %4104 = vst.msk [vmem:[%s3384 + $0x40] sm:$0xff] %vm1869, %v3441
  %4105 = vst.msk [vmem:[%s3384 + $0x48] sm:$0xff] %vm1869, %v3442
  %4106 = vst.msk [vmem:[%s3384 + $0x50] sm:$0xff] %vm1869, %v3443
  %4107 = vst.msk [vmem:[%s3384 + $0x58] sm:$0xff] %vm1869, %v3444
  %4108 = vst.msk [vmem:[%s3384 + $0x60] sm:$0xff] %vm1869, %v3445
  %4109 = vst.msk [vmem:[%s3384 + $0x68] sm:$0xff] %vm1869, %v3446
  %4110 = vst.msk [vmem:[%s3384 + $0x70] sm:$0xff] %vm1869, %v3447
  %4111 = vst.msk [vmem:[%s3384 + $0x78] sm:$0xff] %vm1869, %v3448
  %s4112 = scalar_lea.vmem %s0, 16
  %v4113 = vld [vmem:[%s4112] sm:$0xff]
  %v4114 = vld [vmem:[%s1] sm:$0xff]
  %v4115 = vld [vmem:[%s1 + $0x8] sm:$0xff]
  %v4116 = vld [vmem:[%s1 + $0x10] sm:$0xff]
  %v4117 = vld [vmem:[%s1 + $0x18] sm:$0xff]
  %v4118 = vld [vmem:[%s1 + $0x20] sm:$0xff]
  %v4119 = vld [vmem:[%s1 + $0x28] sm:$0xff]
  %v4120 = vld [vmem:[%s1 + $0x30] sm:$0xff]
  %v4121 = vld [vmem:[%s1 + $0x38] sm:$0xff]
  %v4122 = vld [vmem:[%s1 + $0x40] sm:$0xff]
  %v4123 = vld [vmem:[%s1 + $0x48] sm:$0xff]
  %v4124 = vld [vmem:[%s1 + $0x50] sm:$0xff]
  %v4125 = vld [vmem:[%s1 + $0x58] sm:$0xff]
  %v4126 = vld [vmem:[%s1 + $0x60] sm:$0xff]
  %v4127 = vld [vmem:[%s1 + $0x68] sm:$0xff]
  %v4128 = vld [vmem:[%s1 + $0x70] sm:$0xff]
  %v4129 = vld [vmem:[%s1 + $0x78] sm:$0xff]
  %s4130 = scalar_lea.vmem %s6, 64
  %v4131 = vld [vmem:[%s4130] sm:$0xff]
  %v4132 = vld [vmem:[%s4130 + $0x8] sm:$0xff]
  %v4133 = vld [vmem:[%s4130 + $0x10] sm:$0xff]
  %v4134 = vld [vmem:[%s4130 + $0x18] sm:$0xff]
  %s4135 = scalar_lea.vmem %s4, 256
  %v4136 = vld [vmem:[%s4135] sm:$0xff]
  %v4137 = vld [vmem:[%s4135 + $0x8] sm:$0xff]
  %v4138 = vld [vmem:[%s4135 + $0x10] sm:$0xff]
  %v4139 = vld [vmem:[%s4135 + $0x18] sm:$0xff]
  %v4140 = vld [vmem:[%s4135 + $0x20] sm:$0xff]
  %v4141 = vld [vmem:[%s4135 + $0x28] sm:$0xff]
  %v4142 = vld [vmem:[%s4135 + $0x30] sm:$0xff]
  %v4143 = vld [vmem:[%s4135 + $0x38] sm:$0xff]
  %v4144 = vld [vmem:[%s4135 + $0x40] sm:$0xff]
  %v4145 = vld [vmem:[%s4135 + $0x48] sm:$0xff]
  %v4146 = vld [vmem:[%s4135 + $0x50] sm:$0xff]
  %v4147 = vld [vmem:[%s4135 + $0x58] sm:$0xff]
  %v4148 = vld [vmem:[%s4135 + $0x60] sm:$0xff]
  %v4149 = vld [vmem:[%s4135 + $0x68] sm:$0xff]
  %v4150 = vld [vmem:[%s4135 + $0x70] sm:$0xff]
  %v4151 = vld [vmem:[%s4135 + $0x78] sm:$0xff]
  %s4152 = scalar_lea.vmem %s3, 2
  %v4153 = vld [vmem:[%s4152] sm:$0x1]
  %4155 = vset.pattern.permute.xlu0 0
  %4156 = vperm.xlu0 %4155, %v4136
  %v4157 = vpop.permute.xlu0 %4156
  %4160 = vset.pattern.permute.xlu0 0
  %4161 = vperm.xlu0 %4160, %v4137
  %v4162 = vpop.permute.xlu0 %4161
  %4165 = vset.pattern.permute.xlu0 0
  %4166 = vperm.xlu0 %4165, %v4138
  %v4167 = vpop.permute.xlu0 %4166
  %4170 = vset.pattern.permute.xlu0 0
  %4171 = vperm.xlu0 %4170, %v4139
  %v4172 = vpop.permute.xlu0 %4171
  %4175 = vset.pattern.permute.xlu0 0
  %4176 = vperm.xlu0 %4175, %v4140
  %v4177 = vpop.permute.xlu0 %4176
  %4180 = vset.pattern.permute.xlu0 0
  %4181 = vperm.xlu0 %4180, %v4141
  %v4182 = vpop.permute.xlu0 %4181
  %4185 = vset.pattern.permute.xlu0 0
  %4186 = vperm.xlu0 %4185, %v4142
  %v4187 = vpop.permute.xlu0 %4186
  %4190 = vset.pattern.permute.xlu0 0
  %4191 = vperm.xlu0 %4190, %v4143
  %v4192 = vpop.permute.xlu0 %4191
  %4195 = vset.pattern.permute.xlu0 0
  %4196 = vperm.xlu0 %4195, %v4144
  %v4197 = vpop.permute.xlu0 %4196
  %4200 = vset.pattern.permute.xlu0 0
  %4201 = vperm.xlu0 %4200, %v4145
  %v4202 = vpop.permute.xlu0 %4201
  %4205 = vset.pattern.permute.xlu0 0
  %4206 = vperm.xlu0 %4205, %v4146
  %v4207 = vpop.permute.xlu0 %4206
  %4210 = vset.pattern.permute.xlu0 0
  %4211 = vperm.xlu0 %4210, %v4147
  %v4212 = vpop.permute.xlu0 %4211
  %4215 = vset.pattern.permute.xlu0 0
  %4216 = vperm.xlu0 %4215, %v4148
  %v4217 = vpop.permute.xlu0 %4216
  %4220 = vset.pattern.permute.xlu0 0
  %4221 = vperm.xlu0 %4220, %v4149
  %v4222 = vpop.permute.xlu0 %4221
  %4225 = vset.pattern.permute.xlu0 0
  %4226 = vperm.xlu0 %4225, %v4150
  %v4227 = vpop.permute.xlu0 %4226
  %4230 = vset.pattern.permute.xlu0 0
  %4231 = vperm.xlu0 %4230, %v4151
  %v4232 = vpop.permute.xlu0 %4231
  %v4235 = vlaneseq
  %v4236 = vshrl.u32 %v4235, 7
  %v4237 = vsub.s32 0, %v4236
  %v4238 = vrot.slane %v4153, %v4237
  %v4240 = vadd.f32 %v4157, %v4238
  %v4241 = vadd.f32 %v4162, %v4238
  %v4242 = vadd.f32 %v4167, %v4238
  %v4243 = vadd.f32 %v4172, %v4238
  %v4244 = vadd.f32 %v4177, %v4238
  %v4245 = vadd.f32 %v4182, %v4238
  %v4246 = vadd.f32 %v4187, %v4238
  %v4247 = vadd.f32 %v4192, %v4238
  %v4248 = vadd.f32 %v4197, %v4238
  %v4249 = vadd.f32 %v4202, %v4238
  %v4250 = vadd.f32 %v4207, %v4238
  %v4251 = vadd.f32 %v4212, %v4238
  %v4252 = vadd.f32 %v4217, %v4238
  %v4253 = vadd.f32 %v4222, %v4238
  %v4254 = vadd.f32 %v4227, %v4238
  %v4255 = vadd.f32 %v4232, %v4238
  %v4256 = vlaneseq
  %v4257 = vshrl.u32 %v4256, 7
  %v4258 = vsub.s32 0, %v4257
  %v4259 = vrot.slane %v4113, %v4258
  %4261 = vset.pattern.permute.xlu0 16
  %4262 = vperm.xlu0 %4261, %v4114
  %v4263 = vpop.permute.xlu0 %4262
  %4266 = vset.pattern.permute.xlu0 16
  %4267 = vperm.xlu0 %4266, %v4115
  %v4268 = vpop.permute.xlu0 %4267
  %4271 = vset.pattern.permute.xlu0 16
  %4272 = vperm.xlu0 %4271, %v4116
  %v4273 = vpop.permute.xlu0 %4272
  %4276 = vset.pattern.permute.xlu0 16
  %4277 = vperm.xlu0 %4276, %v4117
  %v4278 = vpop.permute.xlu0 %4277
  %4281 = vset.pattern.permute.xlu0 16
  %4282 = vperm.xlu0 %4281, %v4118
  %v4283 = vpop.permute.xlu0 %4282
  %4286 = vset.pattern.permute.xlu0 16
  %4287 = vperm.xlu0 %4286, %v4119
  %v4288 = vpop.permute.xlu0 %4287
  %4291 = vset.pattern.permute.xlu0 16
  %4292 = vperm.xlu0 %4291, %v4120
  %v4293 = vpop.permute.xlu0 %4292
  %4296 = vset.pattern.permute.xlu0 16
  %4297 = vperm.xlu0 %4296, %v4121
  %v4298 = vpop.permute.xlu0 %4297
  %4301 = vset.pattern.permute.xlu0 16
  %4302 = vperm.xlu0 %4301, %v4122
  %v4303 = vpop.permute.xlu0 %4302
  %4306 = vset.pattern.permute.xlu0 16
  %4307 = vperm.xlu0 %4306, %v4123
  %v4308 = vpop.permute.xlu0 %4307
  %4311 = vset.pattern.permute.xlu0 16
  %4312 = vperm.xlu0 %4311, %v4124
  %v4313 = vpop.permute.xlu0 %4312
  %4316 = vset.pattern.permute.xlu0 16
  %4317 = vperm.xlu0 %4316, %v4125
  %v4318 = vpop.permute.xlu0 %4317
  %4321 = vset.pattern.permute.xlu0 16
  %4322 = vperm.xlu0 %4321, %v4126
  %v4323 = vpop.permute.xlu0 %4322
  %4326 = vset.pattern.permute.xlu0 16
  %4327 = vperm.xlu0 %4326, %v4127
  %v4328 = vpop.permute.xlu0 %4327
  %4331 = vset.pattern.permute.xlu0 16
  %4332 = vperm.xlu0 %4331, %v4128
  %v4333 = vpop.permute.xlu0 %4332
  %4336 = vset.pattern.permute.xlu0 16
  %4337 = vperm.xlu0 %4336, %v4129
  %v4338 = vpop.permute.xlu0 %4337
  %v4340 = vadd.f32 %v4259, %v4263
  %v4341 = vadd.f32 %v4259, %v4268
  %v4342 = vadd.f32 %v4259, %v4273
  %v4343 = vadd.f32 %v4259, %v4278
  %v4344 = vadd.f32 %v4259, %v4283
  %v4345 = vadd.f32 %v4259, %v4288
  %v4346 = vadd.f32 %v4259, %v4293
  %v4347 = vadd.f32 %v4259, %v4298
  %v4348 = vadd.f32 %v4259, %v4303
  %v4349 = vadd.f32 %v4259, %v4308
  %v4350 = vadd.f32 %v4259, %v4313
  %v4351 = vadd.f32 %v4259, %v4318
  %v4352 = vadd.f32 %v4259, %v4323
  %v4353 = vadd.f32 %v4259, %v4328
  %v4354 = vadd.f32 %v4259, %v4333
  %v4355 = vadd.f32 %v4259, %v4338
  %v4356 = vand.u32 2147483647, %v4340
  %v4357 = vand.u32 2147483647, %v4341
  %v4358 = vand.u32 2147483647, %v4342
  %v4359 = vand.u32 2147483647, %v4343
  %v4360 = vand.u32 2147483647, %v4344
  %v4361 = vand.u32 2147483647, %v4345
  %v4362 = vand.u32 2147483647, %v4346
  %v4363 = vand.u32 2147483647, %v4347
  %v4364 = vand.u32 2147483647, %v4348
  %v4365 = vand.u32 2147483647, %v4349
  %v4366 = vand.u32 2147483647, %v4350
  %v4367 = vand.u32 2147483647, %v4351
  %v4368 = vand.u32 2147483647, %v4352
  %v4369 = vand.u32 2147483647, %v4353
  %v4370 = vand.u32 2147483647, %v4354
  %v4371 = vand.u32 2147483647, %v4355
  %v4372 = vmul.f32 %v487, %v4356
  %v4373 = vmul.f32 %v487, %v4357
  %v4374 = vmul.f32 %v487, %v4358
  %v4375 = vmul.f32 %v487, %v4359
  %v4376 = vmul.f32 %v487, %v4360
  %v4377 = vmul.f32 %v487, %v4361
  %v4378 = vmul.f32 %v487, %v4362
  %v4379 = vmul.f32 %v487, %v4363
  %v4380 = vmul.f32 %v487, %v4364
  %v4381 = vmul.f32 %v487, %v4365
  %v4382 = vmul.f32 %v487, %v4366
  %v4383 = vmul.f32 %v487, %v4367
  %v4384 = vmul.f32 %v487, %v4368
  %v4385 = vmul.f32 %v487, %v4369
  %v4386 = vmul.f32 %v487, %v4370
  %v4387 = vmul.f32 %v487, %v4371
  %v4388 = vadd.f32 %v4240, %v4372
  %v4389 = vadd.f32 %v4241, %v4373
  %v4390 = vadd.f32 %v4242, %v4374
  %v4391 = vadd.f32 %v4243, %v4375
  %v4392 = vadd.f32 %v4244, %v4376
  %v4393 = vadd.f32 %v4245, %v4377
  %v4394 = vadd.f32 %v4246, %v4378
  %v4395 = vadd.f32 %v4247, %v4379
  %v4396 = vadd.f32 %v4248, %v4380
  %v4397 = vadd.f32 %v4249, %v4381
  %v4398 = vadd.f32 %v4250, %v4382
  %v4399 = vadd.f32 %v4251, %v4383
  %v4400 = vadd.f32 %v4252, %v4384
  %v4401 = vadd.f32 %v4253, %v4385
  %v4402 = vadd.f32 %v4254, %v4386
  %v4403 = vadd.f32 %v4255, %v4387
  %v4404 = vlaneseq
  %v4405 = vshrl.u32 %v4404, 7
  %v4406 = vsub.s32 1, %v4405
  %v4407 = vrot.slane %v4113, %v4406
  %4408 = vset.pattern.permute.xlu0 17
  %4409 = vperm.xlu0 %4408, %v4114
  %v4410 = vpop.permute.xlu0 %4409
  %4412 = vset.pattern.permute.xlu0 17
  %4413 = vperm.xlu0 %4412, %v4115
  %v4414 = vpop.permute.xlu0 %4413
  %4416 = vset.pattern.permute.xlu0 17
  %4417 = vperm.xlu0 %4416, %v4116
  %v4418 = vpop.permute.xlu0 %4417
  %4420 = vset.pattern.permute.xlu0 17
  %4421 = vperm.xlu0 %4420, %v4117
  %v4422 = vpop.permute.xlu0 %4421
  %4424 = vset.pattern.permute.xlu0 17
  %4425 = vperm.xlu0 %4424, %v4118
  %v4426 = vpop.permute.xlu0 %4425
  %4428 = vset.pattern.permute.xlu0 17
  %4429 = vperm.xlu0 %4428, %v4119
  %v4430 = vpop.permute.xlu0 %4429
  %4432 = vset.pattern.permute.xlu0 17
  %4433 = vperm.xlu0 %4432, %v4120
  %v4434 = vpop.permute.xlu0 %4433
  %4436 = vset.pattern.permute.xlu0 17
  %4437 = vperm.xlu0 %4436, %v4121
  %v4438 = vpop.permute.xlu0 %4437
  %4440 = vset.pattern.permute.xlu0 17
  %4441 = vperm.xlu0 %4440, %v4122
  %v4442 = vpop.permute.xlu0 %4441
  %4444 = vset.pattern.permute.xlu0 17
  %4445 = vperm.xlu0 %4444, %v4123
  %v4446 = vpop.permute.xlu0 %4445
  %4448 = vset.pattern.permute.xlu0 17
  %4449 = vperm.xlu0 %4448, %v4124
  %v4450 = vpop.permute.xlu0 %4449
  %4452 = vset.pattern.permute.xlu0 17
  %4453 = vperm.xlu0 %4452, %v4125
  %v4454 = vpop.permute.xlu0 %4453
  %4456 = vset.pattern.permute.xlu0 17
  %4457 = vperm.xlu0 %4456, %v4126
  %v4458 = vpop.permute.xlu0 %4457
  %4460 = vset.pattern.permute.xlu0 17
  %4461 = vperm.xlu0 %4460, %v4127
  %v4462 = vpop.permute.xlu0 %4461
  %4464 = vset.pattern.permute.xlu0 17
  %4465 = vperm.xlu0 %4464, %v4128
  %v4466 = vpop.permute.xlu0 %4465
  %4468 = vset.pattern.permute.xlu0 17
  %4469 = vperm.xlu0 %4468, %v4129
  %v4470 = vpop.permute.xlu0 %4469
  %v4472 = vadd.f32 %v4407, %v4410
  %v4473 = vadd.f32 %v4407, %v4414
  %v4474 = vadd.f32 %v4407, %v4418
  %v4475 = vadd.f32 %v4407, %v4422
  %v4476 = vadd.f32 %v4407, %v4426
  %v4477 = vadd.f32 %v4407, %v4430
  %v4478 = vadd.f32 %v4407, %v4434
  %v4479 = vadd.f32 %v4407, %v4438
  %v4480 = vadd.f32 %v4407, %v4442
  %v4481 = vadd.f32 %v4407, %v4446
  %v4482 = vadd.f32 %v4407, %v4450
  %v4483 = vadd.f32 %v4407, %v4454
  %v4484 = vadd.f32 %v4407, %v4458
  %v4485 = vadd.f32 %v4407, %v4462
  %v4486 = vadd.f32 %v4407, %v4466
  %v4487 = vadd.f32 %v4407, %v4470
  %v4488 = vand.u32 2147483647, %v4472
  %v4489 = vand.u32 2147483647, %v4473
  %v4490 = vand.u32 2147483647, %v4474
  %v4491 = vand.u32 2147483647, %v4475
  %v4492 = vand.u32 2147483647, %v4476
  %v4493 = vand.u32 2147483647, %v4477
  %v4494 = vand.u32 2147483647, %v4478
  %v4495 = vand.u32 2147483647, %v4479
  %v4496 = vand.u32 2147483647, %v4480
  %v4497 = vand.u32 2147483647, %v4481
  %v4498 = vand.u32 2147483647, %v4482
  %v4499 = vand.u32 2147483647, %v4483
  %v4500 = vand.u32 2147483647, %v4484
  %v4501 = vand.u32 2147483647, %v4485
  %v4502 = vand.u32 2147483647, %v4486
  %v4503 = vand.u32 2147483647, %v4487
  %v4504 = vmul.f32 %v623, %v4488
  %v4505 = vmul.f32 %v623, %v4489
  %v4506 = vmul.f32 %v623, %v4490
  %v4507 = vmul.f32 %v623, %v4491
  %v4508 = vmul.f32 %v623, %v4492
  %v4509 = vmul.f32 %v623, %v4493
  %v4510 = vmul.f32 %v623, %v4494
  %v4511 = vmul.f32 %v623, %v4495
  %v4512 = vmul.f32 %v623, %v4496
  %v4513 = vmul.f32 %v623, %v4497
  %v4514 = vmul.f32 %v623, %v4498
  %v4515 = vmul.f32 %v623, %v4499
  %v4516 = vmul.f32 %v623, %v4500
  %v4517 = vmul.f32 %v623, %v4501
  %v4518 = vmul.f32 %v623, %v4502
  %v4519 = vmul.f32 %v623, %v4503
  %v4520 = vadd.f32 %v4388, %v4504
  %v4521 = vadd.f32 %v4389, %v4505
  %v4522 = vadd.f32 %v4390, %v4506
  %v4523 = vadd.f32 %v4391, %v4507
  %v4524 = vadd.f32 %v4392, %v4508
  %v4525 = vadd.f32 %v4393, %v4509
  %v4526 = vadd.f32 %v4394, %v4510
  %v4527 = vadd.f32 %v4395, %v4511
  %v4528 = vadd.f32 %v4396, %v4512
  %v4529 = vadd.f32 %v4397, %v4513
  %v4530 = vadd.f32 %v4398, %v4514
  %v4531 = vadd.f32 %v4399, %v4515
  %v4532 = vadd.f32 %v4400, %v4516
  %v4533 = vadd.f32 %v4401, %v4517
  %v4534 = vadd.f32 %v4402, %v4518
  %v4535 = vadd.f32 %v4403, %v4519
  %v4536 = vlaneseq
  %v4537 = vshrl.u32 %v4536, 7
  %v4538 = vsub.s32 2, %v4537
  %v4539 = vrot.slane %v4113, %v4538
  %4540 = vset.pattern.permute.xlu0 18
  %4541 = vperm.xlu0 %4540, %v4114
  %v4542 = vpop.permute.xlu0 %4541
  %4544 = vset.pattern.permute.xlu0 18
  %4545 = vperm.xlu0 %4544, %v4115
  %v4546 = vpop.permute.xlu0 %4545
  %4548 = vset.pattern.permute.xlu0 18
  %4549 = vperm.xlu0 %4548, %v4116
  %v4550 = vpop.permute.xlu0 %4549
  %4552 = vset.pattern.permute.xlu0 18
  %4553 = vperm.xlu0 %4552, %v4117
  %v4554 = vpop.permute.xlu0 %4553
  %4556 = vset.pattern.permute.xlu0 18
  %4557 = vperm.xlu0 %4556, %v4118
  %v4558 = vpop.permute.xlu0 %4557
  %4560 = vset.pattern.permute.xlu0 18
  %4561 = vperm.xlu0 %4560, %v4119
  %v4562 = vpop.permute.xlu0 %4561
  %4564 = vset.pattern.permute.xlu0 18
  %4565 = vperm.xlu0 %4564, %v4120
  %v4566 = vpop.permute.xlu0 %4565
  %4568 = vset.pattern.permute.xlu0 18
  %4569 = vperm.xlu0 %4568, %v4121
  %v4570 = vpop.permute.xlu0 %4569
  %4572 = vset.pattern.permute.xlu0 18
  %4573 = vperm.xlu0 %4572, %v4122
  %v4574 = vpop.permute.xlu0 %4573
  %4576 = vset.pattern.permute.xlu0 18
  %4577 = vperm.xlu0 %4576, %v4123
  %v4578 = vpop.permute.xlu0 %4577
  %4580 = vset.pattern.permute.xlu0 18
  %4581 = vperm.xlu0 %4580, %v4124
  %v4582 = vpop.permute.xlu0 %4581
  %4584 = vset.pattern.permute.xlu0 18
  %4585 = vperm.xlu0 %4584, %v4125
  %v4586 = vpop.permute.xlu0 %4585
  %4588 = vset.pattern.permute.xlu0 18
  %4589 = vperm.xlu0 %4588, %v4126
  %v4590 = vpop.permute.xlu0 %4589
  %4592 = vset.pattern.permute.xlu0 18
  %4593 = vperm.xlu0 %4592, %v4127
  %v4594 = vpop.permute.xlu0 %4593
  %4596 = vset.pattern.permute.xlu0 18
  %4597 = vperm.xlu0 %4596, %v4128
  %v4598 = vpop.permute.xlu0 %4597
  %4600 = vset.pattern.permute.xlu0 18
  %4601 = vperm.xlu0 %4600, %v4129
  %v4602 = vpop.permute.xlu0 %4601
  %v4604 = vadd.f32 %v4539, %v4542
  %v4605 = vadd.f32 %v4539, %v4546
  %v4606 = vadd.f32 %v4539, %v4550
  %v4607 = vadd.f32 %v4539, %v4554
  %v4608 = vadd.f32 %v4539, %v4558
  %v4609 = vadd.f32 %v4539, %v4562
  %v4610 = vadd.f32 %v4539, %v4566
  %v4611 = vadd.f32 %v4539, %v4570
  %v4612 = vadd.f32 %v4539, %v4574
  %v4613 = vadd.f32 %v4539, %v4578
  %v4614 = vadd.f32 %v4539, %v4582
  %v4615 = vadd.f32 %v4539, %v4586
  %v4616 = vadd.f32 %v4539, %v4590
  %v4617 = vadd.f32 %v4539, %v4594
  %v4618 = vadd.f32 %v4539, %v4598
  %v4619 = vadd.f32 %v4539, %v4602
  %v4620 = vand.u32 2147483647, %v4604
  %v4621 = vand.u32 2147483647, %v4605
  %v4622 = vand.u32 2147483647, %v4606
  %v4623 = vand.u32 2147483647, %v4607
  %v4624 = vand.u32 2147483647, %v4608
  %v4625 = vand.u32 2147483647, %v4609
  %v4626 = vand.u32 2147483647, %v4610
  %v4627 = vand.u32 2147483647, %v4611
  %v4628 = vand.u32 2147483647, %v4612
  %v4629 = vand.u32 2147483647, %v4613
  %v4630 = vand.u32 2147483647, %v4614
  %v4631 = vand.u32 2147483647, %v4615
  %v4632 = vand.u32 2147483647, %v4616
  %v4633 = vand.u32 2147483647, %v4617
  %v4634 = vand.u32 2147483647, %v4618
  %v4635 = vand.u32 2147483647, %v4619
  %v4636 = vmul.f32 %v759, %v4620
  %v4637 = vmul.f32 %v759, %v4621
  %v4638 = vmul.f32 %v759, %v4622
  %v4639 = vmul.f32 %v759, %v4623
  %v4640 = vmul.f32 %v759, %v4624
  %v4641 = vmul.f32 %v759, %v4625
  %v4642 = vmul.f32 %v759, %v4626
  %v4643 = vmul.f32 %v759, %v4627
  %v4644 = vmul.f32 %v759, %v4628
  %v4645 = vmul.f32 %v759, %v4629
  %v4646 = vmul.f32 %v759, %v4630
  %v4647 = vmul.f32 %v759, %v4631
  %v4648 = vmul.f32 %v759, %v4632
  %v4649 = vmul.f32 %v759, %v4633
  %v4650 = vmul.f32 %v759, %v4634
  %v4651 = vmul.f32 %v759, %v4635
  %v4652 = vadd.f32 %v4520, %v4636
  %v4653 = vadd.f32 %v4521, %v4637
  %v4654 = vadd.f32 %v4522, %v4638
  %v4655 = vadd.f32 %v4523, %v4639
  %v4656 = vadd.f32 %v4524, %v4640
  %v4657 = vadd.f32 %v4525, %v4641
  %v4658 = vadd.f32 %v4526, %v4642
  %v4659 = vadd.f32 %v4527, %v4643
  %v4660 = vadd.f32 %v4528, %v4644
  %v4661 = vadd.f32 %v4529, %v4645
  %v4662 = vadd.f32 %v4530, %v4646
  %v4663 = vadd.f32 %v4531, %v4647
  %v4664 = vadd.f32 %v4532, %v4648
  %v4665 = vadd.f32 %v4533, %v4649
  %v4666 = vadd.f32 %v4534, %v4650
  %v4667 = vadd.f32 %v4535, %v4651
  %v4668 = vlaneseq
  %v4669 = vshrl.u32 %v4668, 7
  %v4670 = vsub.s32 3, %v4669
  %v4671 = vrot.slane %v4113, %v4670
  %4672 = vset.pattern.permute.xlu0 19
  %4673 = vperm.xlu0 %4672, %v4114
  %v4674 = vpop.permute.xlu0 %4673
  %4676 = vset.pattern.permute.xlu0 19
  %4677 = vperm.xlu0 %4676, %v4115
  %v4678 = vpop.permute.xlu0 %4677
  %4680 = vset.pattern.permute.xlu0 19
  %4681 = vperm.xlu0 %4680, %v4116
  %v4682 = vpop.permute.xlu0 %4681
  %4684 = vset.pattern.permute.xlu0 19
  %4685 = vperm.xlu0 %4684, %v4117
  %v4686 = vpop.permute.xlu0 %4685
  %4688 = vset.pattern.permute.xlu0 19
  %4689 = vperm.xlu0 %4688, %v4118
  %v4690 = vpop.permute.xlu0 %4689
  %4692 = vset.pattern.permute.xlu0 19
  %4693 = vperm.xlu0 %4692, %v4119
  %v4694 = vpop.permute.xlu0 %4693
  %4696 = vset.pattern.permute.xlu0 19
  %4697 = vperm.xlu0 %4696, %v4120
  %v4698 = vpop.permute.xlu0 %4697
  %4700 = vset.pattern.permute.xlu0 19
  %4701 = vperm.xlu0 %4700, %v4121
  %v4702 = vpop.permute.xlu0 %4701
  %4704 = vset.pattern.permute.xlu0 19
  %4705 = vperm.xlu0 %4704, %v4122
  %v4706 = vpop.permute.xlu0 %4705
  %4708 = vset.pattern.permute.xlu0 19
  %4709 = vperm.xlu0 %4708, %v4123
  %v4710 = vpop.permute.xlu0 %4709
  %4712 = vset.pattern.permute.xlu0 19
  %4713 = vperm.xlu0 %4712, %v4124
  %v4714 = vpop.permute.xlu0 %4713
  %4716 = vset.pattern.permute.xlu0 19
  %4717 = vperm.xlu0 %4716, %v4125
  %v4718 = vpop.permute.xlu0 %4717
  %4720 = vset.pattern.permute.xlu0 19
  %4721 = vperm.xlu0 %4720, %v4126
  %v4722 = vpop.permute.xlu0 %4721
  %4724 = vset.pattern.permute.xlu0 19
  %4725 = vperm.xlu0 %4724, %v4127
  %v4726 = vpop.permute.xlu0 %4725
  %4728 = vset.pattern.permute.xlu0 19
  %4729 = vperm.xlu0 %4728, %v4128
  %v4730 = vpop.permute.xlu0 %4729
  %4732 = vset.pattern.permute.xlu0 19
  %4733 = vperm.xlu0 %4732, %v4129
  %v4734 = vpop.permute.xlu0 %4733
  %v4736 = vadd.f32 %v4671, %v4674
  %v4737 = vadd.f32 %v4671, %v4678
  %v4738 = vadd.f32 %v4671, %v4682
  %v4739 = vadd.f32 %v4671, %v4686
  %v4740 = vadd.f32 %v4671, %v4690
  %v4741 = vadd.f32 %v4671, %v4694
  %v4742 = vadd.f32 %v4671, %v4698
  %v4743 = vadd.f32 %v4671, %v4702
  %v4744 = vadd.f32 %v4671, %v4706
  %v4745 = vadd.f32 %v4671, %v4710
  %v4746 = vadd.f32 %v4671, %v4714
  %v4747 = vadd.f32 %v4671, %v4718
  %v4748 = vadd.f32 %v4671, %v4722
  %v4749 = vadd.f32 %v4671, %v4726
  %v4750 = vadd.f32 %v4671, %v4730
  %v4751 = vadd.f32 %v4671, %v4734
  %v4752 = vand.u32 2147483647, %v4736
  %v4753 = vand.u32 2147483647, %v4737
  %v4754 = vand.u32 2147483647, %v4738
  %v4755 = vand.u32 2147483647, %v4739
  %v4756 = vand.u32 2147483647, %v4740
  %v4757 = vand.u32 2147483647, %v4741
  %v4758 = vand.u32 2147483647, %v4742
  %v4759 = vand.u32 2147483647, %v4743
  %v4760 = vand.u32 2147483647, %v4744
  %v4761 = vand.u32 2147483647, %v4745
  %v4762 = vand.u32 2147483647, %v4746
  %v4763 = vand.u32 2147483647, %v4747
  %v4764 = vand.u32 2147483647, %v4748
  %v4765 = vand.u32 2147483647, %v4749
  %v4766 = vand.u32 2147483647, %v4750
  %v4767 = vand.u32 2147483647, %v4751
  %v4768 = vmul.f32 %v895, %v4752
  %v4769 = vmul.f32 %v895, %v4753
  %v4770 = vmul.f32 %v895, %v4754
  %v4771 = vmul.f32 %v895, %v4755
  %v4772 = vmul.f32 %v895, %v4756
  %v4773 = vmul.f32 %v895, %v4757
  %v4774 = vmul.f32 %v895, %v4758
  %v4775 = vmul.f32 %v895, %v4759
  %v4776 = vmul.f32 %v895, %v4760
  %v4777 = vmul.f32 %v895, %v4761
  %v4778 = vmul.f32 %v895, %v4762
  %v4779 = vmul.f32 %v895, %v4763
  %v4780 = vmul.f32 %v895, %v4764
  %v4781 = vmul.f32 %v895, %v4765
  %v4782 = vmul.f32 %v895, %v4766
  %v4783 = vmul.f32 %v895, %v4767
  %v4784 = vadd.f32 %v4652, %v4768
  %v4785 = vadd.f32 %v4653, %v4769
  %v4786 = vadd.f32 %v4654, %v4770
  %v4787 = vadd.f32 %v4655, %v4771
  %v4788 = vadd.f32 %v4656, %v4772
  %v4789 = vadd.f32 %v4657, %v4773
  %v4790 = vadd.f32 %v4658, %v4774
  %v4791 = vadd.f32 %v4659, %v4775
  %v4792 = vadd.f32 %v4660, %v4776
  %v4793 = vadd.f32 %v4661, %v4777
  %v4794 = vadd.f32 %v4662, %v4778
  %v4795 = vadd.f32 %v4663, %v4779
  %v4796 = vadd.f32 %v4664, %v4780
  %v4797 = vadd.f32 %v4665, %v4781
  %v4798 = vadd.f32 %v4666, %v4782
  %v4799 = vadd.f32 %v4667, %v4783
  %v4800 = vlaneseq
  %v4801 = vshrl.u32 %v4800, 7
  %v4802 = vsub.s32 4, %v4801
  %v4803 = vrot.slane %v4113, %v4802
  %4804 = vset.pattern.permute.xlu0 20
  %4805 = vperm.xlu0 %4804, %v4114
  %v4806 = vpop.permute.xlu0 %4805
  %4808 = vset.pattern.permute.xlu0 20
  %4809 = vperm.xlu0 %4808, %v4115
  %v4810 = vpop.permute.xlu0 %4809
  %4812 = vset.pattern.permute.xlu0 20
  %4813 = vperm.xlu0 %4812, %v4116
  %v4814 = vpop.permute.xlu0 %4813
  %4816 = vset.pattern.permute.xlu0 20
  %4817 = vperm.xlu0 %4816, %v4117
  %v4818 = vpop.permute.xlu0 %4817
  %4820 = vset.pattern.permute.xlu0 20
  %4821 = vperm.xlu0 %4820, %v4118
  %v4822 = vpop.permute.xlu0 %4821
  %4824 = vset.pattern.permute.xlu0 20
  %4825 = vperm.xlu0 %4824, %v4119
  %v4826 = vpop.permute.xlu0 %4825
  %4828 = vset.pattern.permute.xlu0 20
  %4829 = vperm.xlu0 %4828, %v4120
  %v4830 = vpop.permute.xlu0 %4829
  %4832 = vset.pattern.permute.xlu0 20
  %4833 = vperm.xlu0 %4832, %v4121
  %v4834 = vpop.permute.xlu0 %4833
  %4836 = vset.pattern.permute.xlu0 20
  %4837 = vperm.xlu0 %4836, %v4122
  %v4838 = vpop.permute.xlu0 %4837
  %4840 = vset.pattern.permute.xlu0 20
  %4841 = vperm.xlu0 %4840, %v4123
  %v4842 = vpop.permute.xlu0 %4841
  %4844 = vset.pattern.permute.xlu0 20
  %4845 = vperm.xlu0 %4844, %v4124
  %v4846 = vpop.permute.xlu0 %4845
  %4848 = vset.pattern.permute.xlu0 20
  %4849 = vperm.xlu0 %4848, %v4125
  %v4850 = vpop.permute.xlu0 %4849
  %4852 = vset.pattern.permute.xlu0 20
  %4853 = vperm.xlu0 %4852, %v4126
  %v4854 = vpop.permute.xlu0 %4853
  %4856 = vset.pattern.permute.xlu0 20
  %4857 = vperm.xlu0 %4856, %v4127
  %v4858 = vpop.permute.xlu0 %4857
  %4860 = vset.pattern.permute.xlu0 20
  %4861 = vperm.xlu0 %4860, %v4128
  %v4862 = vpop.permute.xlu0 %4861
  %4864 = vset.pattern.permute.xlu0 20
  %4865 = vperm.xlu0 %4864, %v4129
  %v4866 = vpop.permute.xlu0 %4865
  %v4868 = vadd.f32 %v4803, %v4806
  %v4869 = vadd.f32 %v4803, %v4810
  %v4870 = vadd.f32 %v4803, %v4814
  %v4871 = vadd.f32 %v4803, %v4818
  %v4872 = vadd.f32 %v4803, %v4822
  %v4873 = vadd.f32 %v4803, %v4826
  %v4874 = vadd.f32 %v4803, %v4830
  %v4875 = vadd.f32 %v4803, %v4834
  %v4876 = vadd.f32 %v4803, %v4838
  %v4877 = vadd.f32 %v4803, %v4842
  %v4878 = vadd.f32 %v4803, %v4846
  %v4879 = vadd.f32 %v4803, %v4850
  %v4880 = vadd.f32 %v4803, %v4854
  %v4881 = vadd.f32 %v4803, %v4858
  %v4882 = vadd.f32 %v4803, %v4862
  %v4883 = vadd.f32 %v4803, %v4866
  %v4884 = vand.u32 2147483647, %v4868
  %v4885 = vand.u32 2147483647, %v4869
  %v4886 = vand.u32 2147483647, %v4870
  %v4887 = vand.u32 2147483647, %v4871
  %v4888 = vand.u32 2147483647, %v4872
  %v4889 = vand.u32 2147483647, %v4873
  %v4890 = vand.u32 2147483647, %v4874
  %v4891 = vand.u32 2147483647, %v4875
  %v4892 = vand.u32 2147483647, %v4876
  %v4893 = vand.u32 2147483647, %v4877
  %v4894 = vand.u32 2147483647, %v4878
  %v4895 = vand.u32 2147483647, %v4879
  %v4896 = vand.u32 2147483647, %v4880
  %v4897 = vand.u32 2147483647, %v4881
  %v4898 = vand.u32 2147483647, %v4882
  %v4899 = vand.u32 2147483647, %v4883
  %v4900 = vmul.f32 %v1031, %v4884
  %v4901 = vmul.f32 %v1031, %v4885
  %v4902 = vmul.f32 %v1031, %v4886
  %v4903 = vmul.f32 %v1031, %v4887
  %v4904 = vmul.f32 %v1031, %v4888
  %v4905 = vmul.f32 %v1031, %v4889
  %v4906 = vmul.f32 %v1031, %v4890
  %v4907 = vmul.f32 %v1031, %v4891
  %v4908 = vmul.f32 %v1031, %v4892
  %v4909 = vmul.f32 %v1031, %v4893
  %v4910 = vmul.f32 %v1031, %v4894
  %v4911 = vmul.f32 %v1031, %v4895
  %v4912 = vmul.f32 %v1031, %v4896
  %v4913 = vmul.f32 %v1031, %v4897
  %v4914 = vmul.f32 %v1031, %v4898
  %v4915 = vmul.f32 %v1031, %v4899
  %v4916 = vadd.f32 %v4784, %v4900
  %v4917 = vadd.f32 %v4785, %v4901
  %v4918 = vadd.f32 %v4786, %v4902
  %v4919 = vadd.f32 %v4787, %v4903
  %v4920 = vadd.f32 %v4788, %v4904
  %v4921 = vadd.f32 %v4789, %v4905
  %v4922 = vadd.f32 %v4790, %v4906
  %v4923 = vadd.f32 %v4791, %v4907
  %v4924 = vadd.f32 %v4792, %v4908
  %v4925 = vadd.f32 %v4793, %v4909
  %v4926 = vadd.f32 %v4794, %v4910
  %v4927 = vadd.f32 %v4795, %v4911
  %v4928 = vadd.f32 %v4796, %v4912
  %v4929 = vadd.f32 %v4797, %v4913
  %v4930 = vadd.f32 %v4798, %v4914
  %v4931 = vadd.f32 %v4799, %v4915
  %v4932 = vlaneseq
  %v4933 = vshrl.u32 %v4932, 7
  %v4934 = vsub.s32 5, %v4933
  %v4935 = vrot.slane %v4113, %v4934
  %4936 = vset.pattern.permute.xlu0 21
  %4937 = vperm.xlu0 %4936, %v4114
  %v4938 = vpop.permute.xlu0 %4937
  %4940 = vset.pattern.permute.xlu0 21
  %4941 = vperm.xlu0 %4940, %v4115
  %v4942 = vpop.permute.xlu0 %4941
  %4944 = vset.pattern.permute.xlu0 21
  %4945 = vperm.xlu0 %4944, %v4116
  %v4946 = vpop.permute.xlu0 %4945
  %4948 = vset.pattern.permute.xlu0 21
  %4949 = vperm.xlu0 %4948, %v4117
  %v4950 = vpop.permute.xlu0 %4949
  %4952 = vset.pattern.permute.xlu0 21
  %4953 = vperm.xlu0 %4952, %v4118
  %v4954 = vpop.permute.xlu0 %4953
  %4956 = vset.pattern.permute.xlu0 21
  %4957 = vperm.xlu0 %4956, %v4119
  %v4958 = vpop.permute.xlu0 %4957
  %4960 = vset.pattern.permute.xlu0 21
  %4961 = vperm.xlu0 %4960, %v4120
  %v4962 = vpop.permute.xlu0 %4961
  %4964 = vset.pattern.permute.xlu0 21
  %4965 = vperm.xlu0 %4964, %v4121
  %v4966 = vpop.permute.xlu0 %4965
  %4968 = vset.pattern.permute.xlu0 21
  %4969 = vperm.xlu0 %4968, %v4122
  %v4970 = vpop.permute.xlu0 %4969
  %4972 = vset.pattern.permute.xlu0 21
  %4973 = vperm.xlu0 %4972, %v4123
  %v4974 = vpop.permute.xlu0 %4973
  %4976 = vset.pattern.permute.xlu0 21
  %4977 = vperm.xlu0 %4976, %v4124
  %v4978 = vpop.permute.xlu0 %4977
  %4980 = vset.pattern.permute.xlu0 21
  %4981 = vperm.xlu0 %4980, %v4125
  %v4982 = vpop.permute.xlu0 %4981
  %4984 = vset.pattern.permute.xlu0 21
  %4985 = vperm.xlu0 %4984, %v4126
  %v4986 = vpop.permute.xlu0 %4985
  %4988 = vset.pattern.permute.xlu0 21
  %4989 = vperm.xlu0 %4988, %v4127
  %v4990 = vpop.permute.xlu0 %4989
  %4992 = vset.pattern.permute.xlu0 21
  %4993 = vperm.xlu0 %4992, %v4128
  %v4994 = vpop.permute.xlu0 %4993
  %4996 = vset.pattern.permute.xlu0 21
  %4997 = vperm.xlu0 %4996, %v4129
  %v4998 = vpop.permute.xlu0 %4997
  %v5000 = vadd.f32 %v4935, %v4938
  %v5001 = vadd.f32 %v4935, %v4942
  %v5002 = vadd.f32 %v4935, %v4946
  %v5003 = vadd.f32 %v4935, %v4950
  %v5004 = vadd.f32 %v4935, %v4954
  %v5005 = vadd.f32 %v4935, %v4958
  %v5006 = vadd.f32 %v4935, %v4962
  %v5007 = vadd.f32 %v4935, %v4966
  %v5008 = vadd.f32 %v4935, %v4970
  %v5009 = vadd.f32 %v4935, %v4974
  %v5010 = vadd.f32 %v4935, %v4978
  %v5011 = vadd.f32 %v4935, %v4982
  %v5012 = vadd.f32 %v4935, %v4986
  %v5013 = vadd.f32 %v4935, %v4990
  %v5014 = vadd.f32 %v4935, %v4994
  %v5015 = vadd.f32 %v4935, %v4998
  %v5016 = vand.u32 2147483647, %v5000
  %v5017 = vand.u32 2147483647, %v5001
  %v5018 = vand.u32 2147483647, %v5002
  %v5019 = vand.u32 2147483647, %v5003
  %v5020 = vand.u32 2147483647, %v5004
  %v5021 = vand.u32 2147483647, %v5005
  %v5022 = vand.u32 2147483647, %v5006
  %v5023 = vand.u32 2147483647, %v5007
  %v5024 = vand.u32 2147483647, %v5008
  %v5025 = vand.u32 2147483647, %v5009
  %v5026 = vand.u32 2147483647, %v5010
  %v5027 = vand.u32 2147483647, %v5011
  %v5028 = vand.u32 2147483647, %v5012
  %v5029 = vand.u32 2147483647, %v5013
  %v5030 = vand.u32 2147483647, %v5014
  %v5031 = vand.u32 2147483647, %v5015
  %v5032 = vmul.f32 %v1167, %v5016
  %v5033 = vmul.f32 %v1167, %v5017
  %v5034 = vmul.f32 %v1167, %v5018
  %v5035 = vmul.f32 %v1167, %v5019
  %v5036 = vmul.f32 %v1167, %v5020
  %v5037 = vmul.f32 %v1167, %v5021
  %v5038 = vmul.f32 %v1167, %v5022
  %v5039 = vmul.f32 %v1167, %v5023
  %v5040 = vmul.f32 %v1167, %v5024
  %v5041 = vmul.f32 %v1167, %v5025
  %v5042 = vmul.f32 %v1167, %v5026
  %v5043 = vmul.f32 %v1167, %v5027
  %v5044 = vmul.f32 %v1167, %v5028
  %v5045 = vmul.f32 %v1167, %v5029
  %v5046 = vmul.f32 %v1167, %v5030
  %v5047 = vmul.f32 %v1167, %v5031
  %v5048 = vadd.f32 %v4916, %v5032
  %v5049 = vadd.f32 %v4917, %v5033
  %v5050 = vadd.f32 %v4918, %v5034
  %v5051 = vadd.f32 %v4919, %v5035
  %v5052 = vadd.f32 %v4920, %v5036
  %v5053 = vadd.f32 %v4921, %v5037
  %v5054 = vadd.f32 %v4922, %v5038
  %v5055 = vadd.f32 %v4923, %v5039
  %v5056 = vadd.f32 %v4924, %v5040
  %v5057 = vadd.f32 %v4925, %v5041
  %v5058 = vadd.f32 %v4926, %v5042
  %v5059 = vadd.f32 %v4927, %v5043
  %v5060 = vadd.f32 %v4928, %v5044
  %v5061 = vadd.f32 %v4929, %v5045
  %v5062 = vadd.f32 %v4930, %v5046
  %v5063 = vadd.f32 %v4931, %v5047
  %v5064 = vlaneseq
  %v5065 = vshrl.u32 %v5064, 7
  %v5066 = vsub.s32 6, %v5065
  %v5067 = vrot.slane %v4113, %v5066
  %5068 = vset.pattern.permute.xlu0 22
  %5069 = vperm.xlu0 %5068, %v4114
  %v5070 = vpop.permute.xlu0 %5069
  %5072 = vset.pattern.permute.xlu0 22
  %5073 = vperm.xlu0 %5072, %v4115
  %v5074 = vpop.permute.xlu0 %5073
  %5076 = vset.pattern.permute.xlu0 22
  %5077 = vperm.xlu0 %5076, %v4116
  %v5078 = vpop.permute.xlu0 %5077
  %5080 = vset.pattern.permute.xlu0 22
  %5081 = vperm.xlu0 %5080, %v4117
  %v5082 = vpop.permute.xlu0 %5081
  %5084 = vset.pattern.permute.xlu0 22
  %5085 = vperm.xlu0 %5084, %v4118
  %v5086 = vpop.permute.xlu0 %5085
  %5088 = vset.pattern.permute.xlu0 22
  %5089 = vperm.xlu0 %5088, %v4119
  %v5090 = vpop.permute.xlu0 %5089
  %5092 = vset.pattern.permute.xlu0 22
  %5093 = vperm.xlu0 %5092, %v4120
  %v5094 = vpop.permute.xlu0 %5093
  %5096 = vset.pattern.permute.xlu0 22
  %5097 = vperm.xlu0 %5096, %v4121
  %v5098 = vpop.permute.xlu0 %5097
  %5100 = vset.pattern.permute.xlu0 22
  %5101 = vperm.xlu0 %5100, %v4122
  %v5102 = vpop.permute.xlu0 %5101
  %5104 = vset.pattern.permute.xlu0 22
  %5105 = vperm.xlu0 %5104, %v4123
  %v5106 = vpop.permute.xlu0 %5105
  %5108 = vset.pattern.permute.xlu0 22
  %5109 = vperm.xlu0 %5108, %v4124
  %v5110 = vpop.permute.xlu0 %5109
  %5112 = vset.pattern.permute.xlu0 22
  %5113 = vperm.xlu0 %5112, %v4125
  %v5114 = vpop.permute.xlu0 %5113
  %5116 = vset.pattern.permute.xlu0 22
  %5117 = vperm.xlu0 %5116, %v4126
  %v5118 = vpop.permute.xlu0 %5117
  %5120 = vset.pattern.permute.xlu0 22
  %5121 = vperm.xlu0 %5120, %v4127
  %v5122 = vpop.permute.xlu0 %5121
  %5124 = vset.pattern.permute.xlu0 22
  %5125 = vperm.xlu0 %5124, %v4128
  %v5126 = vpop.permute.xlu0 %5125
  %5128 = vset.pattern.permute.xlu0 22
  %5129 = vperm.xlu0 %5128, %v4129
  %v5130 = vpop.permute.xlu0 %5129
  %v5132 = vadd.f32 %v5067, %v5070
  %v5133 = vadd.f32 %v5067, %v5074
  %v5134 = vadd.f32 %v5067, %v5078
  %v5135 = vadd.f32 %v5067, %v5082
  %v5136 = vadd.f32 %v5067, %v5086
  %v5137 = vadd.f32 %v5067, %v5090
  %v5138 = vadd.f32 %v5067, %v5094
  %v5139 = vadd.f32 %v5067, %v5098
  %v5140 = vadd.f32 %v5067, %v5102
  %v5141 = vadd.f32 %v5067, %v5106
  %v5142 = vadd.f32 %v5067, %v5110
  %v5143 = vadd.f32 %v5067, %v5114
  %v5144 = vadd.f32 %v5067, %v5118
  %v5145 = vadd.f32 %v5067, %v5122
  %v5146 = vadd.f32 %v5067, %v5126
  %v5147 = vadd.f32 %v5067, %v5130
  %v5148 = vand.u32 2147483647, %v5132
  %v5149 = vand.u32 2147483647, %v5133
  %v5150 = vand.u32 2147483647, %v5134
  %v5151 = vand.u32 2147483647, %v5135
  %v5152 = vand.u32 2147483647, %v5136
  %v5153 = vand.u32 2147483647, %v5137
  %v5154 = vand.u32 2147483647, %v5138
  %v5155 = vand.u32 2147483647, %v5139
  %v5156 = vand.u32 2147483647, %v5140
  %v5157 = vand.u32 2147483647, %v5141
  %v5158 = vand.u32 2147483647, %v5142
  %v5159 = vand.u32 2147483647, %v5143
  %v5160 = vand.u32 2147483647, %v5144
  %v5161 = vand.u32 2147483647, %v5145
  %v5162 = vand.u32 2147483647, %v5146
  %v5163 = vand.u32 2147483647, %v5147
  %v5164 = vmul.f32 %v1303, %v5148
  %v5165 = vmul.f32 %v1303, %v5149
  %v5166 = vmul.f32 %v1303, %v5150
  %v5167 = vmul.f32 %v1303, %v5151
  %v5168 = vmul.f32 %v1303, %v5152
  %v5169 = vmul.f32 %v1303, %v5153
  %v5170 = vmul.f32 %v1303, %v5154
  %v5171 = vmul.f32 %v1303, %v5155
  %v5172 = vmul.f32 %v1303, %v5156
  %v5173 = vmul.f32 %v1303, %v5157
  %v5174 = vmul.f32 %v1303, %v5158
  %v5175 = vmul.f32 %v1303, %v5159
  %v5176 = vmul.f32 %v1303, %v5160
  %v5177 = vmul.f32 %v1303, %v5161
  %v5178 = vmul.f32 %v1303, %v5162
  %v5179 = vmul.f32 %v1303, %v5163
  %v5180 = vadd.f32 %v5048, %v5164
  %v5181 = vadd.f32 %v5049, %v5165
  %v5182 = vadd.f32 %v5050, %v5166
  %v5183 = vadd.f32 %v5051, %v5167
  %v5184 = vadd.f32 %v5052, %v5168
  %v5185 = vadd.f32 %v5053, %v5169
  %v5186 = vadd.f32 %v5054, %v5170
  %v5187 = vadd.f32 %v5055, %v5171
  %v5188 = vadd.f32 %v5056, %v5172
  %v5189 = vadd.f32 %v5057, %v5173
  %v5190 = vadd.f32 %v5058, %v5174
  %v5191 = vadd.f32 %v5059, %v5175
  %v5192 = vadd.f32 %v5060, %v5176
  %v5193 = vadd.f32 %v5061, %v5177
  %v5194 = vadd.f32 %v5062, %v5178
  %v5195 = vadd.f32 %v5063, %v5179
  %v5196 = vlaneseq
  %v5197 = vshrl.u32 %v5196, 7
  %v5198 = vsub.s32 7, %v5197
  %v5199 = vrot.slane %v4113, %v5198
  %5200 = vset.pattern.permute.xlu0 23
  %5201 = vperm.xlu0 %5200, %v4114
  %v5202 = vpop.permute.xlu0 %5201
  %5204 = vset.pattern.permute.xlu0 23
  %5205 = vperm.xlu0 %5204, %v4115
  %v5206 = vpop.permute.xlu0 %5205
  %5208 = vset.pattern.permute.xlu0 23
  %5209 = vperm.xlu0 %5208, %v4116
  %v5210 = vpop.permute.xlu0 %5209
  %5212 = vset.pattern.permute.xlu0 23
  %5213 = vperm.xlu0 %5212, %v4117
  %v5214 = vpop.permute.xlu0 %5213
  %5216 = vset.pattern.permute.xlu0 23
  %5217 = vperm.xlu0 %5216, %v4118
  %v5218 = vpop.permute.xlu0 %5217
  %5220 = vset.pattern.permute.xlu0 23
  %5221 = vperm.xlu0 %5220, %v4119
  %v5222 = vpop.permute.xlu0 %5221
  %5224 = vset.pattern.permute.xlu0 23
  %5225 = vperm.xlu0 %5224, %v4120
  %v5226 = vpop.permute.xlu0 %5225
  %5228 = vset.pattern.permute.xlu0 23
  %5229 = vperm.xlu0 %5228, %v4121
  %v5230 = vpop.permute.xlu0 %5229
  %5232 = vset.pattern.permute.xlu0 23
  %5233 = vperm.xlu0 %5232, %v4122
  %v5234 = vpop.permute.xlu0 %5233
  %5236 = vset.pattern.permute.xlu0 23
  %5237 = vperm.xlu0 %5236, %v4123
  %v5238 = vpop.permute.xlu0 %5237
  %5240 = vset.pattern.permute.xlu0 23
  %5241 = vperm.xlu0 %5240, %v4124
  %v5242 = vpop.permute.xlu0 %5241
  %5244 = vset.pattern.permute.xlu0 23
  %5245 = vperm.xlu0 %5244, %v4125
  %v5246 = vpop.permute.xlu0 %5245
  %5248 = vset.pattern.permute.xlu0 23
  %5249 = vperm.xlu0 %5248, %v4126
  %v5250 = vpop.permute.xlu0 %5249
  %5252 = vset.pattern.permute.xlu0 23
  %5253 = vperm.xlu0 %5252, %v4127
  %v5254 = vpop.permute.xlu0 %5253
  %5256 = vset.pattern.permute.xlu0 23
  %5257 = vperm.xlu0 %5256, %v4128
  %v5258 = vpop.permute.xlu0 %5257
  %5260 = vset.pattern.permute.xlu0 23
  %5261 = vperm.xlu0 %5260, %v4129
  %v5262 = vpop.permute.xlu0 %5261
  %v5264 = vadd.f32 %v5199, %v5202
  %v5265 = vadd.f32 %v5199, %v5206
  %v5266 = vadd.f32 %v5199, %v5210
  %v5267 = vadd.f32 %v5199, %v5214
  %v5268 = vadd.f32 %v5199, %v5218
  %v5269 = vadd.f32 %v5199, %v5222
  %v5270 = vadd.f32 %v5199, %v5226
  %v5271 = vadd.f32 %v5199, %v5230
  %v5272 = vadd.f32 %v5199, %v5234
  %v5273 = vadd.f32 %v5199, %v5238
  %v5274 = vadd.f32 %v5199, %v5242
  %v5275 = vadd.f32 %v5199, %v5246
  %v5276 = vadd.f32 %v5199, %v5250
  %v5277 = vadd.f32 %v5199, %v5254
  %v5278 = vadd.f32 %v5199, %v5258
  %v5279 = vadd.f32 %v5199, %v5262
  %v5280 = vand.u32 2147483647, %v5264
  %v5281 = vand.u32 2147483647, %v5265
  %v5282 = vand.u32 2147483647, %v5266
  %v5283 = vand.u32 2147483647, %v5267
  %v5284 = vand.u32 2147483647, %v5268
  %v5285 = vand.u32 2147483647, %v5269
  %v5286 = vand.u32 2147483647, %v5270
  %v5287 = vand.u32 2147483647, %v5271
  %v5288 = vand.u32 2147483647, %v5272
  %v5289 = vand.u32 2147483647, %v5273
  %v5290 = vand.u32 2147483647, %v5274
  %v5291 = vand.u32 2147483647, %v5275
  %v5292 = vand.u32 2147483647, %v5276
  %v5293 = vand.u32 2147483647, %v5277
  %v5294 = vand.u32 2147483647, %v5278
  %v5295 = vand.u32 2147483647, %v5279
  %v5296 = vmul.f32 %v1439, %v5280
  %v5297 = vmul.f32 %v1439, %v5281
  %v5298 = vmul.f32 %v1439, %v5282
  %v5299 = vmul.f32 %v1439, %v5283
  %v5300 = vmul.f32 %v1439, %v5284
  %v5301 = vmul.f32 %v1439, %v5285
  %v5302 = vmul.f32 %v1439, %v5286
  %v5303 = vmul.f32 %v1439, %v5287
  %v5304 = vmul.f32 %v1439, %v5288
  %v5305 = vmul.f32 %v1439, %v5289
  %v5306 = vmul.f32 %v1439, %v5290
  %v5307 = vmul.f32 %v1439, %v5291
  %v5308 = vmul.f32 %v1439, %v5292
  %v5309 = vmul.f32 %v1439, %v5293
  %v5310 = vmul.f32 %v1439, %v5294
  %v5311 = vmul.f32 %v1439, %v5295
  %v5312 = vadd.f32 %v5180, %v5296
  %v5313 = vadd.f32 %v5181, %v5297
  %v5314 = vadd.f32 %v5182, %v5298
  %v5315 = vadd.f32 %v5183, %v5299
  %v5316 = vadd.f32 %v5184, %v5300
  %v5317 = vadd.f32 %v5185, %v5301
  %v5318 = vadd.f32 %v5186, %v5302
  %v5319 = vadd.f32 %v5187, %v5303
  %v5320 = vadd.f32 %v5188, %v5304
  %v5321 = vadd.f32 %v5189, %v5305
  %v5322 = vadd.f32 %v5190, %v5306
  %v5323 = vadd.f32 %v5191, %v5307
  %v5324 = vadd.f32 %v5192, %v5308
  %v5325 = vadd.f32 %v5193, %v5309
  %v5326 = vadd.f32 %v5194, %v5310
  %v5327 = vadd.f32 %v5195, %v5311
  %s5328 = scalar_lea.vmem [#allocation2], 256
  %v5329 = vld [vmem:[%s5328] sm:$0xff]
  %v5330 = vld [vmem:[%s5328 + $0x8] sm:$0xff]
  %v5331 = vld [vmem:[%s5328 + $0x10] sm:$0xff]
  %v5332 = vld [vmem:[%s5328 + $0x18] sm:$0xff]
  %v5333 = vld [vmem:[%s5328 + $0x20] sm:$0xff]
  %v5334 = vld [vmem:[%s5328 + $0x28] sm:$0xff]
  %v5335 = vld [vmem:[%s5328 + $0x30] sm:$0xff]
  %v5336 = vld [vmem:[%s5328 + $0x38] sm:$0xff]
  %v5337 = vld [vmem:[%s5328 + $0x40] sm:$0xff]
  %v5338 = vld [vmem:[%s5328 + $0x48] sm:$0xff]
  %v5339 = vld [vmem:[%s5328 + $0x50] sm:$0xff]
  %v5340 = vld [vmem:[%s5328 + $0x58] sm:$0xff]
  %v5341 = vld [vmem:[%s5328 + $0x60] sm:$0xff]
  %v5342 = vld [vmem:[%s5328 + $0x68] sm:$0xff]
  %v5343 = vld [vmem:[%s5328 + $0x70] sm:$0xff]
  %v5344 = vld [vmem:[%s5328 + $0x78] sm:$0xff]
  %5345 = vmax.xlane.f32.xlu0 %v5312
  %v5346 = vpop.xlane.xlu0 %5345
  %5347 = vmax.xlane.f32.xlu0 %v5313
  %v5348 = vpop.xlane.xlu0 %5347
  %5349 = vmax.xlane.f32.xlu0 %v5314
  %v5350 = vpop.xlane.xlu0 %5349
  %5351 = vmax.xlane.f32.xlu0 %v5315
  %v5352 = vpop.xlane.xlu0 %5351
  %5353 = vmax.xlane.f32.xlu0 %v5316
  %v5354 = vpop.xlane.xlu0 %5353
  %5355 = vmax.xlane.f32.xlu0 %v5317
  %v5356 = vpop.xlane.xlu0 %5355
  %5357 = vmax.xlane.f32.xlu0 %v5318
  %v5358 = vpop.xlane.xlu0 %5357
  %5359 = vmax.xlane.f32.xlu0 %v5319
  %v5360 = vpop.xlane.xlu0 %5359
  %5361 = vmax.xlane.f32.xlu0 %v5320
  %v5362 = vpop.xlane.xlu0 %5361
  %5363 = vmax.xlane.f32.xlu0 %v5321
  %v5364 = vpop.xlane.xlu0 %5363
  %5365 = vmax.xlane.f32.xlu0 %v5322
  %v5366 = vpop.xlane.xlu0 %5365
  %5367 = vmax.xlane.f32.xlu0 %v5323
  %v5368 = vpop.xlane.xlu0 %5367
  %5369 = vmax.xlane.f32.xlu0 %v5324
  %v5370 = vpop.xlane.xlu0 %5369
  %5371 = vmax.xlane.f32.xlu0 %v5325
  %v5372 = vpop.xlane.xlu0 %5371
  %5373 = vmax.xlane.f32.xlu0 %v5326
  %v5374 = vpop.xlane.xlu0 %5373
  %5375 = vmax.xlane.f32.xlu0 %v5327
  %v5376 = vpop.xlane.xlu0 %5375
  %v5377 = vmax.f32 %v5329, %v5346
  %v5378 = vmax.f32 %v5330, %v5348
  %v5379 = vmax.f32 %v5331, %v5350
  %v5380 = vmax.f32 %v5332, %v5352
  %v5381 = vmax.f32 %v5333, %v5354
  %v5382 = vmax.f32 %v5334, %v5356
  %v5383 = vmax.f32 %v5335, %v5358
  %v5384 = vmax.f32 %v5336, %v5360
  %v5385 = vmax.f32 %v5337, %v5362
  %v5386 = vmax.f32 %v5338, %v5364
  %v5387 = vmax.f32 %v5339, %v5366
  %v5388 = vmax.f32 %v5340, %v5368
  %v5389 = vmax.f32 %v5341, %v5370
  %v5390 = vmax.f32 %v5342, %v5372
  %v5391 = vmax.f32 %v5343, %v5374
  %v5392 = vmax.f32 %v5344, %v5376
  %v5393 = vsub.f32 %v5329, %v5377
  %v5394 = vsub.f32 %v5330, %v5378
  %v5395 = vsub.f32 %v5331, %v5379
  %v5396 = vsub.f32 %v5332, %v5380
  %v5397 = vsub.f32 %v5333, %v5381
  %v5398 = vsub.f32 %v5334, %v5382
  %v5399 = vsub.f32 %v5335, %v5383
  %v5400 = vsub.f32 %v5336, %v5384
  %v5401 = vsub.f32 %v5337, %v5385
  %v5402 = vsub.f32 %v5338, %v5386
  %v5403 = vsub.f32 %v5339, %v5387
  %v5404 = vsub.f32 %v5340, %v5388
  %v5405 = vsub.f32 %v5341, %v5389
  %v5406 = vsub.f32 %v5342, %v5390
  %v5407 = vsub.f32 %v5343, %v5391
  %v5408 = vsub.f32 %v5344, %v5392
  %v5409 = vmul.f32 %v5393, 1.442695
  %v5410 = vpow.pop %v5409
  %v5411 = vmul.f32 %v5394, 1.442695
  %v5412 = vpow.pop %v5411
  %v5413 = vmul.f32 %v5395, 1.442695
  %v5414 = vpow.pop %v5413
  %v5415 = vmul.f32 %v5396, 1.442695
  %v5416 = vpow.pop %v5415
  %v5417 = vmul.f32 %v5397, 1.442695
  %v5418 = vpow.pop %v5417
  %v5419 = vmul.f32 %v5398, 1.442695
  %v5420 = vpow.pop %v5419
  %v5421 = vmul.f32 %v5399, 1.442695
  %v5422 = vpow.pop %v5421
  %v5423 = vmul.f32 %v5400, 1.442695
  %v5424 = vpow.pop %v5423
  %v5425 = vmul.f32 %v5401, 1.442695
  %v5426 = vpow.pop %v5425
  %v5427 = vmul.f32 %v5402, 1.442695
  %v5428 = vpow.pop %v5427
  %v5429 = vmul.f32 %v5403, 1.442695
  %v5430 = vpow.pop %v5429
  %v5431 = vmul.f32 %v5404, 1.442695
  %v5432 = vpow.pop %v5431
  %v5433 = vmul.f32 %v5405, 1.442695
  %v5434 = vpow.pop %v5433
  %v5435 = vmul.f32 %v5406, 1.442695
  %v5436 = vpow.pop %v5435
  %v5437 = vmul.f32 %v5407, 1.442695
  %v5438 = vpow.pop %v5437
  %v5439 = vmul.f32 %v5408, 1.442695
  %v5440 = vpow.pop %v5439
  %5442 = vset.pattern.permute.xlu0 0
  %5443 = vperm.xlu0 %5442, %v5377
  %v5444 = vpop.permute.xlu0 %5443
  %5447 = vset.pattern.permute.xlu0 0
  %5448 = vperm.xlu0 %5447, %v5378
  %v5449 = vpop.permute.xlu0 %5448
  %5452 = vset.pattern.permute.xlu0 0
  %5453 = vperm.xlu0 %5452, %v5379
  %v5454 = vpop.permute.xlu0 %5453
  %5457 = vset.pattern.permute.xlu0 0
  %5458 = vperm.xlu0 %5457, %v5380
  %v5459 = vpop.permute.xlu0 %5458
  %5462 = vset.pattern.permute.xlu0 0
  %5463 = vperm.xlu0 %5462, %v5381
  %v5464 = vpop.permute.xlu0 %5463
  %5467 = vset.pattern.permute.xlu0 0
  %5468 = vperm.xlu0 %5467, %v5382
  %v5469 = vpop.permute.xlu0 %5468
  %5472 = vset.pattern.permute.xlu0 0
  %5473 = vperm.xlu0 %5472, %v5383
  %v5474 = vpop.permute.xlu0 %5473
  %5477 = vset.pattern.permute.xlu0 0
  %5478 = vperm.xlu0 %5477, %v5384
  %v5479 = vpop.permute.xlu0 %5478
  %5482 = vset.pattern.permute.xlu0 0
  %5483 = vperm.xlu0 %5482, %v5385
  %v5484 = vpop.permute.xlu0 %5483
  %5487 = vset.pattern.permute.xlu0 0
  %5488 = vperm.xlu0 %5487, %v5386
  %v5489 = vpop.permute.xlu0 %5488
  %5492 = vset.pattern.permute.xlu0 0
  %5493 = vperm.xlu0 %5492, %v5387
  %v5494 = vpop.permute.xlu0 %5493
  %5497 = vset.pattern.permute.xlu0 0
  %5498 = vperm.xlu0 %5497, %v5388
  %v5499 = vpop.permute.xlu0 %5498
  %5502 = vset.pattern.permute.xlu0 0
  %5503 = vperm.xlu0 %5502, %v5389
  %v5504 = vpop.permute.xlu0 %5503
  %5507 = vset.pattern.permute.xlu0 0
  %5508 = vperm.xlu0 %5507, %v5390
  %v5509 = vpop.permute.xlu0 %5508
  %5512 = vset.pattern.permute.xlu0 0
  %5513 = vperm.xlu0 %5512, %v5391
  %v5514 = vpop.permute.xlu0 %5513
  %5517 = vset.pattern.permute.xlu0 0
  %5518 = vperm.xlu0 %5517, %v5392
  %v5519 = vpop.permute.xlu0 %5518
  %v5521 = vsub.f32 %v5312, %v5444
  %v5522 = vsub.f32 %v5313, %v5449
  %v5523 = vsub.f32 %v5314, %v5454
  %v5524 = vsub.f32 %v5315, %v5459
  %v5525 = vsub.f32 %v5316, %v5464
  %v5526 = vsub.f32 %v5317, %v5469
  %v5527 = vsub.f32 %v5318, %v5474
  %v5528 = vsub.f32 %v5319, %v5479
  %v5529 = vsub.f32 %v5320, %v5484
  %v5530 = vsub.f32 %v5321, %v5489
  %v5531 = vsub.f32 %v5322, %v5494
  %v5532 = vsub.f32 %v5323, %v5499
  %v5533 = vsub.f32 %v5324, %v5504
  %v5534 = vsub.f32 %v5325, %v5509
  %v5535 = vsub.f32 %v5326, %v5514
  %v5536 = vsub.f32 %v5327, %v5519
  %v5537 = vpack.c.bf16 %v5522, %v5521
  %v5538 = vpack.c.bf16 %v5524, %v5523
  %v5539 = vpack.c.bf16 %v5526, %v5525
  %v5540 = vpack.c.bf16 %v5528, %v5527
  %v5541 = vpack.c.bf16 %v5530, %v5529
  %v5542 = vpack.c.bf16 %v5532, %v5531
  %v5543 = vpack.c.bf16 %v5534, %v5533
  %v5544 = vpack.c.bf16 %v5536, %v5535
  %v5546 = vmul.bf16 %v5537, 1069105081
  %v5547 = vpow.bf16.pop %v5546
  %v5549 = vmul.bf16 %v5538, 1069105081
  %v5550 = vpow.bf16.pop %v5549
  %v5552 = vmul.bf16 %v5539, 1069105081
  %v5553 = vpow.bf16.pop %v5552
  %v5555 = vmul.bf16 %v5540, 1069105081
  %v5556 = vpow.bf16.pop %v5555
  %v5558 = vmul.bf16 %v5541, 1069105081
  %v5559 = vpow.bf16.pop %v5558
  %v5561 = vmul.bf16 %v5542, 1069105081
  %v5562 = vpow.bf16.pop %v5561
  %v5564 = vmul.bf16 %v5543, 1069105081
  %v5565 = vpow.bf16.pop %v5564
  %v5567 = vmul.bf16 %v5544, 1069105081
  %v5568 = vpow.bf16.pop %v5567
  %vm5569 = vnez %v4131
  %vm5570 = vnez %v4132
  %vm5571 = vnez %v4133
  %vm5572 = vnez %v4134
  %v5573 = vsel %vm5569, 16843009, 0
  %v5574 = vsel %vm5570, 16843009, 0
  %v5575 = vsel %vm5571, 16843009, 0
  %v5576 = vsel %vm5572, 16843009, 0
  %v5577 = vcombine.high %v5573, %v5573
  %v5578 = vcombine.high %v5574, %v5574
  %v5579 = vcombine.high %v5575, %v5575
  %v5580 = vcombine.high %v5576, %v5576
  %vm5581 = vnez %v5577
  %vm5582 = vnez %v5578
  %vm5583 = vnez %v5579
  %vm5584 = vnez %v5580
  %v5585 = vsel %vm5581, 16843009, 0
  %v5586 = vsel %vm5582, 16843009, 0
  %v5587 = vsel %vm5583, 16843009, 0
  %v5588 = vsel %vm5584, 16843009, 0
  %v5589 = vunpack.c.1.s8 %v5573
  %v5590 = vunpack.c.0.s8 %v5573
  %v5591 = vpack.c.b16 %v5589, %v5590
  %v5592 = vunpack.c.1.s8 %v5585
  %v5593 = vunpack.c.0.s8 %v5585
  %v5594 = vpack.c.b16 %v5592, %v5593
  %v5595 = vunpack.c.1.s8 %v5574
  %v5596 = vunpack.c.0.s8 %v5574
  %v5597 = vpack.c.b16 %v5595, %v5596
  %v5598 = vunpack.c.1.s8 %v5586
  %v5599 = vunpack.c.0.s8 %v5586
  %v5600 = vpack.c.b16 %v5598, %v5599
  %v5601 = vunpack.c.1.s8 %v5575
  %v5602 = vunpack.c.0.s8 %v5575
  %v5603 = vpack.c.b16 %v5601, %v5602
  %v5604 = vunpack.c.1.s8 %v5587
  %v5605 = vunpack.c.0.s8 %v5587
  %v5606 = vpack.c.b16 %v5604, %v5605
  %v5607 = vunpack.c.1.s8 %v5576
  %v5608 = vunpack.c.0.s8 %v5576
  %v5609 = vpack.c.b16 %v5607, %v5608
  %v5610 = vunpack.c.1.s8 %v5588
  %v5611 = vunpack.c.0.s8 %v5588
  %v5612 = vpack.c.b16 %v5610, %v5611
  %vm5613 = vcmp.ne.s16.totalorder %v5591, 0
  %vm5614 = vcmp.ne.s16.totalorder %v5594, 0
  %vm5615 = vcmp.ne.s16.totalorder %v5597, 0
  %vm5616 = vcmp.ne.s16.totalorder %v5600, 0
  %vm5617 = vcmp.ne.s16.totalorder %v5603, 0
  %vm5618 = vcmp.ne.s16.totalorder %v5606, 0
  %vm5619 = vcmp.ne.s16.totalorder %v5609, 0
  %vm5620 = vcmp.ne.s16.totalorder %v5612, 0
  %v5621 = vsel %vm5613, %v5547, 0
  %v5622 = vsel %vm5614, %v5550, 0
  %v5623 = vsel %vm5615, %v5553, 0
  %v5624 = vsel %vm5616, %v5556, 0
  %v5625 = vsel %vm5617, %v5559, 0
  %v5626 = vsel %vm5618, %v5562, 0
  %v5627 = vsel %vm5619, %v5565, 0
  %v5628 = vsel %vm5620, %v5568, 0
  %s5629 = scalar_lea.vmem [#allocation3], 256
  %v5630 = vld [vmem:[%s5629] sm:$0xff]
  %v5631 = vld [vmem:[%s5629 + $0x8] sm:$0xff]
  %v5632 = vld [vmem:[%s5629 + $0x10] sm:$0xff]
  %v5633 = vld [vmem:[%s5629 + $0x18] sm:$0xff]
  %v5634 = vld [vmem:[%s5629 + $0x20] sm:$0xff]
  %v5635 = vld [vmem:[%s5629 + $0x28] sm:$0xff]
  %v5636 = vld [vmem:[%s5629 + $0x30] sm:$0xff]
  %v5637 = vld [vmem:[%s5629 + $0x38] sm:$0xff]
  %v5638 = vld [vmem:[%s5629 + $0x40] sm:$0xff]
  %v5639 = vld [vmem:[%s5629 + $0x48] sm:$0xff]
  %v5640 = vld [vmem:[%s5629 + $0x50] sm:$0xff]
  %v5641 = vld [vmem:[%s5629 + $0x58] sm:$0xff]
  %v5642 = vld [vmem:[%s5629 + $0x60] sm:$0xff]
  %v5643 = vld [vmem:[%s5629 + $0x68] sm:$0xff]
  %v5644 = vld [vmem:[%s5629 + $0x70] sm:$0xff]
  %v5645 = vld [vmem:[%s5629 + $0x78] sm:$0xff]
  %v5646 = vmul.f32 %v5410, %v5630
  %v5647 = vmul.f32 %v5412, %v5631
  %v5648 = vmul.f32 %v5414, %v5632
  %v5649 = vmul.f32 %v5416, %v5633
  %v5650 = vmul.f32 %v5418, %v5634
  %v5651 = vmul.f32 %v5420, %v5635
  %v5652 = vmul.f32 %v5422, %v5636
  %v5653 = vmul.f32 %v5424, %v5637
  %v5654 = vmul.f32 %v5426, %v5638
  %v5655 = vmul.f32 %v5428, %v5639
  %v5656 = vmul.f32 %v5430, %v5640
  %v5657 = vmul.f32 %v5432, %v5641
  %v5658 = vmul.f32 %v5434, %v5642
  %v5659 = vmul.f32 %v5436, %v5643
  %v5660 = vmul.f32 %v5438, %v5644
  %v5661 = vmul.f32 %v5440, %v5645
  %v5662 = vunpack.c.l.bf16 %v5621
  %v5663 = vunpack.c.h.bf16 %v5621
  %v5664 = vunpack.c.l.bf16 %v5622
  %v5665 = vunpack.c.h.bf16 %v5622
  %v5666 = vunpack.c.l.bf16 %v5623
  %v5667 = vunpack.c.h.bf16 %v5623
  %v5668 = vunpack.c.l.bf16 %v5624
  %v5669 = vunpack.c.h.bf16 %v5624
  %v5670 = vunpack.c.l.bf16 %v5625
  %v5671 = vunpack.c.h.bf16 %v5625
  %v5672 = vunpack.c.l.bf16 %v5626
  %v5673 = vunpack.c.h.bf16 %v5626
  %v5674 = vunpack.c.l.bf16 %v5627
  %v5675 = vunpack.c.h.bf16 %v5627
  %v5676 = vunpack.c.l.bf16 %v5628
  %v5677 = vunpack.c.h.bf16 %v5628
  %5678 = vadd.xlane.f32.xlu0 %v5662
  %v5679 = vpop.xlane.xlu0 %5678
  %5680 = vadd.xlane.f32.xlu0 %v5663
  %v5681 = vpop.xlane.xlu0 %5680
  %5682 = vadd.xlane.f32.xlu0 %v5664
  %v5683 = vpop.xlane.xlu0 %5682
  %5684 = vadd.xlane.f32.xlu0 %v5665
  %v5685 = vpop.xlane.xlu0 %5684
  %5686 = vadd.xlane.f32.xlu0 %v5666
  %v5687 = vpop.xlane.xlu0 %5686
  %5688 = vadd.xlane.f32.xlu0 %v5667
  %v5689 = vpop.xlane.xlu0 %5688
  %5690 = vadd.xlane.f32.xlu0 %v5668
  %v5691 = vpop.xlane.xlu0 %5690
  %5692 = vadd.xlane.f32.xlu0 %v5669
  %v5693 = vpop.xlane.xlu0 %5692
  %5694 = vadd.xlane.f32.xlu0 %v5670
  %v5695 = vpop.xlane.xlu0 %5694
  %5696 = vadd.xlane.f32.xlu0 %v5671
  %v5697 = vpop.xlane.xlu0 %5696
  %5698 = vadd.xlane.f32.xlu0 %v5672
  %v5699 = vpop.xlane.xlu0 %5698
  %5700 = vadd.xlane.f32.xlu0 %v5673
  %v5701 = vpop.xlane.xlu0 %5700
  %5702 = vadd.xlane.f32.xlu0 %v5674
  %v5703 = vpop.xlane.xlu0 %5702
  %5704 = vadd.xlane.f32.xlu0 %v5675
  %v5705 = vpop.xlane.xlu0 %5704
  %5706 = vadd.xlane.f32.xlu0 %v5676
  %v5707 = vpop.xlane.xlu0 %5706
  %5708 = vadd.xlane.f32.xlu0 %v5677
  %v5709 = vpop.xlane.xlu0 %5708
  %v5710 = vadd.f32 %v5646, %v5679
  %v5711 = vadd.f32 %v5647, %v5681
  %v5712 = vadd.f32 %v5648, %v5683
  %v5713 = vadd.f32 %v5649, %v5685
  %v5714 = vadd.f32 %v5650, %v5687
  %v5715 = vadd.f32 %v5651, %v5689
  %v5716 = vadd.f32 %v5652, %v5691
  %v5717 = vadd.f32 %v5653, %v5693
  %v5718 = vadd.f32 %v5654, %v5695
  %v5719 = vadd.f32 %v5655, %v5697
  %v5720 = vadd.f32 %v5656, %v5699
  %v5721 = vadd.f32 %v5657, %v5701
  %v5722 = vadd.f32 %v5658, %v5703
  %v5723 = vadd.f32 %v5659, %v5705
  %v5724 = vadd.f32 %v5660, %v5707
  %v5725 = vadd.f32 %v5661, %v5709
  %5726 = vst.msk [vmem:[%s5629] sm:$0xff] %vm1869, %v5710
  %5727 = vst.msk [vmem:[%s5629 + $0x8] sm:$0xff] %vm1869, %v5711
  %5728 = vst.msk [vmem:[%s5629 + $0x10] sm:$0xff] %vm1869, %v5712
  %5729 = vst.msk [vmem:[%s5629 + $0x18] sm:$0xff] %vm1869, %v5713
  %5730 = vst.msk [vmem:[%s5629 + $0x20] sm:$0xff] %vm1869, %v5714
  %5731 = vst.msk [vmem:[%s5629 + $0x28] sm:$0xff] %vm1869, %v5715
  %5732 = vst.msk [vmem:[%s5629 + $0x30] sm:$0xff] %vm1869, %v5716
  %5733 = vst.msk [vmem:[%s5629 + $0x38] sm:$0xff] %vm1869, %v5717
  %5734 = vst.msk [vmem:[%s5629 + $0x40] sm:$0xff] %vm1869, %v5718
  %5735 = vst.msk [vmem:[%s5629 + $0x48] sm:$0xff] %vm1869, %v5719
  %5736 = vst.msk [vmem:[%s5629 + $0x50] sm:$0xff] %vm1869, %v5720
  %5737 = vst.msk [vmem:[%s5629 + $0x58] sm:$0xff] %vm1869, %v5721
  %5738 = vst.msk [vmem:[%s5629 + $0x60] sm:$0xff] %vm1869, %v5722
  %5739 = vst.msk [vmem:[%s5629 + $0x68] sm:$0xff] %vm1869, %v5723
  %5740 = vst.msk [vmem:[%s5629 + $0x70] sm:$0xff] %vm1869, %v5724
  %5741 = vst.msk [vmem:[%s5629 + $0x78] sm:$0xff] %vm1869, %v5725
  %s5742 = scalar_lea.vmem [#allocation4], 256
  %v5743 = vld [vmem:[%s5742] sm:$0xff]
  %v5744 = vld [vmem:[%s5742 + $0x8] sm:$0xff]
  %v5745 = vld [vmem:[%s5742 + $0x10] sm:$0xff]
  %v5746 = vld [vmem:[%s5742 + $0x18] sm:$0xff]
  %v5747 = vld [vmem:[%s5742 + $0x20] sm:$0xff]
  %v5748 = vld [vmem:[%s5742 + $0x28] sm:$0xff]
  %v5749 = vld [vmem:[%s5742 + $0x30] sm:$0xff]
  %v5750 = vld [vmem:[%s5742 + $0x38] sm:$0xff]
  %v5751 = vld [vmem:[%s5742 + $0x40] sm:$0xff]
  %v5752 = vld [vmem:[%s5742 + $0x48] sm:$0xff]
  %v5753 = vld [vmem:[%s5742 + $0x50] sm:$0xff]
  %v5754 = vld [vmem:[%s5742 + $0x58] sm:$0xff]
  %v5755 = vld [vmem:[%s5742 + $0x60] sm:$0xff]
  %v5756 = vld [vmem:[%s5742 + $0x68] sm:$0xff]
  %v5757 = vld [vmem:[%s5742 + $0x70] sm:$0xff]
  %v5758 = vld [vmem:[%s5742 + $0x78] sm:$0xff]
  %5760 = vset.pattern.permute.xlu0 0
  %5761 = vperm.xlu0 %5760, %v5410
  %v5762 = vpop.permute.xlu0 %5761
  %5765 = vset.pattern.permute.xlu0 0
  %5766 = vperm.xlu0 %5765, %v5412
  %v5767 = vpop.permute.xlu0 %5766
  %5770 = vset.pattern.permute.xlu0 0
  %5771 = vperm.xlu0 %5770, %v5414
  %v5772 = vpop.permute.xlu0 %5771
  %5775 = vset.pattern.permute.xlu0 0
  %5776 = vperm.xlu0 %5775, %v5416
  %v5777 = vpop.permute.xlu0 %5776
  %5780 = vset.pattern.permute.xlu0 0
  %5781 = vperm.xlu0 %5780, %v5418
  %v5782 = vpop.permute.xlu0 %5781
  %5785 = vset.pattern.permute.xlu0 0
  %5786 = vperm.xlu0 %5785, %v5420
  %v5787 = vpop.permute.xlu0 %5786
  %5790 = vset.pattern.permute.xlu0 0
  %5791 = vperm.xlu0 %5790, %v5422
  %v5792 = vpop.permute.xlu0 %5791
  %5795 = vset.pattern.permute.xlu0 0
  %5796 = vperm.xlu0 %5795, %v5424
  %v5797 = vpop.permute.xlu0 %5796
  %5800 = vset.pattern.permute.xlu0 0
  %5801 = vperm.xlu0 %5800, %v5426
  %v5802 = vpop.permute.xlu0 %5801
  %5805 = vset.pattern.permute.xlu0 0
  %5806 = vperm.xlu0 %5805, %v5428
  %v5807 = vpop.permute.xlu0 %5806
  %5810 = vset.pattern.permute.xlu0 0
  %5811 = vperm.xlu0 %5810, %v5430
  %v5812 = vpop.permute.xlu0 %5811
  %5815 = vset.pattern.permute.xlu0 0
  %5816 = vperm.xlu0 %5815, %v5432
  %v5817 = vpop.permute.xlu0 %5816
  %5820 = vset.pattern.permute.xlu0 0
  %5821 = vperm.xlu0 %5820, %v5434
  %v5822 = vpop.permute.xlu0 %5821
  %5825 = vset.pattern.permute.xlu0 0
  %5826 = vperm.xlu0 %5825, %v5436
  %v5827 = vpop.permute.xlu0 %5826
  %5830 = vset.pattern.permute.xlu0 0
  %5831 = vperm.xlu0 %5830, %v5438
  %v5832 = vpop.permute.xlu0 %5831
  %5835 = vset.pattern.permute.xlu0 0
  %5836 = vperm.xlu0 %5835, %v5440
  %v5837 = vpop.permute.xlu0 %5836
  %v5839 = vmul.f32 %v5762, %v5743
  %v5840 = vmul.f32 %v5767, %v5744
  %v5841 = vmul.f32 %v5772, %v5745
  %v5842 = vmul.f32 %v5777, %v5746
  %v5843 = vmul.f32 %v5782, %v5747
  %v5844 = vmul.f32 %v5787, %v5748
  %v5845 = vmul.f32 %v5792, %v5749
  %v5846 = vmul.f32 %v5797, %v5750
  %v5847 = vmul.f32 %v5802, %v5751
  %v5848 = vmul.f32 %v5807, %v5752
  %v5849 = vmul.f32 %v5812, %v5753
  %v5850 = vmul.f32 %v5817, %v5754
  %v5851 = vmul.f32 %v5822, %v5755
  %v5852 = vmul.f32 %v5827, %v5756
  %v5853 = vmul.f32 %v5832, %v5757
  %v5854 = vmul.f32 %v5837, %v5758
  %v5855 = vld [vmem:[%s2] sm:$0xff]
  %v5856 = vld [vmem:[%s2 + $0x8] sm:$0xff]
  %v5857 = vld [vmem:[%s2 + $0x10] sm:$0xff]
  %v5858 = vld [vmem:[%s2 + $0x18] sm:$0xff]
  %v5859 = vld [vmem:[%s2 + $0x20] sm:$0xff]
  %v5860 = vld [vmem:[%s2 + $0x28] sm:$0xff]
  %v5861 = vld [vmem:[%s2 + $0x30] sm:$0xff]
  %v5862 = vld [vmem:[%s2 + $0x38] sm:$0xff]
  %v5863 = vld [vmem:[%s2 + $0x40] sm:$0xff]
  %v5864 = vld [vmem:[%s2 + $0x48] sm:$0xff]
  %v5865 = vld [vmem:[%s2 + $0x50] sm:$0xff]
  %v5866 = vld [vmem:[%s2 + $0x58] sm:$0xff]
  %v5867 = vld [vmem:[%s2 + $0x60] sm:$0xff]
  %v5868 = vld [vmem:[%s2 + $0x68] sm:$0xff]
  %v5869 = vld [vmem:[%s2 + $0x70] sm:$0xff]
  %v5870 = vld [vmem:[%s2 + $0x78] sm:$0xff]
  %v5871 = vpack.c.bf16 %v5856, %v5855
  %v5872 = vpack.c.bf16 %v5858, %v5857
  %v5873 = vpack.c.bf16 %v5860, %v5859
  %v5874 = vpack.c.bf16 %v5862, %v5861
  %v5875 = vpack.c.bf16 %v5864, %v5863
  %v5876 = vpack.c.bf16 %v5866, %v5865
  %v5877 = vpack.c.bf16 %v5868, %v5867
  %v5878 = vpack.c.bf16 %v5870, %v5869
  %5887 = vrot.lane.b32.xlu0 %v5871, 112
  %v5888 = vpop.permute.xlu0 %5887
  %5889 = vrot.lane.b32.xlu0 %v5872, 112
  %v5890 = vpop.permute.xlu0 %5889
  %5891 = vrot.lane.b32.xlu0 %v5873, 112
  %v5892 = vpop.permute.xlu0 %5891
  %5893 = vrot.lane.b32.xlu0 %v5874, 112
  %v5894 = vpop.permute.xlu0 %5893
  %5895 = vrot.lane.b32.xlu0 %v5875, 112
  %v5896 = vpop.permute.xlu0 %5895
  %5897 = vrot.lane.b32.xlu0 %v5876, 112
  %v5898 = vpop.permute.xlu0 %5897
  %5899 = vrot.lane.b32.xlu0 %v5877, 112
  %v5900 = vpop.permute.xlu0 %5899
  %5901 = vrot.lane.b32.xlu0 %v5878, 112
  %v5902 = vpop.permute.xlu0 %5901
  %5911 = vmatprep.subr.bf16.mxu0 0
  %5912 = vmatpush1.bf16.msra.mxu0 %v5902
  %5913 = vmatprep.subr.bf16.mxu0 0
  %5914 = vmatpush1.bf16.msra.mxu0 %v5900
  %5915 = vmatprep.subr.bf16.mxu0 0
  %5916 = vmatpush1.bf16.msra.mxu0 %v5898
  %5917 = vmatprep.subr.bf16.mxu0 0
  %5918 = vmatpush1.bf16.msra.mxu0 %v5896
  %5919 = vmatprep.subr.bf16.mxu0 0
  %5920 = vmatpush1.bf16.msra.mxu0 %v5894
  %5921 = vmatprep.subr.bf16.mxu0 0
  %5922 = vmatpush1.bf16.msra.mxu0 %v5892
  %5923 = vmatprep.subr.bf16.mxu0 0
  %5924 = vmatpush1.bf16.msra.mxu0 %v5890
  %5925 = vmatprep.subr.bf16.mxu0 0
  %5926 = vmatpush1.bf16.msra.mxu0 %v5888
  %5927 = vmatprep.subr.bf16.mxu0 0
  %5928 = vmatpush2.bf16.msra.mxu0 0
  %5929 = vmatprep.subr.bf16.mxu0 0
  %5930 = vmatpush2.bf16.msra.mxu0 0
  %5931 = vmatprep.subr.bf16.mxu0 0
  %5932 = vmatpush2.bf16.msra.mxu0 0
  %5933 = vmatprep.subr.bf16.mxu0 0
  %5934 = vmatpush2.bf16.msra.mxu0 0
  %5935 = vmatprep.subr.bf16.mxu0 0
  %5936 = vmatpush2.bf16.msra.mxu0 0
  %5937 = vmatprep.subr.bf16.mxu0 0
  %5938 = vmatpush2.bf16.msra.mxu0 0
  %5939 = vmatprep.subr.bf16.mxu0 0
  %5940 = vmatpush2.bf16.msra.mxu0 0
  %5941 = vmatprep.subr.bf16.mxu0 0
  %5942 = vmatpush2.bf16.msra.mxu0 0
  %5943 = vmatprep.mubr.bf16.mxu0 0
  %5944 = vmatmul.mubr.bf16.gmra.mxu0 %v5621
  %v5945 = vpop.f32.mrf.mxu0
  %v5946 = vadd.f32 0.0, %v5945
  %v5947 = vpop.f32.mrf.mxu0
  %v5948 = vpop.f32.mrf.mxu0
  %v5949 = vadd.f32 0.0, %v5948
  %v5950 = vpop.f32.mrf.mxu0
  %5951 = vmatprep.mubr.bf16.mxu0 0
  %5952 = vmatmul.mubr.bf16.gmra.mxu0 %v5622
  %v5953 = vpop.f32.mrf.mxu0
  %v5954 = vadd.f32 0.0, %v5953
  %v5955 = vpop.f32.mrf.mxu0
  %v5956 = vpop.f32.mrf.mxu0
  %v5957 = vadd.f32 0.0, %v5956
  %v5958 = vpop.f32.mrf.mxu0
  %5959 = vmatprep.mubr.bf16.mxu0 0
  %5960 = vmatmul.mubr.bf16.gmra.mxu0 %v5623
  %v5961 = vpop.f32.mrf.mxu0
  %v5962 = vadd.f32 0.0, %v5961
  %v5963 = vpop.f32.mrf.mxu0
  %v5964 = vpop.f32.mrf.mxu0
  %v5965 = vadd.f32 0.0, %v5964
  %v5966 = vpop.f32.mrf.mxu0
  %5967 = vmatprep.mubr.bf16.mxu0 0
  %5968 = vmatmul.mubr.bf16.gmra.mxu0 %v5624
  %v5969 = vpop.f32.mrf.mxu0
  %v5970 = vadd.f32 0.0, %v5969
  %v5971 = vpop.f32.mrf.mxu0
  %v5972 = vpop.f32.mrf.mxu0
  %v5973 = vadd.f32 0.0, %v5972
  %v5974 = vpop.f32.mrf.mxu0
  %5975 = vmatprep.mubr.bf16.mxu0 0
  %5976 = vmatmul.mubr.bf16.gmra.mxu0 %v5625
  %v5977 = vpop.f32.mrf.mxu0
  %v5978 = vadd.f32 0.0, %v5977
  %v5979 = vpop.f32.mrf.mxu0
  %v5980 = vpop.f32.mrf.mxu0
  %v5981 = vadd.f32 0.0, %v5980
  %v5982 = vpop.f32.mrf.mxu0
  %5983 = vmatprep.mubr.bf16.mxu0 0
  %5984 = vmatmul.mubr.bf16.gmra.mxu0 %v5626
  %v5985 = vpop.f32.mrf.mxu0
  %v5986 = vadd.f32 0.0, %v5985
  %v5987 = vpop.f32.mrf.mxu0
  %v5988 = vpop.f32.mrf.mxu0
  %v5989 = vadd.f32 0.0, %v5988
  %v5990 = vpop.f32.mrf.mxu0
  %5991 = vmatprep.mubr.bf16.mxu0 0
  %5992 = vmatmul.mubr.bf16.gmra.mxu0 %v5627
  %v5993 = vpop.f32.mrf.mxu0
  %v5994 = vadd.f32 0.0, %v5993
  %v5995 = vpop.f32.mrf.mxu0
  %v5996 = vpop.f32.mrf.mxu0
  %v5997 = vadd.f32 0.0, %v5996
  %v5998 = vpop.f32.mrf.mxu0
  %5999 = vmatprep.mubr.bf16.mxu0 0
  %6000 = vmatmul.mubr.bf16.gmra.mxu0 %v5628
  %v6001 = vpop.f32.mrf.mxu0
  %v6002 = vadd.f32 0.0, %v6001
  %v6003 = vpop.f32.mrf.mxu0
  %v6004 = vpop.f32.mrf.mxu0
  %v6005 = vadd.f32 0.0, %v6004
  %v6006 = vpop.f32.mrf.mxu0
  %6007 = vdwg.mxu0
  %v6008 = vadd.f32 %v5839, %v5946
  %v6009 = vadd.f32 %v5840, %v5949
  %v6010 = vadd.f32 %v5841, %v5954
  %v6011 = vadd.f32 %v5842, %v5957
  %v6012 = vadd.f32 %v5843, %v5962
  %v6013 = vadd.f32 %v5844, %v5965
  %v6014 = vadd.f32 %v5845, %v5970
  %v6015 = vadd.f32 %v5846, %v5973
  %v6016 = vadd.f32 %v5847, %v5978
  %v6017 = vadd.f32 %v5848, %v5981
  %v6018 = vadd.f32 %v5849, %v5986
  %v6019 = vadd.f32 %v5850, %v5989
  %v6020 = vadd.f32 %v5851, %v5994
  %v6021 = vadd.f32 %v5852, %v5997
  %v6022 = vadd.f32 %v5853, %v6002
  %v6023 = vadd.f32 %v5854, %v6005
  %6024 = vst.msk [vmem:[%s5742] sm:$0xff] %vm2135, %v6008
  %6025 = vst.msk [vmem:[%s5742 + $0x8] sm:$0xff] %vm2135, %v6009
  %6026 = vst.msk [vmem:[%s5742 + $0x10] sm:$0xff] %vm2135, %v6010
  %6027 = vst.msk [vmem:[%s5742 + $0x18] sm:$0xff] %vm2135, %v6011
  %6028 = vst.msk [vmem:[%s5742 + $0x20] sm:$0xff] %vm2135, %v6012
  %6029 = vst.msk [vmem:[%s5742 + $0x28] sm:$0xff] %vm2135, %v6013
  %6030 = vst.msk [vmem:[%s5742 + $0x30] sm:$0xff] %vm2135, %v6014
  %6031 = vst.msk [vmem:[%s5742 + $0x38] sm:$0xff] %vm2135, %v6015
  %6032 = vst.msk [vmem:[%s5742 + $0x40] sm:$0xff] %vm2135, %v6016
  %6033 = vst.msk [vmem:[%s5742 + $0x48] sm:$0xff] %vm2135, %v6017
  %6034 = vst.msk [vmem:[%s5742 + $0x50] sm:$0xff] %vm2135, %v6018
  %6035 = vst.msk [vmem:[%s5742 + $0x58] sm:$0xff] %vm2135, %v6019
  %6036 = vst.msk [vmem:[%s5742 + $0x60] sm:$0xff] %vm2135, %v6020
  %6037 = vst.msk [vmem:[%s5742 + $0x68] sm:$0xff] %vm2135, %v6021
  %6038 = vst.msk [vmem:[%s5742 + $0x70] sm:$0xff] %vm2135, %v6022
  %6039 = vst.msk [vmem:[%s5742 + $0x78] sm:$0xff] %vm2135, %v6023
  %6040 = vst.msk [vmem:[%s5328] sm:$0xff] %vm1869, %v5377
  %6041 = vst.msk [vmem:[%s5328 + $0x8] sm:$0xff] %vm1869, %v5378
  %6042 = vst.msk [vmem:[%s5328 + $0x10] sm:$0xff] %vm1869, %v5379
  %6043 = vst.msk [vmem:[%s5328 + $0x18] sm:$0xff] %vm1869, %v5380
  %6044 = vst.msk [vmem:[%s5328 + $0x20] sm:$0xff] %vm1869, %v5381
  %6045 = vst.msk [vmem:[%s5328 + $0x28] sm:$0xff] %vm1869, %v5382
  %6046 = vst.msk [vmem:[%s5328 + $0x30] sm:$0xff] %vm1869, %v5383
  %6047 = vst.msk [vmem:[%s5328 + $0x38] sm:$0xff] %vm1869, %v5384
  %6048 = vst.msk [vmem:[%s5328 + $0x40] sm:$0xff] %vm1869, %v5385
  %6049 = vst.msk [vmem:[%s5328 + $0x48] sm:$0xff] %vm1869, %v5386
  %6050 = vst.msk [vmem:[%s5328 + $0x50] sm:$0xff] %vm1869, %v5387
  %6051 = vst.msk [vmem:[%s5328 + $0x58] sm:$0xff] %vm1869, %v5388
  %6052 = vst.msk [vmem:[%s5328 + $0x60] sm:$0xff] %vm1869, %v5389
  %6053 = vst.msk [vmem:[%s5328 + $0x68] sm:$0xff] %vm1869, %v5390
  %6054 = vst.msk [vmem:[%s5328 + $0x70] sm:$0xff] %vm1869, %v5391
  %6055 = vst.msk [vmem:[%s5328 + $0x78] sm:$0xff] %vm1869, %v5392
  %s6056 = scalar_lea.vmem %s0, 24
  %v6057 = vld [vmem:[%s6056] sm:$0xff]
  %v6058 = vld [vmem:[%s1] sm:$0xff]
  %v6059 = vld [vmem:[%s1 + $0x8] sm:$0xff]
  %v6060 = vld [vmem:[%s1 + $0x10] sm:$0xff]
  %v6061 = vld [vmem:[%s1 + $0x18] sm:$0xff]
  %v6062 = vld [vmem:[%s1 + $0x20] sm:$0xff]
  %v6063 = vld [vmem:[%s1 + $0x28] sm:$0xff]
  %v6064 = vld [vmem:[%s1 + $0x30] sm:$0xff]
  %v6065 = vld [vmem:[%s1 + $0x38] sm:$0xff]
  %v6066 = vld [vmem:[%s1 + $0x40] sm:$0xff]
  %v6067 = vld [vmem:[%s1 + $0x48] sm:$0xff]
  %v6068 = vld [vmem:[%s1 + $0x50] sm:$0xff]
  %v6069 = vld [vmem:[%s1 + $0x58] sm:$0xff]
  %v6070 = vld [vmem:[%s1 + $0x60] sm:$0xff]
  %v6071 = vld [vmem:[%s1 + $0x68] sm:$0xff]
  %v6072 = vld [vmem:[%s1 + $0x70] sm:$0xff]
  %v6073 = vld [vmem:[%s1 + $0x78] sm:$0xff]
  %s6074 = scalar_lea.vmem %s6, 96
  %v6075 = vld [vmem:[%s6074] sm:$0xff]
  %v6076 = vld [vmem:[%s6074 + $0x8] sm:$0xff]
  %v6077 = vld [vmem:[%s6074 + $0x10] sm:$0xff]
  %v6078 = vld [vmem:[%s6074 + $0x18] sm:$0xff]
  %s6079 = scalar_lea.vmem %s4, 384
  %v6080 = vld [vmem:[%s6079] sm:$0xff]
  %v6081 = vld [vmem:[%s6079 + $0x8] sm:$0xff]
  %v6082 = vld [vmem:[%s6079 + $0x10] sm:$0xff]
  %v6083 = vld [vmem:[%s6079 + $0x18] sm:$0xff]
  %v6084 = vld [vmem:[%s6079 + $0x20] sm:$0xff]
  %v6085 = vld [vmem:[%s6079 + $0x28] sm:$0xff]
  %v6086 = vld [vmem:[%s6079 + $0x30] sm:$0xff]
  %v6087 = vld [vmem:[%s6079 + $0x38] sm:$0xff]
  %v6088 = vld [vmem:[%s6079 + $0x40] sm:$0xff]
  %v6089 = vld [vmem:[%s6079 + $0x48] sm:$0xff]
  %v6090 = vld [vmem:[%s6079 + $0x50] sm:$0xff]
  %v6091 = vld [vmem:[%s6079 + $0x58] sm:$0xff]
  %v6092 = vld [vmem:[%s6079 + $0x60] sm:$0xff]
  %v6093 = vld [vmem:[%s6079 + $0x68] sm:$0xff]
  %v6094 = vld [vmem:[%s6079 + $0x70] sm:$0xff]
  %v6095 = vld [vmem:[%s6079 + $0x78] sm:$0xff]
  %s6096 = scalar_lea.vmem %s3, 3
  %v6097 = vld [vmem:[%s6096] sm:$0x1]
  %6099 = vset.pattern.permute.xlu0 0
  %6100 = vperm.xlu0 %6099, %v6080
  %v6101 = vpop.permute.xlu0 %6100
  %6104 = vset.pattern.permute.xlu0 0
  %6105 = vperm.xlu0 %6104, %v6081
  %v6106 = vpop.permute.xlu0 %6105
  %6109 = vset.pattern.permute.xlu0 0
  %6110 = vperm.xlu0 %6109, %v6082
  %v6111 = vpop.permute.xlu0 %6110
  %6114 = vset.pattern.permute.xlu0 0
  %6115 = vperm.xlu0 %6114, %v6083
  %v6116 = vpop.permute.xlu0 %6115
  %6119 = vset.pattern.permute.xlu0 0
  %6120 = vperm.xlu0 %6119, %v6084
  %v6121 = vpop.permute.xlu0 %6120
  %6124 = vset.pattern.permute.xlu0 0
  %6125 = vperm.xlu0 %6124, %v6085
  %v6126 = vpop.permute.xlu0 %6125
  %6129 = vset.pattern.permute.xlu0 0
  %6130 = vperm.xlu0 %6129, %v6086
  %v6131 = vpop.permute.xlu0 %6130
  %6134 = vset.pattern.permute.xlu0 0
  %6135 = vperm.xlu0 %6134, %v6087
  %v6136 = vpop.permute.xlu0 %6135
  %6139 = vset.pattern.permute.xlu0 0
  %6140 = vperm.xlu0 %6139, %v6088
  %v6141 = vpop.permute.xlu0 %6140
  %6144 = vset.pattern.permute.xlu0 0
  %6145 = vperm.xlu0 %6144, %v6089
  %v6146 = vpop.permute.xlu0 %6145
  %6149 = vset.pattern.permute.xlu0 0
  %6150 = vperm.xlu0 %6149, %v6090
  %v6151 = vpop.permute.xlu0 %6150
  %6154 = vset.pattern.permute.xlu0 0
  %6155 = vperm.xlu0 %6154, %v6091
  %v6156 = vpop.permute.xlu0 %6155
  %6159 = vset.pattern.permute.xlu0 0
  %6160 = vperm.xlu0 %6159, %v6092
  %v6161 = vpop.permute.xlu0 %6160
  %6164 = vset.pattern.permute.xlu0 0
  %6165 = vperm.xlu0 %6164, %v6093
  %v6166 = vpop.permute.xlu0 %6165
  %6169 = vset.pattern.permute.xlu0 0
  %6170 = vperm.xlu0 %6169, %v6094
  %v6171 = vpop.permute.xlu0 %6170
  %6174 = vset.pattern.permute.xlu0 0
  %6175 = vperm.xlu0 %6174, %v6095
  %v6176 = vpop.permute.xlu0 %6175
  %v6179 = vlaneseq
  %v6180 = vshrl.u32 %v6179, 7
  %v6181 = vsub.s32 0, %v6180
  %v6182 = vrot.slane %v6097, %v6181
  %v6184 = vadd.f32 %v6101, %v6182
  %v6185 = vadd.f32 %v6106, %v6182
  %v6186 = vadd.f32 %v6111, %v6182
  %v6187 = vadd.f32 %v6116, %v6182
  %v6188 = vadd.f32 %v6121, %v6182
  %v6189 = vadd.f32 %v6126, %v6182
  %v6190 = vadd.f32 %v6131, %v6182
  %v6191 = vadd.f32 %v6136, %v6182
  %v6192 = vadd.f32 %v6141, %v6182
  %v6193 = vadd.f32 %v6146, %v6182
  %v6194 = vadd.f32 %v6151, %v6182
  %v6195 = vadd.f32 %v6156, %v6182
  %v6196 = vadd.f32 %v6161, %v6182
  %v6197 = vadd.f32 %v6166, %v6182
  %v6198 = vadd.f32 %v6171, %v6182
  %v6199 = vadd.f32 %v6176, %v6182
  %v6200 = vlaneseq
  %v6201 = vshrl.u32 %v6200, 7
  %v6202 = vsub.s32 0, %v6201
  %v6203 = vrot.slane %v6057, %v6202
  %6205 = vset.pattern.permute.xlu0 24
  %6206 = vperm.xlu0 %6205, %v6058
  %v6207 = vpop.permute.xlu0 %6206
  %6210 = vset.pattern.permute.xlu0 24
  %6211 = vperm.xlu0 %6210, %v6059
  %v6212 = vpop.permute.xlu0 %6211
  %6215 = vset.pattern.permute.xlu0 24
  %6216 = vperm.xlu0 %6215, %v6060
  %v6217 = vpop.permute.xlu0 %6216
  %6220 = vset.pattern.permute.xlu0 24
  %6221 = vperm.xlu0 %6220, %v6061
  %v6222 = vpop.permute.xlu0 %6221
  %6225 = vset.pattern.permute.xlu0 24
  %6226 = vperm.xlu0 %6225, %v6062
  %v6227 = vpop.permute.xlu0 %6226
  %6230 = vset.pattern.permute.xlu0 24
  %6231 = vperm.xlu0 %6230, %v6063
  %v6232 = vpop.permute.xlu0 %6231
  %6235 = vset.pattern.permute.xlu0 24
  %6236 = vperm.xlu0 %6235, %v6064
  %v6237 = vpop.permute.xlu0 %6236
  %6240 = vset.pattern.permute.xlu0 24
  %6241 = vperm.xlu0 %6240, %v6065
  %v6242 = vpop.permute.xlu0 %6241
  %6245 = vset.pattern.permute.xlu0 24
  %6246 = vperm.xlu0 %6245, %v6066
  %v6247 = vpop.permute.xlu0 %6246
  %6250 = vset.pattern.permute.xlu0 24
  %6251 = vperm.xlu0 %6250, %v6067
  %v6252 = vpop.permute.xlu0 %6251
  %6255 = vset.pattern.permute.xlu0 24
  %6256 = vperm.xlu0 %6255, %v6068
  %v6257 = vpop.permute.xlu0 %6256
  %6260 = vset.pattern.permute.xlu0 24
  %6261 = vperm.xlu0 %6260, %v6069
  %v6262 = vpop.permute.xlu0 %6261
  %6265 = vset.pattern.permute.xlu0 24
  %6266 = vperm.xlu0 %6265, %v6070
  %v6267 = vpop.permute.xlu0 %6266
  %6270 = vset.pattern.permute.xlu0 24
  %6271 = vperm.xlu0 %6270, %v6071
  %v6272 = vpop.permute.xlu0 %6271
  %6275 = vset.pattern.permute.xlu0 24
  %6276 = vperm.xlu0 %6275, %v6072
  %v6277 = vpop.permute.xlu0 %6276
  %6280 = vset.pattern.permute.xlu0 24
  %6281 = vperm.xlu0 %6280, %v6073
  %v6282 = vpop.permute.xlu0 %6281
  %v6284 = vadd.f32 %v6203, %v6207
  %v6285 = vadd.f32 %v6203, %v6212
  %v6286 = vadd.f32 %v6203, %v6217
  %v6287 = vadd.f32 %v6203, %v6222
  %v6288 = vadd.f32 %v6203, %v6227
  %v6289 = vadd.f32 %v6203, %v6232
  %v6290 = vadd.f32 %v6203, %v6237
  %v6291 = vadd.f32 %v6203, %v6242
  %v6292 = vadd.f32 %v6203, %v6247
  %v6293 = vadd.f32 %v6203, %v6252
  %v6294 = vadd.f32 %v6203, %v6257
  %v6295 = vadd.f32 %v6203, %v6262
  %v6296 = vadd.f32 %v6203, %v6267
  %v6297 = vadd.f32 %v6203, %v6272
  %v6298 = vadd.f32 %v6203, %v6277
  %v6299 = vadd.f32 %v6203, %v6282
  %v6300 = vand.u32 2147483647, %v6284
  %v6301 = vand.u32 2147483647, %v6285
  %v6302 = vand.u32 2147483647, %v6286
  %v6303 = vand.u32 2147483647, %v6287
  %v6304 = vand.u32 2147483647, %v6288
  %v6305 = vand.u32 2147483647, %v6289
  %v6306 = vand.u32 2147483647, %v6290
  %v6307 = vand.u32 2147483647, %v6291
  %v6308 = vand.u32 2147483647, %v6292
  %v6309 = vand.u32 2147483647, %v6293
  %v6310 = vand.u32 2147483647, %v6294
  %v6311 = vand.u32 2147483647, %v6295
  %v6312 = vand.u32 2147483647, %v6296
  %v6313 = vand.u32 2147483647, %v6297
  %v6314 = vand.u32 2147483647, %v6298
  %v6315 = vand.u32 2147483647, %v6299
  %v6316 = vmul.f32 %v487, %v6300
  %v6317 = vmul.f32 %v487, %v6301
  %v6318 = vmul.f32 %v487, %v6302
  %v6319 = vmul.f32 %v487, %v6303
  %v6320 = vmul.f32 %v487, %v6304
  %v6321 = vmul.f32 %v487, %v6305
  %v6322 = vmul.f32 %v487, %v6306
  %v6323 = vmul.f32 %v487, %v6307
  %v6324 = vmul.f32 %v487, %v6308
  %v6325 = vmul.f32 %v487, %v6309
  %v6326 = vmul.f32 %v487, %v6310
  %v6327 = vmul.f32 %v487, %v6311
  %v6328 = vmul.f32 %v487, %v6312
  %v6329 = vmul.f32 %v487, %v6313
  %v6330 = vmul.f32 %v487, %v6314
  %v6331 = vmul.f32 %v487, %v6315
  %v6332 = vadd.f32 %v6184, %v6316
  %v6333 = vadd.f32 %v6185, %v6317
  %v6334 = vadd.f32 %v6186, %v6318
  %v6335 = vadd.f32 %v6187, %v6319
  %v6336 = vadd.f32 %v6188, %v6320
  %v6337 = vadd.f32 %v6189, %v6321
  %v6338 = vadd.f32 %v6190, %v6322
  %v6339 = vadd.f32 %v6191, %v6323
  %v6340 = vadd.f32 %v6192, %v6324
  %v6341 = vadd.f32 %v6193, %v6325
  %v6342 = vadd.f32 %v6194, %v6326
  %v6343 = vadd.f32 %v6195, %v6327
  %v6344 = vadd.f32 %v6196, %v6328
  %v6345 = vadd.f32 %v6197, %v6329
  %v6346 = vadd.f32 %v6198, %v6330
  %v6347 = vadd.f32 %v6199, %v6331
  %v6348 = vlaneseq
  %v6349 = vshrl.u32 %v6348, 7
  %v6350 = vsub.s32 1, %v6349
  %v6351 = vrot.slane %v6057, %v6350
  %6352 = vset.pattern.permute.xlu0 25
  %6353 = vperm.xlu0 %6352, %v6058
  %v6354 = vpop.permute.xlu0 %6353
  %6356 = vset.pattern.permute.xlu0 25
  %6357 = vperm.xlu0 %6356, %v6059
  %v6358 = vpop.permute.xlu0 %6357
  %6360 = vset.pattern.permute.xlu0 25
  %6361 = vperm.xlu0 %6360, %v6060
  %v6362 = vpop.permute.xlu0 %6361
  %6364 = vset.pattern.permute.xlu0 25
  %6365 = vperm.xlu0 %6364, %v6061
  %v6366 = vpop.permute.xlu0 %6365
  %6368 = vset.pattern.permute.xlu0 25
  %6369 = vperm.xlu0 %6368, %v6062
  %v6370 = vpop.permute.xlu0 %6369
  %6372 = vset.pattern.permute.xlu0 25
  %6373 = vperm.xlu0 %6372, %v6063
  %v6374 = vpop.permute.xlu0 %6373
  %6376 = vset.pattern.permute.xlu0 25
  %6377 = vperm.xlu0 %6376, %v6064
  %v6378 = vpop.permute.xlu0 %6377
  %6380 = vset.pattern.permute.xlu0 25
  %6381 = vperm.xlu0 %6380, %v6065
  %v6382 = vpop.permute.xlu0 %6381
  %6384 = vset.pattern.permute.xlu0 25
  %6385 = vperm.xlu0 %6384, %v6066
  %v6386 = vpop.permute.xlu0 %6385
  %6388 = vset.pattern.permute.xlu0 25
  %6389 = vperm.xlu0 %6388, %v6067
  %v6390 = vpop.permute.xlu0 %6389
  %6392 = vset.pattern.permute.xlu0 25
  %6393 = vperm.xlu0 %6392, %v6068
  %v6394 = vpop.permute.xlu0 %6393
  %6396 = vset.pattern.permute.xlu0 25
  %6397 = vperm.xlu0 %6396, %v6069
  %v6398 = vpop.permute.xlu0 %6397
  %6400 = vset.pattern.permute.xlu0 25
  %6401 = vperm.xlu0 %6400, %v6070
  %v6402 = vpop.permute.xlu0 %6401
  %6404 = vset.pattern.permute.xlu0 25
  %6405 = vperm.xlu0 %6404, %v6071
  %v6406 = vpop.permute.xlu0 %6405
  %6408 = vset.pattern.permute.xlu0 25
  %6409 = vperm.xlu0 %6408, %v6072
  %v6410 = vpop.permute.xlu0 %6409
  %6412 = vset.pattern.permute.xlu0 25
  %6413 = vperm.xlu0 %6412, %v6073
  %v6414 = vpop.permute.xlu0 %6413
  %v6416 = vadd.f32 %v6351, %v6354
  %v6417 = vadd.f32 %v6351, %v6358
  %v6418 = vadd.f32 %v6351, %v6362
  %v6419 = vadd.f32 %v6351, %v6366
  %v6420 = vadd.f32 %v6351, %v6370
  %v6421 = vadd.f32 %v6351, %v6374
  %v6422 = vadd.f32 %v6351, %v6378
  %v6423 = vadd.f32 %v6351, %v6382
  %v6424 = vadd.f32 %v6351, %v6386
  %v6425 = vadd.f32 %v6351, %v6390
  %v6426 = vadd.f32 %v6351, %v6394
  %v6427 = vadd.f32 %v6351, %v6398
  %v6428 = vadd.f32 %v6351, %v6402
  %v6429 = vadd.f32 %v6351, %v6406
  %v6430 = vadd.f32 %v6351, %v6410
  %v6431 = vadd.f32 %v6351, %v6414
  %v6432 = vand.u32 2147483647, %v6416
  %v6433 = vand.u32 2147483647, %v6417
  %v6434 = vand.u32 2147483647, %v6418
  %v6435 = vand.u32 2147483647, %v6419
  %v6436 = vand.u32 2147483647, %v6420
  %v6437 = vand.u32 2147483647, %v6421
  %v6438 = vand.u32 2147483647, %v6422
  %v6439 = vand.u32 2147483647, %v6423
  %v6440 = vand.u32 2147483647, %v6424
  %v6441 = vand.u32 2147483647, %v6425
  %v6442 = vand.u32 2147483647, %v6426
  %v6443 = vand.u32 2147483647, %v6427
  %v6444 = vand.u32 2147483647, %v6428
  %v6445 = vand.u32 2147483647, %v6429
  %v6446 = vand.u32 2147483647, %v6430
  %v6447 = vand.u32 2147483647, %v6431
  %v6448 = vmul.f32 %v623, %v6432
  %v6449 = vmul.f32 %v623, %v6433
  %v6450 = vmul.f32 %v623, %v6434
  %v6451 = vmul.f32 %v623, %v6435
  %v6452 = vmul.f32 %v623, %v6436
  %v6453 = vmul.f32 %v623, %v6437
  %v6454 = vmul.f32 %v623, %v6438
  %v6455 = vmul.f32 %v623, %v6439
  %v6456 = vmul.f32 %v623, %v6440
  %v6457 = vmul.f32 %v623, %v6441
  %v6458 = vmul.f32 %v623, %v6442
  %v6459 = vmul.f32 %v623, %v6443
  %v6460 = vmul.f32 %v623, %v6444
  %v6461 = vmul.f32 %v623, %v6445
  %v6462 = vmul.f32 %v623, %v6446
  %v6463 = vmul.f32 %v623, %v6447
  %v6464 = vadd.f32 %v6332, %v6448
  %v6465 = vadd.f32 %v6333, %v6449
  %v6466 = vadd.f32 %v6334, %v6450
  %v6467 = vadd.f32 %v6335, %v6451
  %v6468 = vadd.f32 %v6336, %v6452
  %v6469 = vadd.f32 %v6337, %v6453
  %v6470 = vadd.f32 %v6338, %v6454
  %v6471 = vadd.f32 %v6339, %v6455
  %v6472 = vadd.f32 %v6340, %v6456
  %v6473 = vadd.f32 %v6341, %v6457
  %v6474 = vadd.f32 %v6342, %v6458
  %v6475 = vadd.f32 %v6343, %v6459
  %v6476 = vadd.f32 %v6344, %v6460
  %v6477 = vadd.f32 %v6345, %v6461
  %v6478 = vadd.f32 %v6346, %v6462
  %v6479 = vadd.f32 %v6347, %v6463
  %v6480 = vlaneseq
  %v6481 = vshrl.u32 %v6480, 7
  %v6482 = vsub.s32 2, %v6481
  %v6483 = vrot.slane %v6057, %v6482
  %6484 = vset.pattern.permute.xlu0 26
  %6485 = vperm.xlu0 %6484, %v6058
  %v6486 = vpop.permute.xlu0 %6485
  %6488 = vset.pattern.permute.xlu0 26
  %6489 = vperm.xlu0 %6488, %v6059
  %v6490 = vpop.permute.xlu0 %6489
  %6492 = vset.pattern.permute.xlu0 26
  %6493 = vperm.xlu0 %6492, %v6060
  %v6494 = vpop.permute.xlu0 %6493
  %6496 = vset.pattern.permute.xlu0 26
  %6497 = vperm.xlu0 %6496, %v6061
  %v6498 = vpop.permute.xlu0 %6497
  %6500 = vset.pattern.permute.xlu0 26
  %6501 = vperm.xlu0 %6500, %v6062
  %v6502 = vpop.permute.xlu0 %6501
  %6504 = vset.pattern.permute.xlu0 26
  %6505 = vperm.xlu0 %6504, %v6063
  %v6506 = vpop.permute.xlu0 %6505
  %6508 = vset.pattern.permute.xlu0 26
  %6509 = vperm.xlu0 %6508, %v6064
  %v6510 = vpop.permute.xlu0 %6509
  %6512 = vset.pattern.permute.xlu0 26
  %6513 = vperm.xlu0 %6512, %v6065
  %v6514 = vpop.permute.xlu0 %6513
  %6516 = vset.pattern.permute.xlu0 26
  %6517 = vperm.xlu0 %6516, %v6066
  %v6518 = vpop.permute.xlu0 %6517
  %6520 = vset.pattern.permute.xlu0 26
  %6521 = vperm.xlu0 %6520, %v6067
  %v6522 = vpop.permute.xlu0 %6521
  %6524 = vset.pattern.permute.xlu0 26
  %6525 = vperm.xlu0 %6524, %v6068
  %v6526 = vpop.permute.xlu0 %6525
  %6528 = vset.pattern.permute.xlu0 26
  %6529 = vperm.xlu0 %6528, %v6069
  %v6530 = vpop.permute.xlu0 %6529
  %6532 = vset.pattern.permute.xlu0 26
  %6533 = vperm.xlu0 %6532, %v6070
  %v6534 = vpop.permute.xlu0 %6533
  %6536 = vset.pattern.permute.xlu0 26
  %6537 = vperm.xlu0 %6536, %v6071
  %v6538 = vpop.permute.xlu0 %6537
  %6540 = vset.pattern.permute.xlu0 26
  %6541 = vperm.xlu0 %6540, %v6072
  %v6542 = vpop.permute.xlu0 %6541
  %6544 = vset.pattern.permute.xlu0 26
  %6545 = vperm.xlu0 %6544, %v6073
  %v6546 = vpop.permute.xlu0 %6545
  %v6548 = vadd.f32 %v6483, %v6486
  %v6549 = vadd.f32 %v6483, %v6490
  %v6550 = vadd.f32 %v6483, %v6494
  %v6551 = vadd.f32 %v6483, %v6498
  %v6552 = vadd.f32 %v6483, %v6502
  %v6553 = vadd.f32 %v6483, %v6506
  %v6554 = vadd.f32 %v6483, %v6510
  %v6555 = vadd.f32 %v6483, %v6514
  %v6556 = vadd.f32 %v6483, %v6518
  %v6557 = vadd.f32 %v6483, %v6522
  %v6558 = vadd.f32 %v6483, %v6526
  %v6559 = vadd.f32 %v6483, %v6530
  %v6560 = vadd.f32 %v6483, %v6534
  %v6561 = vadd.f32 %v6483, %v6538
  %v6562 = vadd.f32 %v6483, %v6542
  %v6563 = vadd.f32 %v6483, %v6546
  %v6564 = vand.u32 2147483647, %v6548
  %v6565 = vand.u32 2147483647, %v6549
  %v6566 = vand.u32 2147483647, %v6550
  %v6567 = vand.u32 2147483647, %v6551
  %v6568 = vand.u32 2147483647, %v6552
  %v6569 = vand.u32 2147483647, %v6553
  %v6570 = vand.u32 2147483647, %v6554
  %v6571 = vand.u32 2147483647, %v6555
  %v6572 = vand.u32 2147483647, %v6556
  %v6573 = vand.u32 2147483647, %v6557
  %v6574 = vand.u32 2147483647, %v6558
  %v6575 = vand.u32 2147483647, %v6559
  %v6576 = vand.u32 2147483647, %v6560
  %v6577 = vand.u32 2147483647, %v6561
  %v6578 = vand.u32 2147483647, %v6562
  %v6579 = vand.u32 2147483647, %v6563
  %v6580 = vmul.f32 %v759, %v6564
  %v6581 = vmul.f32 %v759, %v6565
  %v6582 = vmul.f32 %v759, %v6566
  %v6583 = vmul.f32 %v759, %v6567
  %v6584 = vmul.f32 %v759, %v6568
  %v6585 = vmul.f32 %v759, %v6569
  %v6586 = vmul.f32 %v759, %v6570
  %v6587 = vmul.f32 %v759, %v6571
  %v6588 = vmul.f32 %v759, %v6572
  %v6589 = vmul.f32 %v759, %v6573
  %v6590 = vmul.f32 %v759, %v6574
  %v6591 = vmul.f32 %v759, %v6575
  %v6592 = vmul.f32 %v759, %v6576
  %v6593 = vmul.f32 %v759, %v6577
  %v6594 = vmul.f32 %v759, %v6578
  %v6595 = vmul.f32 %v759, %v6579
  %v6596 = vadd.f32 %v6464, %v6580
  %v6597 = vadd.f32 %v6465, %v6581
  %v6598 = vadd.f32 %v6466, %v6582
  %v6599 = vadd.f32 %v6467, %v6583
  %v6600 = vadd.f32 %v6468, %v6584
  %v6601 = vadd.f32 %v6469, %v6585
  %v6602 = vadd.f32 %v6470, %v6586
  %v6603 = vadd.f32 %v6471, %v6587
  %v6604 = vadd.f32 %v6472, %v6588
  %v6605 = vadd.f32 %v6473, %v6589
  %v6606 = vadd.f32 %v6474, %v6590
  %v6607 = vadd.f32 %v6475, %v6591
  %v6608 = vadd.f32 %v6476, %v6592
  %v6609 = vadd.f32 %v6477, %v6593
  %v6610 = vadd.f32 %v6478, %v6594
  %v6611 = vadd.f32 %v6479, %v6595
  %v6612 = vlaneseq
  %v6613 = vshrl.u32 %v6612, 7
  %v6614 = vsub.s32 3, %v6613
  %v6615 = vrot.slane %v6057, %v6614
  %6616 = vset.pattern.permute.xlu0 27
  %6617 = vperm.xlu0 %6616, %v6058
  %v6618 = vpop.permute.xlu0 %6617
  %6620 = vset.pattern.permute.xlu0 27
  %6621 = vperm.xlu0 %6620, %v6059
  %v6622 = vpop.permute.xlu0 %6621
  %6624 = vset.pattern.permute.xlu0 27
  %6625 = vperm.xlu0 %6624, %v6060
  %v6626 = vpop.permute.xlu0 %6625
  %6628 = vset.pattern.permute.xlu0 27
  %6629 = vperm.xlu0 %6628, %v6061
  %v6630 = vpop.permute.xlu0 %6629
  %6632 = vset.pattern.permute.xlu0 27
  %6633 = vperm.xlu0 %6632, %v6062
  %v6634 = vpop.permute.xlu0 %6633
  %6636 = vset.pattern.permute.xlu0 27
  %6637 = vperm.xlu0 %6636, %v6063
  %v6638 = vpop.permute.xlu0 %6637
  %6640 = vset.pattern.permute.xlu0 27
  %6641 = vperm.xlu0 %6640, %v6064
  %v6642 = vpop.permute.xlu0 %6641
  %6644 = vset.pattern.permute.xlu0 27
  %6645 = vperm.xlu0 %6644, %v6065
  %v6646 = vpop.permute.xlu0 %6645
  %6648 = vset.pattern.permute.xlu0 27
  %6649 = vperm.xlu0 %6648, %v6066
  %v6650 = vpop.permute.xlu0 %6649
  %6652 = vset.pattern.permute.xlu0 27
  %6653 = vperm.xlu0 %6652, %v6067
  %v6654 = vpop.permute.xlu0 %6653
  %6656 = vset.pattern.permute.xlu0 27
  %6657 = vperm.xlu0 %6656, %v6068
  %v6658 = vpop.permute.xlu0 %6657
  %6660 = vset.pattern.permute.xlu0 27
  %6661 = vperm.xlu0 %6660, %v6069
  %v6662 = vpop.permute.xlu0 %6661
  %6664 = vset.pattern.permute.xlu0 27
  %6665 = vperm.xlu0 %6664, %v6070
  %v6666 = vpop.permute.xlu0 %6665
  %6668 = vset.pattern.permute.xlu0 27
  %6669 = vperm.xlu0 %6668, %v6071
  %v6670 = vpop.permute.xlu0 %6669
  %6672 = vset.pattern.permute.xlu0 27
  %6673 = vperm.xlu0 %6672, %v6072
  %v6674 = vpop.permute.xlu0 %6673
  %6676 = vset.pattern.permute.xlu0 27
  %6677 = vperm.xlu0 %6676, %v6073
  %v6678 = vpop.permute.xlu0 %6677
  %v6680 = vadd.f32 %v6615, %v6618
  %v6681 = vadd.f32 %v6615, %v6622
  %v6682 = vadd.f32 %v6615, %v6626
  %v6683 = vadd.f32 %v6615, %v6630
  %v6684 = vadd.f32 %v6615, %v6634
  %v6685 = vadd.f32 %v6615, %v6638
  %v6686 = vadd.f32 %v6615, %v6642
  %v6687 = vadd.f32 %v6615, %v6646
  %v6688 = vadd.f32 %v6615, %v6650
  %v6689 = vadd.f32 %v6615, %v6654
  %v6690 = vadd.f32 %v6615, %v6658
  %v6691 = vadd.f32 %v6615, %v6662
  %v6692 = vadd.f32 %v6615, %v6666
  %v6693 = vadd.f32 %v6615, %v6670
  %v6694 = vadd.f32 %v6615, %v6674
  %v6695 = vadd.f32 %v6615, %v6678
  %v6696 = vand.u32 2147483647, %v6680
  %v6697 = vand.u32 2147483647, %v6681
  %v6698 = vand.u32 2147483647, %v6682
  %v6699 = vand.u32 2147483647, %v6683
  %v6700 = vand.u32 2147483647, %v6684
  %v6701 = vand.u32 2147483647, %v6685
  %v6702 = vand.u32 2147483647, %v6686
  %v6703 = vand.u32 2147483647, %v6687
  %v6704 = vand.u32 2147483647, %v6688
  %v6705 = vand.u32 2147483647, %v6689
  %v6706 = vand.u32 2147483647, %v6690
  %v6707 = vand.u32 2147483647, %v6691
  %v6708 = vand.u32 2147483647, %v6692
  %v6709 = vand.u32 2147483647, %v6693
  %v6710 = vand.u32 2147483647, %v6694
  %v6711 = vand.u32 2147483647, %v6695
  %v6712 = vmul.f32 %v895, %v6696
  %v6713 = vmul.f32 %v895, %v6697
  %v6714 = vmul.f32 %v895, %v6698
  %v6715 = vmul.f32 %v895, %v6699
  %v6716 = vmul.f32 %v895, %v6700
  %v6717 = vmul.f32 %v895, %v6701
  %v6718 = vmul.f32 %v895, %v6702
  %v6719 = vmul.f32 %v895, %v6703
  %v6720 = vmul.f32 %v895, %v6704
  %v6721 = vmul.f32 %v895, %v6705
  %v6722 = vmul.f32 %v895, %v6706
  %v6723 = vmul.f32 %v895, %v6707
  %v6724 = vmul.f32 %v895, %v6708
  %v6725 = vmul.f32 %v895, %v6709
  %v6726 = vmul.f32 %v895, %v6710
  %v6727 = vmul.f32 %v895, %v6711
  %v6728 = vadd.f32 %v6596, %v6712
  %v6729 = vadd.f32 %v6597, %v6713
  %v6730 = vadd.f32 %v6598, %v6714
  %v6731 = vadd.f32 %v6599, %v6715
  %v6732 = vadd.f32 %v6600, %v6716
  %v6733 = vadd.f32 %v6601, %v6717
  %v6734 = vadd.f32 %v6602, %v6718
  %v6735 = vadd.f32 %v6603, %v6719
  %v6736 = vadd.f32 %v6604, %v6720
  %v6737 = vadd.f32 %v6605, %v6721
  %v6738 = vadd.f32 %v6606, %v6722
  %v6739 = vadd.f32 %v6607, %v6723
  %v6740 = vadd.f32 %v6608, %v6724
  %v6741 = vadd.f32 %v6609, %v6725
  %v6742 = vadd.f32 %v6610, %v6726
  %v6743 = vadd.f32 %v6611, %v6727
  %v6744 = vlaneseq
  %v6745 = vshrl.u32 %v6744, 7
  %v6746 = vsub.s32 4, %v6745
  %v6747 = vrot.slane %v6057, %v6746
  %6748 = vset.pattern.permute.xlu0 28
  %6749 = vperm.xlu0 %6748, %v6058
  %v6750 = vpop.permute.xlu0 %6749
  %6752 = vset.pattern.permute.xlu0 28
  %6753 = vperm.xlu0 %6752, %v6059
  %v6754 = vpop.permute.xlu0 %6753
  %6756 = vset.pattern.permute.xlu0 28
  %6757 = vperm.xlu0 %6756, %v6060
  %v6758 = vpop.permute.xlu0 %6757
  %6760 = vset.pattern.permute.xlu0 28
  %6761 = vperm.xlu0 %6760, %v6061
  %v6762 = vpop.permute.xlu0 %6761
  %6764 = vset.pattern.permute.xlu0 28
  %6765 = vperm.xlu0 %6764, %v6062
  %v6766 = vpop.permute.xlu0 %6765
  %6768 = vset.pattern.permute.xlu0 28
  %6769 = vperm.xlu0 %6768, %v6063
  %v6770 = vpop.permute.xlu0 %6769
  %6772 = vset.pattern.permute.xlu0 28
  %6773 = vperm.xlu0 %6772, %v6064
  %v6774 = vpop.permute.xlu0 %6773
  %6776 = vset.pattern.permute.xlu0 28
  %6777 = vperm.xlu0 %6776, %v6065
  %v6778 = vpop.permute.xlu0 %6777
  %6780 = vset.pattern.permute.xlu0 28
  %6781 = vperm.xlu0 %6780, %v6066
  %v6782 = vpop.permute.xlu0 %6781
  %6784 = vset.pattern.permute.xlu0 28
  %6785 = vperm.xlu0 %6784, %v6067
  %v6786 = vpop.permute.xlu0 %6785
  %6788 = vset.pattern.permute.xlu0 28
  %6789 = vperm.xlu0 %6788, %v6068
  %v6790 = vpop.permute.xlu0 %6789
  %6792 = vset.pattern.permute.xlu0 28
  %6793 = vperm.xlu0 %6792, %v6069
  %v6794 = vpop.permute.xlu0 %6793
  %6796 = vset.pattern.permute.xlu0 28
  %6797 = vperm.xlu0 %6796, %v6070
  %v6798 = vpop.permute.xlu0 %6797
  %6800 = vset.pattern.permute.xlu0 28
  %6801 = vperm.xlu0 %6800, %v6071
  %v6802 = vpop.permute.xlu0 %6801
  %6804 = vset.pattern.permute.xlu0 28
  %6805 = vperm.xlu0 %6804, %v6072
  %v6806 = vpop.permute.xlu0 %6805
  %6808 = vset.pattern.permute.xlu0 28
  %6809 = vperm.xlu0 %6808, %v6073
  %v6810 = vpop.permute.xlu0 %6809
  %v6812 = vadd.f32 %v6747, %v6750
  %v6813 = vadd.f32 %v6747, %v6754
  %v6814 = vadd.f32 %v6747, %v6758
  %v6815 = vadd.f32 %v6747, %v6762
  %v6816 = vadd.f32 %v6747, %v6766
  %v6817 = vadd.f32 %v6747, %v6770
  %v6818 = vadd.f32 %v6747, %v6774
  %v6819 = vadd.f32 %v6747, %v6778
  %v6820 = vadd.f32 %v6747, %v6782
  %v6821 = vadd.f32 %v6747, %v6786
  %v6822 = vadd.f32 %v6747, %v6790
  %v6823 = vadd.f32 %v6747, %v6794
  %v6824 = vadd.f32 %v6747, %v6798
  %v6825 = vadd.f32 %v6747, %v6802
  %v6826 = vadd.f32 %v6747, %v6806
  %v6827 = vadd.f32 %v6747, %v6810
  %v6828 = vand.u32 2147483647, %v6812
  %v6829 = vand.u32 2147483647, %v6813
  %v6830 = vand.u32 2147483647, %v6814
  %v6831 = vand.u32 2147483647, %v6815
  %v6832 = vand.u32 2147483647, %v6816
  %v6833 = vand.u32 2147483647, %v6817
  %v6834 = vand.u32 2147483647, %v6818
  %v6835 = vand.u32 2147483647, %v6819
  %v6836 = vand.u32 2147483647, %v6820
  %v6837 = vand.u32 2147483647, %v6821
  %v6838 = vand.u32 2147483647, %v6822
  %v6839 = vand.u32 2147483647, %v6823
  %v6840 = vand.u32 2147483647, %v6824
  %v6841 = vand.u32 2147483647, %v6825
  %v6842 = vand.u32 2147483647, %v6826
  %v6843 = vand.u32 2147483647, %v6827
  %v6844 = vmul.f32 %v1031, %v6828
  %v6845 = vmul.f32 %v1031, %v6829
  %v6846 = vmul.f32 %v1031, %v6830
  %v6847 = vmul.f32 %v1031, %v6831
  %v6848 = vmul.f32 %v1031, %v6832
  %v6849 = vmul.f32 %v1031, %v6833
  %v6850 = vmul.f32 %v1031, %v6834
  %v6851 = vmul.f32 %v1031, %v6835
  %v6852 = vmul.f32 %v1031, %v6836
  %v6853 = vmul.f32 %v1031, %v6837
  %v6854 = vmul.f32 %v1031, %v6838
  %v6855 = vmul.f32 %v1031, %v6839
  %v6856 = vmul.f32 %v1031, %v6840
  %v6857 = vmul.f32 %v1031, %v6841
  %v6858 = vmul.f32 %v1031, %v6842
  %v6859 = vmul.f32 %v1031, %v6843
  %v6860 = vadd.f32 %v6728, %v6844
  %v6861 = vadd.f32 %v6729, %v6845
  %v6862 = vadd.f32 %v6730, %v6846
  %v6863 = vadd.f32 %v6731, %v6847
  %v6864 = vadd.f32 %v6732, %v6848
  %v6865 = vadd.f32 %v6733, %v6849
  %v6866 = vadd.f32 %v6734, %v6850
  %v6867 = vadd.f32 %v6735, %v6851
  %v6868 = vadd.f32 %v6736, %v6852
  %v6869 = vadd.f32 %v6737, %v6853
  %v6870 = vadd.f32 %v6738, %v6854
  %v6871 = vadd.f32 %v6739, %v6855
  %v6872 = vadd.f32 %v6740, %v6856
  %v6873 = vadd.f32 %v6741, %v6857
  %v6874 = vadd.f32 %v6742, %v6858
  %v6875 = vadd.f32 %v6743, %v6859
  %v6876 = vlaneseq
  %v6877 = vshrl.u32 %v6876, 7
  %v6878 = vsub.s32 5, %v6877
  %v6879 = vrot.slane %v6057, %v6878
  %6880 = vset.pattern.permute.xlu0 29
  %6881 = vperm.xlu0 %6880, %v6058
  %v6882 = vpop.permute.xlu0 %6881
  %6884 = vset.pattern.permute.xlu0 29
  %6885 = vperm.xlu0 %6884, %v6059
  %v6886 = vpop.permute.xlu0 %6885
  %6888 = vset.pattern.permute.xlu0 29
  %6889 = vperm.xlu0 %6888, %v6060
  %v6890 = vpop.permute.xlu0 %6889
  %6892 = vset.pattern.permute.xlu0 29
  %6893 = vperm.xlu0 %6892, %v6061
  %v6894 = vpop.permute.xlu0 %6893
  %6896 = vset.pattern.permute.xlu0 29
  %6897 = vperm.xlu0 %6896, %v6062
  %v6898 = vpop.permute.xlu0 %6897
  %6900 = vset.pattern.permute.xlu0 29
  %6901 = vperm.xlu0 %6900, %v6063
  %v6902 = vpop.permute.xlu0 %6901
  %6904 = vset.pattern.permute.xlu0 29
  %6905 = vperm.xlu0 %6904, %v6064
  %v6906 = vpop.permute.xlu0 %6905
  %6908 = vset.pattern.permute.xlu0 29
  %6909 = vperm.xlu0 %6908, %v6065
  %v6910 = vpop.permute.xlu0 %6909
  %6912 = vset.pattern.permute.xlu0 29
  %6913 = vperm.xlu0 %6912, %v6066
  %v6914 = vpop.permute.xlu0 %6913
  %6916 = vset.pattern.permute.xlu0 29
  %6917 = vperm.xlu0 %6916, %v6067
  %v6918 = vpop.permute.xlu0 %6917
  %6920 = vset.pattern.permute.xlu0 29
  %6921 = vperm.xlu0 %6920, %v6068
  %v6922 = vpop.permute.xlu0 %6921
  %6924 = vset.pattern.permute.xlu0 29
  %6925 = vperm.xlu0 %6924, %v6069
  %v6926 = vpop.permute.xlu0 %6925
  %6928 = vset.pattern.permute.xlu0 29
  %6929 = vperm.xlu0 %6928, %v6070
  %v6930 = vpop.permute.xlu0 %6929
  %6932 = vset.pattern.permute.xlu0 29
  %6933 = vperm.xlu0 %6932, %v6071
  %v6934 = vpop.permute.xlu0 %6933
  %6936 = vset.pattern.permute.xlu0 29
  %6937 = vperm.xlu0 %6936, %v6072
  %v6938 = vpop.permute.xlu0 %6937
  %6940 = vset.pattern.permute.xlu0 29
  %6941 = vperm.xlu0 %6940, %v6073
  %v6942 = vpop.permute.xlu0 %6941
  %v6944 = vadd.f32 %v6879, %v6882
  %v6945 = vadd.f32 %v6879, %v6886
  %v6946 = vadd.f32 %v6879, %v6890
  %v6947 = vadd.f32 %v6879, %v6894
  %v6948 = vadd.f32 %v6879, %v6898
  %v6949 = vadd.f32 %v6879, %v6902
  %v6950 = vadd.f32 %v6879, %v6906
  %v6951 = vadd.f32 %v6879, %v6910
  %v6952 = vadd.f32 %v6879, %v6914
  %v6953 = vadd.f32 %v6879, %v6918
  %v6954 = vadd.f32 %v6879, %v6922
  %v6955 = vadd.f32 %v6879, %v6926
  %v6956 = vadd.f32 %v6879, %v6930
  %v6957 = vadd.f32 %v6879, %v6934
  %v6958 = vadd.f32 %v6879, %v6938
  %v6959 = vadd.f32 %v6879, %v6942
  %v6960 = vand.u32 2147483647, %v6944
  %v6961 = vand.u32 2147483647, %v6945
  %v6962 = vand.u32 2147483647, %v6946
  %v6963 = vand.u32 2147483647, %v6947
  %v6964 = vand.u32 2147483647, %v6948
  %v6965 = vand.u32 2147483647, %v6949
  %v6966 = vand.u32 2147483647, %v6950
  %v6967 = vand.u32 2147483647, %v6951
  %v6968 = vand.u32 2147483647, %v6952
  %v6969 = vand.u32 2147483647, %v6953
  %v6970 = vand.u32 2147483647, %v6954
  %v6971 = vand.u32 2147483647, %v6955
  %v6972 = vand.u32 2147483647, %v6956
  %v6973 = vand.u32 2147483647, %v6957
  %v6974 = vand.u32 2147483647, %v6958
  %v6975 = vand.u32 2147483647, %v6959
  %v6976 = vmul.f32 %v1167, %v6960
  %v6977 = vmul.f32 %v1167, %v6961
  %v6978 = vmul.f32 %v1167, %v6962
  %v6979 = vmul.f32 %v1167, %v6963
  %v6980 = vmul.f32 %v1167, %v6964
  %v6981 = vmul.f32 %v1167, %v6965
  %v6982 = vmul.f32 %v1167, %v6966
  %v6983 = vmul.f32 %v1167, %v6967
  %v6984 = vmul.f32 %v1167, %v6968
  %v6985 = vmul.f32 %v1167, %v6969
  %v6986 = vmul.f32 %v1167, %v6970
  %v6987 = vmul.f32 %v1167, %v6971
  %v6988 = vmul.f32 %v1167, %v6972
  %v6989 = vmul.f32 %v1167, %v6973
  %v6990 = vmul.f32 %v1167, %v6974
  %v6991 = vmul.f32 %v1167, %v6975
  %v6992 = vadd.f32 %v6860, %v6976
  %v6993 = vadd.f32 %v6861, %v6977
  %v6994 = vadd.f32 %v6862, %v6978
  %v6995 = vadd.f32 %v6863, %v6979
  %v6996 = vadd.f32 %v6864, %v6980
  %v6997 = vadd.f32 %v6865, %v6981
  %v6998 = vadd.f32 %v6866, %v6982
  %v6999 = vadd.f32 %v6867, %v6983
  %v7000 = vadd.f32 %v6868, %v6984
  %v7001 = vadd.f32 %v6869, %v6985
  %v7002 = vadd.f32 %v6870, %v6986
  %v7003 = vadd.f32 %v6871, %v6987
  %v7004 = vadd.f32 %v6872, %v6988
  %v7005 = vadd.f32 %v6873, %v6989
  %v7006 = vadd.f32 %v6874, %v6990
  %v7007 = vadd.f32 %v6875, %v6991
  %v7008 = vlaneseq
  %v7009 = vshrl.u32 %v7008, 7
  %v7010 = vsub.s32 6, %v7009
  %v7011 = vrot.slane %v6057, %v7010
  %7012 = vset.pattern.permute.xlu0 30
  %7013 = vperm.xlu0 %7012, %v6058
  %v7014 = vpop.permute.xlu0 %7013
  %7016 = vset.pattern.permute.xlu0 30
  %7017 = vperm.xlu0 %7016, %v6059
  %v7018 = vpop.permute.xlu0 %7017
  %7020 = vset.pattern.permute.xlu0 30
  %7021 = vperm.xlu0 %7020, %v6060
  %v7022 = vpop.permute.xlu0 %7021
  %7024 = vset.pattern.permute.xlu0 30
  %7025 = vperm.xlu0 %7024, %v6061
  %v7026 = vpop.permute.xlu0 %7025
  %7028 = vset.pattern.permute.xlu0 30
  %7029 = vperm.xlu0 %7028, %v6062
  %v7030 = vpop.permute.xlu0 %7029
  %7032 = vset.pattern.permute.xlu0 30
  %7033 = vperm.xlu0 %7032, %v6063
  %v7034 = vpop.permute.xlu0 %7033
  %7036 = vset.pattern.permute.xlu0 30
  %7037 = vperm.xlu0 %7036, %v6064
  %v7038 = vpop.permute.xlu0 %7037
  %7040 = vset.pattern.permute.xlu0 30
  %7041 = vperm.xlu0 %7040, %v6065
  %v7042 = vpop.permute.xlu0 %7041
  %7044 = vset.pattern.permute.xlu0 30
  %7045 = vperm.xlu0 %7044, %v6066
  %v7046 = vpop.permute.xlu0 %7045
  %7048 = vset.pattern.permute.xlu0 30
  %7049 = vperm.xlu0 %7048, %v6067
  %v7050 = vpop.permute.xlu0 %7049
  %7052 = vset.pattern.permute.xlu0 30
  %7053 = vperm.xlu0 %7052, %v6068
  %v7054 = vpop.permute.xlu0 %7053
  %7056 = vset.pattern.permute.xlu0 30
  %7057 = vperm.xlu0 %7056, %v6069
  %v7058 = vpop.permute.xlu0 %7057
  %7060 = vset.pattern.permute.xlu0 30
  %7061 = vperm.xlu0 %7060, %v6070
  %v7062 = vpop.permute.xlu0 %7061
  %7064 = vset.pattern.permute.xlu0 30
  %7065 = vperm.xlu0 %7064, %v6071
  %v7066 = vpop.permute.xlu0 %7065
  %7068 = vset.pattern.permute.xlu0 30
  %7069 = vperm.xlu0 %7068, %v6072
  %v7070 = vpop.permute.xlu0 %7069
  %7072 = vset.pattern.permute.xlu0 30
  %7073 = vperm.xlu0 %7072, %v6073
  %v7074 = vpop.permute.xlu0 %7073
  %v7076 = vadd.f32 %v7011, %v7014
  %v7077 = vadd.f32 %v7011, %v7018
  %v7078 = vadd.f32 %v7011, %v7022
  %v7079 = vadd.f32 %v7011, %v7026
  %v7080 = vadd.f32 %v7011, %v7030
  %v7081 = vadd.f32 %v7011, %v7034
  %v7082 = vadd.f32 %v7011, %v7038
  %v7083 = vadd.f32 %v7011, %v7042
  %v7084 = vadd.f32 %v7011, %v7046
  %v7085 = vadd.f32 %v7011, %v7050
  %v7086 = vadd.f32 %v7011, %v7054
  %v7087 = vadd.f32 %v7011, %v7058
  %v7088 = vadd.f32 %v7011, %v7062
  %v7089 = vadd.f32 %v7011, %v7066
  %v7090 = vadd.f32 %v7011, %v7070
  %v7091 = vadd.f32 %v7011, %v7074
  %v7092 = vand.u32 2147483647, %v7076
  %v7093 = vand.u32 2147483647, %v7077
  %v7094 = vand.u32 2147483647, %v7078
  %v7095 = vand.u32 2147483647, %v7079
  %v7096 = vand.u32 2147483647, %v7080
  %v7097 = vand.u32 2147483647, %v7081
  %v7098 = vand.u32 2147483647, %v7082
  %v7099 = vand.u32 2147483647, %v7083
  %v7100 = vand.u32 2147483647, %v7084
  %v7101 = vand.u32 2147483647, %v7085
  %v7102 = vand.u32 2147483647, %v7086
  %v7103 = vand.u32 2147483647, %v7087
  %v7104 = vand.u32 2147483647, %v7088
  %v7105 = vand.u32 2147483647, %v7089
  %v7106 = vand.u32 2147483647, %v7090
  %v7107 = vand.u32 2147483647, %v7091
  %v7108 = vmul.f32 %v1303, %v7092
  %v7109 = vmul.f32 %v1303, %v7093
  %v7110 = vmul.f32 %v1303, %v7094
  %v7111 = vmul.f32 %v1303, %v7095
  %v7112 = vmul.f32 %v1303, %v7096
  %v7113 = vmul.f32 %v1303, %v7097
  %v7114 = vmul.f32 %v1303, %v7098
  %v7115 = vmul.f32 %v1303, %v7099
  %v7116 = vmul.f32 %v1303, %v7100
  %v7117 = vmul.f32 %v1303, %v7101
  %v7118 = vmul.f32 %v1303, %v7102
  %v7119 = vmul.f32 %v1303, %v7103
  %v7120 = vmul.f32 %v1303, %v7104
  %v7121 = vmul.f32 %v1303, %v7105
  %v7122 = vmul.f32 %v1303, %v7106
  %v7123 = vmul.f32 %v1303, %v7107
  %v7124 = vadd.f32 %v6992, %v7108
  %v7125 = vadd.f32 %v6993, %v7109
  %v7126 = vadd.f32 %v6994, %v7110
  %v7127 = vadd.f32 %v6995, %v7111
  %v7128 = vadd.f32 %v6996, %v7112
  %v7129 = vadd.f32 %v6997, %v7113
  %v7130 = vadd.f32 %v6998, %v7114
  %v7131 = vadd.f32 %v6999, %v7115
  %v7132 = vadd.f32 %v7000, %v7116
  %v7133 = vadd.f32 %v7001, %v7117
  %v7134 = vadd.f32 %v7002, %v7118
  %v7135 = vadd.f32 %v7003, %v7119
  %v7136 = vadd.f32 %v7004, %v7120
  %v7137 = vadd.f32 %v7005, %v7121
  %v7138 = vadd.f32 %v7006, %v7122
  %v7139 = vadd.f32 %v7007, %v7123
  %v7140 = vlaneseq
  %v7141 = vshrl.u32 %v7140, 7
  %v7142 = vsub.s32 7, %v7141
  %v7143 = vrot.slane %v6057, %v7142
  %7144 = vset.pattern.permute.xlu0 31
  %7145 = vperm.xlu0 %7144, %v6058
  %v7146 = vpop.permute.xlu0 %7145
  %7148 = vset.pattern.permute.xlu0 31
  %7149 = vperm.xlu0 %7148, %v6059
  %v7150 = vpop.permute.xlu0 %7149
  %7152 = vset.pattern.permute.xlu0 31
  %7153 = vperm.xlu0 %7152, %v6060
  %v7154 = vpop.permute.xlu0 %7153
  %7156 = vset.pattern.permute.xlu0 31
  %7157 = vperm.xlu0 %7156, %v6061
  %v7158 = vpop.permute.xlu0 %7157
  %7160 = vset.pattern.permute.xlu0 31
  %7161 = vperm.xlu0 %7160, %v6062
  %v7162 = vpop.permute.xlu0 %7161
  %7164 = vset.pattern.permute.xlu0 31
  %7165 = vperm.xlu0 %7164, %v6063
  %v7166 = vpop.permute.xlu0 %7165
  %7168 = vset.pattern.permute.xlu0 31
  %7169 = vperm.xlu0 %7168, %v6064
  %v7170 = vpop.permute.xlu0 %7169
  %7172 = vset.pattern.permute.xlu0 31
  %7173 = vperm.xlu0 %7172, %v6065
  %v7174 = vpop.permute.xlu0 %7173
  %7176 = vset.pattern.permute.xlu0 31
  %7177 = vperm.xlu0 %7176, %v6066
  %v7178 = vpop.permute.xlu0 %7177
  %7180 = vset.pattern.permute.xlu0 31
  %7181 = vperm.xlu0 %7180, %v6067
  %v7182 = vpop.permute.xlu0 %7181
  %7184 = vset.pattern.permute.xlu0 31
  %7185 = vperm.xlu0 %7184, %v6068
  %v7186 = vpop.permute.xlu0 %7185
  %7188 = vset.pattern.permute.xlu0 31
  %7189 = vperm.xlu0 %7188, %v6069
  %v7190 = vpop.permute.xlu0 %7189
  %7192 = vset.pattern.permute.xlu0 31
  %7193 = vperm.xlu0 %7192, %v6070
  %v7194 = vpop.permute.xlu0 %7193
  %7196 = vset.pattern.permute.xlu0 31
  %7197 = vperm.xlu0 %7196, %v6071
  %v7198 = vpop.permute.xlu0 %7197
  %7200 = vset.pattern.permute.xlu0 31
  %7201 = vperm.xlu0 %7200, %v6072
  %v7202 = vpop.permute.xlu0 %7201
  %7204 = vset.pattern.permute.xlu0 31
  %7205 = vperm.xlu0 %7204, %v6073
  %v7206 = vpop.permute.xlu0 %7205
  %v7208 = vadd.f32 %v7143, %v7146
  %v7209 = vadd.f32 %v7143, %v7150
  %v7210 = vadd.f32 %v7143, %v7154
  %v7211 = vadd.f32 %v7143, %v7158
  %v7212 = vadd.f32 %v7143, %v7162
  %v7213 = vadd.f32 %v7143, %v7166
  %v7214 = vadd.f32 %v7143, %v7170
  %v7215 = vadd.f32 %v7143, %v7174
  %v7216 = vadd.f32 %v7143, %v7178
  %v7217 = vadd.f32 %v7143, %v7182
  %v7218 = vadd.f32 %v7143, %v7186
  %v7219 = vadd.f32 %v7143, %v7190
  %v7220 = vadd.f32 %v7143, %v7194
  %v7221 = vadd.f32 %v7143, %v7198
  %v7222 = vadd.f32 %v7143, %v7202
  %v7223 = vadd.f32 %v7143, %v7206
  %v7224 = vand.u32 2147483647, %v7208
  %v7225 = vand.u32 2147483647, %v7209
  %v7226 = vand.u32 2147483647, %v7210
  %v7227 = vand.u32 2147483647, %v7211
  %v7228 = vand.u32 2147483647, %v7212
  %v7229 = vand.u32 2147483647, %v7213
  %v7230 = vand.u32 2147483647, %v7214
  %v7231 = vand.u32 2147483647, %v7215
  %v7232 = vand.u32 2147483647, %v7216
  %v7233 = vand.u32 2147483647, %v7217
  %v7234 = vand.u32 2147483647, %v7218
  %v7235 = vand.u32 2147483647, %v7219
  %v7236 = vand.u32 2147483647, %v7220
  %v7237 = vand.u32 2147483647, %v7221
  %v7238 = vand.u32 2147483647, %v7222
  %v7239 = vand.u32 2147483647, %v7223
  %v7240 = vmul.f32 %v1439, %v7224
  %v7241 = vmul.f32 %v1439, %v7225
  %v7242 = vmul.f32 %v1439, %v7226
  %v7243 = vmul.f32 %v1439, %v7227
  %v7244 = vmul.f32 %v1439, %v7228
  %v7245 = vmul.f32 %v1439, %v7229
  %v7246 = vmul.f32 %v1439, %v7230
  %v7247 = vmul.f32 %v1439, %v7231
  %v7248 = vmul.f32 %v1439, %v7232
  %v7249 = vmul.f32 %v1439, %v7233
  %v7250 = vmul.f32 %v1439, %v7234
  %v7251 = vmul.f32 %v1439, %v7235
  %v7252 = vmul.f32 %v1439, %v7236
  %v7253 = vmul.f32 %v1439, %v7237
  %v7254 = vmul.f32 %v1439, %v7238
  %v7255 = vmul.f32 %v1439, %v7239
  %v7256 = vadd.f32 %v7124, %v7240
  %v7257 = vadd.f32 %v7125, %v7241
  %v7258 = vadd.f32 %v7126, %v7242
  %v7259 = vadd.f32 %v7127, %v7243
  %v7260 = vadd.f32 %v7128, %v7244
  %v7261 = vadd.f32 %v7129, %v7245
  %v7262 = vadd.f32 %v7130, %v7246
  %v7263 = vadd.f32 %v7131, %v7247
  %v7264 = vadd.f32 %v7132, %v7248
  %v7265 = vadd.f32 %v7133, %v7249
  %v7266 = vadd.f32 %v7134, %v7250
  %v7267 = vadd.f32 %v7135, %v7251
  %v7268 = vadd.f32 %v7136, %v7252
  %v7269 = vadd.f32 %v7137, %v7253
  %v7270 = vadd.f32 %v7138, %v7254
  %v7271 = vadd.f32 %v7139, %v7255
  %s7272 = scalar_lea.vmem [#allocation2], 384
  %v7273 = vld [vmem:[%s7272] sm:$0xff]
  %v7274 = vld [vmem:[%s7272 + $0x8] sm:$0xff]
  %v7275 = vld [vmem:[%s7272 + $0x10] sm:$0xff]
  %v7276 = vld [vmem:[%s7272 + $0x18] sm:$0xff]
  %v7277 = vld [vmem:[%s7272 + $0x20] sm:$0xff]
  %v7278 = vld [vmem:[%s7272 + $0x28] sm:$0xff]
  %v7279 = vld [vmem:[%s7272 + $0x30] sm:$0xff]
  %v7280 = vld [vmem:[%s7272 + $0x38] sm:$0xff]
  %v7281 = vld [vmem:[%s7272 + $0x40] sm:$0xff]
  %v7282 = vld [vmem:[%s7272 + $0x48] sm:$0xff]
  %v7283 = vld [vmem:[%s7272 + $0x50] sm:$0xff]
  %v7284 = vld [vmem:[%s7272 + $0x58] sm:$0xff]
  %v7285 = vld [vmem:[%s7272 + $0x60] sm:$0xff]
  %v7286 = vld [vmem:[%s7272 + $0x68] sm:$0xff]
  %v7287 = vld [vmem:[%s7272 + $0x70] sm:$0xff]
  %v7288 = vld [vmem:[%s7272 + $0x78] sm:$0xff]
  %7289 = vmax.xlane.f32.xlu0 %v7256
  %v7290 = vpop.xlane.xlu0 %7289
  %7291 = vmax.xlane.f32.xlu0 %v7257
  %v7292 = vpop.xlane.xlu0 %7291
  %7293 = vmax.xlane.f32.xlu0 %v7258
  %v7294 = vpop.xlane.xlu0 %7293
  %7295 = vmax.xlane.f32.xlu0 %v7259
  %v7296 = vpop.xlane.xlu0 %7295
  %7297 = vmax.xlane.f32.xlu0 %v7260
  %v7298 = vpop.xlane.xlu0 %7297
  %7299 = vmax.xlane.f32.xlu0 %v7261
  %v7300 = vpop.xlane.xlu0 %7299
  %7301 = vmax.xlane.f32.xlu0 %v7262
  %v7302 = vpop.xlane.xlu0 %7301
  %7303 = vmax.xlane.f32.xlu0 %v7263
  %v7304 = vpop.xlane.xlu0 %7303
  %7305 = vmax.xlane.f32.xlu0 %v7264
  %v7306 = vpop.xlane.xlu0 %7305
  %7307 = vmax.xlane.f32.xlu0 %v7265
  %v7308 = vpop.xlane.xlu0 %7307
  %7309 = vmax.xlane.f32.xlu0 %v7266
  %v7310 = vpop.xlane.xlu0 %7309
  %7311 = vmax.xlane.f32.xlu0 %v7267
  %v7312 = vpop.xlane.xlu0 %7311
  %7313 = vmax.xlane.f32.xlu0 %v7268
  %v7314 = vpop.xlane.xlu0 %7313
  %7315 = vmax.xlane.f32.xlu0 %v7269
  %v7316 = vpop.xlane.xlu0 %7315
  %7317 = vmax.xlane.f32.xlu0 %v7270
  %v7318 = vpop.xlane.xlu0 %7317
  %7319 = vmax.xlane.f32.xlu0 %v7271
  %v7320 = vpop.xlane.xlu0 %7319
  %v7321 = vmax.f32 %v7273, %v7290
  %v7322 = vmax.f32 %v7274, %v7292
  %v7323 = vmax.f32 %v7275, %v7294
  %v7324 = vmax.f32 %v7276, %v7296
  %v7325 = vmax.f32 %v7277, %v7298
  %v7326 = vmax.f32 %v7278, %v7300
  %v7327 = vmax.f32 %v7279, %v7302
  %v7328 = vmax.f32 %v7280, %v7304
  %v7329 = vmax.f32 %v7281, %v7306
  %v7330 = vmax.f32 %v7282, %v7308
  %v7331 = vmax.f32 %v7283, %v7310
  %v7332 = vmax.f32 %v7284, %v7312
  %v7333 = vmax.f32 %v7285, %v7314
  %v7334 = vmax.f32 %v7286, %v7316
  %v7335 = vmax.f32 %v7287, %v7318
  %v7336 = vmax.f32 %v7288, %v7320
  %v7337 = vsub.f32 %v7273, %v7321
  %v7338 = vsub.f32 %v7274, %v7322
  %v7339 = vsub.f32 %v7275, %v7323
  %v7340 = vsub.f32 %v7276, %v7324
  %v7341 = vsub.f32 %v7277, %v7325
  %v7342 = vsub.f32 %v7278, %v7326
  %v7343 = vsub.f32 %v7279, %v7327
  %v7344 = vsub.f32 %v7280, %v7328
  %v7345 = vsub.f32 %v7281, %v7329
  %v7346 = vsub.f32 %v7282, %v7330
  %v7347 = vsub.f32 %v7283, %v7331
  %v7348 = vsub.f32 %v7284, %v7332
  %v7349 = vsub.f32 %v7285, %v7333
  %v7350 = vsub.f32 %v7286, %v7334
  %v7351 = vsub.f32 %v7287, %v7335
  %v7352 = vsub.f32 %v7288, %v7336
  %v7353 = vmul.f32 %v7337, 1.442695
  %v7354 = vpow.pop %v7353
  %v7355 = vmul.f32 %v7338, 1.442695
  %v7356 = vpow.pop %v7355
  %v7357 = vmul.f32 %v7339, 1.442695
  %v7358 = vpow.pop %v7357
  %v7359 = vmul.f32 %v7340, 1.442695
  %v7360 = vpow.pop %v7359
  %v7361 = vmul.f32 %v7341, 1.442695
  %v7362 = vpow.pop %v7361
  %v7363 = vmul.f32 %v7342, 1.442695
  %v7364 = vpow.pop %v7363
  %v7365 = vmul.f32 %v7343, 1.442695
  %v7366 = vpow.pop %v7365
  %v7367 = vmul.f32 %v7344, 1.442695
  %v7368 = vpow.pop %v7367
  %v7369 = vmul.f32 %v7345, 1.442695
  %v7370 = vpow.pop %v7369
  %v7371 = vmul.f32 %v7346, 1.442695
  %v7372 = vpow.pop %v7371
  %v7373 = vmul.f32 %v7347, 1.442695
  %v7374 = vpow.pop %v7373
  %v7375 = vmul.f32 %v7348, 1.442695
  %v7376 = vpow.pop %v7375
  %v7377 = vmul.f32 %v7349, 1.442695
  %v7378 = vpow.pop %v7377
  %v7379 = vmul.f32 %v7350, 1.442695
  %v7380 = vpow.pop %v7379
  %v7381 = vmul.f32 %v7351, 1.442695
  %v7382 = vpow.pop %v7381
  %v7383 = vmul.f32 %v7352, 1.442695
  %v7384 = vpow.pop %v7383
  %7386 = vset.pattern.permute.xlu0 0
  %7387 = vperm.xlu0 %7386, %v7321
  %v7388 = vpop.permute.xlu0 %7387
  %7391 = vset.pattern.permute.xlu0 0
  %7392 = vperm.xlu0 %7391, %v7322
  %v7393 = vpop.permute.xlu0 %7392
  %7396 = vset.pattern.permute.xlu0 0
  %7397 = vperm.xlu0 %7396, %v7323
  %v7398 = vpop.permute.xlu0 %7397
  %7401 = vset.pattern.permute.xlu0 0
  %7402 = vperm.xlu0 %7401, %v7324
  %v7403 = vpop.permute.xlu0 %7402
  %7406 = vset.pattern.permute.xlu0 0
  %7407 = vperm.xlu0 %7406, %v7325
  %v7408 = vpop.permute.xlu0 %7407
  %7411 = vset.pattern.permute.xlu0 0
  %7412 = vperm.xlu0 %7411, %v7326
  %v7413 = vpop.permute.xlu0 %7412
  %7416 = vset.pattern.permute.xlu0 0
  %7417 = vperm.xlu0 %7416, %v7327
  %v7418 = vpop.permute.xlu0 %7417
  %7421 = vset.pattern.permute.xlu0 0
  %7422 = vperm.xlu0 %7421, %v7328
  %v7423 = vpop.permute.xlu0 %7422
  %7426 = vset.pattern.permute.xlu0 0
  %7427 = vperm.xlu0 %7426, %v7329
  %v7428 = vpop.permute.xlu0 %7427
  %7431 = vset.pattern.permute.xlu0 0
  %7432 = vperm.xlu0 %7431, %v7330
  %v7433 = vpop.permute.xlu0 %7432
  %7436 = vset.pattern.permute.xlu0 0
  %7437 = vperm.xlu0 %7436, %v7331
  %v7438 = vpop.permute.xlu0 %7437
  %7441 = vset.pattern.permute.xlu0 0
  %7442 = vperm.xlu0 %7441, %v7332
  %v7443 = vpop.permute.xlu0 %7442
  %7446 = vset.pattern.permute.xlu0 0
  %7447 = vperm.xlu0 %7446, %v7333
  %v7448 = vpop.permute.xlu0 %7447
  %7451 = vset.pattern.permute.xlu0 0
  %7452 = vperm.xlu0 %7451, %v7334
  %v7453 = vpop.permute.xlu0 %7452
  %7456 = vset.pattern.permute.xlu0 0
  %7457 = vperm.xlu0 %7456, %v7335
  %v7458 = vpop.permute.xlu0 %7457
  %7461 = vset.pattern.permute.xlu0 0
  %7462 = vperm.xlu0 %7461, %v7336
  %v7463 = vpop.permute.xlu0 %7462
  %v7465 = vsub.f32 %v7256, %v7388
  %v7466 = vsub.f32 %v7257, %v7393
  %v7467 = vsub.f32 %v7258, %v7398
  %v7468 = vsub.f32 %v7259, %v7403
  %v7469 = vsub.f32 %v7260, %v7408
  %v7470 = vsub.f32 %v7261, %v7413
  %v7471 = vsub.f32 %v7262, %v7418
  %v7472 = vsub.f32 %v7263, %v7423
  %v7473 = vsub.f32 %v7264, %v7428
  %v7474 = vsub.f32 %v7265, %v7433
  %v7475 = vsub.f32 %v7266, %v7438
  %v7476 = vsub.f32 %v7267, %v7443
  %v7477 = vsub.f32 %v7268, %v7448
  %v7478 = vsub.f32 %v7269, %v7453
  %v7479 = vsub.f32 %v7270, %v7458
  %v7480 = vsub.f32 %v7271, %v7463
  %v7481 = vpack.c.bf16 %v7466, %v7465
  %v7482 = vpack.c.bf16 %v7468, %v7467
  %v7483 = vpack.c.bf16 %v7470, %v7469
  %v7484 = vpack.c.bf16 %v7472, %v7471
  %v7485 = vpack.c.bf16 %v7474, %v7473
  %v7486 = vpack.c.bf16 %v7476, %v7475
  %v7487 = vpack.c.bf16 %v7478, %v7477
  %v7488 = vpack.c.bf16 %v7480, %v7479
  %v7490 = vmul.bf16 %v7481, 1069105081
  %v7491 = vpow.bf16.pop %v7490
  %v7493 = vmul.bf16 %v7482, 1069105081
  %v7494 = vpow.bf16.pop %v7493
  %v7496 = vmul.bf16 %v7483, 1069105081
  %v7497 = vpow.bf16.pop %v7496
  %v7499 = vmul.bf16 %v7484, 1069105081
  %v7500 = vpow.bf16.pop %v7499
  %v7502 = vmul.bf16 %v7485, 1069105081
  %v7503 = vpow.bf16.pop %v7502
  %v7505 = vmul.bf16 %v7486, 1069105081
  %v7506 = vpow.bf16.pop %v7505
  %v7508 = vmul.bf16 %v7487, 1069105081
  %v7509 = vpow.bf16.pop %v7508
  %v7511 = vmul.bf16 %v7488, 1069105081
  %v7512 = vpow.bf16.pop %v7511
  %vm7513 = vnez %v6075
  %vm7514 = vnez %v6076
  %vm7515 = vnez %v6077
  %vm7516 = vnez %v6078
  %v7517 = vsel %vm7513, 16843009, 0
  %v7518 = vsel %vm7514, 16843009, 0
  %v7519 = vsel %vm7515, 16843009, 0
  %v7520 = vsel %vm7516, 16843009, 0
  %v7521 = vcombine.high %v7517, %v7517
  %v7522 = vcombine.high %v7518, %v7518
  %v7523 = vcombine.high %v7519, %v7519
  %v7524 = vcombine.high %v7520, %v7520
  %vm7525 = vnez %v7521
  %vm7526 = vnez %v7522
  %vm7527 = vnez %v7523
  %vm7528 = vnez %v7524
  %v7529 = vsel %vm7525, 16843009, 0
  %v7530 = vsel %vm7526, 16843009, 0
  %v7531 = vsel %vm7527, 16843009, 0
  %v7532 = vsel %vm7528, 16843009, 0
  %v7533 = vunpack.c.1.s8 %v7517
  %v7534 = vunpack.c.0.s8 %v7517
  %v7535 = vpack.c.b16 %v7533, %v7534
  %v7536 = vunpack.c.1.s8 %v7529
  %v7537 = vunpack.c.0.s8 %v7529
  %v7538 = vpack.c.b16 %v7536, %v7537
  %v7539 = vunpack.c.1.s8 %v7518
  %v7540 = vunpack.c.0.s8 %v7518
  %v7541 = vpack.c.b16 %v7539, %v7540
  %v7542 = vunpack.c.1.s8 %v7530
  %v7543 = vunpack.c.0.s8 %v7530
  %v7544 = vpack.c.b16 %v7542, %v7543
  %v7545 = vunpack.c.1.s8 %v7519
  %v7546 = vunpack.c.0.s8 %v7519
  %v7547 = vpack.c.b16 %v7545, %v7546
  %v7548 = vunpack.c.1.s8 %v7531
  %v7549 = vunpack.c.0.s8 %v7531
  %v7550 = vpack.c.b16 %v7548, %v7549
  %v7551 = vunpack.c.1.s8 %v7520
  %v7552 = vunpack.c.0.s8 %v7520
  %v7553 = vpack.c.b16 %v7551, %v7552
  %v7554 = vunpack.c.1.s8 %v7532
  %v7555 = vunpack.c.0.s8 %v7532
  %v7556 = vpack.c.b16 %v7554, %v7555
  %vm7557 = vcmp.ne.s16.totalorder %v7535, 0
  %vm7558 = vcmp.ne.s16.totalorder %v7538, 0
  %vm7559 = vcmp.ne.s16.totalorder %v7541, 0
  %vm7560 = vcmp.ne.s16.totalorder %v7544, 0
  %vm7561 = vcmp.ne.s16.totalorder %v7547, 0
  %vm7562 = vcmp.ne.s16.totalorder %v7550, 0
  %vm7563 = vcmp.ne.s16.totalorder %v7553, 0
  %vm7564 = vcmp.ne.s16.totalorder %v7556, 0
  %v7565 = vsel %vm7557, %v7491, 0
  %v7566 = vsel %vm7558, %v7494, 0
  %v7567 = vsel %vm7559, %v7497, 0
  %v7568 = vsel %vm7560, %v7500, 0
  %v7569 = vsel %vm7561, %v7503, 0
  %v7570 = vsel %vm7562, %v7506, 0
  %v7571 = vsel %vm7563, %v7509, 0
  %v7572 = vsel %vm7564, %v7512, 0
  %s7573 = scalar_lea.vmem [#allocation3], 384
  %v7574 = vld [vmem:[%s7573] sm:$0xff]
  %v7575 = vld [vmem:[%s7573 + $0x8] sm:$0xff]
  %v7576 = vld [vmem:[%s7573 + $0x10] sm:$0xff]
  %v7577 = vld [vmem:[%s7573 + $0x18] sm:$0xff]
  %v7578 = vld [vmem:[%s7573 + $0x20] sm:$0xff]
  %v7579 = vld [vmem:[%s7573 + $0x28] sm:$0xff]
  %v7580 = vld [vmem:[%s7573 + $0x30] sm:$0xff]
  %v7581 = vld [vmem:[%s7573 + $0x38] sm:$0xff]
  %v7582 = vld [vmem:[%s7573 + $0x40] sm:$0xff]
  %v7583 = vld [vmem:[%s7573 + $0x48] sm:$0xff]
  %v7584 = vld [vmem:[%s7573 + $0x50] sm:$0xff]
  %v7585 = vld [vmem:[%s7573 + $0x58] sm:$0xff]
  %v7586 = vld [vmem:[%s7573 + $0x60] sm:$0xff]
  %v7587 = vld [vmem:[%s7573 + $0x68] sm:$0xff]
  %v7588 = vld [vmem:[%s7573 + $0x70] sm:$0xff]
  %v7589 = vld [vmem:[%s7573 + $0x78] sm:$0xff]
  %v7590 = vmul.f32 %v7354, %v7574
  %v7591 = vmul.f32 %v7356, %v7575
  %v7592 = vmul.f32 %v7358, %v7576
  %v7593 = vmul.f32 %v7360, %v7577
  %v7594 = vmul.f32 %v7362, %v7578
  %v7595 = vmul.f32 %v7364, %v7579
  %v7596 = vmul.f32 %v7366, %v7580
  %v7597 = vmul.f32 %v7368, %v7581
  %v7598 = vmul.f32 %v7370, %v7582
  %v7599 = vmul.f32 %v7372, %v7583
  %v7600 = vmul.f32 %v7374, %v7584
  %v7601 = vmul.f32 %v7376, %v7585
  %v7602 = vmul.f32 %v7378, %v7586
  %v7603 = vmul.f32 %v7380, %v7587
  %v7604 = vmul.f32 %v7382, %v7588
  %v7605 = vmul.f32 %v7384, %v7589
  %v7606 = vunpack.c.l.bf16 %v7565
  %v7607 = vunpack.c.h.bf16 %v7565
  %v7608 = vunpack.c.l.bf16 %v7566
  %v7609 = vunpack.c.h.bf16 %v7566
  %v7610 = vunpack.c.l.bf16 %v7567
  %v7611 = vunpack.c.h.bf16 %v7567
  %v7612 = vunpack.c.l.bf16 %v7568
  %v7613 = vunpack.c.h.bf16 %v7568
  %v7614 = vunpack.c.l.bf16 %v7569
  %v7615 = vunpack.c.h.bf16 %v7569
  %v7616 = vunpack.c.l.bf16 %v7570
  %v7617 = vunpack.c.h.bf16 %v7570
  %v7618 = vunpack.c.l.bf16 %v7571
  %v7619 = vunpack.c.h.bf16 %v7571
  %v7620 = vunpack.c.l.bf16 %v7572
  %v7621 = vunpack.c.h.bf16 %v7572
  %7622 = vadd.xlane.f32.xlu0 %v7606
  %v7623 = vpop.xlane.xlu0 %7622
  %7624 = vadd.xlane.f32.xlu0 %v7607
  %v7625 = vpop.xlane.xlu0 %7624
  %7626 = vadd.xlane.f32.xlu0 %v7608
  %v7627 = vpop.xlane.xlu0 %7626
  %7628 = vadd.xlane.f32.xlu0 %v7609
  %v7629 = vpop.xlane.xlu0 %7628
  %7630 = vadd.xlane.f32.xlu0 %v7610
  %v7631 = vpop.xlane.xlu0 %7630
  %7632 = vadd.xlane.f32.xlu0 %v7611
  %v7633 = vpop.xlane.xlu0 %7632
  %7634 = vadd.xlane.f32.xlu0 %v7612
  %v7635 = vpop.xlane.xlu0 %7634
  %7636 = vadd.xlane.f32.xlu0 %v7613
  %v7637 = vpop.xlane.xlu0 %7636
  %7638 = vadd.xlane.f32.xlu0 %v7614
  %v7639 = vpop.xlane.xlu0 %7638
  %7640 = vadd.xlane.f32.xlu0 %v7615
  %v7641 = vpop.xlane.xlu0 %7640
  %7642 = vadd.xlane.f32.xlu0 %v7616
  %v7643 = vpop.xlane.xlu0 %7642
  %7644 = vadd.xlane.f32.xlu0 %v7617
  %v7645 = vpop.xlane.xlu0 %7644
  %7646 = vadd.xlane.f32.xlu0 %v7618
  %v7647 = vpop.xlane.xlu0 %7646
  %7648 = vadd.xlane.f32.xlu0 %v7619
  %v7649 = vpop.xlane.xlu0 %7648
  %7650 = vadd.xlane.f32.xlu0 %v7620
  %v7651 = vpop.xlane.xlu0 %7650
  %7652 = vadd.xlane.f32.xlu0 %v7621
  %v7653 = vpop.xlane.xlu0 %7652
  %v7654 = vadd.f32 %v7590, %v7623
  %v7655 = vadd.f32 %v7591, %v7625
  %v7656 = vadd.f32 %v7592, %v7627
  %v7657 = vadd.f32 %v7593, %v7629
  %v7658 = vadd.f32 %v7594, %v7631
  %v7659 = vadd.f32 %v7595, %v7633
  %v7660 = vadd.f32 %v7596, %v7635
  %v7661 = vadd.f32 %v7597, %v7637
  %v7662 = vadd.f32 %v7598, %v7639
  %v7663 = vadd.f32 %v7599, %v7641
  %v7664 = vadd.f32 %v7600, %v7643
  %v7665 = vadd.f32 %v7601, %v7645
  %v7666 = vadd.f32 %v7602, %v7647
  %v7667 = vadd.f32 %v7603, %v7649
  %v7668 = vadd.f32 %v7604, %v7651
  %v7669 = vadd.f32 %v7605, %v7653
  %7670 = vst.msk [vmem:[%s7573] sm:$0xff] %vm1869, %v7654
  %7671 = vst.msk [vmem:[%s7573 + $0x8] sm:$0xff] %vm1869, %v7655
  %7672 = vst.msk [vmem:[%s7573 + $0x10] sm:$0xff] %vm1869, %v7656
  %7673 = vst.msk [vmem:[%s7573 + $0x18] sm:$0xff] %vm1869, %v7657
  %7674 = vst.msk [vmem:[%s7573 + $0x20] sm:$0xff] %vm1869, %v7658
  %7675 = vst.msk [vmem:[%s7573 + $0x28] sm:$0xff] %vm1869, %v7659
  %7676 = vst.msk [vmem:[%s7573 + $0x30] sm:$0xff] %vm1869, %v7660
  %7677 = vst.msk [vmem:[%s7573 + $0x38] sm:$0xff] %vm1869, %v7661
  %7678 = vst.msk [vmem:[%s7573 + $0x40] sm:$0xff] %vm1869, %v7662
  %7679 = vst.msk [vmem:[%s7573 + $0x48] sm:$0xff] %vm1869, %v7663
  %7680 = vst.msk [vmem:[%s7573 + $0x50] sm:$0xff] %vm1869, %v7664
  %7681 = vst.msk [vmem:[%s7573 + $0x58] sm:$0xff] %vm1869, %v7665
  %7682 = vst.msk [vmem:[%s7573 + $0x60] sm:$0xff] %vm1869, %v7666
  %7683 = vst.msk [vmem:[%s7573 + $0x68] sm:$0xff] %vm1869, %v7667
  %7684 = vst.msk [vmem:[%s7573 + $0x70] sm:$0xff] %vm1869, %v7668
  %7685 = vst.msk [vmem:[%s7573 + $0x78] sm:$0xff] %vm1869, %v7669
  %s7686 = scalar_lea.vmem [#allocation4], 384
  %v7687 = vld [vmem:[%s7686] sm:$0xff]
  %v7688 = vld [vmem:[%s7686 + $0x8] sm:$0xff]
  %v7689 = vld [vmem:[%s7686 + $0x10] sm:$0xff]
  %v7690 = vld [vmem:[%s7686 + $0x18] sm:$0xff]
  %v7691 = vld [vmem:[%s7686 + $0x20] sm:$0xff]
  %v7692 = vld [vmem:[%s7686 + $0x28] sm:$0xff]
  %v7693 = vld [vmem:[%s7686 + $0x30] sm:$0xff]
  %v7694 = vld [vmem:[%s7686 + $0x38] sm:$0xff]
  %v7695 = vld [vmem:[%s7686 + $0x40] sm:$0xff]
  %v7696 = vld [vmem:[%s7686 + $0x48] sm:$0xff]
  %v7697 = vld [vmem:[%s7686 + $0x50] sm:$0xff]
  %v7698 = vld [vmem:[%s7686 + $0x58] sm:$0xff]
  %v7699 = vld [vmem:[%s7686 + $0x60] sm:$0xff]
  %v7700 = vld [vmem:[%s7686 + $0x68] sm:$0xff]
  %v7701 = vld [vmem:[%s7686 + $0x70] sm:$0xff]
  %v7702 = vld [vmem:[%s7686 + $0x78] sm:$0xff]
  %7704 = vset.pattern.permute.xlu0 0
  %7705 = vperm.xlu0 %7704, %v7354
  %v7706 = vpop.permute.xlu0 %7705
  %7709 = vset.pattern.permute.xlu0 0
  %7710 = vperm.xlu0 %7709, %v7356
  %v7711 = vpop.permute.xlu0 %7710
  %7714 = vset.pattern.permute.xlu0 0
  %7715 = vperm.xlu0 %7714, %v7358
  %v7716 = vpop.permute.xlu0 %7715
  %7719 = vset.pattern.permute.xlu0 0
  %7720 = vperm.xlu0 %7719, %v7360
  %v7721 = vpop.permute.xlu0 %7720
  %7724 = vset.pattern.permute.xlu0 0
  %7725 = vperm.xlu0 %7724, %v7362
  %v7726 = vpop.permute.xlu0 %7725
  %7729 = vset.pattern.permute.xlu0 0
  %7730 = vperm.xlu0 %7729, %v7364
  %v7731 = vpop.permute.xlu0 %7730
  %7734 = vset.pattern.permute.xlu0 0
  %7735 = vperm.xlu0 %7734, %v7366
  %v7736 = vpop.permute.xlu0 %7735
  %7739 = vset.pattern.permute.xlu0 0
  %7740 = vperm.xlu0 %7739, %v7368
  %v7741 = vpop.permute.xlu0 %7740
  %7744 = vset.pattern.permute.xlu0 0
  %7745 = vperm.xlu0 %7744, %v7370
  %v7746 = vpop.permute.xlu0 %7745
  %7749 = vset.pattern.permute.xlu0 0
  %7750 = vperm.xlu0 %7749, %v7372
  %v7751 = vpop.permute.xlu0 %7750
  %7754 = vset.pattern.permute.xlu0 0
  %7755 = vperm.xlu0 %7754, %v7374
  %v7756 = vpop.permute.xlu0 %7755
  %7759 = vset.pattern.permute.xlu0 0
  %7760 = vperm.xlu0 %7759, %v7376
  %v7761 = vpop.permute.xlu0 %7760
  %7764 = vset.pattern.permute.xlu0 0
  %7765 = vperm.xlu0 %7764, %v7378
  %v7766 = vpop.permute.xlu0 %7765
  %7769 = vset.pattern.permute.xlu0 0
  %7770 = vperm.xlu0 %7769, %v7380
  %v7771 = vpop.permute.xlu0 %7770
  %7774 = vset.pattern.permute.xlu0 0
  %7775 = vperm.xlu0 %7774, %v7382
  %v7776 = vpop.permute.xlu0 %7775
  %7779 = vset.pattern.permute.xlu0 0
  %7780 = vperm.xlu0 %7779, %v7384
  %v7781 = vpop.permute.xlu0 %7780
  %v7783 = vmul.f32 %v7706, %v7687
  %v7784 = vmul.f32 %v7711, %v7688
  %v7785 = vmul.f32 %v7716, %v7689
  %v7786 = vmul.f32 %v7721, %v7690
  %v7787 = vmul.f32 %v7726, %v7691
  %v7788 = vmul.f32 %v7731, %v7692
  %v7789 = vmul.f32 %v7736, %v7693
  %v7790 = vmul.f32 %v7741, %v7694
  %v7791 = vmul.f32 %v7746, %v7695
  %v7792 = vmul.f32 %v7751, %v7696
  %v7793 = vmul.f32 %v7756, %v7697
  %v7794 = vmul.f32 %v7761, %v7698
  %v7795 = vmul.f32 %v7766, %v7699
  %v7796 = vmul.f32 %v7771, %v7700
  %v7797 = vmul.f32 %v7776, %v7701
  %v7798 = vmul.f32 %v7781, %v7702
  %v7799 = vld [vmem:[%s2] sm:$0xff]
  %v7800 = vld [vmem:[%s2 + $0x8] sm:$0xff]
  %v7801 = vld [vmem:[%s2 + $0x10] sm:$0xff]
  %v7802 = vld [vmem:[%s2 + $0x18] sm:$0xff]
  %v7803 = vld [vmem:[%s2 + $0x20] sm:$0xff]
  %v7804 = vld [vmem:[%s2 + $0x28] sm:$0xff]
  %v7805 = vld [vmem:[%s2 + $0x30] sm:$0xff]
  %v7806 = vld [vmem:[%s2 + $0x38] sm:$0xff]
  %v7807 = vld [vmem:[%s2 + $0x40] sm:$0xff]
  %v7808 = vld [vmem:[%s2 + $0x48] sm:$0xff]
  %v7809 = vld [vmem:[%s2 + $0x50] sm:$0xff]
  %v7810 = vld [vmem:[%s2 + $0x58] sm:$0xff]
  %v7811 = vld [vmem:[%s2 + $0x60] sm:$0xff]
  %v7812 = vld [vmem:[%s2 + $0x68] sm:$0xff]
  %v7813 = vld [vmem:[%s2 + $0x70] sm:$0xff]
  %v7814 = vld [vmem:[%s2 + $0x78] sm:$0xff]
  %v7815 = vpack.c.bf16 %v7800, %v7799
  %v7816 = vpack.c.bf16 %v7802, %v7801
  %v7817 = vpack.c.bf16 %v7804, %v7803
  %v7818 = vpack.c.bf16 %v7806, %v7805
  %v7819 = vpack.c.bf16 %v7808, %v7807
  %v7820 = vpack.c.bf16 %v7810, %v7809
  %v7821 = vpack.c.bf16 %v7812, %v7811
  %v7822 = vpack.c.bf16 %v7814, %v7813
  %7831 = vrot.lane.b32.xlu0 %v7815, 104
  %v7832 = vpop.permute.xlu0 %7831
  %7833 = vrot.lane.b32.xlu0 %v7816, 104
  %v7834 = vpop.permute.xlu0 %7833
  %7835 = vrot.lane.b32.xlu0 %v7817, 104
  %v7836 = vpop.permute.xlu0 %7835
  %7837 = vrot.lane.b32.xlu0 %v7818, 104
  %v7838 = vpop.permute.xlu0 %7837
  %7839 = vrot.lane.b32.xlu0 %v7819, 104
  %v7840 = vpop.permute.xlu0 %7839
  %7841 = vrot.lane.b32.xlu0 %v7820, 104
  %v7842 = vpop.permute.xlu0 %7841
  %7843 = vrot.lane.b32.xlu0 %v7821, 104
  %v7844 = vpop.permute.xlu0 %7843
  %7845 = vrot.lane.b32.xlu0 %v7822, 104
  %v7846 = vpop.permute.xlu0 %7845
  %7855 = vmatprep.subr.bf16.mxu0 0
  %7856 = vmatpush1.bf16.msra.mxu0 %v7846
  %7857 = vmatprep.subr.bf16.mxu0 0
  %7858 = vmatpush1.bf16.msra.mxu0 %v7844
  %7859 = vmatprep.subr.bf16.mxu0 0
  %7860 = vmatpush1.bf16.msra.mxu0 %v7842
  %7861 = vmatprep.subr.bf16.mxu0 0
  %7862 = vmatpush1.bf16.msra.mxu0 %v7840
  %7863 = vmatprep.subr.bf16.mxu0 0
  %7864 = vmatpush1.bf16.msra.mxu0 %v7838
  %7865 = vmatprep.subr.bf16.mxu0 0
  %7866 = vmatpush1.bf16.msra.mxu0 %v7836
  %7867 = vmatprep.subr.bf16.mxu0 0
  %7868 = vmatpush1.bf16.msra.mxu0 %v7834
  %7869 = vmatprep.subr.bf16.mxu0 0
  %7870 = vmatpush1.bf16.msra.mxu0 %v7832
  %7871 = vmatprep.subr.bf16.mxu0 0
  %7872 = vmatpush2.bf16.msra.mxu0 0
  %7873 = vmatprep.subr.bf16.mxu0 0
  %7874 = vmatpush2.bf16.msra.mxu0 0
  %7875 = vmatprep.subr.bf16.mxu0 0
  %7876 = vmatpush2.bf16.msra.mxu0 0
  %7877 = vmatprep.subr.bf16.mxu0 0
  %7878 = vmatpush2.bf16.msra.mxu0 0
  %7879 = vmatprep.subr.bf16.mxu0 0
  %7880 = vmatpush2.bf16.msra.mxu0 0
  %7881 = vmatprep.subr.bf16.mxu0 0
  %7882 = vmatpush2.bf16.msra.mxu0 0
  %7883 = vmatprep.subr.bf16.mxu0 0
  %7884 = vmatpush2.bf16.msra.mxu0 0
  %7885 = vmatprep.subr.bf16.mxu0 0
  %7886 = vmatpush2.bf16.msra.mxu0 0
  %7887 = vmatprep.mubr.bf16.mxu0 0
  %7888 = vmatmul.mubr.bf16.gmra.mxu0 %v7565
  %v7889 = vpop.f32.mrf.mxu0
  %v7890 = vadd.f32 0.0, %v7889
  %v7891 = vpop.f32.mrf.mxu0
  %v7892 = vpop.f32.mrf.mxu0
  %v7893 = vadd.f32 0.0, %v7892
  %v7894 = vpop.f32.mrf.mxu0
  %7895 = vmatprep.mubr.bf16.mxu0 0
  %7896 = vmatmul.mubr.bf16.gmra.mxu0 %v7566
  %v7897 = vpop.f32.mrf.mxu0
  %v7898 = vadd.f32 0.0, %v7897
  %v7899 = vpop.f32.mrf.mxu0
  %v7900 = vpop.f32.mrf.mxu0
  %v7901 = vadd.f32 0.0, %v7900
  %v7902 = vpop.f32.mrf.mxu0
  %7903 = vmatprep.mubr.bf16.mxu0 0
  %7904 = vmatmul.mubr.bf16.gmra.mxu0 %v7567
  %v7905 = vpop.f32.mrf.mxu0
  %v7906 = vadd.f32 0.0, %v7905
  %v7907 = vpop.f32.mrf.mxu0
  %v7908 = vpop.f32.mrf.mxu0
  %v7909 = vadd.f32 0.0, %v7908
  %v7910 = vpop.f32.mrf.mxu0
  %7911 = vmatprep.mubr.bf16.mxu0 0
  %7912 = vmatmul.mubr.bf16.gmra.mxu0 %v7568
  %v7913 = vpop.f32.mrf.mxu0
  %v7914 = vadd.f32 0.0, %v7913
  %v7915 = vpop.f32.mrf.mxu0
  %v7916 = vpop.f32.mrf.mxu0
  %v7917 = vadd.f32 0.0, %v7916
  %v7918 = vpop.f32.mrf.mxu0
  %7919 = vmatprep.mubr.bf16.mxu0 0
  %7920 = vmatmul.mubr.bf16.gmra.mxu0 %v7569
  %v7921 = vpop.f32.mrf.mxu0
  %v7922 = vadd.f32 0.0, %v7921
  %v7923 = vpop.f32.mrf.mxu0
  %v7924 = vpop.f32.mrf.mxu0
  %v7925 = vadd.f32 0.0, %v7924
  %v7926 = vpop.f32.mrf.mxu0
  %7927 = vmatprep.mubr.bf16.mxu0 0
  %7928 = vmatmul.mubr.bf16.gmra.mxu0 %v7570
  %v7929 = vpop.f32.mrf.mxu0
  %v7930 = vadd.f32 0.0, %v7929
  %v7931 = vpop.f32.mrf.mxu0
  %v7932 = vpop.f32.mrf.mxu0
  %v7933 = vadd.f32 0.0, %v7932
  %v7934 = vpop.f32.mrf.mxu0
  %7935 = vmatprep.mubr.bf16.mxu0 0
  %7936 = vmatmul.mubr.bf16.gmra.mxu0 %v7571
  %v7937 = vpop.f32.mrf.mxu0
  %v7938 = vadd.f32 0.0, %v7937
  %v7939 = vpop.f32.mrf.mxu0
  %v7940 = vpop.f32.mrf.mxu0
  %v7941 = vadd.f32 0.0, %v7940
  %v7942 = vpop.f32.mrf.mxu0
  %7943 = vmatprep.mubr.bf16.mxu0 0
  %7944 = vmatmul.mubr.bf16.gmra.mxu0 %v7572
  %v7945 = vpop.f32.mrf.mxu0
  %v7946 = vadd.f32 0.0, %v7945
  %v7947 = vpop.f32.mrf.mxu0
  %v7948 = vpop.f32.mrf.mxu0
  %v7949 = vadd.f32 0.0, %v7948
  %v7950 = vpop.f32.mrf.mxu0
  %7951 = vdwg.mxu0
  %v7952 = vadd.f32 %v7783, %v7890
  %v7953 = vadd.f32 %v7784, %v7893
  %v7954 = vadd.f32 %v7785, %v7898
  %v7955 = vadd.f32 %v7786, %v7901
  %v7956 = vadd.f32 %v7787, %v7906
  %v7957 = vadd.f32 %v7788, %v7909
  %v7958 = vadd.f32 %v7789, %v7914
  %v7959 = vadd.f32 %v7790, %v7917
  %v7960 = vadd.f32 %v7791, %v7922
  %v7961 = vadd.f32 %v7792, %v7925
  %v7962 = vadd.f32 %v7793, %v7930
  %v7963 = vadd.f32 %v7794, %v7933
  %v7964 = vadd.f32 %v7795, %v7938
  %v7965 = vadd.f32 %v7796, %v7941
  %v7966 = vadd.f32 %v7797, %v7946
  %v7967 = vadd.f32 %v7798, %v7949
  %7968 = vst.msk [vmem:[%s7686] sm:$0xff] %vm2135, %v7952
  %7969 = vst.msk [vmem:[%s7686 + $0x8] sm:$0xff] %vm2135, %v7953
  %7970 = vst.msk [vmem:[%s7686 + $0x10] sm:$0xff] %vm2135, %v7954
  %7971 = vst.msk [vmem:[%s7686 + $0x18] sm:$0xff] %vm2135, %v7955
  %7972 = vst.msk [vmem:[%s7686 + $0x20] sm:$0xff] %vm2135, %v7956
  %7973 = vst.msk [vmem:[%s7686 + $0x28] sm:$0xff] %vm2135, %v7957
  %7974 = vst.msk [vmem:[%s7686 + $0x30] sm:$0xff] %vm2135, %v7958
  %7975 = vst.msk [vmem:[%s7686 + $0x38] sm:$0xff] %vm2135, %v7959
  %7976 = vst.msk [vmem:[%s7686 + $0x40] sm:$0xff] %vm2135, %v7960
  %7977 = vst.msk [vmem:[%s7686 + $0x48] sm:$0xff] %vm2135, %v7961
  %7978 = vst.msk [vmem:[%s7686 + $0x50] sm:$0xff] %vm2135, %v7962
  %7979 = vst.msk [vmem:[%s7686 + $0x58] sm:$0xff] %vm2135, %v7963
  %7980 = vst.msk [vmem:[%s7686 + $0x60] sm:$0xff] %vm2135, %v7964
  %7981 = vst.msk [vmem:[%s7686 + $0x68] sm:$0xff] %vm2135, %v7965
  %7982 = vst.msk [vmem:[%s7686 + $0x70] sm:$0xff] %vm2135, %v7966
  %7983 = vst.msk [vmem:[%s7686 + $0x78] sm:$0xff] %vm2135, %v7967
  %7984 = vst.msk [vmem:[%s7272] sm:$0xff] %vm1869, %v7321
  %7985 = vst.msk [vmem:[%s7272 + $0x8] sm:$0xff] %vm1869, %v7322
  %7986 = vst.msk [vmem:[%s7272 + $0x10] sm:$0xff] %vm1869, %v7323
  %7987 = vst.msk [vmem:[%s7272 + $0x18] sm:$0xff] %vm1869, %v7324
  %7988 = vst.msk [vmem:[%s7272 + $0x20] sm:$0xff] %vm1869, %v7325
  %7989 = vst.msk [vmem:[%s7272 + $0x28] sm:$0xff] %vm1869, %v7326
  %7990 = vst.msk [vmem:[%s7272 + $0x30] sm:$0xff] %vm1869, %v7327
  %7991 = vst.msk [vmem:[%s7272 + $0x38] sm:$0xff] %vm1869, %v7328
  %7992 = vst.msk [vmem:[%s7272 + $0x40] sm:$0xff] %vm1869, %v7329
  %7993 = vst.msk [vmem:[%s7272 + $0x48] sm:$0xff] %vm1869, %v7330
  %7994 = vst.msk [vmem:[%s7272 + $0x50] sm:$0xff] %vm1869, %v7331
  %7995 = vst.msk [vmem:[%s7272 + $0x58] sm:$0xff] %vm1869, %v7332
  %7996 = vst.msk [vmem:[%s7272 + $0x60] sm:$0xff] %vm1869, %v7333
  %7997 = vst.msk [vmem:[%s7272 + $0x68] sm:$0xff] %vm1869, %v7334
  %7998 = vst.msk [vmem:[%s7272 + $0x70] sm:$0xff] %vm1869, %v7335
  %7999 = vst.msk [vmem:[%s7272 + $0x78] sm:$0xff] %vm1869, %v7336
  // Predicated region
  $region34: #{tpu_custom_call.1} parent=0 // pred_check
    %p8000 = pneg %p30
  $region35: #{tpu_custom_call.1} parent=0 // pred_check_branch
    %8002 = sbr.rel (%p8000) target = $region37
  $region36: #{tpu_custom_call.1} parent=0 // pred_region
    %v8003 = vld [vmem:[#allocation3] sm:$0xff]
    %v8004 = vld [vmem:[#allocation3 + $0x8] sm:$0xff]
    %v8005 = vld [vmem:[#allocation3 + $0x10] sm:$0xff]
    %v8006 = vld [vmem:[#allocation3 + $0x18] sm:$0xff]
    %v8007 = vld [vmem:[#allocation3 + $0x20] sm:$0xff]
    %v8008 = vld [vmem:[#allocation3 + $0x28] sm:$0xff]
    %v8009 = vld [vmem:[#allocation3 + $0x30] sm:$0xff]
    %v8010 = vld [vmem:[#allocation3 + $0x38] sm:$0xff]
    %v8011 = vld [vmem:[#allocation3 + $0x40] sm:$0xff]
    %v8012 = vld [vmem:[#allocation3 + $0x48] sm:$0xff]
    %v8013 = vld [vmem:[#allocation3 + $0x50] sm:$0xff]
    %v8014 = vld [vmem:[#allocation3 + $0x58] sm:$0xff]
    %v8015 = vld [vmem:[#allocation3 + $0x60] sm:$0xff]
    %v8016 = vld [vmem:[#allocation3 + $0x68] sm:$0xff]
    %v8017 = vld [vmem:[#allocation3 + $0x70] sm:$0xff]
    %v8018 = vld [vmem:[#allocation3 + $0x78] sm:$0xff]
    %vm8019 = vcmp.gt.f32.partialorder %v8003, 0.0
    %vm8020 = vcmp.gt.f32.partialorder %v8004, 0.0
    %vm8021 = vcmp.gt.f32.partialorder %v8005, 0.0
    %vm8022 = vcmp.gt.f32.partialorder %v8006, 0.0
    %vm8023 = vcmp.gt.f32.partialorder %v8007, 0.0
    %vm8024 = vcmp.gt.f32.partialorder %v8008, 0.0
    %vm8025 = vcmp.gt.f32.partialorder %v8009, 0.0
    %vm8026 = vcmp.gt.f32.partialorder %v8010, 0.0
    %vm8027 = vcmp.gt.f32.partialorder %v8011, 0.0
    %vm8028 = vcmp.gt.f32.partialorder %v8012, 0.0
    %vm8029 = vcmp.gt.f32.partialorder %v8013, 0.0
    %vm8030 = vcmp.gt.f32.partialorder %v8014, 0.0
    %vm8031 = vcmp.gt.f32.partialorder %v8015, 0.0
    %vm8032 = vcmp.gt.f32.partialorder %v8016, 0.0
    %vm8033 = vcmp.gt.f32.partialorder %v8017, 0.0
    %vm8034 = vcmp.gt.f32.partialorder %v8018, 0.0
    %v8035 = vsel %vm8019, %v8003, 1.0
    %v8036 = vsel %vm8020, %v8004, 1.0
    %v8037 = vsel %vm8021, %v8005, 1.0
    %v8038 = vsel %vm8022, %v8006, 1.0
    %v8039 = vsel %vm8023, %v8007, 1.0
    %v8040 = vsel %vm8024, %v8008, 1.0
    %v8041 = vsel %vm8025, %v8009, 1.0
    %v8042 = vsel %vm8026, %v8010, 1.0
    %v8043 = vsel %vm8027, %v8011, 1.0
    %v8044 = vsel %vm8028, %v8012, 1.0
    %v8045 = vsel %vm8029, %v8013, 1.0
    %v8046 = vsel %vm8030, %v8014, 1.0
    %v8047 = vsel %vm8031, %v8015, 1.0
    %v8048 = vsel %vm8032, %v8016, 1.0
    %v8049 = vsel %vm8033, %v8017, 1.0
    %v8050 = vsel %vm8034, %v8018, 1.0
    %v8051 = vld [vmem:[#allocation4] sm:$0xff]
    %v8052 = vld [vmem:[#allocation4 + $0x8] sm:$0xff]
    %v8053 = vld [vmem:[#allocation4 + $0x10] sm:$0xff]
    %v8054 = vld [vmem:[#allocation4 + $0x18] sm:$0xff]
    %v8055 = vld [vmem:[#allocation4 + $0x20] sm:$0xff]
    %v8056 = vld [vmem:[#allocation4 + $0x28] sm:$0xff]
    %v8057 = vld [vmem:[#allocation4 + $0x30] sm:$0xff]
    %v8058 = vld [vmem:[#allocation4 + $0x38] sm:$0xff]
    %v8059 = vld [vmem:[#allocation4 + $0x40] sm:$0xff]
    %v8060 = vld [vmem:[#allocation4 + $0x48] sm:$0xff]
    %v8061 = vld [vmem:[#allocation4 + $0x50] sm:$0xff]
    %v8062 = vld [vmem:[#allocation4 + $0x58] sm:$0xff]
    %v8063 = vld [vmem:[#allocation4 + $0x60] sm:$0xff]
    %v8064 = vld [vmem:[#allocation4 + $0x68] sm:$0xff]
    %v8065 = vld [vmem:[#allocation4 + $0x70] sm:$0xff]
    %v8066 = vld [vmem:[#allocation4 + $0x78] sm:$0xff]
    %v8067 = vrcp.pop %v8035
    %v8068 = vrcp.pop %v8036
    %v8069 = vrcp.pop %v8037
    %v8070 = vrcp.pop %v8038
    %v8071 = vrcp.pop %v8039
    %v8072 = vrcp.pop %v8040
    %v8073 = vrcp.pop %v8041
    %v8074 = vrcp.pop %v8042
    %v8075 = vrcp.pop %v8043
    %v8076 = vrcp.pop %v8044
    %v8077 = vrcp.pop %v8045
    %v8078 = vrcp.pop %v8046
    %v8079 = vrcp.pop %v8047
    %v8080 = vrcp.pop %v8048
    %v8081 = vrcp.pop %v8049
    %v8082 = vrcp.pop %v8050
    %8084 = vset.pattern.permute.xlu0 0
    %8085 = vperm.xlu0 %8084, %v8067
    %v8086 = vpop.permute.xlu0 %8085
    %8089 = vset.pattern.permute.xlu0 0
    %8090 = vperm.xlu0 %8089, %v8068
    %v8091 = vpop.permute.xlu0 %8090
    %8094 = vset.pattern.permute.xlu0 0
    %8095 = vperm.xlu0 %8094, %v8069
    %v8096 = vpop.permute.xlu0 %8095
    %8099 = vset.pattern.permute.xlu0 0
    %8100 = vperm.xlu0 %8099, %v8070
    %v8101 = vpop.permute.xlu0 %8100
    %8104 = vset.pattern.permute.xlu0 0
    %8105 = vperm.xlu0 %8104, %v8071
    %v8106 = vpop.permute.xlu0 %8105
    %8109 = vset.pattern.permute.xlu0 0
    %8110 = vperm.xlu0 %8109, %v8072
    %v8111 = vpop.permute.xlu0 %8110
    %8114 = vset.pattern.permute.xlu0 0
    %8115 = vperm.xlu0 %8114, %v8073
    %v8116 = vpop.permute.xlu0 %8115
    %8119 = vset.pattern.permute.xlu0 0
    %8120 = vperm.xlu0 %8119, %v8074
    %v8121 = vpop.permute.xlu0 %8120
    %8124 = vset.pattern.permute.xlu0 0
    %8125 = vperm.xlu0 %8124, %v8075
    %v8126 = vpop.permute.xlu0 %8125
    %8129 = vset.pattern.permute.xlu0 0
    %8130 = vperm.xlu0 %8129, %v8076
    %v8131 = vpop.permute.xlu0 %8130
    %8134 = vset.pattern.permute.xlu0 0
    %8135 = vperm.xlu0 %8134, %v8077
    %v8136 = vpop.permute.xlu0 %8135
    %8139 = vset.pattern.permute.xlu0 0
    %8140 = vperm.xlu0 %8139, %v8078
    %v8141 = vpop.permute.xlu0 %8140
    %8144 = vset.pattern.permute.xlu0 0
    %8145 = vperm.xlu0 %8144, %v8079
    %v8146 = vpop.permute.xlu0 %8145
    %8149 = vset.pattern.permute.xlu0 0
    %8150 = vperm.xlu0 %8149, %v8080
    %v8151 = vpop.permute.xlu0 %8150
    %8154 = vset.pattern.permute.xlu0 0
    %8155 = vperm.xlu0 %8154, %v8081
    %v8156 = vpop.permute.xlu0 %8155
    %8159 = vset.pattern.permute.xlu0 0
    %8160 = vperm.xlu0 %8159, %v8082
    %v8161 = vpop.permute.xlu0 %8160
    %v8163 = vmul.f32 %v8051, %v8086
    %v8164 = vmul.f32 %v8052, %v8091
    %v8165 = vmul.f32 %v8053, %v8096
    %v8166 = vmul.f32 %v8054, %v8101
    %v8167 = vmul.f32 %v8055, %v8106
    %v8168 = vmul.f32 %v8056, %v8111
    %v8169 = vmul.f32 %v8057, %v8116
    %v8170 = vmul.f32 %v8058, %v8121
    %v8171 = vmul.f32 %v8059, %v8126
    %v8172 = vmul.f32 %v8060, %v8131
    %v8173 = vmul.f32 %v8061, %v8136
    %v8174 = vmul.f32 %v8062, %v8141
    %v8175 = vmul.f32 %v8063, %v8146
    %v8176 = vmul.f32 %v8064, %v8151
    %v8177 = vmul.f32 %v8065, %v8156
    %v8178 = vmul.f32 %v8066, %v8161
    %v8179 = vld [vmem:[%s3685] sm:$0xff]
    %v8180 = vld [vmem:[%s3685 + $0x8] sm:$0xff]
    %v8181 = vld [vmem:[%s3685 + $0x10] sm:$0xff]
    %v8182 = vld [vmem:[%s3685 + $0x18] sm:$0xff]
    %v8183 = vld [vmem:[%s3685 + $0x20] sm:$0xff]
    %v8184 = vld [vmem:[%s3685 + $0x28] sm:$0xff]
    %v8185 = vld [vmem:[%s3685 + $0x30] sm:$0xff]
    %v8186 = vld [vmem:[%s3685 + $0x38] sm:$0xff]
    %v8187 = vld [vmem:[%s3685 + $0x40] sm:$0xff]
    %v8188 = vld [vmem:[%s3685 + $0x48] sm:$0xff]
    %v8189 = vld [vmem:[%s3685 + $0x50] sm:$0xff]
    %v8190 = vld [vmem:[%s3685 + $0x58] sm:$0xff]
    %v8191 = vld [vmem:[%s3685 + $0x60] sm:$0xff]
    %v8192 = vld [vmem:[%s3685 + $0x68] sm:$0xff]
    %v8193 = vld [vmem:[%s3685 + $0x70] sm:$0xff]
    %v8194 = vld [vmem:[%s3685 + $0x78] sm:$0xff]
    %vm8195 = vcmp.gt.f32.partialorder %v8179, 0.0
    %vm8196 = vcmp.gt.f32.partialorder %v8180, 0.0
    %vm8197 = vcmp.gt.f32.partialorder %v8181, 0.0
    %vm8198 = vcmp.gt.f32.partialorder %v8182, 0.0
    %vm8199 = vcmp.gt.f32.partialorder %v8183, 0.0
    %vm8200 = vcmp.gt.f32.partialorder %v8184, 0.0
    %vm8201 = vcmp.gt.f32.partialorder %v8185, 0.0
    %vm8202 = vcmp.gt.f32.partialorder %v8186, 0.0
    %vm8203 = vcmp.gt.f32.partialorder %v8187, 0.0
    %vm8204 = vcmp.gt.f32.partialorder %v8188, 0.0
    %vm8205 = vcmp.gt.f32.partialorder %v8189, 0.0
    %vm8206 = vcmp.gt.f32.partialorder %v8190, 0.0
    %vm8207 = vcmp.gt.f32.partialorder %v8191, 0.0
    %vm8208 = vcmp.gt.f32.partialorder %v8192, 0.0
    %vm8209 = vcmp.gt.f32.partialorder %v8193, 0.0
    %vm8210 = vcmp.gt.f32.partialorder %v8194, 0.0
    %v8211 = vsel %vm8195, %v8179, 1.0
    %v8212 = vsel %vm8196, %v8180, 1.0
    %v8213 = vsel %vm8197, %v8181, 1.0
    %v8214 = vsel %vm8198, %v8182, 1.0
    %v8215 = vsel %vm8199, %v8183, 1.0
    %v8216 = vsel %vm8200, %v8184, 1.0
    %v8217 = vsel %vm8201, %v8185, 1.0
    %v8218 = vsel %vm8202, %v8186, 1.0
    %v8219 = vsel %vm8203, %v8187, 1.0
    %v8220 = vsel %vm8204, %v8188, 1.0
    %v8221 = vsel %vm8205, %v8189, 1.0
    %v8222 = vsel %vm8206, %v8190, 1.0
    %v8223 = vsel %vm8207, %v8191, 1.0
    %v8224 = vsel %vm8208, %v8192, 1.0
    %v8225 = vsel %vm8209, %v8193, 1.0
    %v8226 = vsel %vm8210, %v8194, 1.0
    %v8227 = vld [vmem:[%s3798] sm:$0xff]
    %v8228 = vld [vmem:[%s3798 + $0x8] sm:$0xff]
    %v8229 = vld [vmem:[%s3798 + $0x10] sm:$0xff]
    %v8230 = vld [vmem:[%s3798 + $0x18] sm:$0xff]
    %v8231 = vld [vmem:[%s3798 + $0x20] sm:$0xff]
    %v8232 = vld [vmem:[%s3798 + $0x28] sm:$0xff]
    %v8233 = vld [vmem:[%s3798 + $0x30] sm:$0xff]
    %v8234 = vld [vmem:[%s3798 + $0x38] sm:$0xff]
    %v8235 = vld [vmem:[%s3798 + $0x40] sm:$0xff]
    %v8236 = vld [vmem:[%s3798 + $0x48] sm:$0xff]
    %v8237 = vld [vmem:[%s3798 + $0x50] sm:$0xff]
    %v8238 = vld [vmem:[%s3798 + $0x58] sm:$0xff]
    %v8239 = vld [vmem:[%s3798 + $0x60] sm:$0xff]
    %v8240 = vld [vmem:[%s3798 + $0x68] sm:$0xff]
    %v8241 = vld [vmem:[%s3798 + $0x70] sm:$0xff]
    %v8242 = vld [vmem:[%s3798 + $0x78] sm:$0xff]
    %v8243 = vrcp.pop %v8211
    %v8244 = vrcp.pop %v8212
    %v8245 = vrcp.pop %v8213
    %v8246 = vrcp.pop %v8214
    %v8247 = vrcp.pop %v8215
    %v8248 = vrcp.pop %v8216
    %v8249 = vrcp.pop %v8217
    %v8250 = vrcp.pop %v8218
    %v8251 = vrcp.pop %v8219
    %v8252 = vrcp.pop %v8220
    %v8253 = vrcp.pop %v8221
    %v8254 = vrcp.pop %v8222
    %v8255 = vrcp.pop %v8223
    %v8256 = vrcp.pop %v8224
    %v8257 = vrcp.pop %v8225
    %v8258 = vrcp.pop %v8226
    %8260 = vset.pattern.permute.xlu0 0
    %8261 = vperm.xlu0 %8260, %v8243
    %v8262 = vpop.permute.xlu0 %8261
    %8265 = vset.pattern.permute.xlu0 0
    %8266 = vperm.xlu0 %8265, %v8244
    %v8267 = vpop.permute.xlu0 %8266
    %8270 = vset.pattern.permute.xlu0 0
    %8271 = vperm.xlu0 %8270, %v8245
    %v8272 = vpop.permute.xlu0 %8271
    %8275 = vset.pattern.permute.xlu0 0
    %8276 = vperm.xlu0 %8275, %v8246
    %v8277 = vpop.permute.xlu0 %8276
    %8280 = vset.pattern.permute.xlu0 0
    %8281 = vperm.xlu0 %8280, %v8247
    %v8282 = vpop.permute.xlu0 %8281
    %8285 = vset.pattern.permute.xlu0 0
    %8286 = vperm.xlu0 %8285, %v8248
    %v8287 = vpop.permute.xlu0 %8286
    %8290 = vset.pattern.permute.xlu0 0
    %8291 = vperm.xlu0 %8290, %v8249
    %v8292 = vpop.permute.xlu0 %8291
    %8295 = vset.pattern.permute.xlu0 0
    %8296 = vperm.xlu0 %8295, %v8250
    %v8297 = vpop.permute.xlu0 %8296
    %8300 = vset.pattern.permute.xlu0 0
    %8301 = vperm.xlu0 %8300, %v8251
    %v8302 = vpop.permute.xlu0 %8301
    %8305 = vset.pattern.permute.xlu0 0
    %8306 = vperm.xlu0 %8305, %v8252
    %v8307 = vpop.permute.xlu0 %8306
    %8310 = vset.pattern.permute.xlu0 0
    %8311 = vperm.xlu0 %8310, %v8253
    %v8312 = vpop.permute.xlu0 %8311
    %8315 = vset.pattern.permute.xlu0 0
    %8316 = vperm.xlu0 %8315, %v8254
    %v8317 = vpop.permute.xlu0 %8316
    %8320 = vset.pattern.permute.xlu0 0
    %8321 = vperm.xlu0 %8320, %v8255
    %v8322 = vpop.permute.xlu0 %8321
    %8325 = vset.pattern.permute.xlu0 0
    %8326 = vperm.xlu0 %8325, %v8256
    %v8327 = vpop.permute.xlu0 %8326
    %8330 = vset.pattern.permute.xlu0 0
    %8331 = vperm.xlu0 %8330, %v8257
    %v8332 = vpop.permute.xlu0 %8331
    %8335 = vset.pattern.permute.xlu0 0
    %8336 = vperm.xlu0 %8335, %v8258
    %v8337 = vpop.permute.xlu0 %8336
    %v8339 = vmul.f32 %v8227, %v8262
    %v8340 = vmul.f32 %v8228, %v8267
    %v8341 = vmul.f32 %v8229, %v8272
    %v8342 = vmul.f32 %v8230, %v8277
    %v8343 = vmul.f32 %v8231, %v8282
    %v8344 = vmul.f32 %v8232, %v8287
    %v8345 = vmul.f32 %v8233, %v8292
    %v8346 = vmul.f32 %v8234, %v8297
    %v8347 = vmul.f32 %v8235, %v8302
    %v8348 = vmul.f32 %v8236, %v8307
    %v8349 = vmul.f32 %v8237, %v8312
    %v8350 = vmul.f32 %v8238, %v8317
    %v8351 = vmul.f32 %v8239, %v8322
    %v8352 = vmul.f32 %v8240, %v8327
    %v8353 = vmul.f32 %v8241, %v8332
    %v8354 = vmul.f32 %v8242, %v8337
    %v8355 = vld [vmem:[%s5629] sm:$0xff]
    %v8356 = vld [vmem:[%s5629 + $0x8] sm:$0xff]
    %v8357 = vld [vmem:[%s5629 + $0x10] sm:$0xff]
    %v8358 = vld [vmem:[%s5629 + $0x18] sm:$0xff]
    %v8359 = vld [vmem:[%s5629 + $0x20] sm:$0xff]
    %v8360 = vld [vmem:[%s5629 + $0x28] sm:$0xff]
    %v8361 = vld [vmem:[%s5629 + $0x30] sm:$0xff]
    %v8362 = vld [vmem:[%s5629 + $0x38] sm:$0xff]
    %v8363 = vld [vmem:[%s5629 + $0x40] sm:$0xff]
    %v8364 = vld [vmem:[%s5629 + $0x48] sm:$0xff]
    %v8365 = vld [vmem:[%s5629 + $0x50] sm:$0xff]
    %v8366 = vld [vmem:[%s5629 + $0x58] sm:$0xff]
    %v8367 = vld [vmem:[%s5629 + $0x60] sm:$0xff]
    %v8368 = vld [vmem:[%s5629 + $0x68] sm:$0xff]
    %v8369 = vld [vmem:[%s5629 + $0x70] sm:$0xff]
    %v8370 = vld [vmem:[%s5629 + $0x78] sm:$0xff]
    %vm8371 = vcmp.gt.f32.partialorder %v8355, 0.0
    %vm8372 = vcmp.gt.f32.partialorder %v8356, 0.0
    %vm8373 = vcmp.gt.f32.partialorder %v8357, 0.0
    %vm8374 = vcmp.gt.f32.partialorder %v8358, 0.0
    %vm8375 = vcmp.gt.f32.partialorder %v8359, 0.0
    %vm8376 = vcmp.gt.f32.partialorder %v8360, 0.0
    %vm8377 = vcmp.gt.f32.partialorder %v8361, 0.0
    %vm8378 = vcmp.gt.f32.partialorder %v8362, 0.0
    %vm8379 = vcmp.gt.f32.partialorder %v8363, 0.0
    %vm8380 = vcmp.gt.f32.partialorder %v8364, 0.0
    %vm8381 = vcmp.gt.f32.partialorder %v8365, 0.0
    %vm8382 = vcmp.gt.f32.partialorder %v8366, 0.0
    %vm8383 = vcmp.gt.f32.partialorder %v8367, 0.0
    %vm8384 = vcmp.gt.f32.partialorder %v8368, 0.0
    %vm8385 = vcmp.gt.f32.partialorder %v8369, 0.0
    %vm8386 = vcmp.gt.f32.partialorder %v8370, 0.0
    %v8387 = vsel %vm8371, %v8355, 1.0
    %v8388 = vsel %vm8372, %v8356, 1.0
    %v8389 = vsel %vm8373, %v8357, 1.0
    %v8390 = vsel %vm8374, %v8358, 1.0
    %v8391 = vsel %vm8375, %v8359, 1.0
    %v8392 = vsel %vm8376, %v8360, 1.0
    %v8393 = vsel %vm8377, %v8361, 1.0
    %v8394 = vsel %vm8378, %v8362, 1.0
    %v8395 = vsel %vm8379, %v8363, 1.0
    %v8396 = vsel %vm8380, %v8364, 1.0
    %v8397 = vsel %vm8381, %v8365, 1.0
    %v8398 = vsel %vm8382, %v8366, 1.0
    %v8399 = vsel %vm8383, %v8367, 1.0
    %v8400 = vsel %vm8384, %v8368, 1.0
    %v8401 = vsel %vm8385, %v8369, 1.0
    %v8402 = vsel %vm8386, %v8370, 1.0
    %v8403 = vld [vmem:[%s5742] sm:$0xff]
    %v8404 = vld [vmem:[%s5742 + $0x8] sm:$0xff]
    %v8405 = vld [vmem:[%s5742 + $0x10] sm:$0xff]
    %v8406 = vld [vmem:[%s5742 + $0x18] sm:$0xff]
    %v8407 = vld [vmem:[%s5742 + $0x20] sm:$0xff]
    %v8408 = vld [vmem:[%s5742 + $0x28] sm:$0xff]
    %v8409 = vld [vmem:[%s5742 + $0x30] sm:$0xff]
    %v8410 = vld [vmem:[%s5742 + $0x38] sm:$0xff]
    %v8411 = vld [vmem:[%s5742 + $0x40] sm:$0xff]
    %v8412 = vld [vmem:[%s5742 + $0x48] sm:$0xff]
    %v8413 = vld [vmem:[%s5742 + $0x50] sm:$0xff]
    %v8414 = vld [vmem:[%s5742 + $0x58] sm:$0xff]
    %v8415 = vld [vmem:[%s5742 + $0x60] sm:$0xff]
    %v8416 = vld [vmem:[%s5742 + $0x68] sm:$0xff]
    %v8417 = vld [vmem:[%s5742 + $0x70] sm:$0xff]
    %v8418 = vld [vmem:[%s5742 + $0x78] sm:$0xff]
    %v8419 = vrcp.pop %v8387
    %v8420 = vrcp.pop %v8388
    %v8421 = vrcp.pop %v8389
    %v8422 = vrcp.pop %v8390
    %v8423 = vrcp.pop %v8391
    %v8424 = vrcp.pop %v8392
    %v8425 = vrcp.pop %v8393
    %v8426 = vrcp.pop %v8394
    %v8427 = vrcp.pop %v8395
    %v8428 = vrcp.pop %v8396
    %v8429 = vrcp.pop %v8397
    %v8430 = vrcp.pop %v8398
    %v8431 = vrcp.pop %v8399
    %v8432 = vrcp.pop %v8400
    %v8433 = vrcp.pop %v8401
    %v8434 = vrcp.pop %v8402
    %8436 = vset.pattern.permute.xlu0 0
    %8437 = vperm.xlu0 %8436, %v8419
    %v8438 = vpop.permute.xlu0 %8437
    %8441 = vset.pattern.permute.xlu0 0
    %8442 = vperm.xlu0 %8441, %v8420
    %v8443 = vpop.permute.xlu0 %8442
    %8446 = vset.pattern.permute.xlu0 0
    %8447 = vperm.xlu0 %8446, %v8421
    %v8448 = vpop.permute.xlu0 %8447
    %8451 = vset.pattern.permute.xlu0 0
    %8452 = vperm.xlu0 %8451, %v8422
    %v8453 = vpop.permute.xlu0 %8452
    %8456 = vset.pattern.permute.xlu0 0
    %8457 = vperm.xlu0 %8456, %v8423
    %v8458 = vpop.permute.xlu0 %8457
    %8461 = vset.pattern.permute.xlu0 0
    %8462 = vperm.xlu0 %8461, %v8424
    %v8463 = vpop.permute.xlu0 %8462
    %8466 = vset.pattern.permute.xlu0 0
    %8467 = vperm.xlu0 %8466, %v8425
    %v8468 = vpop.permute.xlu0 %8467
    %8471 = vset.pattern.permute.xlu0 0
    %8472 = vperm.xlu0 %8471, %v8426
    %v8473 = vpop.permute.xlu0 %8472
    %8476 = vset.pattern.permute.xlu0 0
    %8477 = vperm.xlu0 %8476, %v8427
    %v8478 = vpop.permute.xlu0 %8477
    %8481 = vset.pattern.permute.xlu0 0
    %8482 = vperm.xlu0 %8481, %v8428
    %v8483 = vpop.permute.xlu0 %8482
    %8486 = vset.pattern.permute.xlu0 0
    %8487 = vperm.xlu0 %8486, %v8429
    %v8488 = vpop.permute.xlu0 %8487
    %8491 = vset.pattern.permute.xlu0 0
    %8492 = vperm.xlu0 %8491, %v8430
    %v8493 = vpop.permute.xlu0 %8492
    %8496 = vset.pattern.permute.xlu0 0
    %8497 = vperm.xlu0 %8496, %v8431
    %v8498 = vpop.permute.xlu0 %8497
    %8501 = vset.pattern.permute.xlu0 0
    %8502 = vperm.xlu0 %8501, %v8432
    %v8503 = vpop.permute.xlu0 %8502
    %8506 = vset.pattern.permute.xlu0 0
    %8507 = vperm.xlu0 %8506, %v8433
    %v8508 = vpop.permute.xlu0 %8507
    %8511 = vset.pattern.permute.xlu0 0
    %8512 = vperm.xlu0 %8511, %v8434
    %v8513 = vpop.permute.xlu0 %8512
    %v8515 = vmul.f32 %v8403, %v8438
    %v8516 = vmul.f32 %v8404, %v8443
    %v8517 = vmul.f32 %v8405, %v8448
    %v8518 = vmul.f32 %v8406, %v8453
    %v8519 = vmul.f32 %v8407, %v8458
    %v8520 = vmul.f32 %v8408, %v8463
    %v8521 = vmul.f32 %v8409, %v8468
    %v8522 = vmul.f32 %v8410, %v8473
    %v8523 = vmul.f32 %v8411, %v8478
    %v8524 = vmul.f32 %v8412, %v8483
    %v8525 = vmul.f32 %v8413, %v8488
    %v8526 = vmul.f32 %v8414, %v8493
    %v8527 = vmul.f32 %v8415, %v8498
    %v8528 = vmul.f32 %v8416, %v8503
    %v8529 = vmul.f32 %v8417, %v8508
    %v8530 = vmul.f32 %v8418, %v8513
    %v8531 = vld [vmem:[%s7573] sm:$0xff]
    %v8532 = vld [vmem:[%s7573 + $0x8] sm:$0xff]
    %v8533 = vld [vmem:[%s7573 + $0x10] sm:$0xff]
    %v8534 = vld [vmem:[%s7573 + $0x18] sm:$0xff]
    %v8535 = vld [vmem:[%s7573 + $0x20] sm:$0xff]
    %v8536 = vld [vmem:[%s7573 + $0x28] sm:$0xff]
    %v8537 = vld [vmem:[%s7573 + $0x30] sm:$0xff]
    %v8538 = vld [vmem:[%s7573 + $0x38] sm:$0xff]
    %v8539 = vld [vmem:[%s7573 + $0x40] sm:$0xff]
    %v8540 = vld [vmem:[%s7573 + $0x48] sm:$0xff]
    %v8541 = vld [vmem:[%s7573 + $0x50] sm:$0xff]
    %v8542 = vld [vmem:[%s7573 + $0x58] sm:$0xff]
    %v8543 = vld [vmem:[%s7573 + $0x60] sm:$0xff]
    %v8544 = vld [vmem:[%s7573 + $0x68] sm:$0xff]
    %v8545 = vld [vmem:[%s7573 + $0x70] sm:$0xff]
    %v8546 = vld [vmem:[%s7573 + $0x78] sm:$0xff]
    %vm8547 = vcmp.gt.f32.partialorder %v8531, 0.0
    %vm8548 = vcmp.gt.f32.partialorder %v8532, 0.0
    %vm8549 = vcmp.gt.f32.partialorder %v8533, 0.0
    %vm8550 = vcmp.gt.f32.partialorder %v8534, 0.0
    %vm8551 = vcmp.gt.f32.partialorder %v8535, 0.0
    %vm8552 = vcmp.gt.f32.partialorder %v8536, 0.0
    %vm8553 = vcmp.gt.f32.partialorder %v8537, 0.0
    %vm8554 = vcmp.gt.f32.partialorder %v8538, 0.0
    %vm8555 = vcmp.gt.f32.partialorder %v8539, 0.0
    %vm8556 = vcmp.gt.f32.partialorder %v8540, 0.0
    %vm8557 = vcmp.gt.f32.partialorder %v8541, 0.0
    %vm8558 = vcmp.gt.f32.partialorder %v8542, 0.0
    %vm8559 = vcmp.gt.f32.partialorder %v8543, 0.0
    %vm8560 = vcmp.gt.f32.partialorder %v8544, 0.0
    %vm8561 = vcmp.gt.f32.partialorder %v8545, 0.0
    %vm8562 = vcmp.gt.f32.partialorder %v8546, 0.0
    %v8563 = vsel %vm8547, %v8531, 1.0
    %v8564 = vsel %vm8548, %v8532, 1.0
    %v8565 = vsel %vm8549, %v8533, 1.0
    %v8566 = vsel %vm8550, %v8534, 1.0
    %v8567 = vsel %vm8551, %v8535, 1.0
    %v8568 = vsel %vm8552, %v8536, 1.0
    %v8569 = vsel %vm8553, %v8537, 1.0
    %v8570 = vsel %vm8554, %v8538, 1.0
    %v8571 = vsel %vm8555, %v8539, 1.0
    %v8572 = vsel %vm8556, %v8540, 1.0
    %v8573 = vsel %vm8557, %v8541, 1.0
    %v8574 = vsel %vm8558, %v8542, 1.0
    %v8575 = vsel %vm8559, %v8543, 1.0
    %v8576 = vsel %vm8560, %v8544, 1.0
    %v8577 = vsel %vm8561, %v8545, 1.0
    %v8578 = vsel %vm8562, %v8546, 1.0
    %v8579 = vld [vmem:[%s7686] sm:$0xff]
    %v8580 = vld [vmem:[%s7686 + $0x8] sm:$0xff]
    %v8581 = vld [vmem:[%s7686 + $0x10] sm:$0xff]
    %v8582 = vld [vmem:[%s7686 + $0x18] sm:$0xff]
    %v8583 = vld [vmem:[%s7686 + $0x20] sm:$0xff]
    %v8584 = vld [vmem:[%s7686 + $0x28] sm:$0xff]
    %v8585 = vld [vmem:[%s7686 + $0x30] sm:$0xff]
    %v8586 = vld [vmem:[%s7686 + $0x38] sm:$0xff]
    %v8587 = vld [vmem:[%s7686 + $0x40] sm:$0xff]
    %v8588 = vld [vmem:[%s7686 + $0x48] sm:$0xff]
    %v8589 = vld [vmem:[%s7686 + $0x50] sm:$0xff]
    %v8590 = vld [vmem:[%s7686 + $0x58] sm:$0xff]
    %v8591 = vld [vmem:[%s7686 + $0x60] sm:$0xff]
    %v8592 = vld [vmem:[%s7686 + $0x68] sm:$0xff]
    %v8593 = vld [vmem:[%s7686 + $0x70] sm:$0xff]
    %v8594 = vld [vmem:[%s7686 + $0x78] sm:$0xff]
    %v8595 = vrcp.pop %v8563
    %v8596 = vrcp.pop %v8564
    %v8597 = vrcp.pop %v8565
    %v8598 = vrcp.pop %v8566
    %v8599 = vrcp.pop %v8567
    %v8600 = vrcp.pop %v8568
    %v8601 = vrcp.pop %v8569
    %v8602 = vrcp.pop %v8570
    %v8603 = vrcp.pop %v8571
    %v8604 = vrcp.pop %v8572
    %v8605 = vrcp.pop %v8573
    %v8606 = vrcp.pop %v8574
    %v8607 = vrcp.pop %v8575
    %v8608 = vrcp.pop %v8576
    %v8609 = vrcp.pop %v8577
    %v8610 = vrcp.pop %v8578
    %8612 = vset.pattern.permute.xlu0 0
    %8613 = vperm.xlu0 %8612, %v8595
    %v8614 = vpop.permute.xlu0 %8613
    %8617 = vset.pattern.permute.xlu0 0
    %8618 = vperm.xlu0 %8617, %v8596
    %v8619 = vpop.permute.xlu0 %8618
    %8622 = vset.pattern.permute.xlu0 0
    %8623 = vperm.xlu0 %8622, %v8597
    %v8624 = vpop.permute.xlu0 %8623
    %8627 = vset.pattern.permute.xlu0 0
    %8628 = vperm.xlu0 %8627, %v8598
    %v8629 = vpop.permute.xlu0 %8628
    %8632 = vset.pattern.permute.xlu0 0
    %8633 = vperm.xlu0 %8632, %v8599
    %v8634 = vpop.permute.xlu0 %8633
    %8637 = vset.pattern.permute.xlu0 0
    %8638 = vperm.xlu0 %8637, %v8600
    %v8639 = vpop.permute.xlu0 %8638
    %8642 = vset.pattern.permute.xlu0 0
    %8643 = vperm.xlu0 %8642, %v8601
    %v8644 = vpop.permute.xlu0 %8643
    %8647 = vset.pattern.permute.xlu0 0
    %8648 = vperm.xlu0 %8647, %v8602
    %v8649 = vpop.permute.xlu0 %8648
    %8652 = vset.pattern.permute.xlu0 0
    %8653 = vperm.xlu0 %8652, %v8603
    %v8654 = vpop.permute.xlu0 %8653
    %8657 = vset.pattern.permute.xlu0 0
    %8658 = vperm.xlu0 %8657, %v8604
    %v8659 = vpop.permute.xlu0 %8658
    %8662 = vset.pattern.permute.xlu0 0
    %8663 = vperm.xlu0 %8662, %v8605
    %v8664 = vpop.permute.xlu0 %8663
    %8667 = vset.pattern.permute.xlu0 0
    %8668 = vperm.xlu0 %8667, %v8606
    %v8669 = vpop.permute.xlu0 %8668
    %8672 = vset.pattern.permute.xlu0 0
    %8673 = vperm.xlu0 %8672, %v8607
    %v8674 = vpop.permute.xlu0 %8673
    %8677 = vset.pattern.permute.xlu0 0
    %8678 = vperm.xlu0 %8677, %v8608
    %v8679 = vpop.permute.xlu0 %8678
    %8682 = vset.pattern.permute.xlu0 0
    %8683 = vperm.xlu0 %8682, %v8609
    %v8684 = vpop.permute.xlu0 %8683
    %8687 = vset.pattern.permute.xlu0 0
    %8688 = vperm.xlu0 %8687, %v8610
    %v8689 = vpop.permute.xlu0 %8688
    %v8691 = vmul.f32 %v8579, %v8614
    %v8692 = vmul.f32 %v8580, %v8619
    %v8693 = vmul.f32 %v8581, %v8624
    %v8694 = vmul.f32 %v8582, %v8629
    %v8695 = vmul.f32 %v8583, %v8634
    %v8696 = vmul.f32 %v8584, %v8639
    %v8697 = vmul.f32 %v8585, %v8644
    %v8698 = vmul.f32 %v8586, %v8649
    %v8699 = vmul.f32 %v8587, %v8654
    %v8700 = vmul.f32 %v8588, %v8659
    %v8701 = vmul.f32 %v8589, %v8664
    %v8702 = vmul.f32 %v8590, %v8669
    %v8703 = vmul.f32 %v8591, %v8674
    %v8704 = vmul.f32 %v8592, %v8679
    %v8705 = vmul.f32 %v8593, %v8684
    %v8706 = vmul.f32 %v8594, %v8689
    %8723 = vrot.lane.b32.xlu0 %v8339, 8
    %v8724 = vpop.permute.xlu0 %8723
    %8725 = vrot.lane.b32.xlu0 %v8340, 8
    %v8726 = vpop.permute.xlu0 %8725
    %8727 = vrot.lane.b32.xlu0 %v8341, 8
    %v8728 = vpop.permute.xlu0 %8727
    %8729 = vrot.lane.b32.xlu0 %v8342, 8
    %v8730 = vpop.permute.xlu0 %8729
    %8731 = vrot.lane.b32.xlu0 %v8343, 8
    %v8732 = vpop.permute.xlu0 %8731
    %8733 = vrot.lane.b32.xlu0 %v8344, 8
    %v8734 = vpop.permute.xlu0 %8733
    %8735 = vrot.lane.b32.xlu0 %v8345, 8
    %v8736 = vpop.permute.xlu0 %8735
    %8737 = vrot.lane.b32.xlu0 %v8346, 8
    %v8738 = vpop.permute.xlu0 %8737
    %8739 = vrot.lane.b32.xlu0 %v8347, 8
    %v8740 = vpop.permute.xlu0 %8739
    %8741 = vrot.lane.b32.xlu0 %v8348, 8
    %v8742 = vpop.permute.xlu0 %8741
    %8743 = vrot.lane.b32.xlu0 %v8349, 8
    %v8744 = vpop.permute.xlu0 %8743
    %8745 = vrot.lane.b32.xlu0 %v8350, 8
    %v8746 = vpop.permute.xlu0 %8745
    %8747 = vrot.lane.b32.xlu0 %v8351, 8
    %v8748 = vpop.permute.xlu0 %8747
    %8749 = vrot.lane.b32.xlu0 %v8352, 8
    %v8750 = vpop.permute.xlu0 %8749
    %8751 = vrot.lane.b32.xlu0 %v8353, 8
    %v8752 = vpop.permute.xlu0 %8751
    %8753 = vrot.lane.b32.xlu0 %v8354, 8
    %v8754 = vpop.permute.xlu0 %8753
    %8787 = vrot.lane.b32.xlu0 %v8515, 16
    %v8788 = vpop.permute.xlu0 %8787
    %8789 = vrot.lane.b32.xlu0 %v8516, 16
    %v8790 = vpop.permute.xlu0 %8789
    %8791 = vrot.lane.b32.xlu0 %v8517, 16
    %v8792 = vpop.permute.xlu0 %8791
    %8793 = vrot.lane.b32.xlu0 %v8518, 16
    %v8794 = vpop.permute.xlu0 %8793
    %8795 = vrot.lane.b32.xlu0 %v8519, 16
    %v8796 = vpop.permute.xlu0 %8795
    %8797 = vrot.lane.b32.xlu0 %v8520, 16
    %v8798 = vpop.permute.xlu0 %8797
    %8799 = vrot.lane.b32.xlu0 %v8521, 16
    %v8800 = vpop.permute.xlu0 %8799
    %8801 = vrot.lane.b32.xlu0 %v8522, 16
    %v8802 = vpop.permute.xlu0 %8801
    %8803 = vrot.lane.b32.xlu0 %v8523, 16
    %v8804 = vpop.permute.xlu0 %8803
    %8805 = vrot.lane.b32.xlu0 %v8524, 16
    %v8806 = vpop.permute.xlu0 %8805
    %8807 = vrot.lane.b32.xlu0 %v8525, 16
    %v8808 = vpop.permute.xlu0 %8807
    %8809 = vrot.lane.b32.xlu0 %v8526, 16
    %v8810 = vpop.permute.xlu0 %8809
    %8811 = vrot.lane.b32.xlu0 %v8527, 16
    %v8812 = vpop.permute.xlu0 %8811
    %8813 = vrot.lane.b32.xlu0 %v8528, 16
    %v8814 = vpop.permute.xlu0 %8813
    %8815 = vrot.lane.b32.xlu0 %v8529, 16
    %v8816 = vpop.permute.xlu0 %8815
    %8817 = vrot.lane.b32.xlu0 %v8530, 16
    %v8818 = vpop.permute.xlu0 %8817
    %8851 = vrot.lane.b32.xlu0 %v8691, 24
    %v8852 = vpop.permute.xlu0 %8851
    %8853 = vrot.lane.b32.xlu0 %v8692, 24
    %v8854 = vpop.permute.xlu0 %8853
    %8855 = vrot.lane.b32.xlu0 %v8693, 24
    %v8856 = vpop.permute.xlu0 %8855
    %8857 = vrot.lane.b32.xlu0 %v8694, 24
    %v8858 = vpop.permute.xlu0 %8857
    %8859 = vrot.lane.b32.xlu0 %v8695, 24
    %v8860 = vpop.permute.xlu0 %8859
    %8861 = vrot.lane.b32.xlu0 %v8696, 24
    %v8862 = vpop.permute.xlu0 %8861
    %8863 = vrot.lane.b32.xlu0 %v8697, 24
    %v8864 = vpop.permute.xlu0 %8863
    %8865 = vrot.lane.b32.xlu0 %v8698, 24
    %v8866 = vpop.permute.xlu0 %8865
    %8867 = vrot.lane.b32.xlu0 %v8699, 24
    %v8868 = vpop.permute.xlu0 %8867
    %8869 = vrot.lane.b32.xlu0 %v8700, 24
    %v8870 = vpop.permute.xlu0 %8869
    %8871 = vrot.lane.b32.xlu0 %v8701, 24
    %v8872 = vpop.permute.xlu0 %8871
    %8873 = vrot.lane.b32.xlu0 %v8702, 24
    %v8874 = vpop.permute.xlu0 %8873
    %8875 = vrot.lane.b32.xlu0 %v8703, 24
    %v8876 = vpop.permute.xlu0 %8875
    %8877 = vrot.lane.b32.xlu0 %v8704, 24
    %v8878 = vpop.permute.xlu0 %8877
    %8879 = vrot.lane.b32.xlu0 %v8705, 24
    %v8880 = vpop.permute.xlu0 %8879
    %8881 = vrot.lane.b32.xlu0 %v8706, 24
    %v8882 = vpop.permute.xlu0 %8881
    %v8899 = vsel %vm2135, %v8163, %v8724
    %v8900 = vsel %vm2135, %v8164, %v8726
    %v8901 = vsel %vm2135, %v8165, %v8728
    %v8902 = vsel %vm2135, %v8166, %v8730
    %v8903 = vsel %vm2135, %v8167, %v8732
    %v8904 = vsel %vm2135, %v8168, %v8734
    %v8905 = vsel %vm2135, %v8169, %v8736
    %v8906 = vsel %vm2135, %v8170, %v8738
    %v8907 = vsel %vm2135, %v8171, %v8740
    %v8908 = vsel %vm2135, %v8172, %v8742
    %v8909 = vsel %vm2135, %v8173, %v8744
    %v8910 = vsel %vm2135, %v8174, %v8746
    %v8911 = vsel %vm2135, %v8175, %v8748
    %v8912 = vsel %vm2135, %v8176, %v8750
    %v8913 = vsel %vm2135, %v8177, %v8752
    %v8914 = vsel %vm2135, %v8178, %v8754
    %vm8915 = vcmask 130048
    %v8916 = vsel %vm8915, %v8899, %v8788
    %v8917 = vsel %vm8915, %v8900, %v8790
    %v8918 = vsel %vm8915, %v8901, %v8792
    %v8919 = vsel %vm8915, %v8902, %v8794
    %v8920 = vsel %vm8915, %v8903, %v8796
    %v8921 = vsel %vm8915, %v8904, %v8798
    %v8922 = vsel %vm8915, %v8905, %v8800
    %v8923 = vsel %vm8915, %v8906, %v8802
    %v8924 = vsel %vm8915, %v8907, %v8804
    %v8925 = vsel %vm8915, %v8908, %v8806
    %v8926 = vsel %vm8915, %v8909, %v8808
    %v8927 = vsel %vm8915, %v8910, %v8810
    %v8928 = vsel %vm8915, %v8911, %v8812
    %v8929 = vsel %vm8915, %v8912, %v8814
    %v8930 = vsel %vm8915, %v8913, %v8816
    %v8931 = vsel %vm8915, %v8914, %v8818
    %vm8932 = vcmask 195584
    %v8933 = vsel %vm8932, %v8916, %v8852
    %v8934 = vsel %vm8932, %v8917, %v8854
    %v8935 = vsel %vm8932, %v8918, %v8856
    %v8936 = vsel %vm8932, %v8919, %v8858
    %v8937 = vsel %vm8932, %v8920, %v8860
    %v8938 = vsel %vm8932, %v8921, %v8862
    %v8939 = vsel %vm8932, %v8922, %v8864
    %v8940 = vsel %vm8932, %v8923, %v8866
    %v8941 = vsel %vm8932, %v8924, %v8868
    %v8942 = vsel %vm8932, %v8925, %v8870
    %v8943 = vsel %vm8932, %v8926, %v8872
    %v8944 = vsel %vm8932, %v8927, %v8874
    %v8945 = vsel %vm8932, %v8928, %v8876
    %v8946 = vsel %vm8932, %v8929, %v8878
    %v8947 = vsel %vm8932, %v8930, %v8880
    %v8948 = vsel %vm8932, %v8931, %v8882
    %vm8949 = vcmask 261120
    %8950 = vst.msk [vmem:[%s7] sm:$0xff] %vm8949, %v8933
    %8951 = vst.msk [vmem:[%s7 + $0x8] sm:$0xff] %vm8949, %v8934
    %8952 = vst.msk [vmem:[%s7 + $0x10] sm:$0xff] %vm8949, %v8935
    %8953 = vst.msk [vmem:[%s7 + $0x18] sm:$0xff] %vm8949, %v8936
    %8954 = vst.msk [vmem:[%s7 + $0x20] sm:$0xff] %vm8949, %v8937
    %8955 = vst.msk [vmem:[%s7 + $0x28] sm:$0xff] %vm8949, %v8938
    %8956 = vst.msk [vmem:[%s7 + $0x30] sm:$0xff] %vm8949, %v8939
    %8957 = vst.msk [vmem:[%s7 + $0x38] sm:$0xff] %vm8949, %v8940
    %8958 = vst.msk [vmem:[%s7 + $0x40] sm:$0xff] %vm8949, %v8941
    %8959 = vst.msk [vmem:[%s7 + $0x48] sm:$0xff] %vm8949, %v8942
    %8960 = vst.msk [vmem:[%s7 + $0x50] sm:$0xff] %vm8949, %v8943
    %8961 = vst.msk [vmem:[%s7 + $0x58] sm:$0xff] %vm8949, %v8944
    %8962 = vst.msk [vmem:[%s7 + $0x60] sm:$0xff] %vm8949, %v8945
    %8963 = vst.msk [vmem:[%s7 + $0x68] sm:$0xff] %vm8949, %v8946
    %8964 = vst.msk [vmem:[%s7 + $0x70] sm:$0xff] %vm8949, %v8947
    %8965 = vst.msk [vmem:[%s7 + $0x78] sm:$0xff] %vm8949, %v8948
  $region37: #{tpu_custom_call.1} parent=0 // pred_fallthru
    _
  // Predicated region
  $region38: #{tpu_custom_call.1} parent=0 // pred_check
    _
  $region39: #{tpu_custom_call.1} parent=0 // pred_check_branch
    %8967 = sbr.rel (0) target = $region41
  $region40: #{tpu_custom_call.1} parent=0 // pred_region
    _
  $region41: #{tpu_custom_call.1} parent=0 // pred_fallthru
    _
  // Predicated region
  $region42: #{tpu_custom_call.1} parent=0 // pred_check
    _
  $region43: #{tpu_custom_call.1} parent=0 // pred_check_branch
    %8969 = sbr.rel (0) target = $region45
  $region44: #{tpu_custom_call.1} parent=0 // pred_region
    _
  $region45: #{tpu_custom_call.1} parent=0 // pred_fallthru
    _

</llo_original>
